<compile_context>
chip_gen: v6e
topology: v6e:2x2x1
jax: 0.10.0
libtpu: 0.0.40
codegen_flags: <defaults>
</compile_context>

<pallas_src>
import functools
import math

import jax
import jax.numpy as jnp
from jax.experimental import pallas as pl
from jax.experimental.pallas import tpu as pltpu


def _vmem():
    return pl.BlockSpec(memory_space=pltpu.MemorySpace.VMEM)


# Stacked per-layer parameter key order (shared by init, wrapper and kernel).
_ENC_KEYS = ["wqkv", "bqkv", "wo", "bo", "ln1_g", "ln1_b",
             "w1", "b1", "w2", "b2", "ln2_g", "ln2_b"]
_DEC_KEYS = ["sa_wqkv", "sa_bqkv", "sa_wo", "sa_bo", "ln1_g", "ln1_b",
             "ca_wq", "ca_bq", "ca_wkv", "ca_bkv", "ca_wo", "ca_bo",
             "ln2_g", "ln2_b",
             "w1", "b1", "w2", "b2", "ln3_g", "ln3_b"]


# ----------------------------- in-kernel helpers -----------------------------

def _mm(a, b):
    return jnp.dot(a, b, preferred_element_type=jnp.float32)


def _layer_norm(x, g, b, eps=1e-5):
    mu = jnp.mean(x, axis=-1, keepdims=True)
    var = jnp.mean(jnp.square(x - mu), axis=-1, keepdims=True)
    return (x - mu) * jax.lax.rsqrt(var + eps) * g + b


def _mha(q, k, v, bias, n_heads):
    """Batch-folded multi-head attention.

    q: [Mq, H]; k, v: [Mk, H]; bias: [Mq, Mk] block-diagonal additive mask
    (0 keep / -1e10 drop, cross-batch entries are -1e10).
    Returns (context [Mq, H], probs [n_heads, Mq, Mk])."""
    H = q.shape[-1]
    hd = H // n_heads
    inv_scale = 1.0 / math.sqrt(hd)
    # Per-head scores (contract on head_dim directly -> no K transpose), then
    # one fused softmax over all heads.
    scores = [
        jax.lax.dot_general(q[:, h * hd:(h + 1) * hd] * inv_scale,
                            k[:, h * hd:(h + 1) * hd],
                            (((1,), (1,)), ((), ())),
                            preferred_element_type=jnp.float32)
        for h in range(n_heads)
    ]
    s = jnp.stack(scores, axis=0) + bias[None]          # [NH, Mq, Mk]
    s = s - jnp.max(s, axis=-1, keepdims=True)
    e = jnp.exp(s)
    p = e * pl.reciprocal(jnp.sum(e, axis=-1, keepdims=True), approx=True)
    ctx = jnp.concatenate(
        [jnp.dot(p[h], v[:, h * hd:(h + 1) * hd],
                 preferred_element_type=jnp.float32)
         for h in range(n_heads)], axis=-1)             # [Mq, H]
    return ctx, p


# ------------------------------ fused kernel ---------------------------------

def _fused_transformer_kernel(*refs, n_layers, n_heads):
    n_enc = len(_ENC_KEYS)
    n_dec = len(_DEC_KEYS)
    xs_ref, xt_ref, eb_ref, tb_ref, cb_ref = refs[:5]
    enc_refs = dict(zip(_ENC_KEYS, refs[5:5 + n_enc]))
    dec_refs = dict(zip(_DEC_KEYS, refs[5 + n_enc:5 + n_enc + n_dec]))
    wt_ref, bt_ref, wm_ref, bm_ref, wol_ref, bol_ref = \
        refs[5 + n_enc + n_dec:5 + n_enc + n_dec + 6]
    topo_ref, mc_ref, ol_ref, attn_ref = refs[-4:]

    H = xs_ref.shape[-1]

    # --------------------------- encoder stack ---------------------------
    xs = xs_ref[...]                    # [B*S, H]
    eb = eb_ref[...]                    # [B*S, B*S]
    for l in range(n_layers):           # static unroll (n_layers is tiny)
        p = {k: enc_refs[k][l] for k in _ENC_KEYS}
        qkv = _mm(xs, p["wqkv"]) + p["bqkv"]           # fused Q,K,V  [B*S, 3H]
        ctx, _ = _mha(qkv[:, :H], qkv[:, H:2 * H], qkv[:, 2 * H:], eb, n_heads)
        xs = _layer_norm(xs + _mm(ctx, p["wo"]) + p["bo"], p["ln1_g"], p["ln1_b"])
        f = jnp.maximum(_mm(xs, p["w1"]) + p["b1"], 0.0)
        xs = _layer_norm(xs + _mm(f, p["w2"]) + p["b2"], p["ln2_g"], p["ln2_b"])

    # --------------------------- decoder stack ---------------------------
    xt = xt_ref[...]                    # [B*T, H]
    tb = tb_ref[...]                    # [B*T, B*T]  (causal + pad, block-diag)
    cb = cb_ref[...]                    # [B*T, B*S]  (src pad, block-diag)
    attn_last = None
    for l in range(n_layers):
        p = {k: dec_refs[k][l] for k in _DEC_KEYS}
        # masked self attention
        qkv = _mm(xt, p["sa_wqkv"]) + p["sa_bqkv"]
        ctx, _ = _mha(qkv[:, :H], qkv[:, H:2 * H], qkv[:, 2 * H:], tb, n_heads)
        xt = _layer_norm(xt + _mm(ctx, p["sa_wo"]) + p["sa_bo"],
                         p["ln1_g"], p["ln1_b"])
        # cross attention (Q from trg, fused K/V from final encoder output)
        q = _mm(xt, p["ca_wq"]) + p["ca_bq"]
        kv = _mm(xs, p["ca_wkv"]) + p["ca_bkv"]
        ctx, probs = _mha(q, kv[:, :H], kv[:, H:], cb, n_heads)
        if l == n_layers - 1:           # only the last layer's probs are used
            attn_last = probs
        xt = _layer_norm(xt + _mm(ctx, p["ca_wo"]) + p["ca_bo"],
                         p["ln2_g"], p["ln2_b"])
        # positionwise feed-forward
        f = jnp.maximum(_mm(xt, p["w1"]) + p["b1"], 0.0)
        xt = _layer_norm(xt + _mm(f, p["w2"]) + p["b2"], p["ln3_g"], p["ln3_b"])

    # ----------------------------- heads ---------------------------------
    attn_ref[...] = attn_last                               # [NH, B*T, B*S]
    topo_ref[...] = _mm(xt, wt_ref[...]) + bt_ref[...]      # [B*T, topo_dim]
    mc_ref[...] = _mm(xt, wm_ref[...]) + bm_ref[...]        # [B*T, mc_dim]
    ol_ref[...] = _mm(xt, wol_ref[...]) + bol_ref[...]      # [B*T, out_dim]


# ------------------------------ JAX wrapper -----------------------------------

def _block_diag_bias(keep):
    """keep: [B, Tq, Tk] bool keep-mask -> [B*Tq, B*Tk] additive bias where
    cross-batch and masked entries are -1e10 (exp underflows to exactly 0)."""
    B, Tq, Tk = keep.shape
    same_batch = jnp.eye(B, dtype=bool)[:, None, :, None]        # [B,1,B,1]
    full = keep[:, :, None, :] & same_batch                      # [B,Tq,B,Tk]
    full = full.reshape(B * Tq, B * Tk)
    return jnp.where(full, 0.0, -1e10).astype(jnp.float32)


def transformer_forward(params, src, trg, cfg):
    B, S = src.shape
    T = trg.shape[1]
    H = cfg["hid_dim"]
    NH = cfg["n_heads"]
    n_layers = cfg["n_layers"]
    ep, dp = params["encoder"], params["decoder"]

    # ----- masks -> block-diagonal additive biases (built once, in XLA) -----
    src_keep = (src != cfg["src_pad_idx"])                       # [B, S]
    trg_keep = (trg != cfg["trg_pad_idx"])                       # [B, T]
    causal = jnp.tril(jnp.ones((T, T), dtype=bool))
    eb = _block_diag_bias(jnp.broadcast_to(src_keep[:, None, :], (B, S, S)))
    tb = _block_diag_bias(trg_keep[:, None, :] & causal[None])
    cb = _block_diag_bias(jnp.broadcast_to(src_keep[:, None, :], (B, T, S)))

    # ----- embeddings (gathers stay in XLA), dropout == identity -----
    xs = jnp.concatenate([ep["mc_emb"][src[:, 0:1]],
                          ep["num_emb"][src[:, 1:2]],
                          ep["vocab_emb"][src[:, 2:]]], axis=1)
    xs = xs * math.sqrt(H) + ep["pos_emb"][jnp.arange(S)][None]
    if T == 1:
        tok = dp["vocab_emb"][trg[:, 0:1]]
    elif T == 2:
        tok = jnp.concatenate([dp["vocab_emb"][trg[:, 0:1]],
                               dp["topo_emb"][trg[:, 1:2]]], axis=1)
    elif T == 3:
        tok = jnp.concatenate([dp["vocab_emb"][trg[:, 0:1]],
                               dp["topo_emb"][trg[:, 1:2]],
                               dp["mc_emb"][trg[:, 2:3]]], axis=1)
    else:
        tok = jnp.concatenate([dp["vocab_emb"][trg[:, 0:1]],
                               dp["topo_emb"][trg[:, 1:2]],
                               dp["mc_emb"][trg[:, 2:3]],
                               dp["vocab_emb"][trg[:, 3:]]], axis=1)
    xt = tok * math.sqrt(H) + dp["pos_emb"][jnp.arange(T)][None]

    xs2 = xs.reshape(B * S, H).astype(jnp.float32)
    xt2 = xt.reshape(B * T, H).astype(jnp.float32)

    # ----- single fused pallas_call for the whole forward pass -----
    inputs = [xs2, xt2, eb, tb, cb]
    inputs += [ep["layers"][k] for k in _ENC_KEYS]
    inputs += [dp["layers"][k] for k in _DEC_KEYS]
    inputs += [dp["fc_topo"]["w"], dp["fc_topo"]["b"],
               dp["fc_mc"]["w"], dp["fc_mc"]["b"],
               dp["fc_ol"]["w"], dp["fc_ol"]["b"]]

    topo_dim = dp["fc_topo"]["w"].shape[1]
    mc_dim = dp["fc_mc"]["w"].shape[1]
    out_dim = dp["fc_ol"]["w"].shape[1]

    topo_full, mc_full, ol_full, attn_raw = pl.pallas_call(
        functools.partial(_fused_transformer_kernel,
                          n_layers=n_layers, n_heads=NH),
        out_shape=(jax.ShapeDtypeStruct((B * T, topo_dim), jnp.float32),
                   jax.ShapeDtypeStruct((B * T, mc_dim), jnp.float32),
                   jax.ShapeDtypeStruct((B * T, out_dim), jnp.float32),
                   jax.ShapeDtypeStruct((NH, B * T, B * S), jnp.float32)),
        in_specs=[_vmem()] * len(inputs),
        out_specs=(_vmem(), _vmem(), _vmem(), _vmem()),
    )(*inputs)

    # Extract the per-batch diagonal blocks of the cross-attention probs
    # (tiny, static slices; cross-batch entries are exactly zero anyway).
    attention = jnp.stack(
        [attn_raw[:, b * T:(b + 1) * T, b * S:(b + 1) * S] for b in range(B)],
        axis=0)                                                   # [B,NH,T,S]

    output = {}
    output["output_topo"] = topo_full.reshape(B, T, topo_dim)[:, 0]
    if T >= 2:
        output["output_mc"] = mc_full.reshape(B, T, mc_dim)[:, 1]
    if T >= 3:
        output["output_ol"] = ol_full.reshape(B, T, out_dim)[:, 2:]
    output["attention"] = attention
    return output


# ------------------------------ parameter init ---------------------------------

def xavier_uniform(key, shape):
    lim = math.sqrt(6.0 / (shape[0] + shape[1]))
    return jax.random.uniform(key, shape, jnp.float32, -lim, lim)


def init_linear(key, in_dim, out_dim):
    return {"w": xavier_uniform(key, (in_dim, out_dim)),
            "b": jnp.zeros((1, out_dim), jnp.float32)}


def _ln_params(hid_dim):
    return jnp.ones((1, hid_dim), jnp.float32), jnp.zeros((1, hid_dim), jnp.float32)


def init_enc_layer(key, hid_dim, pf_dim):
    k = jax.random.split(key, 6)
    wq = xavier_uniform(k[0], (hid_dim, hid_dim))
    wk = xavier_uniform(k[1], (hid_dim, hid_dim))
    wv = xavier_uniform(k[2], (hid_dim, hid_dim))
    g1, b1 = _ln_params(hid_dim)
    g2, b2 = _ln_params(hid_dim)
    return {"wqkv": jnp.concatenate([wq, wk, wv], axis=1),
            "bqkv": jnp.zeros((1, 3 * hid_dim), jnp.float32),
            "wo": xavier_uniform(k[3], (hid_dim, hid_dim)),
            "bo": jnp.zeros((1, hid_dim), jnp.float32),
            "ln1_g": g1, "ln1_b": b1,
            "w1": xavier_uniform(k[4], (hid_dim, pf_dim)),
            "b1": jnp.zeros((1, pf_dim), jnp.float32),
            "w2": xavier_uniform(k[5], (pf_dim, hid_dim)),
            "b2": jnp.zeros((1, hid_dim), jnp.float32),
            "ln2_g": g2, "ln2_b": b2}


def init_dec_layer(key, hid_dim, pf_dim):
    k = jax.random.split(key, 10)
    sa_wq = xavier_uniform(k[0], (hid_dim, hid_dim))
    sa_wk = xavier_uniform(k[1], (hid_dim, hid_dim))
    sa_wv = xavier_uniform(k[2], (hid_dim, hid_dim))
    ca_wk = xavier_uniform(k[5], (hid_dim, hid_dim))
    ca_wv = xavier_uniform(k[6], (hid_dim, hid_dim))
    g1, b1 = _ln_params(hid_dim)
    g2, b2 = _ln_params(hid_dim)
    g3, b3 = _ln_params(hid_dim)
    return {"sa_wqkv": jnp.concatenate([sa_wq, sa_wk, sa_wv], axis=1),
            "sa_bqkv": jnp.zeros((1, 3 * hid_dim), jnp.float32),
            "sa_wo": xavier_uniform(k[3], (hid_dim, hid_dim)),
            "sa_bo": jnp.zeros((1, hid_dim), jnp.float32),
            "ln1_g": g1, "ln1_b": b1,
            "ca_wq": xavier_uniform(k[4], (hid_dim, hid_dim)),
            "ca_bq": jnp.zeros((1, hid_dim), jnp.float32),
            "ca_wkv": jnp.concatenate([ca_wk, ca_wv], axis=1),
            "ca_bkv": jnp.zeros((1, 2 * hid_dim), jnp.float32),
            "ca_wo": xavier_uniform(k[7], (hid_dim, hid_dim)),
            "ca_bo": jnp.zeros((1, hid_dim), jnp.float32),
            "ln2_g": g2, "ln2_b": b2,
            "w1": xavier_uniform(k[8], (hid_dim, pf_dim)),
            "b1": jnp.zeros((1, pf_dim), jnp.float32),
            "w2": xavier_uniform(k[9], (pf_dim, hid_dim)),
            "b2": jnp.zeros((1, hid_dim), jnp.float32),
            "ln3_g": g3, "ln3_b": b3}


def _stack_layers(layers):
    return {k: jnp.stack([lp[k] for lp in layers], axis=0) for k in layers[0]}


def init_params(key, cfg):
    H, PF = cfg["hid_dim"], cfg["pf_dim"]
    ke, kd = jax.random.split(key, 2)
    ek = jax.random.split(ke, 4 + cfg["n_layers"])
    dk = jax.random.split(kd, 7 + cfg["n_layers"])
    encoder = {
        "mc_emb": xavier_uniform(ek[0], (cfg["mc_dim"], H)),
        "num_emb": xavier_uniform(ek[1], (cfg["max_conn"], H)),
        "vocab_emb": xavier_uniform(ek[2], (cfg["input_dim"], H)),
        "pos_emb": xavier_uniform(ek[3], (cfg["max_len"], H)),
        "layers": _stack_layers(
            [init_enc_layer(ek[4 + i], H, PF) for i in range(cfg["n_layers"])]),
    }
    decoder = {
        "topo_emb": xavier_uniform(dk[0], (cfg["topo_dim"], H)),
        "mc_emb": xavier_uniform(dk[1], (cfg["mc_dim"], H)),
        "vocab_emb": xavier_uniform(dk[2], (cfg["output_dim"], H)),
        "pos_emb": xavier_uniform(dk[3], (cfg["max_len"], H)),
        "fc_topo": init_linear(dk[4], H, cfg["topo_dim"]),
        "fc_mc": init_linear(dk[5], H, cfg["mc_dim"]),
        "fc_ol": init_linear(dk[6], H, cfg["output_dim"]),
        "layers": _stack_layers(
            [init_dec_layer(dk[7 + i], H, PF) for i in range(cfg["n_layers"])]),
    }
    return {"encoder": encoder, "decoder": decoder}


# ------------------------------------ main -------------------------------------

if __name__ == "__main__":
    cfg = dict(input_dim=20, output_dim=24, topo_dim=10, mc_dim=8,
               hid_dim=32, n_layers=2, n_heads=4, pf_dim=64,
               max_len=16, max_conn=10, src_pad_idx=0, trg_pad_idx=0)

    key = jax.random.PRNGKey(0)
    kp, ks, kt = jax.random.split(key, 3)
    params = init_params(kp, cfg)

    B, src_len, trg_len = 2, 8, 6
    ks0, ks1, ks2 = jax.random.split(ks, 3)
    src = jnp.concatenate(
        [jax.random.randint(ks0, (B, 1), 1, cfg["mc_dim"]),
         jax.random.randint(ks1, (B, 1), 1, cfg["max_conn"]),
         jax.random.randint(ks2, (B, src_len - 2), 1, cfg["input_dim"])],
        axis=1).astype(jnp.int32)
    kt0, kt1, kt2, kt3 = jax.random.split(kt, 4)
    trg = jnp.concatenate(
        [jax.random.randint(kt0, (B, 1), 1, cfg["output_dim"]),
         jax.random.randint(kt1, (B, 1), 1, cfg["topo_dim"]),
         jax.random.randint(kt2, (B, 1), 1, cfg["mc_dim"]),
         jax.random.randint(kt3, (B, trg_len - 3), 1, cfg["output_dim"])],
        axis=1).astype(jnp.int32)

    fwd = jax.jit(functools.partial(transformer_forward, cfg=cfg))
    out = fwd(params, src, trg)
    out = jax.block_until_ready(out)

    assert out["output_topo"].shape == (B, cfg["topo_dim"])
    assert out["output_mc"].shape == (B, cfg["mc_dim"])
    assert out["output_ol"].shape == (B, trg_len - 2, cfg["output_dim"])
    assert out["attention"].shape == (B, cfg["n_heads"], trg_len, src_len)
    assert all(bool(jnp.all(jnp.isfinite(v))) for v in out.values())
    print("KERNEL_OK")
</pallas_src>

<mosaic_0001>
module attributes {stable_mosaic.version = 11 : i64} {
  func.func @_fused_transformer_kernel(%arg0: memref<16x32xf32, #tpu.memory_space<vmem>>, %arg1: memref<12x32xf32, #tpu.memory_space<vmem>>, %arg2: memref<16x16xf32, #tpu.memory_space<vmem>>, %arg3: memref<12x12xf32, #tpu.memory_space<vmem>>, %arg4: memref<12x16xf32, #tpu.memory_space<vmem>>, %arg5: memref<2x32x96xf32, #tpu.memory_space<vmem>>, %arg6: memref<2x1x96xf32, #tpu.memory_space<vmem>>, %arg7: memref<2x32x32xf32, #tpu.memory_space<vmem>>, %arg8: memref<2x1x32xf32, #tpu.memory_space<vmem>>, %arg9: memref<2x1x32xf32, #tpu.memory_space<vmem>>, %arg10: memref<2x1x32xf32, #tpu.memory_space<vmem>>, %arg11: memref<2x32x64xf32, #tpu.memory_space<vmem>>, %arg12: memref<2x1x64xf32, #tpu.memory_space<vmem>>, %arg13: memref<2x64x32xf32, #tpu.memory_space<vmem>>, %arg14: memref<2x1x32xf32, #tpu.memory_space<vmem>>, %arg15: memref<2x1x32xf32, #tpu.memory_space<vmem>>, %arg16: memref<2x1x32xf32, #tpu.memory_space<vmem>>, %arg17: memref<2x32x96xf32, #tpu.memory_space<vmem>>, %arg18: memref<2x1x96xf32, #tpu.memory_space<vmem>>, %arg19: memref<2x32x32xf32, #tpu.memory_space<vmem>>, %arg20: memref<2x1x32xf32, #tpu.memory_space<vmem>>, %arg21: memref<2x1x32xf32, #tpu.memory_space<vmem>>, %arg22: memref<2x1x32xf32, #tpu.memory_space<vmem>>, %arg23: memref<2x32x32xf32, #tpu.memory_space<vmem>>, %arg24: memref<2x1x32xf32, #tpu.memory_space<vmem>>, %arg25: memref<2x32x64xf32, #tpu.memory_space<vmem>>, %arg26: memref<2x1x64xf32, #tpu.memory_space<vmem>>, %arg27: memref<2x32x32xf32, #tpu.memory_space<vmem>>, %arg28: memref<2x1x32xf32, #tpu.memory_space<vmem>>, %arg29: memref<2x1x32xf32, #tpu.memory_space<vmem>>, %arg30: memref<2x1x32xf32, #tpu.memory_space<vmem>>, %arg31: memref<2x32x64xf32, #tpu.memory_space<vmem>>, %arg32: memref<2x1x64xf32, #tpu.memory_space<vmem>>, %arg33: memref<2x64x32xf32, #tpu.memory_space<vmem>>, %arg34: memref<2x1x32xf32, #tpu.memory_space<vmem>>, %arg35: memref<2x1x32xf32, #tpu.memory_space<vmem>>, %arg36: memref<2x1x32xf32, #tpu.memory_space<vmem>>, %arg37: memref<32x10xf32, #tpu.memory_space<vmem>>, %arg38: memref<1x10xf32, #tpu.memory_space<vmem>>, %arg39: memref<32x8xf32, #tpu.memory_space<vmem>>, %arg40: memref<1x8xf32, #tpu.memory_space<vmem>>, %arg41: memref<32x24xf32, #tpu.memory_space<vmem>>, %arg42: memref<1x24xf32, #tpu.memory_space<vmem>>, %arg43: memref<12x10xf32, #tpu.memory_space<vmem>>, %arg44: memref<12x8xf32, #tpu.memory_space<vmem>>, %arg45: memref<12x24xf32, #tpu.memory_space<vmem>>, %arg46: memref<4x12x16xf32, #tpu.memory_space<vmem>>) attributes {dimension_semantics = [], scalar_prefetch = 0 : i64, scratch_operands = 0 : i64, tpu.core_type = #tpu.core_type<tc>} {
    %c0 = arith.constant 0 : index
    %c0_0 = arith.constant 0 : index
    %0 = vector.load %arg0[%c0, %c0_0] : memref<16x32xf32, #tpu.memory_space<vmem>>, vector<16x32xf32>
    %c0_1 = arith.constant 0 : index
    %c0_2 = arith.constant 0 : index
    %1 = vector.load %arg2[%c0_1, %c0_2] : memref<16x16xf32, #tpu.memory_space<vmem>>, vector<16x16xf32>
    %c0_3 = arith.constant 0 : index
    %c0_4 = arith.constant 0 : index
    %c0_5 = arith.constant 0 : index
    %2 = vector.load %arg5[%c0_3, %c0_4, %c0_5] : memref<2x32x96xf32, #tpu.memory_space<vmem>>, vector<1x32x96xf32>
    %3 = vector.shape_cast %2 : vector<1x32x96xf32> to vector<32x96xf32>
    %c0_6 = arith.constant 0 : index
    %c0_7 = arith.constant 0 : index
    %c0_8 = arith.constant 0 : index
    %4 = vector.load %arg6[%c0_6, %c0_7, %c0_8] : memref<2x1x96xf32, #tpu.memory_space<vmem>>, vector<1x1x96xf32>
    %5 = vector.shape_cast %4 : vector<1x1x96xf32> to vector<1x96xf32>
    %c0_9 = arith.constant 0 : index
    %c0_10 = arith.constant 0 : index
    %c0_11 = arith.constant 0 : index
    %6 = vector.load %arg7[%c0_9, %c0_10, %c0_11] : memref<2x32x32xf32, #tpu.memory_space<vmem>>, vector<1x32x32xf32>
    %7 = vector.shape_cast %6 : vector<1x32x32xf32> to vector<32x32xf32>
    %c0_12 = arith.constant 0 : index
    %c0_13 = arith.constant 0 : index
    %c0_14 = arith.constant 0 : index
    %8 = vector.load %arg8[%c0_12, %c0_13, %c0_14] : memref<2x1x32xf32, #tpu.memory_space<vmem>>, vector<1x1x32xf32>
    %9 = vector.shape_cast %8 : vector<1x1x32xf32> to vector<1x32xf32>
    %c0_15 = arith.constant 0 : index
    %c0_16 = arith.constant 0 : index
    %c0_17 = arith.constant 0 : index
    %10 = vector.load %arg9[%c0_15, %c0_16, %c0_17] : memref<2x1x32xf32, #tpu.memory_space<vmem>>, vector<1x1x32xf32>
    %11 = vector.shape_cast %10 : vector<1x1x32xf32> to vector<1x32xf32>
    %c0_18 = arith.constant 0 : index
    %c0_19 = arith.constant 0 : index
    %c0_20 = arith.constant 0 : index
    %12 = vector.load %arg10[%c0_18, %c0_19, %c0_20] : memref<2x1x32xf32, #tpu.memory_space<vmem>>, vector<1x1x32xf32>
    %13 = vector.shape_cast %12 : vector<1x1x32xf32> to vector<1x32xf32>
    %c0_21 = arith.constant 0 : index
    %c0_22 = arith.constant 0 : index
    %c0_23 = arith.constant 0 : index
    %14 = vector.load %arg11[%c0_21, %c0_22, %c0_23] : memref<2x32x64xf32, #tpu.memory_space<vmem>>, vector<1x32x64xf32>
    %15 = vector.shape_cast %14 : vector<1x32x64xf32> to vector<32x64xf32>
    %c0_24 = arith.constant 0 : index
    %c0_25 = arith.constant 0 : index
    %c0_26 = arith.constant 0 : index
    %16 = vector.load %arg12[%c0_24, %c0_25, %c0_26] : memref<2x1x64xf32, #tpu.memory_space<vmem>>, vector<1x1x64xf32>
    %17 = vector.shape_cast %16 : vector<1x1x64xf32> to vector<1x64xf32>
    %c0_27 = arith.constant 0 : index
    %c0_28 = arith.constant 0 : index
    %c0_29 = arith.constant 0 : index
    %18 = vector.load %arg13[%c0_27, %c0_28, %c0_29] : memref<2x64x32xf32, #tpu.memory_space<vmem>>, vector<1x64x32xf32>
    %19 = vector.shape_cast %18 : vector<1x64x32xf32> to vector<64x32xf32>
    %c0_30 = arith.constant 0 : index
    %c0_31 = arith.constant 0 : index
    %c0_32 = arith.constant 0 : index
    %20 = vector.load %arg14[%c0_30, %c0_31, %c0_32] : memref<2x1x32xf32, #tpu.memory_space<vmem>>, vector<1x1x32xf32>
    %21 = vector.shape_cast %20 : vector<1x1x32xf32> to vector<1x32xf32>
    %c0_33 = arith.constant 0 : index
    %c0_34 = arith.constant 0 : index
    %c0_35 = arith.constant 0 : index
    %22 = vector.load %arg15[%c0_33, %c0_34, %c0_35] : memref<2x1x32xf32, #tpu.memory_space<vmem>>, vector<1x1x32xf32>
    %23 = vector.shape_cast %22 : vector<1x1x32xf32> to vector<1x32xf32>
    %c0_36 = arith.constant 0 : index
    %c0_37 = arith.constant 0 : index
    %c0_38 = arith.constant 0 : index
    %24 = vector.load %arg16[%c0_36, %c0_37, %c0_38] : memref<2x1x32xf32, #tpu.memory_space<vmem>>, vector<1x1x32xf32>
    %25 = vector.shape_cast %24 : vector<1x1x32xf32> to vector<1x32xf32>
    %cst = arith.constant dense<0.000000e+00> : vector<16x96xf32>
    %26 = tpu.matmul %0, %3, %cst {dimension_numbers = #tpu.dot_dimension_numbers<[1], [0], [0], [1], [0, 0, 1, 1], [], []>} : vector<16x32xf32>, vector<32x96xf32>, vector<16x96xf32> -> vector<16x96xf32>
    %27 = vector.broadcast %5 : vector<1x96xf32> to vector<16x96xf32>
    %28 = arith.addf %26, %27 : vector<16x96xf32>
    %29 = vector.extract_strided_slice %28 {offsets = [0, 0], sizes = [16, 32], strides = [1, 1]} : vector<16x96xf32> to vector<16x32xf32>
    %30 = vector.extract_strided_slice %28 {offsets = [0, 32], sizes = [16, 32], strides = [1, 1]} : vector<16x96xf32> to vector<16x32xf32>
    %31 = vector.extract_strided_slice %28 {offsets = [0, 64], sizes = [16, 32], strides = [1, 1]} : vector<16x96xf32> to vector<16x32xf32>
    %32 = vector.extract_strided_slice %29 {offsets = [0, 0], sizes = [16, 8], strides = [1, 1]} : vector<16x32xf32> to vector<16x8xf32>
    %cst_39 = arith.constant 0.353553385 : f32
    %33 = vector.broadcast %cst_39 : f32 to vector<16x8xf32>
    %34 = arith.mulf %32, %33 : vector<16x8xf32>
    %35 = vector.extract_strided_slice %30 {offsets = [0, 0], sizes = [16, 8], strides = [1, 1]} : vector<16x32xf32> to vector<16x8xf32>
    %cst_40 = arith.constant dense<0.000000e+00> : vector<16x16xf32>
    %36 = tpu.matmul %34, %35, %cst_40 {dimension_numbers = #tpu.dot_dimension_numbers<[1], [1], [0], [0], [0, 0, 1, 0], [], []>} : vector<16x8xf32>, vector<16x8xf32>, vector<16x16xf32> -> vector<16x16xf32>
    %37 = vector.extract_strided_slice %29 {offsets = [0, 8], sizes = [16, 8], strides = [1, 1]} : vector<16x32xf32> to vector<16x8xf32>
    %cst_41 = arith.constant 0.353553385 : f32
    %38 = vector.broadcast %cst_41 : f32 to vector<16x8xf32>
    %39 = arith.mulf %37, %38 : vector<16x8xf32>
    %40 = vector.extract_strided_slice %30 {offsets = [0, 8], sizes = [16, 8], strides = [1, 1]} : vector<16x32xf32> to vector<16x8xf32>
    %cst_42 = arith.constant dense<0.000000e+00> : vector<16x16xf32>
    %41 = tpu.matmul %39, %40, %cst_42 {dimension_numbers = #tpu.dot_dimension_numbers<[1], [1], [0], [0], [0, 0, 1, 0], [], []>} : vector<16x8xf32>, vector<16x8xf32>, vector<16x16xf32> -> vector<16x16xf32>
    %42 = vector.extract_strided_slice %29 {offsets = [0, 16], sizes = [16, 8], strides = [1, 1]} : vector<16x32xf32> to vector<16x8xf32>
    %cst_43 = arith.constant 0.353553385 : f32
    %43 = vector.broadcast %cst_43 : f32 to vector<16x8xf32>
    %44 = arith.mulf %42, %43 : vector<16x8xf32>
    %45 = vector.extract_strided_slice %30 {offsets = [0, 16], sizes = [16, 8], strides = [1, 1]} : vector<16x32xf32> to vector<16x8xf32>
    %cst_44 = arith.constant dense<0.000000e+00> : vector<16x16xf32>
    %46 = tpu.matmul %44, %45, %cst_44 {dimension_numbers = #tpu.dot_dimension_numbers<[1], [1], [0], [0], [0, 0, 1, 0], [], []>} : vector<16x8xf32>, vector<16x8xf32>, vector<16x16xf32> -> vector<16x16xf32>
    %47 = vector.extract_strided_slice %29 {offsets = [0, 24], sizes = [16, 8], strides = [1, 1]} : vector<16x32xf32> to vector<16x8xf32>
    %cst_45 = arith.constant 0.353553385 : f32
    %48 = vector.broadcast %cst_45 : f32 to vector<16x8xf32>
    %49 = arith.mulf %47, %48 : vector<16x8xf32>
    %50 = vector.extract_strided_slice %30 {offsets = [0, 24], sizes = [16, 8], strides = [1, 1]} : vector<16x32xf32> to vector<16x8xf32>
    %cst_46 = arith.constant dense<0.000000e+00> : vector<16x16xf32>
    %51 = tpu.matmul %49, %50, %cst_46 {dimension_numbers = #tpu.dot_dimension_numbers<[1], [1], [0], [0], [0, 0, 1, 0], [], []>} : vector<16x8xf32>, vector<16x8xf32>, vector<16x16xf32> -> vector<16x16xf32>
    %52 = vector.shape_cast %36 : vector<16x16xf32> to vector<1x16x16xf32>
    %53 = vector.shape_cast %41 : vector<16x16xf32> to vector<1x16x16xf32>
    %54 = vector.shape_cast %46 : vector<16x16xf32> to vector<1x16x16xf32>
    %55 = vector.shape_cast %51 : vector<16x16xf32> to vector<1x16x16xf32>
    %56 = tpu.concatenate %52, %53, %54, %55 in 0 : vector<1x16x16xf32>, vector<1x16x16xf32>, vector<1x16x16xf32>, vector<1x16x16xf32> -> vector<4x16x16xf32>
    %57 = vector.shape_cast %1 : vector<16x16xf32> to vector<1x16x16xf32>
    %58 = vector.broadcast %57 : vector<1x16x16xf32> to vector<4x16x16xf32>
    %59 = arith.addf %56, %58 : vector<4x16x16xf32>
    %cst_47 = arith.constant dense<0xFF800000> : vector<4x16xf32>
    %60 = vector.multi_reduction <maximumf>, %59, %cst_47 [2] : vector<4x16x16xf32> to vector<4x16xf32>
    %61 = vector.shape_cast %60 : vector<4x16xf32> to vector<4x16x1xf32>
    %62 = vector.broadcast %61 : vector<4x16x1xf32> to vector<4x16x16xf32>
    %63 = arith.subf %59, %62 : vector<4x16x16xf32>
    %64 = math.exp %63 : vector<4x16x16xf32>
    %cst_48 = arith.constant dense<0.000000e+00> : vector<4x16xf32>
    %65 = vector.multi_reduction <add>, %64, %cst_48 [2] : vector<4x16x16xf32> to vector<4x16xf32>
    %66 = vector.shape_cast %65 : vector<4x16xf32> to vector<4x16x1xf32>
    %67 = tpu.reciprocal %66 {approx = true} : vector<4x16x1xf32> -> vector<4x16x1xf32>
    %68 = vector.broadcast %67 : vector<4x16x1xf32> to vector<4x16x16xf32>
    %69 = arith.mulf %64, %68 : vector<4x16x16xf32>
    %70 = vector.extract_strided_slice %69 {offsets = [0, 0, 0], sizes = [1, 16, 16], strides = [1, 1, 1]} : vector<4x16x16xf32> to vector<1x16x16xf32>
    %71 = vector.shape_cast %70 : vector<1x16x16xf32> to vector<16x16xf32>
    %72 = vector.extract_strided_slice %31 {offsets = [0, 0], sizes = [16, 8], strides = [1, 1]} : vector<16x32xf32> to vector<16x8xf32>
    %cst_49 = arith.constant dense<0.000000e+00> : vector<16x8xf32>
    %73 = tpu.matmul %71, %72, %cst_49 {dimension_numbers = #tpu.dot_dimension_numbers<[1], [0], [0], [1], [0, 0, 1, 1], [], []>} : vector<16x16xf32>, vector<16x8xf32>, vector<16x8xf32> -> vector<16x8xf32>
    %74 = vector.extract_strided_slice %69 {offsets = [1, 0, 0], sizes = [1, 16, 16], strides = [1, 1, 1]} : vector<4x16x16xf32> to vector<1x16x16xf32>
    %75 = vector.shape_cast %74 : vector<1x16x16xf32> to vector<16x16xf32>
    %76 = vector.extract_strided_slice %31 {offsets = [0, 8], sizes = [16, 8], strides = [1, 1]} : vector<16x32xf32> to vector<16x8xf32>
    %cst_50 = arith.constant dense<0.000000e+00> : vector<16x8xf32>
    %77 = tpu.matmul %75, %76, %cst_50 {dimension_numbers = #tpu.dot_dimension_numbers<[1], [0], [0], [1], [0, 0, 1, 1], [], []>} : vector<16x16xf32>, vector<16x8xf32>, vector<16x8xf32> -> vector<16x8xf32>
    %78 = vector.extract_strided_slice %69 {offsets = [2, 0, 0], sizes = [1, 16, 16], strides = [1, 1, 1]} : vector<4x16x16xf32> to vector<1x16x16xf32>
    %79 = vector.shape_cast %78 : vector<1x16x16xf32> to vector<16x16xf32>
    %80 = vector.extract_strided_slice %31 {offsets = [0, 16], sizes = [16, 8], strides = [1, 1]} : vector<16x32xf32> to vector<16x8xf32>
    %cst_51 = arith.constant dense<0.000000e+00> : vector<16x8xf32>
    %81 = tpu.matmul %79, %80, %cst_51 {dimension_numbers = #tpu.dot_dimension_numbers<[1], [0], [0], [1], [0, 0, 1, 1], [], []>} : vector<16x16xf32>, vector<16x8xf32>, vector<16x8xf32> -> vector<16x8xf32>
    %82 = vector.extract_strided_slice %69 {offsets = [3, 0, 0], sizes = [1, 16, 16], strides = [1, 1, 1]} : vector<4x16x16xf32> to vector<1x16x16xf32>
    %83 = vector.shape_cast %82 : vector<1x16x16xf32> to vector<16x16xf32>
    %84 = vector.extract_strided_slice %31 {offsets = [0, 24], sizes = [16, 8], strides = [1, 1]} : vector<16x32xf32> to vector<16x8xf32>
    %cst_52 = arith.constant dense<0.000000e+00> : vector<16x8xf32>
    %85 = tpu.matmul %83, %84, %cst_52 {dimension_numbers = #tpu.dot_dimension_numbers<[1], [0], [0], [1], [0, 0, 1, 1], [], []>} : vector<16x16xf32>, vector<16x8xf32>, vector<16x8xf32> -> vector<16x8xf32>
    %86 = tpu.concatenate %73, %77, %81, %85 in 1 : vector<16x8xf32>, vector<16x8xf32>, vector<16x8xf32>, vector<16x8xf32> -> vector<16x32xf32>
    %cst_53 = arith.constant dense<0.000000e+00> : vector<16x32xf32>
    %87 = tpu.matmul %86, %7, %cst_53 {dimension_numbers = #tpu.dot_dimension_numbers<[1], [0], [0], [1], [0, 0, 1, 1], [], []>} : vector<16x32xf32>, vector<32x32xf32>, vector<16x32xf32> -> vector<16x32xf32>
    %88 = arith.addf %0, %87 : vector<16x32xf32>
    %89 = vector.broadcast %9 : vector<1x32xf32> to vector<16x32xf32>
    %90 = arith.addf %88, %89 : vector<16x32xf32>
    %cst_54 = arith.constant dense<0.000000e+00> : vector<16xf32>
    %91 = vector.multi_reduction <add>, %90, %cst_54 [1] : vector<16x32xf32> to vector<16xf32>
    %92 = vector.shape_cast %91 : vector<16xf32> to vector<16x1xf32>
    %cst_55 = arith.constant 3.200000e+01 : f32
    %93 = vector.broadcast %cst_55 : f32 to vector<16x1xf32>
    %94 = arith.divf %92, %93 : vector<16x1xf32>
    %95 = vector.broadcast %94 : vector<16x1xf32> to vector<16x32xf32>
    %96 = arith.subf %90, %95 : vector<16x32xf32>
    %97 = arith.mulf %96, %96 : vector<16x32xf32>
    %cst_56 = arith.constant dense<0.000000e+00> : vector<16xf32>
    %98 = vector.multi_reduction <add>, %97, %cst_56 [1] : vector<16x32xf32> to vector<16xf32>
    %99 = vector.shape_cast %98 : vector<16xf32> to vector<16x1xf32>
    %cst_57 = arith.constant 3.200000e+01 : f32
    %100 = vector.broadcast %cst_57 : f32 to vector<16x1xf32>
    %101 = arith.divf %99, %100 : vector<16x1xf32>
    %102 = vector.broadcast %94 : vector<16x1xf32> to vector<16x32xf32>
    %103 = arith.subf %90, %102 : vector<16x32xf32>
    %cst_58 = arith.constant 9.99999974E-6 : f32
    %104 = vector.broadcast %cst_58 : f32 to vector<16x1xf32>
    %105 = arith.addf %101, %104 : vector<16x1xf32>
    %106 = math.rsqrt %105 : vector<16x1xf32>
    %107 = vector.broadcast %106 : vector<16x1xf32> to vector<16x32xf32>
    %108 = arith.mulf %103, %107 : vector<16x32xf32>
    %109 = vector.broadcast %11 : vector<1x32xf32> to vector<16x32xf32>
    %110 = arith.mulf %108, %109 : vector<16x32xf32>
    %111 = vector.broadcast %13 : vector<1x32xf32> to vector<16x32xf32>
    %112 = arith.addf %110, %111 : vector<16x32xf32>
    %cst_59 = arith.constant dense<0.000000e+00> : vector<16x64xf32>
    %113 = tpu.matmul %112, %15, %cst_59 {dimension_numbers = #tpu.dot_dimension_numbers<[1], [0], [0], [1], [0, 0, 1, 1], [], []>} : vector<16x32xf32>, vector<32x64xf32>, vector<16x64xf32> -> vector<16x64xf32>
    %114 = vector.broadcast %17 : vector<1x64xf32> to vector<16x64xf32>
    %115 = arith.addf %113, %114 : vector<16x64xf32>
    %cst_60 = arith.constant 0.000000e+00 : f32
    %116 = vector.broadcast %cst_60 : f32 to vector<16x64xf32>
    %117 = arith.maximumf %115, %116 : vector<16x64xf32>
    %cst_61 = arith.constant dense<0.000000e+00> : vector<16x32xf32>
    %118 = tpu.matmul %117, %19, %cst_61 {dimension_numbers = #tpu.dot_dimension_numbers<[1], [0], [0], [1], [0, 0, 1, 1], [], []>} : vector<16x64xf32>, vector<64x32xf32>, vector<16x32xf32> -> vector<16x32xf32>
    %119 = arith.addf %112, %118 : vector<16x32xf32>
    %120 = vector.broadcast %21 : vector<1x32xf32> to vector<16x32xf32>
    %121 = arith.addf %119, %120 : vector<16x32xf32>
    %cst_62 = arith.constant dense<0.000000e+00> : vector<16xf32>
    %122 = vector.multi_reduction <add>, %121, %cst_62 [1] : vector<16x32xf32> to vector<16xf32>
    %123 = vector.shape_cast %122 : vector<16xf32> to vector<16x1xf32>
    %cst_63 = arith.constant 3.200000e+01 : f32
    %124 = vector.broadcast %cst_63 : f32 to vector<16x1xf32>
    %125 = arith.divf %123, %124 : vector<16x1xf32>
    %126 = vector.broadcast %125 : vector<16x1xf32> to vector<16x32xf32>
    %127 = arith.subf %121, %126 : vector<16x32xf32>
    %128 = arith.mulf %127, %127 : vector<16x32xf32>
    %cst_64 = arith.constant dense<0.000000e+00> : vector<16xf32>
    %129 = vector.multi_reduction <add>, %128, %cst_64 [1] : vector<16x32xf32> to vector<16xf32>
    %130 = vector.shape_cast %129 : vector<16xf32> to vector<16x1xf32>
    %cst_65 = arith.constant 3.200000e+01 : f32
    %131 = vector.broadcast %cst_65 : f32 to vector<16x1xf32>
    %132 = arith.divf %130, %131 : vector<16x1xf32>
    %133 = vector.broadcast %125 : vector<16x1xf32> to vector<16x32xf32>
    %134 = arith.subf %121, %133 : vector<16x32xf32>
    %cst_66 = arith.constant 9.99999974E-6 : f32
    %135 = vector.broadcast %cst_66 : f32 to vector<16x1xf32>
    %136 = arith.addf %132, %135 : vector<16x1xf32>
    %137 = math.rsqrt %136 : vector<16x1xf32>
    %138 = vector.broadcast %137 : vector<16x1xf32> to vector<16x32xf32>
    %139 = arith.mulf %134, %138 : vector<16x32xf32>
    %140 = vector.broadcast %23 : vector<1x32xf32> to vector<16x32xf32>
    %141 = arith.mulf %139, %140 : vector<16x32xf32>
    %142 = vector.broadcast %25 : vector<1x32xf32> to vector<16x32xf32>
    %143 = arith.addf %141, %142 : vector<16x32xf32>
    %c1 = arith.constant 1 : index
    %c0_67 = arith.constant 0 : index
    %c0_68 = arith.constant 0 : index
    %144 = vector.load %arg5[%c1, %c0_67, %c0_68] : memref<2x32x96xf32, #tpu.memory_space<vmem>>, vector<1x32x96xf32>
    %145 = vector.shape_cast %144 : vector<1x32x96xf32> to vector<32x96xf32>
    %c1_69 = arith.constant 1 : index
    %c0_70 = arith.constant 0 : index
    %c0_71 = arith.constant 0 : index
    %146 = vector.load %arg6[%c1_69, %c0_70, %c0_71] : memref<2x1x96xf32, #tpu.memory_space<vmem>>, vector<1x1x96xf32>
    %147 = vector.shape_cast %146 : vector<1x1x96xf32> to vector<1x96xf32>
    %c1_72 = arith.constant 1 : index
    %c0_73 = arith.constant 0 : index
    %c0_74 = arith.constant 0 : index
    %148 = vector.load %arg7[%c1_72, %c0_73, %c0_74] : memref<2x32x32xf32, #tpu.memory_space<vmem>>, vector<1x32x32xf32>
    %149 = vector.shape_cast %148 : vector<1x32x32xf32> to vector<32x32xf32>
    %c1_75 = arith.constant 1 : index
    %c0_76 = arith.constant 0 : index
    %c0_77 = arith.constant 0 : index
    %150 = vector.load %arg8[%c1_75, %c0_76, %c0_77] : memref<2x1x32xf32, #tpu.memory_space<vmem>>, vector<1x1x32xf32>
    %151 = vector.shape_cast %150 : vector<1x1x32xf32> to vector<1x32xf32>
    %c1_78 = arith.constant 1 : index
    %c0_79 = arith.constant 0 : index
    %c0_80 = arith.constant 0 : index
    %152 = vector.load %arg9[%c1_78, %c0_79, %c0_80] : memref<2x1x32xf32, #tpu.memory_space<vmem>>, vector<1x1x32xf32>
    %153 = vector.shape_cast %152 : vector<1x1x32xf32> to vector<1x32xf32>
    %c1_81 = arith.constant 1 : index
    %c0_82 = arith.constant 0 : index
    %c0_83 = arith.constant 0 : index
    %154 = vector.load %arg10[%c1_81, %c0_82, %c0_83] : memref<2x1x32xf32, #tpu.memory_space<vmem>>, vector<1x1x32xf32>
    %155 = vector.shape_cast %154 : vector<1x1x32xf32> to vector<1x32xf32>
    %c1_84 = arith.constant 1 : index
    %c0_85 = arith.constant 0 : index
    %c0_86 = arith.constant 0 : index
    %156 = vector.load %arg11[%c1_84, %c0_85, %c0_86] : memref<2x32x64xf32, #tpu.memory_space<vmem>>, vector<1x32x64xf32>
    %157 = vector.shape_cast %156 : vector<1x32x64xf32> to vector<32x64xf32>
    %c1_87 = arith.constant 1 : index
    %c0_88 = arith.constant 0 : index
    %c0_89 = arith.constant 0 : index
    %158 = vector.load %arg12[%c1_87, %c0_88, %c0_89] : memref<2x1x64xf32, #tpu.memory_space<vmem>>, vector<1x1x64xf32>
    %159 = vector.shape_cast %158 : vector<1x1x64xf32> to vector<1x64xf32>
    %c1_90 = arith.constant 1 : index
    %c0_91 = arith.constant 0 : index
    %c0_92 = arith.constant 0 : index
    %160 = vector.load %arg13[%c1_90, %c0_91, %c0_92] : memref<2x64x32xf32, #tpu.memory_space<vmem>>, vector<1x64x32xf32>
    %161 = vector.shape_cast %160 : vector<1x64x32xf32> to vector<64x32xf32>
    %c1_93 = arith.constant 1 : index
    %c0_94 = arith.constant 0 : index
    %c0_95 = arith.constant 0 : index
    %162 = vector.load %arg14[%c1_93, %c0_94, %c0_95] : memref<2x1x32xf32, #tpu.memory_space<vmem>>, vector<1x1x32xf32>
    %163 = vector.shape_cast %162 : vector<1x1x32xf32> to vector<1x32xf32>
    %c1_96 = arith.constant 1 : index
    %c0_97 = arith.constant 0 : index
    %c0_98 = arith.constant 0 : index
    %164 = vector.load %arg15[%c1_96, %c0_97, %c0_98] : memref<2x1x32xf32, #tpu.memory_space<vmem>>, vector<1x1x32xf32>
    %165 = vector.shape_cast %164 : vector<1x1x32xf32> to vector<1x32xf32>
    %c1_99 = arith.constant 1 : index
    %c0_100 = arith.constant 0 : index
    %c0_101 = arith.constant 0 : index
    %166 = vector.load %arg16[%c1_99, %c0_100, %c0_101] : memref<2x1x32xf32, #tpu.memory_space<vmem>>, vector<1x1x32xf32>
    %167 = vector.shape_cast %166 : vector<1x1x32xf32> to vector<1x32xf32>
    %cst_102 = arith.constant dense<0.000000e+00> : vector<16x96xf32>
    %168 = tpu.matmul %143, %145, %cst_102 {dimension_numbers = #tpu.dot_dimension_numbers<[1], [0], [0], [1], [0, 0, 1, 1], [], []>} : vector<16x32xf32>, vector<32x96xf32>, vector<16x96xf32> -> vector<16x96xf32>
    %169 = vector.broadcast %147 : vector<1x96xf32> to vector<16x96xf32>
    %170 = arith.addf %168, %169 : vector<16x96xf32>
    %171 = vector.extract_strided_slice %170 {offsets = [0, 0], sizes = [16, 32], strides = [1, 1]} : vector<16x96xf32> to vector<16x32xf32>
    %172 = vector.extract_strided_slice %170 {offsets = [0, 32], sizes = [16, 32], strides = [1, 1]} : vector<16x96xf32> to vector<16x32xf32>
    %173 = vector.extract_strided_slice %170 {offsets = [0, 64], sizes = [16, 32], strides = [1, 1]} : vector<16x96xf32> to vector<16x32xf32>
    %174 = vector.extract_strided_slice %171 {offsets = [0, 0], sizes = [16, 8], strides = [1, 1]} : vector<16x32xf32> to vector<16x8xf32>
    %cst_103 = arith.constant 0.353553385 : f32
    %175 = vector.broadcast %cst_103 : f32 to vector<16x8xf32>
    %176 = arith.mulf %174, %175 : vector<16x8xf32>
    %177 = vector.extract_strided_slice %172 {offsets = [0, 0], sizes = [16, 8], strides = [1, 1]} : vector<16x32xf32> to vector<16x8xf32>
    %cst_104 = arith.constant dense<0.000000e+00> : vector<16x16xf32>
    %178 = tpu.matmul %176, %177, %cst_104 {dimension_numbers = #tpu.dot_dimension_numbers<[1], [1], [0], [0], [0, 0, 1, 0], [], []>} : vector<16x8xf32>, vector<16x8xf32>, vector<16x16xf32> -> vector<16x16xf32>
    %179 = vector.extract_strided_slice %171 {offsets = [0, 8], sizes = [16, 8], strides = [1, 1]} : vector<16x32xf32> to vector<16x8xf32>
    %cst_105 = arith.constant 0.353553385 : f32
    %180 = vector.broadcast %cst_105 : f32 to vector<16x8xf32>
    %181 = arith.mulf %179, %180 : vector<16x8xf32>
    %182 = vector.extract_strided_slice %172 {offsets = [0, 8], sizes = [16, 8], strides = [1, 1]} : vector<16x32xf32> to vector<16x8xf32>
    %cst_106 = arith.constant dense<0.000000e+00> : vector<16x16xf32>
    %183 = tpu.matmul %181, %182, %cst_106 {dimension_numbers = #tpu.dot_dimension_numbers<[1], [1], [0], [0], [0, 0, 1, 0], [], []>} : vector<16x8xf32>, vector<16x8xf32>, vector<16x16xf32> -> vector<16x16xf32>
    %184 = vector.extract_strided_slice %171 {offsets = [0, 16], sizes = [16, 8], strides = [1, 1]} : vector<16x32xf32> to vector<16x8xf32>
    %cst_107 = arith.constant 0.353553385 : f32
    %185 = vector.broadcast %cst_107 : f32 to vector<16x8xf32>
    %186 = arith.mulf %184, %185 : vector<16x8xf32>
    %187 = vector.extract_strided_slice %172 {offsets = [0, 16], sizes = [16, 8], strides = [1, 1]} : vector<16x32xf32> to vector<16x8xf32>
    %cst_108 = arith.constant dense<0.000000e+00> : vector<16x16xf32>
    %188 = tpu.matmul %186, %187, %cst_108 {dimension_numbers = #tpu.dot_dimension_numbers<[1], [1], [0], [0], [0, 0, 1, 0], [], []>} : vector<16x8xf32>, vector<16x8xf32>, vector<16x16xf32> -> vector<16x16xf32>
    %189 = vector.extract_strided_slice %171 {offsets = [0, 24], sizes = [16, 8], strides = [1, 1]} : vector<16x32xf32> to vector<16x8xf32>
    %cst_109 = arith.constant 0.353553385 : f32
    %190 = vector.broadcast %cst_109 : f32 to vector<16x8xf32>
    %191 = arith.mulf %189, %190 : vector<16x8xf32>
    %192 = vector.extract_strided_slice %172 {offsets = [0, 24], sizes = [16, 8], strides = [1, 1]} : vector<16x32xf32> to vector<16x8xf32>
    %cst_110 = arith.constant dense<0.000000e+00> : vector<16x16xf32>
    %193 = tpu.matmul %191, %192, %cst_110 {dimension_numbers = #tpu.dot_dimension_numbers<[1], [1], [0], [0], [0, 0, 1, 0], [], []>} : vector<16x8xf32>, vector<16x8xf32>, vector<16x16xf32> -> vector<16x16xf32>
    %194 = vector.shape_cast %178 : vector<16x16xf32> to vector<1x16x16xf32>
    %195 = vector.shape_cast %183 : vector<16x16xf32> to vector<1x16x16xf32>
    %196 = vector.shape_cast %188 : vector<16x16xf32> to vector<1x16x16xf32>
    %197 = vector.shape_cast %193 : vector<16x16xf32> to vector<1x16x16xf32>
    %198 = tpu.concatenate %194, %195, %196, %197 in 0 : vector<1x16x16xf32>, vector<1x16x16xf32>, vector<1x16x16xf32>, vector<1x16x16xf32> -> vector<4x16x16xf32>
    %199 = vector.shape_cast %1 : vector<16x16xf32> to vector<1x16x16xf32>
    %200 = vector.broadcast %199 : vector<1x16x16xf32> to vector<4x16x16xf32>
    %201 = arith.addf %198, %200 : vector<4x16x16xf32>
    %cst_111 = arith.constant dense<0xFF800000> : vector<4x16xf32>
    %202 = vector.multi_reduction <maximumf>, %201, %cst_111 [2] : vector<4x16x16xf32> to vector<4x16xf32>
    %203 = vector.shape_cast %202 : vector<4x16xf32> to vector<4x16x1xf32>
    %204 = vector.broadcast %203 : vector<4x16x1xf32> to vector<4x16x16xf32>
    %205 = arith.subf %201, %204 : vector<4x16x16xf32>
    %206 = math.exp %205 : vector<4x16x16xf32>
    %cst_112 = arith.constant dense<0.000000e+00> : vector<4x16xf32>
    %207 = vector.multi_reduction <add>, %206, %cst_112 [2] : vector<4x16x16xf32> to vector<4x16xf32>
    %208 = vector.shape_cast %207 : vector<4x16xf32> to vector<4x16x1xf32>
    %209 = tpu.reciprocal %208 {approx = true} : vector<4x16x1xf32> -> vector<4x16x1xf32>
    %210 = vector.broadcast %209 : vector<4x16x1xf32> to vector<4x16x16xf32>
    %211 = arith.mulf %206, %210 : vector<4x16x16xf32>
    %212 = vector.extract_strided_slice %211 {offsets = [0, 0, 0], sizes = [1, 16, 16], strides = [1, 1, 1]} : vector<4x16x16xf32> to vector<1x16x16xf32>
    %213 = vector.shape_cast %212 : vector<1x16x16xf32> to vector<16x16xf32>
    %214 = vector.extract_strided_slice %173 {offsets = [0, 0], sizes = [16, 8], strides = [1, 1]} : vector<16x32xf32> to vector<16x8xf32>
    %cst_113 = arith.constant dense<0.000000e+00> : vector<16x8xf32>
    %215 = tpu.matmul %213, %214, %cst_113 {dimension_numbers = #tpu.dot_dimension_numbers<[1], [0], [0], [1], [0, 0, 1, 1], [], []>} : vector<16x16xf32>, vector<16x8xf32>, vector<16x8xf32> -> vector<16x8xf32>
    %216 = vector.extract_strided_slice %211 {offsets = [1, 0, 0], sizes = [1, 16, 16], strides = [1, 1, 1]} : vector<4x16x16xf32> to vector<1x16x16xf32>
    %217 = vector.shape_cast %216 : vector<1x16x16xf32> to vector<16x16xf32>
    %218 = vector.extract_strided_slice %173 {offsets = [0, 8], sizes = [16, 8], strides = [1, 1]} : vector<16x32xf32> to vector<16x8xf32>
    %cst_114 = arith.constant dense<0.000000e+00> : vector<16x8xf32>
    %219 = tpu.matmul %217, %218, %cst_114 {dimension_numbers = #tpu.dot_dimension_numbers<[1], [0], [0], [1], [0, 0, 1, 1], [], []>} : vector<16x16xf32>, vector<16x8xf32>, vector<16x8xf32> -> vector<16x8xf32>
    %220 = vector.extract_strided_slice %211 {offsets = [2, 0, 0], sizes = [1, 16, 16], strides = [1, 1, 1]} : vector<4x16x16xf32> to vector<1x16x16xf32>
    %221 = vector.shape_cast %220 : vector<1x16x16xf32> to vector<16x16xf32>
    %222 = vector.extract_strided_slice %173 {offsets = [0, 16], sizes = [16, 8], strides = [1, 1]} : vector<16x32xf32> to vector<16x8xf32>
    %cst_115 = arith.constant dense<0.000000e+00> : vector<16x8xf32>
    %223 = tpu.matmul %221, %222, %cst_115 {dimension_numbers = #tpu.dot_dimension_numbers<[1], [0], [0], [1], [0, 0, 1, 1], [], []>} : vector<16x16xf32>, vector<16x8xf32>, vector<16x8xf32> -> vector<16x8xf32>
    %224 = vector.extract_strided_slice %211 {offsets = [3, 0, 0], sizes = [1, 16, 16], strides = [1, 1, 1]} : vector<4x16x16xf32> to vector<1x16x16xf32>
    %225 = vector.shape_cast %224 : vector<1x16x16xf32> to vector<16x16xf32>
    %226 = vector.extract_strided_slice %173 {offsets = [0, 24], sizes = [16, 8], strides = [1, 1]} : vector<16x32xf32> to vector<16x8xf32>
    %cst_116 = arith.constant dense<0.000000e+00> : vector<16x8xf32>
    %227 = tpu.matmul %225, %226, %cst_116 {dimension_numbers = #tpu.dot_dimension_numbers<[1], [0], [0], [1], [0, 0, 1, 1], [], []>} : vector<16x16xf32>, vector<16x8xf32>, vector<16x8xf32> -> vector<16x8xf32>
    %228 = tpu.concatenate %215, %219, %223, %227 in 1 : vector<16x8xf32>, vector<16x8xf32>, vector<16x8xf32>, vector<16x8xf32> -> vector<16x32xf32>
    %cst_117 = arith.constant dense<0.000000e+00> : vector<16x32xf32>
    %229 = tpu.matmul %228, %149, %cst_117 {dimension_numbers = #tpu.dot_dimension_numbers<[1], [0], [0], [1], [0, 0, 1, 1], [], []>} : vector<16x32xf32>, vector<32x32xf32>, vector<16x32xf32> -> vector<16x32xf32>
    %230 = arith.addf %143, %229 : vector<16x32xf32>
    %231 = vector.broadcast %151 : vector<1x32xf32> to vector<16x32xf32>
    %232 = arith.addf %230, %231 : vector<16x32xf32>
    %cst_118 = arith.constant dense<0.000000e+00> : vector<16xf32>
    %233 = vector.multi_reduction <add>, %232, %cst_118 [1] : vector<16x32xf32> to vector<16xf32>
    %234 = vector.shape_cast %233 : vector<16xf32> to vector<16x1xf32>
    %cst_119 = arith.constant 3.200000e+01 : f32
    %235 = vector.broadcast %cst_119 : f32 to vector<16x1xf32>
    %236 = arith.divf %234, %235 : vector<16x1xf32>
    %237 = vector.broadcast %236 : vector<16x1xf32> to vector<16x32xf32>
    %238 = arith.subf %232, %237 : vector<16x32xf32>
    %239 = arith.mulf %238, %238 : vector<16x32xf32>
    %cst_120 = arith.constant dense<0.000000e+00> : vector<16xf32>
    %240 = vector.multi_reduction <add>, %239, %cst_120 [1] : vector<16x32xf32> to vector<16xf32>
    %241 = vector.shape_cast %240 : vector<16xf32> to vector<16x1xf32>
    %cst_121 = arith.constant 3.200000e+01 : f32
    %242 = vector.broadcast %cst_121 : f32 to vector<16x1xf32>
    %243 = arith.divf %241, %242 : vector<16x1xf32>
    %244 = vector.broadcast %236 : vector<16x1xf32> to vector<16x32xf32>
    %245 = arith.subf %232, %244 : vector<16x32xf32>
    %cst_122 = arith.constant 9.99999974E-6 : f32
    %246 = vector.broadcast %cst_122 : f32 to vector<16x1xf32>
    %247 = arith.addf %243, %246 : vector<16x1xf32>
    %248 = math.rsqrt %247 : vector<16x1xf32>
    %249 = vector.broadcast %248 : vector<16x1xf32> to vector<16x32xf32>
    %250 = arith.mulf %245, %249 : vector<16x32xf32>
    %251 = vector.broadcast %153 : vector<1x32xf32> to vector<16x32xf32>
    %252 = arith.mulf %250, %251 : vector<16x32xf32>
    %253 = vector.broadcast %155 : vector<1x32xf32> to vector<16x32xf32>
    %254 = arith.addf %252, %253 : vector<16x32xf32>
    %cst_123 = arith.constant dense<0.000000e+00> : vector<16x64xf32>
    %255 = tpu.matmul %254, %157, %cst_123 {dimension_numbers = #tpu.dot_dimension_numbers<[1], [0], [0], [1], [0, 0, 1, 1], [], []>} : vector<16x32xf32>, vector<32x64xf32>, vector<16x64xf32> -> vector<16x64xf32>
    %256 = vector.broadcast %159 : vector<1x64xf32> to vector<16x64xf32>
    %257 = arith.addf %255, %256 : vector<16x64xf32>
    %cst_124 = arith.constant 0.000000e+00 : f32
    %258 = vector.broadcast %cst_124 : f32 to vector<16x64xf32>
    %259 = arith.maximumf %257, %258 : vector<16x64xf32>
    %cst_125 = arith.constant dense<0.000000e+00> : vector<16x32xf32>
    %260 = tpu.matmul %259, %161, %cst_125 {dimension_numbers = #tpu.dot_dimension_numbers<[1], [0], [0], [1], [0, 0, 1, 1], [], []>} : vector<16x64xf32>, vector<64x32xf32>, vector<16x32xf32> -> vector<16x32xf32>
    %261 = arith.addf %254, %260 : vector<16x32xf32>
    %262 = vector.broadcast %163 : vector<1x32xf32> to vector<16x32xf32>
    %263 = arith.addf %261, %262 : vector<16x32xf32>
    %cst_126 = arith.constant dense<0.000000e+00> : vector<16xf32>
    %264 = vector.multi_reduction <add>, %263, %cst_126 [1] : vector<16x32xf32> to vector<16xf32>
    %265 = vector.shape_cast %264 : vector<16xf32> to vector<16x1xf32>
    %cst_127 = arith.constant 3.200000e+01 : f32
    %266 = vector.broadcast %cst_127 : f32 to vector<16x1xf32>
    %267 = arith.divf %265, %266 : vector<16x1xf32>
    %268 = vector.broadcast %267 : vector<16x1xf32> to vector<16x32xf32>
    %269 = arith.subf %263, %268 : vector<16x32xf32>
    %270 = arith.mulf %269, %269 : vector<16x32xf32>
    %cst_128 = arith.constant dense<0.000000e+00> : vector<16xf32>
    %271 = vector.multi_reduction <add>, %270, %cst_128 [1] : vector<16x32xf32> to vector<16xf32>
    %272 = vector.shape_cast %271 : vector<16xf32> to vector<16x1xf32>
    %cst_129 = arith.constant 3.200000e+01 : f32
    %273 = vector.broadcast %cst_129 : f32 to vector<16x1xf32>
    %274 = arith.divf %272, %273 : vector<16x1xf32>
    %275 = vector.broadcast %267 : vector<16x1xf32> to vector<16x32xf32>
    %276 = arith.subf %263, %275 : vector<16x32xf32>
    %cst_130 = arith.constant 9.99999974E-6 : f32
    %277 = vector.broadcast %cst_130 : f32 to vector<16x1xf32>
    %278 = arith.addf %274, %277 : vector<16x1xf32>
    %279 = math.rsqrt %278 : vector<16x1xf32>
    %280 = vector.broadcast %279 : vector<16x1xf32> to vector<16x32xf32>
    %281 = arith.mulf %276, %280 : vector<16x32xf32>
    %282 = vector.broadcast %165 : vector<1x32xf32> to vector<16x32xf32>
    %283 = arith.mulf %281, %282 : vector<16x32xf32>
    %284 = vector.broadcast %167 : vector<1x32xf32> to vector<16x32xf32>
    %285 = arith.addf %283, %284 : vector<16x32xf32>
    %c0_131 = arith.constant 0 : index
    %c0_132 = arith.constant 0 : index
    %286 = vector.load %arg1[%c0_131, %c0_132] : memref<12x32xf32, #tpu.memory_space<vmem>>, vector<12x32xf32>
    %c0_133 = arith.constant 0 : index
    %c0_134 = arith.constant 0 : index
    %287 = vector.load %arg3[%c0_133, %c0_134] : memref<12x12xf32, #tpu.memory_space<vmem>>, vector<12x12xf32>
    %c0_135 = arith.constant 0 : index
    %c0_136 = arith.constant 0 : index
    %288 = vector.load %arg4[%c0_135, %c0_136] : memref<12x16xf32, #tpu.memory_space<vmem>>, vector<12x16xf32>
    %c0_137 = arith.constant 0 : index
    %c0_138 = arith.constant 0 : index
    %c0_139 = arith.constant 0 : index
    %289 = vector.load %arg17[%c0_137, %c0_138, %c0_139] : memref<2x32x96xf32, #tpu.memory_space<vmem>>, vector<1x32x96xf32>
    %290 = vector.shape_cast %289 : vector<1x32x96xf32> to vector<32x96xf32>
    %c0_140 = arith.constant 0 : index
    %c0_141 = arith.constant 0 : index
    %c0_142 = arith.constant 0 : index
    %291 = vector.load %arg18[%c0_140, %c0_141, %c0_142] : memref<2x1x96xf32, #tpu.memory_space<vmem>>, vector<1x1x96xf32>
    %292 = vector.shape_cast %291 : vector<1x1x96xf32> to vector<1x96xf32>
    %c0_143 = arith.constant 0 : index
    %c0_144 = arith.constant 0 : index
    %c0_145 = arith.constant 0 : index
    %293 = vector.load %arg19[%c0_143, %c0_144, %c0_145] : memref<2x32x32xf32, #tpu.memory_space<vmem>>, vector<1x32x32xf32>
    %294 = vector.shape_cast %293 : vector<1x32x32xf32> to vector<32x32xf32>
    %c0_146 = arith.constant 0 : index
    %c0_147 = arith.constant 0 : index
    %c0_148 = arith.constant 0 : index
    %295 = vector.load %arg20[%c0_146, %c0_147, %c0_148] : memref<2x1x32xf32, #tpu.memory_space<vmem>>, vector<1x1x32xf32>
    %296 = vector.shape_cast %295 : vector<1x1x32xf32> to vector<1x32xf32>
    %c0_149 = arith.constant 0 : index
    %c0_150 = arith.constant 0 : index
    %c0_151 = arith.constant 0 : index
    %297 = vector.load %arg21[%c0_149, %c0_150, %c0_151] : memref<2x1x32xf32, #tpu.memory_space<vmem>>, vector<1x1x32xf32>
    %298 = vector.shape_cast %297 : vector<1x1x32xf32> to vector<1x32xf32>
    %c0_152 = arith.constant 0 : index
    %c0_153 = arith.constant 0 : index
    %c0_154 = arith.constant 0 : index
    %299 = vector.load %arg22[%c0_152, %c0_153, %c0_154] : memref<2x1x32xf32, #tpu.memory_space<vmem>>, vector<1x1x32xf32>
    %300 = vector.shape_cast %299 : vector<1x1x32xf32> to vector<1x32xf32>
    %c0_155 = arith.constant 0 : index
    %c0_156 = arith.constant 0 : index
    %c0_157 = arith.constant 0 : index
    %301 = vector.load %arg23[%c0_155, %c0_156, %c0_157] : memref<2x32x32xf32, #tpu.memory_space<vmem>>, vector<1x32x32xf32>
    %302 = vector.shape_cast %301 : vector<1x32x32xf32> to vector<32x32xf32>
    %c0_158 = arith.constant 0 : index
    %c0_159 = arith.constant 0 : index
    %c0_160 = arith.constant 0 : index
    %303 = vector.load %arg24[%c0_158, %c0_159, %c0_160] : memref<2x1x32xf32, #tpu.memory_space<vmem>>, vector<1x1x32xf32>
    %304 = vector.shape_cast %303 : vector<1x1x32xf32> to vector<1x32xf32>
    %c0_161 = arith.constant 0 : index
    %c0_162 = arith.constant 0 : index
    %c0_163 = arith.constant 0 : index
    %305 = vector.load %arg25[%c0_161, %c0_162, %c0_163] : memref<2x32x64xf32, #tpu.memory_space<vmem>>, vector<1x32x64xf32>
    %306 = vector.shape_cast %305 : vector<1x32x64xf32> to vector<32x64xf32>
    %c0_164 = arith.constant 0 : index
    %c0_165 = arith.constant 0 : index
    %c0_166 = arith.constant 0 : index
    %307 = vector.load %arg26[%c0_164, %c0_165, %c0_166] : memref<2x1x64xf32, #tpu.memory_space<vmem>>, vector<1x1x64xf32>
    %308 = vector.shape_cast %307 : vector<1x1x64xf32> to vector<1x64xf32>
    %c0_167 = arith.constant 0 : index
    %c0_168 = arith.constant 0 : index
    %c0_169 = arith.constant 0 : index
    %309 = vector.load %arg27[%c0_167, %c0_168, %c0_169] : memref<2x32x32xf32, #tpu.memory_space<vmem>>, vector<1x32x32xf32>
    %310 = vector.shape_cast %309 : vector<1x32x32xf32> to vector<32x32xf32>
    %c0_170 = arith.constant 0 : index
    %c0_171 = arith.constant 0 : index
    %c0_172 = arith.constant 0 : index
    %311 = vector.load %arg28[%c0_170, %c0_171, %c0_172] : memref<2x1x32xf32, #tpu.memory_space<vmem>>, vector<1x1x32xf32>
    %312 = vector.shape_cast %311 : vector<1x1x32xf32> to vector<1x32xf32>
    %c0_173 = arith.constant 0 : index
    %c0_174 = arith.constant 0 : index
    %c0_175 = arith.constant 0 : index
    %313 = vector.load %arg29[%c0_173, %c0_174, %c0_175] : memref<2x1x32xf32, #tpu.memory_space<vmem>>, vector<1x1x32xf32>
    %314 = vector.shape_cast %313 : vector<1x1x32xf32> to vector<1x32xf32>
    %c0_176 = arith.constant 0 : index
    %c0_177 = arith.constant 0 : index
    %c0_178 = arith.constant 0 : index
    %315 = vector.load %arg30[%c0_176, %c0_177, %c0_178] : memref<2x1x32xf32, #tpu.memory_space<vmem>>, vector<1x1x32xf32>
    %316 = vector.shape_cast %315 : vector<1x1x32xf32> to vector<1x32xf32>
    %c0_179 = arith.constant 0 : index
    %c0_180 = arith.constant 0 : index
    %c0_181 = arith.constant 0 : index
    %317 = vector.load %arg31[%c0_179, %c0_180, %c0_181] : memref<2x32x64xf32, #tpu.memory_space<vmem>>, vector<1x32x64xf32>
    %318 = vector.shape_cast %317 : vector<1x32x64xf32> to vector<32x64xf32>
    %c0_182 = arith.constant 0 : index
    %c0_183 = arith.constant 0 : index
    %c0_184 = arith.constant 0 : index
    %319 = vector.load %arg32[%c0_182, %c0_183, %c0_184] : memref<2x1x64xf32, #tpu.memory_space<vmem>>, vector<1x1x64xf32>
    %320 = vector.shape_cast %319 : vector<1x1x64xf32> to vector<1x64xf32>
    %c0_185 = arith.constant 0 : index
    %c0_186 = arith.constant 0 : index
    %c0_187 = arith.constant 0 : index
    %321 = vector.load %arg33[%c0_185, %c0_186, %c0_187] : memref<2x64x32xf32, #tpu.memory_space<vmem>>, vector<1x64x32xf32>
    %322 = vector.shape_cast %321 : vector<1x64x32xf32> to vector<64x32xf32>
    %c0_188 = arith.constant 0 : index
    %c0_189 = arith.constant 0 : index
    %c0_190 = arith.constant 0 : index
    %323 = vector.load %arg34[%c0_188, %c0_189, %c0_190] : memref<2x1x32xf32, #tpu.memory_space<vmem>>, vector<1x1x32xf32>
    %324 = vector.shape_cast %323 : vector<1x1x32xf32> to vector<1x32xf32>
    %c0_191 = arith.constant 0 : index
    %c0_192 = arith.constant 0 : index
    %c0_193 = arith.constant 0 : index
    %325 = vector.load %arg35[%c0_191, %c0_192, %c0_193] : memref<2x1x32xf32, #tpu.memory_space<vmem>>, vector<1x1x32xf32>
    %326 = vector.shape_cast %325 : vector<1x1x32xf32> to vector<1x32xf32>
    %c0_194 = arith.constant 0 : index
    %c0_195 = arith.constant 0 : index
    %c0_196 = arith.constant 0 : index
    %327 = vector.load %arg36[%c0_194, %c0_195, %c0_196] : memref<2x1x32xf32, #tpu.memory_space<vmem>>, vector<1x1x32xf32>
    %328 = vector.shape_cast %327 : vector<1x1x32xf32> to vector<1x32xf32>
    %cst_197 = arith.constant dense<0.000000e+00> : vector<12x96xf32>
    %329 = tpu.matmul %286, %290, %cst_197 {dimension_numbers = #tpu.dot_dimension_numbers<[1], [0], [0], [1], [0, 0, 1, 1], [], []>} : vector<12x32xf32>, vector<32x96xf32>, vector<12x96xf32> -> vector<12x96xf32>
    %330 = vector.broadcast %292 : vector<1x96xf32> to vector<12x96xf32>
    %331 = arith.addf %329, %330 : vector<12x96xf32>
    %332 = vector.extract_strided_slice %331 {offsets = [0, 0], sizes = [12, 32], strides = [1, 1]} : vector<12x96xf32> to vector<12x32xf32>
    %333 = vector.extract_strided_slice %331 {offsets = [0, 32], sizes = [12, 32], strides = [1, 1]} : vector<12x96xf32> to vector<12x32xf32>
    %334 = vector.extract_strided_slice %331 {offsets = [0, 64], sizes = [12, 32], strides = [1, 1]} : vector<12x96xf32> to vector<12x32xf32>
    %335 = vector.extract_strided_slice %332 {offsets = [0, 0], sizes = [12, 8], strides = [1, 1]} : vector<12x32xf32> to vector<12x8xf32>
    %cst_198 = arith.constant 0.353553385 : f32
    %336 = vector.broadcast %cst_198 : f32 to vector<12x8xf32>
    %337 = arith.mulf %335, %336 : vector<12x8xf32>
    %338 = vector.extract_strided_slice %333 {offsets = [0, 0], sizes = [12, 8], strides = [1, 1]} : vector<12x32xf32> to vector<12x8xf32>
    %cst_199 = arith.constant dense<0.000000e+00> : vector<12x12xf32>
    %339 = tpu.matmul %337, %338, %cst_199 {dimension_numbers = #tpu.dot_dimension_numbers<[1], [1], [0], [0], [0, 0, 1, 0], [], []>} : vector<12x8xf32>, vector<12x8xf32>, vector<12x12xf32> -> vector<12x12xf32>
    %340 = vector.extract_strided_slice %332 {offsets = [0, 8], sizes = [12, 8], strides = [1, 1]} : vector<12x32xf32> to vector<12x8xf32>
    %cst_200 = arith.constant 0.353553385 : f32
    %341 = vector.broadcast %cst_200 : f32 to vector<12x8xf32>
    %342 = arith.mulf %340, %341 : vector<12x8xf32>
    %343 = vector.extract_strided_slice %333 {offsets = [0, 8], sizes = [12, 8], strides = [1, 1]} : vector<12x32xf32> to vector<12x8xf32>
    %cst_201 = arith.constant dense<0.000000e+00> : vector<12x12xf32>
    %344 = tpu.matmul %342, %343, %cst_201 {dimension_numbers = #tpu.dot_dimension_numbers<[1], [1], [0], [0], [0, 0, 1, 0], [], []>} : vector<12x8xf32>, vector<12x8xf32>, vector<12x12xf32> -> vector<12x12xf32>
    %345 = vector.extract_strided_slice %332 {offsets = [0, 16], sizes = [12, 8], strides = [1, 1]} : vector<12x32xf32> to vector<12x8xf32>
    %cst_202 = arith.constant 0.353553385 : f32
    %346 = vector.broadcast %cst_202 : f32 to vector<12x8xf32>
    %347 = arith.mulf %345, %346 : vector<12x8xf32>
    %348 = vector.extract_strided_slice %333 {offsets = [0, 16], sizes = [12, 8], strides = [1, 1]} : vector<12x32xf32> to vector<12x8xf32>
    %cst_203 = arith.constant dense<0.000000e+00> : vector<12x12xf32>
    %349 = tpu.matmul %347, %348, %cst_203 {dimension_numbers = #tpu.dot_dimension_numbers<[1], [1], [0], [0], [0, 0, 1, 0], [], []>} : vector<12x8xf32>, vector<12x8xf32>, vector<12x12xf32> -> vector<12x12xf32>
    %350 = vector.extract_strided_slice %332 {offsets = [0, 24], sizes = [12, 8], strides = [1, 1]} : vector<12x32xf32> to vector<12x8xf32>
    %cst_204 = arith.constant 0.353553385 : f32
    %351 = vector.broadcast %cst_204 : f32 to vector<12x8xf32>
    %352 = arith.mulf %350, %351 : vector<12x8xf32>
    %353 = vector.extract_strided_slice %333 {offsets = [0, 24], sizes = [12, 8], strides = [1, 1]} : vector<12x32xf32> to vector<12x8xf32>
    %cst_205 = arith.constant dense<0.000000e+00> : vector<12x12xf32>
    %354 = tpu.matmul %352, %353, %cst_205 {dimension_numbers = #tpu.dot_dimension_numbers<[1], [1], [0], [0], [0, 0, 1, 0], [], []>} : vector<12x8xf32>, vector<12x8xf32>, vector<12x12xf32> -> vector<12x12xf32>
    %355 = vector.shape_cast %339 : vector<12x12xf32> to vector<1x12x12xf32>
    %356 = vector.shape_cast %344 : vector<12x12xf32> to vector<1x12x12xf32>
    %357 = vector.shape_cast %349 : vector<12x12xf32> to vector<1x12x12xf32>
    %358 = vector.shape_cast %354 : vector<12x12xf32> to vector<1x12x12xf32>
    %359 = tpu.concatenate %355, %356, %357, %358 in 0 : vector<1x12x12xf32>, vector<1x12x12xf32>, vector<1x12x12xf32>, vector<1x12x12xf32> -> vector<4x12x12xf32>
    %360 = vector.shape_cast %287 : vector<12x12xf32> to vector<1x12x12xf32>
    %361 = vector.broadcast %360 : vector<1x12x12xf32> to vector<4x12x12xf32>
    %362 = arith.addf %359, %361 : vector<4x12x12xf32>
    %cst_206 = arith.constant dense<0xFF800000> : vector<4x12xf32>
    %363 = vector.multi_reduction <maximumf>, %362, %cst_206 [2] : vector<4x12x12xf32> to vector<4x12xf32>
    %364 = vector.shape_cast %363 : vector<4x12xf32> to vector<4x12x1xf32>
    %365 = vector.broadcast %364 : vector<4x12x1xf32> to vector<4x12x12xf32>
    %366 = arith.subf %362, %365 : vector<4x12x12xf32>
    %367 = math.exp %366 : vector<4x12x12xf32>
    %cst_207 = arith.constant dense<0.000000e+00> : vector<4x12xf32>
    %368 = vector.multi_reduction <add>, %367, %cst_207 [2] : vector<4x12x12xf32> to vector<4x12xf32>
    %369 = vector.shape_cast %368 : vector<4x12xf32> to vector<4x12x1xf32>
    %370 = tpu.reciprocal %369 {approx = true} : vector<4x12x1xf32> -> vector<4x12x1xf32>
    %371 = vector.broadcast %370 : vector<4x12x1xf32> to vector<4x12x12xf32>
    %372 = arith.mulf %367, %371 : vector<4x12x12xf32>
    %373 = vector.extract_strided_slice %372 {offsets = [0, 0, 0], sizes = [1, 12, 12], strides = [1, 1, 1]} : vector<4x12x12xf32> to vector<1x12x12xf32>
    %374 = vector.shape_cast %373 : vector<1x12x12xf32> to vector<12x12xf32>
    %375 = vector.extract_strided_slice %334 {offsets = [0, 0], sizes = [12, 8], strides = [1, 1]} : vector<12x32xf32> to vector<12x8xf32>
    %cst_208 = arith.constant dense<0.000000e+00> : vector<12x8xf32>
    %376 = tpu.matmul %374, %375, %cst_208 {dimension_numbers = #tpu.dot_dimension_numbers<[1], [0], [0], [1], [0, 0, 1, 1], [], []>} : vector<12x12xf32>, vector<12x8xf32>, vector<12x8xf32> -> vector<12x8xf32>
    %377 = vector.extract_strided_slice %372 {offsets = [1, 0, 0], sizes = [1, 12, 12], strides = [1, 1, 1]} : vector<4x12x12xf32> to vector<1x12x12xf32>
    %378 = vector.shape_cast %377 : vector<1x12x12xf32> to vector<12x12xf32>
    %379 = vector.extract_strided_slice %334 {offsets = [0, 8], sizes = [12, 8], strides = [1, 1]} : vector<12x32xf32> to vector<12x8xf32>
    %cst_209 = arith.constant dense<0.000000e+00> : vector<12x8xf32>
    %380 = tpu.matmul %378, %379, %cst_209 {dimension_numbers = #tpu.dot_dimension_numbers<[1], [0], [0], [1], [0, 0, 1, 1], [], []>} : vector<12x12xf32>, vector<12x8xf32>, vector<12x8xf32> -> vector<12x8xf32>
    %381 = vector.extract_strided_slice %372 {offsets = [2, 0, 0], sizes = [1, 12, 12], strides = [1, 1, 1]} : vector<4x12x12xf32> to vector<1x12x12xf32>
    %382 = vector.shape_cast %381 : vector<1x12x12xf32> to vector<12x12xf32>
    %383 = vector.extract_strided_slice %334 {offsets = [0, 16], sizes = [12, 8], strides = [1, 1]} : vector<12x32xf32> to vector<12x8xf32>
    %cst_210 = arith.constant dense<0.000000e+00> : vector<12x8xf32>
    %384 = tpu.matmul %382, %383, %cst_210 {dimension_numbers = #tpu.dot_dimension_numbers<[1], [0], [0], [1], [0, 0, 1, 1], [], []>} : vector<12x12xf32>, vector<12x8xf32>, vector<12x8xf32> -> vector<12x8xf32>
    %385 = vector.extract_strided_slice %372 {offsets = [3, 0, 0], sizes = [1, 12, 12], strides = [1, 1, 1]} : vector<4x12x12xf32> to vector<1x12x12xf32>
    %386 = vector.shape_cast %385 : vector<1x12x12xf32> to vector<12x12xf32>
    %387 = vector.extract_strided_slice %334 {offsets = [0, 24], sizes = [12, 8], strides = [1, 1]} : vector<12x32xf32> to vector<12x8xf32>
    %cst_211 = arith.constant dense<0.000000e+00> : vector<12x8xf32>
    %388 = tpu.matmul %386, %387, %cst_211 {dimension_numbers = #tpu.dot_dimension_numbers<[1], [0], [0], [1], [0, 0, 1, 1], [], []>} : vector<12x12xf32>, vector<12x8xf32>, vector<12x8xf32> -> vector<12x8xf32>
    %389 = tpu.concatenate %376, %380, %384, %388 in 1 : vector<12x8xf32>, vector<12x8xf32>, vector<12x8xf32>, vector<12x8xf32> -> vector<12x32xf32>
    %cst_212 = arith.constant dense<0.000000e+00> : vector<12x32xf32>
    %390 = tpu.matmul %389, %294, %cst_212 {dimension_numbers = #tpu.dot_dimension_numbers<[1], [0], [0], [1], [0, 0, 1, 1], [], []>} : vector<12x32xf32>, vector<32x32xf32>, vector<12x32xf32> -> vector<12x32xf32>
    %391 = arith.addf %286, %390 : vector<12x32xf32>
    %392 = vector.broadcast %296 : vector<1x32xf32> to vector<12x32xf32>
    %393 = arith.addf %391, %392 : vector<12x32xf32>
    %cst_213 = arith.constant dense<0.000000e+00> : vector<12xf32>
    %394 = vector.multi_reduction <add>, %393, %cst_213 [1] : vector<12x32xf32> to vector<12xf32>
    %395 = vector.shape_cast %394 : vector<12xf32> to vector<12x1xf32>
    %cst_214 = arith.constant 3.200000e+01 : f32
    %396 = vector.broadcast %cst_214 : f32 to vector<12x1xf32>
    %397 = arith.divf %395, %396 : vector<12x1xf32>
    %398 = vector.broadcast %397 : vector<12x1xf32> to vector<12x32xf32>
    %399 = arith.subf %393, %398 : vector<12x32xf32>
    %400 = arith.mulf %399, %399 : vector<12x32xf32>
    %cst_215 = arith.constant dense<0.000000e+00> : vector<12xf32>
    %401 = vector.multi_reduction <add>, %400, %cst_215 [1] : vector<12x32xf32> to vector<12xf32>
    %402 = vector.shape_cast %401 : vector<12xf32> to vector<12x1xf32>
    %cst_216 = arith.constant 3.200000e+01 : f32
    %403 = vector.broadcast %cst_216 : f32 to vector<12x1xf32>
    %404 = arith.divf %402, %403 : vector<12x1xf32>
    %405 = vector.broadcast %397 : vector<12x1xf32> to vector<12x32xf32>
    %406 = arith.subf %393, %405 : vector<12x32xf32>
    %cst_217 = arith.constant 9.99999974E-6 : f32
    %407 = vector.broadcast %cst_217 : f32 to vector<12x1xf32>
    %408 = arith.addf %404, %407 : vector<12x1xf32>
    %409 = math.rsqrt %408 : vector<12x1xf32>
    %410 = vector.broadcast %409 : vector<12x1xf32> to vector<12x32xf32>
    %411 = arith.mulf %406, %410 : vector<12x32xf32>
    %412 = vector.broadcast %298 : vector<1x32xf32> to vector<12x32xf32>
    %413 = arith.mulf %411, %412 : vector<12x32xf32>
    %414 = vector.broadcast %300 : vector<1x32xf32> to vector<12x32xf32>
    %415 = arith.addf %413, %414 : vector<12x32xf32>
    %cst_218 = arith.constant dense<0.000000e+00> : vector<12x32xf32>
    %416 = tpu.matmul %415, %302, %cst_218 {dimension_numbers = #tpu.dot_dimension_numbers<[1], [0], [0], [1], [0, 0, 1, 1], [], []>} : vector<12x32xf32>, vector<32x32xf32>, vector<12x32xf32> -> vector<12x32xf32>
    %417 = vector.broadcast %304 : vector<1x32xf32> to vector<12x32xf32>
    %418 = arith.addf %416, %417 : vector<12x32xf32>
    %cst_219 = arith.constant dense<0.000000e+00> : vector<16x64xf32>
    %419 = tpu.matmul %285, %306, %cst_219 {dimension_numbers = #tpu.dot_dimension_numbers<[1], [0], [0], [1], [0, 0, 1, 1], [], []>} : vector<16x32xf32>, vector<32x64xf32>, vector<16x64xf32> -> vector<16x64xf32>
    %420 = vector.broadcast %308 : vector<1x64xf32> to vector<16x64xf32>
    %421 = arith.addf %419, %420 : vector<16x64xf32>
    %422 = vector.extract_strided_slice %421 {offsets = [0, 0], sizes = [16, 32], strides = [1, 1]} : vector<16x64xf32> to vector<16x32xf32>
    %423 = vector.extract_strided_slice %421 {offsets = [0, 32], sizes = [16, 32], strides = [1, 1]} : vector<16x64xf32> to vector<16x32xf32>
    %424 = vector.extract_strided_slice %418 {offsets = [0, 0], sizes = [12, 8], strides = [1, 1]} : vector<12x32xf32> to vector<12x8xf32>
    %cst_220 = arith.constant 0.353553385 : f32
    %425 = vector.broadcast %cst_220 : f32 to vector<12x8xf32>
    %426 = arith.mulf %424, %425 : vector<12x8xf32>
    %427 = vector.extract_strided_slice %422 {offsets = [0, 0], sizes = [16, 8], strides = [1, 1]} : vector<16x32xf32> to vector<16x8xf32>
    %cst_221 = arith.constant dense<0.000000e+00> : vector<12x16xf32>
    %428 = tpu.matmul %426, %427, %cst_221 {dimension_numbers = #tpu.dot_dimension_numbers<[1], [1], [0], [0], [0, 0, 1, 0], [], []>} : vector<12x8xf32>, vector<16x8xf32>, vector<12x16xf32> -> vector<12x16xf32>
    %429 = vector.extract_strided_slice %418 {offsets = [0, 8], sizes = [12, 8], strides = [1, 1]} : vector<12x32xf32> to vector<12x8xf32>
    %cst_222 = arith.constant 0.353553385 : f32
    %430 = vector.broadcast %cst_222 : f32 to vector<12x8xf32>
    %431 = arith.mulf %429, %430 : vector<12x8xf32>
    %432 = vector.extract_strided_slice %422 {offsets = [0, 8], sizes = [16, 8], strides = [1, 1]} : vector<16x32xf32> to vector<16x8xf32>
    %cst_223 = arith.constant dense<0.000000e+00> : vector<12x16xf32>
    %433 = tpu.matmul %431, %432, %cst_223 {dimension_numbers = #tpu.dot_dimension_numbers<[1], [1], [0], [0], [0, 0, 1, 0], [], []>} : vector<12x8xf32>, vector<16x8xf32>, vector<12x16xf32> -> vector<12x16xf32>
    %434 = vector.extract_strided_slice %418 {offsets = [0, 16], sizes = [12, 8], strides = [1, 1]} : vector<12x32xf32> to vector<12x8xf32>
    %cst_224 = arith.constant 0.353553385 : f32
    %435 = vector.broadcast %cst_224 : f32 to vector<12x8xf32>
    %436 = arith.mulf %434, %435 : vector<12x8xf32>
    %437 = vector.extract_strided_slice %422 {offsets = [0, 16], sizes = [16, 8], strides = [1, 1]} : vector<16x32xf32> to vector<16x8xf32>
    %cst_225 = arith.constant dense<0.000000e+00> : vector<12x16xf32>
    %438 = tpu.matmul %436, %437, %cst_225 {dimension_numbers = #tpu.dot_dimension_numbers<[1], [1], [0], [0], [0, 0, 1, 0], [], []>} : vector<12x8xf32>, vector<16x8xf32>, vector<12x16xf32> -> vector<12x16xf32>
    %439 = vector.extract_strided_slice %418 {offsets = [0, 24], sizes = [12, 8], strides = [1, 1]} : vector<12x32xf32> to vector<12x8xf32>
    %cst_226 = arith.constant 0.353553385 : f32
    %440 = vector.broadcast %cst_226 : f32 to vector<12x8xf32>
    %441 = arith.mulf %439, %440 : vector<12x8xf32>
    %442 = vector.extract_strided_slice %422 {offsets = [0, 24], sizes = [16, 8], strides = [1, 1]} : vector<16x32xf32> to vector<16x8xf32>
    %cst_227 = arith.constant dense<0.000000e+00> : vector<12x16xf32>
    %443 = tpu.matmul %441, %442, %cst_227 {dimension_numbers = #tpu.dot_dimension_numbers<[1], [1], [0], [0], [0, 0, 1, 0], [], []>} : vector<12x8xf32>, vector<16x8xf32>, vector<12x16xf32> -> vector<12x16xf32>
    %444 = vector.shape_cast %428 : vector<12x16xf32> to vector<1x12x16xf32>
    %445 = vector.shape_cast %433 : vector<12x16xf32> to vector<1x12x16xf32>
    %446 = vector.shape_cast %438 : vector<12x16xf32> to vector<1x12x16xf32>
    %447 = vector.shape_cast %443 : vector<12x16xf32> to vector<1x12x16xf32>
    %448 = tpu.concatenate %444, %445, %446, %447 in 0 : vector<1x12x16xf32>, vector<1x12x16xf32>, vector<1x12x16xf32>, vector<1x12x16xf32> -> vector<4x12x16xf32>
    %449 = vector.shape_cast %288 : vector<12x16xf32> to vector<1x12x16xf32>
    %450 = vector.broadcast %449 : vector<1x12x16xf32> to vector<4x12x16xf32>
    %451 = arith.addf %448, %450 : vector<4x12x16xf32>
    %cst_228 = arith.constant dense<0xFF800000> : vector<4x12xf32>
    %452 = vector.multi_reduction <maximumf>, %451, %cst_228 [2] : vector<4x12x16xf32> to vector<4x12xf32>
    %453 = vector.shape_cast %452 : vector<4x12xf32> to vector<4x12x1xf32>
    %454 = vector.broadcast %453 : vector<4x12x1xf32> to vector<4x12x16xf32>
    %455 = arith.subf %451, %454 : vector<4x12x16xf32>
    %456 = math.exp %455 : vector<4x12x16xf32>
    %cst_229 = arith.constant dense<0.000000e+00> : vector<4x12xf32>
    %457 = vector.multi_reduction <add>, %456, %cst_229 [2] : vector<4x12x16xf32> to vector<4x12xf32>
    %458 = vector.shape_cast %457 : vector<4x12xf32> to vector<4x12x1xf32>
    %459 = tpu.reciprocal %458 {approx = true} : vector<4x12x1xf32> -> vector<4x12x1xf32>
    %460 = vector.broadcast %459 : vector<4x12x1xf32> to vector<4x12x16xf32>
    %461 = arith.mulf %456, %460 : vector<4x12x16xf32>
    %462 = vector.extract_strided_slice %461 {offsets = [0, 0, 0], sizes = [1, 12, 16], strides = [1, 1, 1]} : vector<4x12x16xf32> to vector<1x12x16xf32>
    %463 = vector.shape_cast %462 : vector<1x12x16xf32> to vector<12x16xf32>
    %464 = vector.extract_strided_slice %423 {offsets = [0, 0], sizes = [16, 8], strides = [1, 1]} : vector<16x32xf32> to vector<16x8xf32>
    %cst_230 = arith.constant dense<0.000000e+00> : vector<12x8xf32>
    %465 = tpu.matmul %463, %464, %cst_230 {dimension_numbers = #tpu.dot_dimension_numbers<[1], [0], [0], [1], [0, 0, 1, 1], [], []>} : vector<12x16xf32>, vector<16x8xf32>, vector<12x8xf32> -> vector<12x8xf32>
    %466 = vector.extract_strided_slice %461 {offsets = [1, 0, 0], sizes = [1, 12, 16], strides = [1, 1, 1]} : vector<4x12x16xf32> to vector<1x12x16xf32>
    %467 = vector.shape_cast %466 : vector<1x12x16xf32> to vector<12x16xf32>
    %468 = vector.extract_strided_slice %423 {offsets = [0, 8], sizes = [16, 8], strides = [1, 1]} : vector<16x32xf32> to vector<16x8xf32>
    %cst_231 = arith.constant dense<0.000000e+00> : vector<12x8xf32>
    %469 = tpu.matmul %467, %468, %cst_231 {dimension_numbers = #tpu.dot_dimension_numbers<[1], [0], [0], [1], [0, 0, 1, 1], [], []>} : vector<12x16xf32>, vector<16x8xf32>, vector<12x8xf32> -> vector<12x8xf32>
    %470 = vector.extract_strided_slice %461 {offsets = [2, 0, 0], sizes = [1, 12, 16], strides = [1, 1, 1]} : vector<4x12x16xf32> to vector<1x12x16xf32>
    %471 = vector.shape_cast %470 : vector<1x12x16xf32> to vector<12x16xf32>
    %472 = vector.extract_strided_slice %423 {offsets = [0, 16], sizes = [16, 8], strides = [1, 1]} : vector<16x32xf32> to vector<16x8xf32>
    %cst_232 = arith.constant dense<0.000000e+00> : vector<12x8xf32>
    %473 = tpu.matmul %471, %472, %cst_232 {dimension_numbers = #tpu.dot_dimension_numbers<[1], [0], [0], [1], [0, 0, 1, 1], [], []>} : vector<12x16xf32>, vector<16x8xf32>, vector<12x8xf32> -> vector<12x8xf32>
    %474 = vector.extract_strided_slice %461 {offsets = [3, 0, 0], sizes = [1, 12, 16], strides = [1, 1, 1]} : vector<4x12x16xf32> to vector<1x12x16xf32>
    %475 = vector.shape_cast %474 : vector<1x12x16xf32> to vector<12x16xf32>
    %476 = vector.extract_strided_slice %423 {offsets = [0, 24], sizes = [16, 8], strides = [1, 1]} : vector<16x32xf32> to vector<16x8xf32>
    %cst_233 = arith.constant dense<0.000000e+00> : vector<12x8xf32>
    %477 = tpu.matmul %475, %476, %cst_233 {dimension_numbers = #tpu.dot_dimension_numbers<[1], [0], [0], [1], [0, 0, 1, 1], [], []>} : vector<12x16xf32>, vector<16x8xf32>, vector<12x8xf32> -> vector<12x8xf32>
    %478 = tpu.concatenate %465, %469, %473, %477 in 1 : vector<12x8xf32>, vector<12x8xf32>, vector<12x8xf32>, vector<12x8xf32> -> vector<12x32xf32>
    %cst_234 = arith.constant dense<0.000000e+00> : vector<12x32xf32>
    %479 = tpu.matmul %478, %310, %cst_234 {dimension_numbers = #tpu.dot_dimension_numbers<[1], [0], [0], [1], [0, 0, 1, 1], [], []>} : vector<12x32xf32>, vector<32x32xf32>, vector<12x32xf32> -> vector<12x32xf32>
    %480 = arith.addf %415, %479 : vector<12x32xf32>
    %481 = vector.broadcast %312 : vector<1x32xf32> to vector<12x32xf32>
    %482 = arith.addf %480, %481 : vector<12x32xf32>
    %cst_235 = arith.constant dense<0.000000e+00> : vector<12xf32>
    %483 = vector.multi_reduction <add>, %482, %cst_235 [1] : vector<12x32xf32> to vector<12xf32>
    %484 = vector.shape_cast %483 : vector<12xf32> to vector<12x1xf32>
    %cst_236 = arith.constant 3.200000e+01 : f32
    %485 = vector.broadcast %cst_236 : f32 to vector<12x1xf32>
    %486 = arith.divf %484, %485 : vector<12x1xf32>
    %487 = vector.broadcast %486 : vector<12x1xf32> to vector<12x32xf32>
    %488 = arith.subf %482, %487 : vector<12x32xf32>
    %489 = arith.mulf %488, %488 : vector<12x32xf32>
    %cst_237 = arith.constant dense<0.000000e+00> : vector<12xf32>
    %490 = vector.multi_reduction <add>, %489, %cst_237 [1] : vector<12x32xf32> to vector<12xf32>
    %491 = vector.shape_cast %490 : vector<12xf32> to vector<12x1xf32>
    %cst_238 = arith.constant 3.200000e+01 : f32
    %492 = vector.broadcast %cst_238 : f32 to vector<12x1xf32>
    %493 = arith.divf %491, %492 : vector<12x1xf32>
    %494 = vector.broadcast %486 : vector<12x1xf32> to vector<12x32xf32>
    %495 = arith.subf %482, %494 : vector<12x32xf32>
    %cst_239 = arith.constant 9.99999974E-6 : f32
    %496 = vector.broadcast %cst_239 : f32 to vector<12x1xf32>
    %497 = arith.addf %493, %496 : vector<12x1xf32>
    %498 = math.rsqrt %497 : vector<12x1xf32>
    %499 = vector.broadcast %498 : vector<12x1xf32> to vector<12x32xf32>
    %500 = arith.mulf %495, %499 : vector<12x32xf32>
    %501 = vector.broadcast %314 : vector<1x32xf32> to vector<12x32xf32>
    %502 = arith.mulf %500, %501 : vector<12x32xf32>
    %503 = vector.broadcast %316 : vector<1x32xf32> to vector<12x32xf32>
    %504 = arith.addf %502, %503 : vector<12x32xf32>
    %cst_240 = arith.constant dense<0.000000e+00> : vector<12x64xf32>
    %505 = tpu.matmul %504, %318, %cst_240 {dimension_numbers = #tpu.dot_dimension_numbers<[1], [0], [0], [1], [0, 0, 1, 1], [], []>} : vector<12x32xf32>, vector<32x64xf32>, vector<12x64xf32> -> vector<12x64xf32>
    %506 = vector.broadcast %320 : vector<1x64xf32> to vector<12x64xf32>
    %507 = arith.addf %505, %506 : vector<12x64xf32>
    %cst_241 = arith.constant 0.000000e+00 : f32
    %508 = vector.broadcast %cst_241 : f32 to vector<12x64xf32>
    %509 = arith.maximumf %507, %508 : vector<12x64xf32>
    %cst_242 = arith.constant dense<0.000000e+00> : vector<12x32xf32>
    %510 = tpu.matmul %509, %322, %cst_242 {dimension_numbers = #tpu.dot_dimension_numbers<[1], [0], [0], [1], [0, 0, 1, 1], [], []>} : vector<12x64xf32>, vector<64x32xf32>, vector<12x32xf32> -> vector<12x32xf32>
    %511 = arith.addf %504, %510 : vector<12x32xf32>
    %512 = vector.broadcast %324 : vector<1x32xf32> to vector<12x32xf32>
    %513 = arith.addf %511, %512 : vector<12x32xf32>
    %cst_243 = arith.constant dense<0.000000e+00> : vector<12xf32>
    %514 = vector.multi_reduction <add>, %513, %cst_243 [1] : vector<12x32xf32> to vector<12xf32>
    %515 = vector.shape_cast %514 : vector<12xf32> to vector<12x1xf32>
    %cst_244 = arith.constant 3.200000e+01 : f32
    %516 = vector.broadcast %cst_244 : f32 to vector<12x1xf32>
    %517 = arith.divf %515, %516 : vector<12x1xf32>
    %518 = vector.broadcast %517 : vector<12x1xf32> to vector<12x32xf32>
    %519 = arith.subf %513, %518 : vector<12x32xf32>
    %520 = arith.mulf %519, %519 : vector<12x32xf32>
    %cst_245 = arith.constant dense<0.000000e+00> : vector<12xf32>
    %521 = vector.multi_reduction <add>, %520, %cst_245 [1] : vector<12x32xf32> to vector<12xf32>
    %522 = vector.shape_cast %521 : vector<12xf32> to vector<12x1xf32>
    %cst_246 = arith.constant 3.200000e+01 : f32
    %523 = vector.broadcast %cst_246 : f32 to vector<12x1xf32>
    %524 = arith.divf %522, %523 : vector<12x1xf32>
    %525 = vector.broadcast %517 : vector<12x1xf32> to vector<12x32xf32>
    %526 = arith.subf %513, %525 : vector<12x32xf32>
    %cst_247 = arith.constant 9.99999974E-6 : f32
    %527 = vector.broadcast %cst_247 : f32 to vector<12x1xf32>
    %528 = arith.addf %524, %527 : vector<12x1xf32>
    %529 = math.rsqrt %528 : vector<12x1xf32>
    %530 = vector.broadcast %529 : vector<12x1xf32> to vector<12x32xf32>
    %531 = arith.mulf %526, %530 : vector<12x32xf32>
    %532 = vector.broadcast %326 : vector<1x32xf32> to vector<12x32xf32>
    %533 = arith.mulf %531, %532 : vector<12x32xf32>
    %534 = vector.broadcast %328 : vector<1x32xf32> to vector<12x32xf32>
    %535 = arith.addf %533, %534 : vector<12x32xf32>
    %c1_248 = arith.constant 1 : index
    %c0_249 = arith.constant 0 : index
    %c0_250 = arith.constant 0 : index
    %536 = vector.load %arg17[%c1_248, %c0_249, %c0_250] : memref<2x32x96xf32, #tpu.memory_space<vmem>>, vector<1x32x96xf32>
    %537 = vector.shape_cast %536 : vector<1x32x96xf32> to vector<32x96xf32>
    %c1_251 = arith.constant 1 : index
    %c0_252 = arith.constant 0 : index
    %c0_253 = arith.constant 0 : index
    %538 = vector.load %arg18[%c1_251, %c0_252, %c0_253] : memref<2x1x96xf32, #tpu.memory_space<vmem>>, vector<1x1x96xf32>
    %539 = vector.shape_cast %538 : vector<1x1x96xf32> to vector<1x96xf32>
    %c1_254 = arith.constant 1 : index
    %c0_255 = arith.constant 0 : index
    %c0_256 = arith.constant 0 : index
    %540 = vector.load %arg19[%c1_254, %c0_255, %c0_256] : memref<2x32x32xf32, #tpu.memory_space<vmem>>, vector<1x32x32xf32>
    %541 = vector.shape_cast %540 : vector<1x32x32xf32> to vector<32x32xf32>
    %c1_257 = arith.constant 1 : index
    %c0_258 = arith.constant 0 : index
    %c0_259 = arith.constant 0 : index
    %542 = vector.load %arg20[%c1_257, %c0_258, %c0_259] : memref<2x1x32xf32, #tpu.memory_space<vmem>>, vector<1x1x32xf32>
    %543 = vector.shape_cast %542 : vector<1x1x32xf32> to vector<1x32xf32>
    %c1_260 = arith.constant 1 : index
    %c0_261 = arith.constant 0 : index
    %c0_262 = arith.constant 0 : index
    %544 = vector.load %arg21[%c1_260, %c0_261, %c0_262] : memref<2x1x32xf32, #tpu.memory_space<vmem>>, vector<1x1x32xf32>
    %545 = vector.shape_cast %544 : vector<1x1x32xf32> to vector<1x32xf32>
    %c1_263 = arith.constant 1 : index
    %c0_264 = arith.constant 0 : index
    %c0_265 = arith.constant 0 : index
    %546 = vector.load %arg22[%c1_263, %c0_264, %c0_265] : memref<2x1x32xf32, #tpu.memory_space<vmem>>, vector<1x1x32xf32>
    %547 = vector.shape_cast %546 : vector<1x1x32xf32> to vector<1x32xf32>
    %c1_266 = arith.constant 1 : index
    %c0_267 = arith.constant 0 : index
    %c0_268 = arith.constant 0 : index
    %548 = vector.load %arg23[%c1_266, %c0_267, %c0_268] : memref<2x32x32xf32, #tpu.memory_space<vmem>>, vector<1x32x32xf32>
    %549 = vector.shape_cast %548 : vector<1x32x32xf32> to vector<32x32xf32>
    %c1_269 = arith.constant 1 : index
    %c0_270 = arith.constant 0 : index
    %c0_271 = arith.constant 0 : index
    %550 = vector.load %arg24[%c1_269, %c0_270, %c0_271] : memref<2x1x32xf32, #tpu.memory_space<vmem>>, vector<1x1x32xf32>
    %551 = vector.shape_cast %550 : vector<1x1x32xf32> to vector<1x32xf32>
    %c1_272 = arith.constant 1 : index
    %c0_273 = arith.constant 0 : index
    %c0_274 = arith.constant 0 : index
    %552 = vector.load %arg25[%c1_272, %c0_273, %c0_274] : memref<2x32x64xf32, #tpu.memory_space<vmem>>, vector<1x32x64xf32>
    %553 = vector.shape_cast %552 : vector<1x32x64xf32> to vector<32x64xf32>
    %c1_275 = arith.constant 1 : index
    %c0_276 = arith.constant 0 : index
    %c0_277 = arith.constant 0 : index
    %554 = vector.load %arg26[%c1_275, %c0_276, %c0_277] : memref<2x1x64xf32, #tpu.memory_space<vmem>>, vector<1x1x64xf32>
    %555 = vector.shape_cast %554 : vector<1x1x64xf32> to vector<1x64xf32>
    %c1_278 = arith.constant 1 : index
    %c0_279 = arith.constant 0 : index
    %c0_280 = arith.constant 0 : index
    %556 = vector.load %arg27[%c1_278, %c0_279, %c0_280] : memref<2x32x32xf32, #tpu.memory_space<vmem>>, vector<1x32x32xf32>
    %557 = vector.shape_cast %556 : vector<1x32x32xf32> to vector<32x32xf32>
    %c1_281 = arith.constant 1 : index
    %c0_282 = arith.constant 0 : index
    %c0_283 = arith.constant 0 : index
    %558 = vector.load %arg28[%c1_281, %c0_282, %c0_283] : memref<2x1x32xf32, #tpu.memory_space<vmem>>, vector<1x1x32xf32>
    %559 = vector.shape_cast %558 : vector<1x1x32xf32> to vector<1x32xf32>
    %c1_284 = arith.constant 1 : index
    %c0_285 = arith.constant 0 : index
    %c0_286 = arith.constant 0 : index
    %560 = vector.load %arg29[%c1_284, %c0_285, %c0_286] : memref<2x1x32xf32, #tpu.memory_space<vmem>>, vector<1x1x32xf32>
    %561 = vector.shape_cast %560 : vector<1x1x32xf32> to vector<1x32xf32>
    %c1_287 = arith.constant 1 : index
    %c0_288 = arith.constant 0 : index
    %c0_289 = arith.constant 0 : index
    %562 = vector.load %arg30[%c1_287, %c0_288, %c0_289] : memref<2x1x32xf32, #tpu.memory_space<vmem>>, vector<1x1x32xf32>
    %563 = vector.shape_cast %562 : vector<1x1x32xf32> to vector<1x32xf32>
    %c1_290 = arith.constant 1 : index
    %c0_291 = arith.constant 0 : index
    %c0_292 = arith.constant 0 : index
    %564 = vector.load %arg31[%c1_290, %c0_291, %c0_292] : memref<2x32x64xf32, #tpu.memory_space<vmem>>, vector<1x32x64xf32>
    %565 = vector.shape_cast %564 : vector<1x32x64xf32> to vector<32x64xf32>
    %c1_293 = arith.constant 1 : index
    %c0_294 = arith.constant 0 : index
    %c0_295 = arith.constant 0 : index
    %566 = vector.load %arg32[%c1_293, %c0_294, %c0_295] : memref<2x1x64xf32, #tpu.memory_space<vmem>>, vector<1x1x64xf32>
    %567 = vector.shape_cast %566 : vector<1x1x64xf32> to vector<1x64xf32>
    %c1_296 = arith.constant 1 : index
    %c0_297 = arith.constant 0 : index
    %c0_298 = arith.constant 0 : index
    %568 = vector.load %arg33[%c1_296, %c0_297, %c0_298] : memref<2x64x32xf32, #tpu.memory_space<vmem>>, vector<1x64x32xf32>
    %569 = vector.shape_cast %568 : vector<1x64x32xf32> to vector<64x32xf32>
    %c1_299 = arith.constant 1 : index
    %c0_300 = arith.constant 0 : index
    %c0_301 = arith.constant 0 : index
    %570 = vector.load %arg34[%c1_299, %c0_300, %c0_301] : memref<2x1x32xf32, #tpu.memory_space<vmem>>, vector<1x1x32xf32>
    %571 = vector.shape_cast %570 : vector<1x1x32xf32> to vector<1x32xf32>
    %c1_302 = arith.constant 1 : index
    %c0_303 = arith.constant 0 : index
    %c0_304 = arith.constant 0 : index
    %572 = vector.load %arg35[%c1_302, %c0_303, %c0_304] : memref<2x1x32xf32, #tpu.memory_space<vmem>>, vector<1x1x32xf32>
    %573 = vector.shape_cast %572 : vector<1x1x32xf32> to vector<1x32xf32>
    %c1_305 = arith.constant 1 : index
    %c0_306 = arith.constant 0 : index
    %c0_307 = arith.constant 0 : index
    %574 = vector.load %arg36[%c1_305, %c0_306, %c0_307] : memref<2x1x32xf32, #tpu.memory_space<vmem>>, vector<1x1x32xf32>
    %575 = vector.shape_cast %574 : vector<1x1x32xf32> to vector<1x32xf32>
    %cst_308 = arith.constant dense<0.000000e+00> : vector<12x96xf32>
    %576 = tpu.matmul %535, %537, %cst_308 {dimension_numbers = #tpu.dot_dimension_numbers<[1], [0], [0], [1], [0, 0, 1, 1], [], []>} : vector<12x32xf32>, vector<32x96xf32>, vector<12x96xf32> -> vector<12x96xf32>
    %577 = vector.broadcast %539 : vector<1x96xf32> to vector<12x96xf32>
    %578 = arith.addf %576, %577 : vector<12x96xf32>
    %579 = vector.extract_strided_slice %578 {offsets = [0, 0], sizes = [12, 32], strides = [1, 1]} : vector<12x96xf32> to vector<12x32xf32>
    %580 = vector.extract_strided_slice %578 {offsets = [0, 32], sizes = [12, 32], strides = [1, 1]} : vector<12x96xf32> to vector<12x32xf32>
    %581 = vector.extract_strided_slice %578 {offsets = [0, 64], sizes = [12, 32], strides = [1, 1]} : vector<12x96xf32> to vector<12x32xf32>
    %582 = vector.extract_strided_slice %579 {offsets = [0, 0], sizes = [12, 8], strides = [1, 1]} : vector<12x32xf32> to vector<12x8xf32>
    %cst_309 = arith.constant 0.353553385 : f32
    %583 = vector.broadcast %cst_309 : f32 to vector<12x8xf32>
    %584 = arith.mulf %582, %583 : vector<12x8xf32>
    %585 = vector.extract_strided_slice %580 {offsets = [0, 0], sizes = [12, 8], strides = [1, 1]} : vector<12x32xf32> to vector<12x8xf32>
    %cst_310 = arith.constant dense<0.000000e+00> : vector<12x12xf32>
    %586 = tpu.matmul %584, %585, %cst_310 {dimension_numbers = #tpu.dot_dimension_numbers<[1], [1], [0], [0], [0, 0, 1, 0], [], []>} : vector<12x8xf32>, vector<12x8xf32>, vector<12x12xf32> -> vector<12x12xf32>
    %587 = vector.extract_strided_slice %579 {offsets = [0, 8], sizes = [12, 8], strides = [1, 1]} : vector<12x32xf32> to vector<12x8xf32>
    %cst_311 = arith.constant 0.353553385 : f32
    %588 = vector.broadcast %cst_311 : f32 to vector<12x8xf32>
    %589 = arith.mulf %587, %588 : vector<12x8xf32>
    %590 = vector.extract_strided_slice %580 {offsets = [0, 8], sizes = [12, 8], strides = [1, 1]} : vector<12x32xf32> to vector<12x8xf32>
    %cst_312 = arith.constant dense<0.000000e+00> : vector<12x12xf32>
    %591 = tpu.matmul %589, %590, %cst_312 {dimension_numbers = #tpu.dot_dimension_numbers<[1], [1], [0], [0], [0, 0, 1, 0], [], []>} : vector<12x8xf32>, vector<12x8xf32>, vector<12x12xf32> -> vector<12x12xf32>
    %592 = vector.extract_strided_slice %579 {offsets = [0, 16], sizes = [12, 8], strides = [1, 1]} : vector<12x32xf32> to vector<12x8xf32>
    %cst_313 = arith.constant 0.353553385 : f32
    %593 = vector.broadcast %cst_313 : f32 to vector<12x8xf32>
    %594 = arith.mulf %592, %593 : vector<12x8xf32>
    %595 = vector.extract_strided_slice %580 {offsets = [0, 16], sizes = [12, 8], strides = [1, 1]} : vector<12x32xf32> to vector<12x8xf32>
    %cst_314 = arith.constant dense<0.000000e+00> : vector<12x12xf32>
    %596 = tpu.matmul %594, %595, %cst_314 {dimension_numbers = #tpu.dot_dimension_numbers<[1], [1], [0], [0], [0, 0, 1, 0], [], []>} : vector<12x8xf32>, vector<12x8xf32>, vector<12x12xf32> -> vector<12x12xf32>
    %597 = vector.extract_strided_slice %579 {offsets = [0, 24], sizes = [12, 8], strides = [1, 1]} : vector<12x32xf32> to vector<12x8xf32>
    %cst_315 = arith.constant 0.353553385 : f32
    %598 = vector.broadcast %cst_315 : f32 to vector<12x8xf32>
    %599 = arith.mulf %597, %598 : vector<12x8xf32>
    %600 = vector.extract_strided_slice %580 {offsets = [0, 24], sizes = [12, 8], strides = [1, 1]} : vector<12x32xf32> to vector<12x8xf32>
    %cst_316 = arith.constant dense<0.000000e+00> : vector<12x12xf32>
    %601 = tpu.matmul %599, %600, %cst_316 {dimension_numbers = #tpu.dot_dimension_numbers<[1], [1], [0], [0], [0, 0, 1, 0], [], []>} : vector<12x8xf32>, vector<12x8xf32>, vector<12x12xf32> -> vector<12x12xf32>
    %602 = vector.shape_cast %586 : vector<12x12xf32> to vector<1x12x12xf32>
    %603 = vector.shape_cast %591 : vector<12x12xf32> to vector<1x12x12xf32>
    %604 = vector.shape_cast %596 : vector<12x12xf32> to vector<1x12x12xf32>
    %605 = vector.shape_cast %601 : vector<12x12xf32> to vector<1x12x12xf32>
    %606 = tpu.concatenate %602, %603, %604, %605 in 0 : vector<1x12x12xf32>, vector<1x12x12xf32>, vector<1x12x12xf32>, vector<1x12x12xf32> -> vector<4x12x12xf32>
    %607 = vector.shape_cast %287 : vector<12x12xf32> to vector<1x12x12xf32>
    %608 = vector.broadcast %607 : vector<1x12x12xf32> to vector<4x12x12xf32>
    %609 = arith.addf %606, %608 : vector<4x12x12xf32>
    %cst_317 = arith.constant dense<0xFF800000> : vector<4x12xf32>
    %610 = vector.multi_reduction <maximumf>, %609, %cst_317 [2] : vector<4x12x12xf32> to vector<4x12xf32>
    %611 = vector.shape_cast %610 : vector<4x12xf32> to vector<4x12x1xf32>
    %612 = vector.broadcast %611 : vector<4x12x1xf32> to vector<4x12x12xf32>
    %613 = arith.subf %609, %612 : vector<4x12x12xf32>
    %614 = math.exp %613 : vector<4x12x12xf32>
    %cst_318 = arith.constant dense<0.000000e+00> : vector<4x12xf32>
    %615 = vector.multi_reduction <add>, %614, %cst_318 [2] : vector<4x12x12xf32> to vector<4x12xf32>
    %616 = vector.shape_cast %615 : vector<4x12xf32> to vector<4x12x1xf32>
    %617 = tpu.reciprocal %616 {approx = true} : vector<4x12x1xf32> -> vector<4x12x1xf32>
    %618 = vector.broadcast %617 : vector<4x12x1xf32> to vector<4x12x12xf32>
    %619 = arith.mulf %614, %618 : vector<4x12x12xf32>
    %620 = vector.extract_strided_slice %619 {offsets = [0, 0, 0], sizes = [1, 12, 12], strides = [1, 1, 1]} : vector<4x12x12xf32> to vector<1x12x12xf32>
    %621 = vector.shape_cast %620 : vector<1x12x12xf32> to vector<12x12xf32>
    %622 = vector.extract_strided_slice %581 {offsets = [0, 0], sizes = [12, 8], strides = [1, 1]} : vector<12x32xf32> to vector<12x8xf32>
    %cst_319 = arith.constant dense<0.000000e+00> : vector<12x8xf32>
    %623 = tpu.matmul %621, %622, %cst_319 {dimension_numbers = #tpu.dot_dimension_numbers<[1], [0], [0], [1], [0, 0, 1, 1], [], []>} : vector<12x12xf32>, vector<12x8xf32>, vector<12x8xf32> -> vector<12x8xf32>
    %624 = vector.extract_strided_slice %619 {offsets = [1, 0, 0], sizes = [1, 12, 12], strides = [1, 1, 1]} : vector<4x12x12xf32> to vector<1x12x12xf32>
    %625 = vector.shape_cast %624 : vector<1x12x12xf32> to vector<12x12xf32>
    %626 = vector.extract_strided_slice %581 {offsets = [0, 8], sizes = [12, 8], strides = [1, 1]} : vector<12x32xf32> to vector<12x8xf32>
    %cst_320 = arith.constant dense<0.000000e+00> : vector<12x8xf32>
    %627 = tpu.matmul %625, %626, %cst_320 {dimension_numbers = #tpu.dot_dimension_numbers<[1], [0], [0], [1], [0, 0, 1, 1], [], []>} : vector<12x12xf32>, vector<12x8xf32>, vector<12x8xf32> -> vector<12x8xf32>
    %628 = vector.extract_strided_slice %619 {offsets = [2, 0, 0], sizes = [1, 12, 12], strides = [1, 1, 1]} : vector<4x12x12xf32> to vector<1x12x12xf32>
    %629 = vector.shape_cast %628 : vector<1x12x12xf32> to vector<12x12xf32>
    %630 = vector.extract_strided_slice %581 {offsets = [0, 16], sizes = [12, 8], strides = [1, 1]} : vector<12x32xf32> to vector<12x8xf32>
    %cst_321 = arith.constant dense<0.000000e+00> : vector<12x8xf32>
    %631 = tpu.matmul %629, %630, %cst_321 {dimension_numbers = #tpu.dot_dimension_numbers<[1], [0], [0], [1], [0, 0, 1, 1], [], []>} : vector<12x12xf32>, vector<12x8xf32>, vector<12x8xf32> -> vector<12x8xf32>
    %632 = vector.extract_strided_slice %619 {offsets = [3, 0, 0], sizes = [1, 12, 12], strides = [1, 1, 1]} : vector<4x12x12xf32> to vector<1x12x12xf32>
    %633 = vector.shape_cast %632 : vector<1x12x12xf32> to vector<12x12xf32>
    %634 = vector.extract_strided_slice %581 {offsets = [0, 24], sizes = [12, 8], strides = [1, 1]} : vector<12x32xf32> to vector<12x8xf32>
    %cst_322 = arith.constant dense<0.000000e+00> : vector<12x8xf32>
    %635 = tpu.matmul %633, %634, %cst_322 {dimension_numbers = #tpu.dot_dimension_numbers<[1], [0], [0], [1], [0, 0, 1, 1], [], []>} : vector<12x12xf32>, vector<12x8xf32>, vector<12x8xf32> -> vector<12x8xf32>
    %636 = tpu.concatenate %623, %627, %631, %635 in 1 : vector<12x8xf32>, vector<12x8xf32>, vector<12x8xf32>, vector<12x8xf32> -> vector<12x32xf32>
    %cst_323 = arith.constant dense<0.000000e+00> : vector<12x32xf32>
    %637 = tpu.matmul %636, %541, %cst_323 {dimension_numbers = #tpu.dot_dimension_numbers<[1], [0], [0], [1], [0, 0, 1, 1], [], []>} : vector<12x32xf32>, vector<32x32xf32>, vector<12x32xf32> -> vector<12x32xf32>
    %638 = arith.addf %535, %637 : vector<12x32xf32>
    %639 = vector.broadcast %543 : vector<1x32xf32> to vector<12x32xf32>
    %640 = arith.addf %638, %639 : vector<12x32xf32>
    %cst_324 = arith.constant dense<0.000000e+00> : vector<12xf32>
    %641 = vector.multi_reduction <add>, %640, %cst_324 [1] : vector<12x32xf32> to vector<12xf32>
    %642 = vector.shape_cast %641 : vector<12xf32> to vector<12x1xf32>
    %cst_325 = arith.constant 3.200000e+01 : f32
    %643 = vector.broadcast %cst_325 : f32 to vector<12x1xf32>
    %644 = arith.divf %642, %643 : vector<12x1xf32>
    %645 = vector.broadcast %644 : vector<12x1xf32> to vector<12x32xf32>
    %646 = arith.subf %640, %645 : vector<12x32xf32>
    %647 = arith.mulf %646, %646 : vector<12x32xf32>
    %cst_326 = arith.constant dense<0.000000e+00> : vector<12xf32>
    %648 = vector.multi_reduction <add>, %647, %cst_326 [1] : vector<12x32xf32> to vector<12xf32>
    %649 = vector.shape_cast %648 : vector<12xf32> to vector<12x1xf32>
    %cst_327 = arith.constant 3.200000e+01 : f32
    %650 = vector.broadcast %cst_327 : f32 to vector<12x1xf32>
    %651 = arith.divf %649, %650 : vector<12x1xf32>
    %652 = vector.broadcast %644 : vector<12x1xf32> to vector<12x32xf32>
    %653 = arith.subf %640, %652 : vector<12x32xf32>
    %cst_328 = arith.constant 9.99999974E-6 : f32
    %654 = vector.broadcast %cst_328 : f32 to vector<12x1xf32>
    %655 = arith.addf %651, %654 : vector<12x1xf32>
    %656 = math.rsqrt %655 : vector<12x1xf32>
    %657 = vector.broadcast %656 : vector<12x1xf32> to vector<12x32xf32>
    %658 = arith.mulf %653, %657 : vector<12x32xf32>
    %659 = vector.broadcast %545 : vector<1x32xf32> to vector<12x32xf32>
    %660 = arith.mulf %658, %659 : vector<12x32xf32>
    %661 = vector.broadcast %547 : vector<1x32xf32> to vector<12x32xf32>
    %662 = arith.addf %660, %661 : vector<12x32xf32>
    %cst_329 = arith.constant dense<0.000000e+00> : vector<12x32xf32>
    %663 = tpu.matmul %662, %549, %cst_329 {dimension_numbers = #tpu.dot_dimension_numbers<[1], [0], [0], [1], [0, 0, 1, 1], [], []>} : vector<12x32xf32>, vector<32x32xf32>, vector<12x32xf32> -> vector<12x32xf32>
    %664 = vector.broadcast %551 : vector<1x32xf32> to vector<12x32xf32>
    %665 = arith.addf %663, %664 : vector<12x32xf32>
    %cst_330 = arith.constant dense<0.000000e+00> : vector<16x64xf32>
    %666 = tpu.matmul %285, %553, %cst_330 {dimension_numbers = #tpu.dot_dimension_numbers<[1], [0], [0], [1], [0, 0, 1, 1], [], []>} : vector<16x32xf32>, vector<32x64xf32>, vector<16x64xf32> -> vector<16x64xf32>
    %667 = vector.broadcast %555 : vector<1x64xf32> to vector<16x64xf32>
    %668 = arith.addf %666, %667 : vector<16x64xf32>
    %669 = vector.extract_strided_slice %668 {offsets = [0, 0], sizes = [16, 32], strides = [1, 1]} : vector<16x64xf32> to vector<16x32xf32>
    %670 = vector.extract_strided_slice %668 {offsets = [0, 32], sizes = [16, 32], strides = [1, 1]} : vector<16x64xf32> to vector<16x32xf32>
    %671 = vector.extract_strided_slice %665 {offsets = [0, 0], sizes = [12, 8], strides = [1, 1]} : vector<12x32xf32> to vector<12x8xf32>
    %cst_331 = arith.constant 0.353553385 : f32
    %672 = vector.broadcast %cst_331 : f32 to vector<12x8xf32>
    %673 = arith.mulf %671, %672 : vector<12x8xf32>
    %674 = vector.extract_strided_slice %669 {offsets = [0, 0], sizes = [16, 8], strides = [1, 1]} : vector<16x32xf32> to vector<16x8xf32>
    %cst_332 = arith.constant dense<0.000000e+00> : vector<12x16xf32>
    %675 = tpu.matmul %673, %674, %cst_332 {dimension_numbers = #tpu.dot_dimension_numbers<[1], [1], [0], [0], [0, 0, 1, 0], [], []>} : vector<12x8xf32>, vector<16x8xf32>, vector<12x16xf32> -> vector<12x16xf32>
    %676 = vector.extract_strided_slice %665 {offsets = [0, 8], sizes = [12, 8], strides = [1, 1]} : vector<12x32xf32> to vector<12x8xf32>
    %cst_333 = arith.constant 0.353553385 : f32
    %677 = vector.broadcast %cst_333 : f32 to vector<12x8xf32>
    %678 = arith.mulf %676, %677 : vector<12x8xf32>
    %679 = vector.extract_strided_slice %669 {offsets = [0, 8], sizes = [16, 8], strides = [1, 1]} : vector<16x32xf32> to vector<16x8xf32>
    %cst_334 = arith.constant dense<0.000000e+00> : vector<12x16xf32>
    %680 = tpu.matmul %678, %679, %cst_334 {dimension_numbers = #tpu.dot_dimension_numbers<[1], [1], [0], [0], [0, 0, 1, 0], [], []>} : vector<12x8xf32>, vector<16x8xf32>, vector<12x16xf32> -> vector<12x16xf32>
    %681 = vector.extract_strided_slice %665 {offsets = [0, 16], sizes = [12, 8], strides = [1, 1]} : vector<12x32xf32> to vector<12x8xf32>
    %cst_335 = arith.constant 0.353553385 : f32
    %682 = vector.broadcast %cst_335 : f32 to vector<12x8xf32>
    %683 = arith.mulf %681, %682 : vector<12x8xf32>
    %684 = vector.extract_strided_slice %669 {offsets = [0, 16], sizes = [16, 8], strides = [1, 1]} : vector<16x32xf32> to vector<16x8xf32>
    %cst_336 = arith.constant dense<0.000000e+00> : vector<12x16xf32>
    %685 = tpu.matmul %683, %684, %cst_336 {dimension_numbers = #tpu.dot_dimension_numbers<[1], [1], [0], [0], [0, 0, 1, 0], [], []>} : vector<12x8xf32>, vector<16x8xf32>, vector<12x16xf32> -> vector<12x16xf32>
    %686 = vector.extract_strided_slice %665 {offsets = [0, 24], sizes = [12, 8], strides = [1, 1]} : vector<12x32xf32> to vector<12x8xf32>
    %cst_337 = arith.constant 0.353553385 : f32
    %687 = vector.broadcast %cst_337 : f32 to vector<12x8xf32>
    %688 = arith.mulf %686, %687 : vector<12x8xf32>
    %689 = vector.extract_strided_slice %669 {offsets = [0, 24], sizes = [16, 8], strides = [1, 1]} : vector<16x32xf32> to vector<16x8xf32>
    %cst_338 = arith.constant dense<0.000000e+00> : vector<12x16xf32>
    %690 = tpu.matmul %688, %689, %cst_338 {dimension_numbers = #tpu.dot_dimension_numbers<[1], [1], [0], [0], [0, 0, 1, 0], [], []>} : vector<12x8xf32>, vector<16x8xf32>, vector<12x16xf32> -> vector<12x16xf32>
    %691 = vector.shape_cast %675 : vector<12x16xf32> to vector<1x12x16xf32>
    %692 = vector.shape_cast %680 : vector<12x16xf32> to vector<1x12x16xf32>
    %693 = vector.shape_cast %685 : vector<12x16xf32> to vector<1x12x16xf32>
    %694 = vector.shape_cast %690 : vector<12x16xf32> to vector<1x12x16xf32>
    %695 = tpu.concatenate %691, %692, %693, %694 in 0 : vector<1x12x16xf32>, vector<1x12x16xf32>, vector<1x12x16xf32>, vector<1x12x16xf32> -> vector<4x12x16xf32>
    %696 = vector.shape_cast %288 : vector<12x16xf32> to vector<1x12x16xf32>
    %697 = vector.broadcast %696 : vector<1x12x16xf32> to vector<4x12x16xf32>
    %698 = arith.addf %695, %697 : vector<4x12x16xf32>
    %cst_339 = arith.constant dense<0xFF800000> : vector<4x12xf32>
    %699 = vector.multi_reduction <maximumf>, %698, %cst_339 [2] : vector<4x12x16xf32> to vector<4x12xf32>
    %700 = vector.shape_cast %699 : vector<4x12xf32> to vector<4x12x1xf32>
    %701 = vector.broadcast %700 : vector<4x12x1xf32> to vector<4x12x16xf32>
    %702 = arith.subf %698, %701 : vector<4x12x16xf32>
    %703 = math.exp %702 : vector<4x12x16xf32>
    %cst_340 = arith.constant dense<0.000000e+00> : vector<4x12xf32>
    %704 = vector.multi_reduction <add>, %703, %cst_340 [2] : vector<4x12x16xf32> to vector<4x12xf32>
    %705 = vector.shape_cast %704 : vector<4x12xf32> to vector<4x12x1xf32>
    %706 = tpu.reciprocal %705 {approx = true} : vector<4x12x1xf32> -> vector<4x12x1xf32>
    %707 = vector.broadcast %706 : vector<4x12x1xf32> to vector<4x12x16xf32>
    %708 = arith.mulf %703, %707 : vector<4x12x16xf32>
    %709 = vector.extract_strided_slice %708 {offsets = [0, 0, 0], sizes = [1, 12, 16], strides = [1, 1, 1]} : vector<4x12x16xf32> to vector<1x12x16xf32>
    %710 = vector.shape_cast %709 : vector<1x12x16xf32> to vector<12x16xf32>
    %711 = vector.extract_strided_slice %670 {offsets = [0, 0], sizes = [16, 8], strides = [1, 1]} : vector<16x32xf32> to vector<16x8xf32>
    %cst_341 = arith.constant dense<0.000000e+00> : vector<12x8xf32>
    %712 = tpu.matmul %710, %711, %cst_341 {dimension_numbers = #tpu.dot_dimension_numbers<[1], [0], [0], [1], [0, 0, 1, 1], [], []>} : vector<12x16xf32>, vector<16x8xf32>, vector<12x8xf32> -> vector<12x8xf32>
    %713 = vector.extract_strided_slice %708 {offsets = [1, 0, 0], sizes = [1, 12, 16], strides = [1, 1, 1]} : vector<4x12x16xf32> to vector<1x12x16xf32>
    %714 = vector.shape_cast %713 : vector<1x12x16xf32> to vector<12x16xf32>
    %715 = vector.extract_strided_slice %670 {offsets = [0, 8], sizes = [16, 8], strides = [1, 1]} : vector<16x32xf32> to vector<16x8xf32>
    %cst_342 = arith.constant dense<0.000000e+00> : vector<12x8xf32>
    %716 = tpu.matmul %714, %715, %cst_342 {dimension_numbers = #tpu.dot_dimension_numbers<[1], [0], [0], [1], [0, 0, 1, 1], [], []>} : vector<12x16xf32>, vector<16x8xf32>, vector<12x8xf32> -> vector<12x8xf32>
    %717 = vector.extract_strided_slice %708 {offsets = [2, 0, 0], sizes = [1, 12, 16], strides = [1, 1, 1]} : vector<4x12x16xf32> to vector<1x12x16xf32>
    %718 = vector.shape_cast %717 : vector<1x12x16xf32> to vector<12x16xf32>
    %719 = vector.extract_strided_slice %670 {offsets = [0, 16], sizes = [16, 8], strides = [1, 1]} : vector<16x32xf32> to vector<16x8xf32>
    %cst_343 = arith.constant dense<0.000000e+00> : vector<12x8xf32>
    %720 = tpu.matmul %718, %719, %cst_343 {dimension_numbers = #tpu.dot_dimension_numbers<[1], [0], [0], [1], [0, 0, 1, 1], [], []>} : vector<12x16xf32>, vector<16x8xf32>, vector<12x8xf32> -> vector<12x8xf32>
    %721 = vector.extract_strided_slice %708 {offsets = [3, 0, 0], sizes = [1, 12, 16], strides = [1, 1, 1]} : vector<4x12x16xf32> to vector<1x12x16xf32>
    %722 = vector.shape_cast %721 : vector<1x12x16xf32> to vector<12x16xf32>
    %723 = vector.extract_strided_slice %670 {offsets = [0, 24], sizes = [16, 8], strides = [1, 1]} : vector<16x32xf32> to vector<16x8xf32>
    %cst_344 = arith.constant dense<0.000000e+00> : vector<12x8xf32>
    %724 = tpu.matmul %722, %723, %cst_344 {dimension_numbers = #tpu.dot_dimension_numbers<[1], [0], [0], [1], [0, 0, 1, 1], [], []>} : vector<12x16xf32>, vector<16x8xf32>, vector<12x8xf32> -> vector<12x8xf32>
    %725 = tpu.concatenate %712, %716, %720, %724 in 1 : vector<12x8xf32>, vector<12x8xf32>, vector<12x8xf32>, vector<12x8xf32> -> vector<12x32xf32>
    %cst_345 = arith.constant dense<0.000000e+00> : vector<12x32xf32>
    %726 = tpu.matmul %725, %557, %cst_345 {dimension_numbers = #tpu.dot_dimension_numbers<[1], [0], [0], [1], [0, 0, 1, 1], [], []>} : vector<12x32xf32>, vector<32x32xf32>, vector<12x32xf32> -> vector<12x32xf32>
    %727 = arith.addf %662, %726 : vector<12x32xf32>
    %728 = vector.broadcast %559 : vector<1x32xf32> to vector<12x32xf32>
    %729 = arith.addf %727, %728 : vector<12x32xf32>
    %cst_346 = arith.constant dense<0.000000e+00> : vector<12xf32>
    %730 = vector.multi_reduction <add>, %729, %cst_346 [1] : vector<12x32xf32> to vector<12xf32>
    %731 = vector.shape_cast %730 : vector<12xf32> to vector<12x1xf32>
    %cst_347 = arith.constant 3.200000e+01 : f32
    %732 = vector.broadcast %cst_347 : f32 to vector<12x1xf32>
    %733 = arith.divf %731, %732 : vector<12x1xf32>
    %734 = vector.broadcast %733 : vector<12x1xf32> to vector<12x32xf32>
    %735 = arith.subf %729, %734 : vector<12x32xf32>
    %736 = arith.mulf %735, %735 : vector<12x32xf32>
    %cst_348 = arith.constant dense<0.000000e+00> : vector<12xf32>
    %737 = vector.multi_reduction <add>, %736, %cst_348 [1] : vector<12x32xf32> to vector<12xf32>
    %738 = vector.shape_cast %737 : vector<12xf32> to vector<12x1xf32>
    %cst_349 = arith.constant 3.200000e+01 : f32
    %739 = vector.broadcast %cst_349 : f32 to vector<12x1xf32>
    %740 = arith.divf %738, %739 : vector<12x1xf32>
    %741 = vector.broadcast %733 : vector<12x1xf32> to vector<12x32xf32>
    %742 = arith.subf %729, %741 : vector<12x32xf32>
    %cst_350 = arith.constant 9.99999974E-6 : f32
    %743 = vector.broadcast %cst_350 : f32 to vector<12x1xf32>
    %744 = arith.addf %740, %743 : vector<12x1xf32>
    %745 = math.rsqrt %744 : vector<12x1xf32>
    %746 = vector.broadcast %745 : vector<12x1xf32> to vector<12x32xf32>
    %747 = arith.mulf %742, %746 : vector<12x32xf32>
    %748 = vector.broadcast %561 : vector<1x32xf32> to vector<12x32xf32>
    %749 = arith.mulf %747, %748 : vector<12x32xf32>
    %750 = vector.broadcast %563 : vector<1x32xf32> to vector<12x32xf32>
    %751 = arith.addf %749, %750 : vector<12x32xf32>
    %cst_351 = arith.constant dense<0.000000e+00> : vector<12x64xf32>
    %752 = tpu.matmul %751, %565, %cst_351 {dimension_numbers = #tpu.dot_dimension_numbers<[1], [0], [0], [1], [0, 0, 1, 1], [], []>} : vector<12x32xf32>, vector<32x64xf32>, vector<12x64xf32> -> vector<12x64xf32>
    %753 = vector.broadcast %567 : vector<1x64xf32> to vector<12x64xf32>
    %754 = arith.addf %752, %753 : vector<12x64xf32>
    %cst_352 = arith.constant 0.000000e+00 : f32
    %755 = vector.broadcast %cst_352 : f32 to vector<12x64xf32>
    %756 = arith.maximumf %754, %755 : vector<12x64xf32>
    %cst_353 = arith.constant dense<0.000000e+00> : vector<12x32xf32>
    %757 = tpu.matmul %756, %569, %cst_353 {dimension_numbers = #tpu.dot_dimension_numbers<[1], [0], [0], [1], [0, 0, 1, 1], [], []>} : vector<12x64xf32>, vector<64x32xf32>, vector<12x32xf32> -> vector<12x32xf32>
    %758 = arith.addf %751, %757 : vector<12x32xf32>
    %759 = vector.broadcast %571 : vector<1x32xf32> to vector<12x32xf32>
    %760 = arith.addf %758, %759 : vector<12x32xf32>
    %cst_354 = arith.constant dense<0.000000e+00> : vector<12xf32>
    %761 = vector.multi_reduction <add>, %760, %cst_354 [1] : vector<12x32xf32> to vector<12xf32>
    %762 = vector.shape_cast %761 : vector<12xf32> to vector<12x1xf32>
    %cst_355 = arith.constant 3.200000e+01 : f32
    %763 = vector.broadcast %cst_355 : f32 to vector<12x1xf32>
    %764 = arith.divf %762, %763 : vector<12x1xf32>
    %765 = vector.broadcast %764 : vector<12x1xf32> to vector<12x32xf32>
    %766 = arith.subf %760, %765 : vector<12x32xf32>
    %767 = arith.mulf %766, %766 : vector<12x32xf32>
    %cst_356 = arith.constant dense<0.000000e+00> : vector<12xf32>
    %768 = vector.multi_reduction <add>, %767, %cst_356 [1] : vector<12x32xf32> to vector<12xf32>
    %769 = vector.shape_cast %768 : vector<12xf32> to vector<12x1xf32>
    %cst_357 = arith.constant 3.200000e+01 : f32
    %770 = vector.broadcast %cst_357 : f32 to vector<12x1xf32>
    %771 = arith.divf %769, %770 : vector<12x1xf32>
    %772 = vector.broadcast %764 : vector<12x1xf32> to vector<12x32xf32>
    %773 = arith.subf %760, %772 : vector<12x32xf32>
    %cst_358 = arith.constant 9.99999974E-6 : f32
    %774 = vector.broadcast %cst_358 : f32 to vector<12x1xf32>
    %775 = arith.addf %771, %774 : vector<12x1xf32>
    %776 = math.rsqrt %775 : vector<12x1xf32>
    %777 = vector.broadcast %776 : vector<12x1xf32> to vector<12x32xf32>
    %778 = arith.mulf %773, %777 : vector<12x32xf32>
    %779 = vector.broadcast %573 : vector<1x32xf32> to vector<12x32xf32>
    %780 = arith.mulf %778, %779 : vector<12x32xf32>
    %781 = vector.broadcast %575 : vector<1x32xf32> to vector<12x32xf32>
    %782 = arith.addf %780, %781 : vector<12x32xf32>
    %c0_359 = arith.constant 0 : index
    %c0_360 = arith.constant 0 : index
    %c0_361 = arith.constant 0 : index
    %783 = vector.load %arg46[%c0_359, %c0_360, %c0_361] : memref<4x12x16xf32, #tpu.memory_space<vmem>>, vector<4x12x16xf32>
    tpu.vector_store %arg46[%c0_359, %c0_360, %c0_361], %708 {strides = array<i32>} : memref<4x12x16xf32, #tpu.memory_space<vmem>>, vector<4x12x16xf32>,
    %c0_362 = arith.constant 0 : index
    %c0_363 = arith.constant 0 : index
    %784 = vector.load %arg37[%c0_362, %c0_363] : memref<32x10xf32, #tpu.memory_space<vmem>>, vector<32x10xf32>
    %cst_364 = arith.constant dense<0.000000e+00> : vector<12x10xf32>
    %785 = tpu.matmul %782, %784, %cst_364 {dimension_numbers = #tpu.dot_dimension_numbers<[1], [0], [0], [1], [0, 0, 1, 1], [], []>} : vector<12x32xf32>, vector<32x10xf32>, vector<12x10xf32> -> vector<12x10xf32>
    %c0_365 = arith.constant 0 : index
    %c0_366 = arith.constant 0 : index
    %786 = vector.load %arg38[%c0_365, %c0_366] : memref<1x10xf32, #tpu.memory_space<vmem>>, vector<1x10xf32>
    %787 = vector.broadcast %786 : vector<1x10xf32> to vector<12x10xf32>
    %788 = arith.addf %785, %787 : vector<12x10xf32>
    %c0_367 = arith.constant 0 : index
    %c0_368 = arith.constant 0 : index
    %789 = vector.load %arg43[%c0_367, %c0_368] : memref<12x10xf32, #tpu.memory_space<vmem>>, vector<12x10xf32>
    tpu.vector_store %arg43[%c0_367, %c0_368], %788 {strides = array<i32>} : memref<12x10xf32, #tpu.memory_space<vmem>>, vector<12x10xf32>,
    %c0_369 = arith.constant 0 : index
    %c0_370 = arith.constant 0 : index
    %790 = vector.load %arg39[%c0_369, %c0_370] : memref<32x8xf32, #tpu.memory_space<vmem>>, vector<32x8xf32>
    %cst_371 = arith.constant dense<0.000000e+00> : vector<12x8xf32>
    %791 = tpu.matmul %782, %790, %cst_371 {dimension_numbers = #tpu.dot_dimension_numbers<[1], [0], [0], [1], [0, 0, 1, 1], [], []>} : vector<12x32xf32>, vector<32x8xf32>, vector<12x8xf32> -> vector<12x8xf32>
    %c0_372 = arith.constant 0 : index
    %c0_373 = arith.constant 0 : index
    %792 = vector.load %arg40[%c0_372, %c0_373] : memref<1x8xf32, #tpu.memory_space<vmem>>, vector<1x8xf32>
    %793 = vector.broadcast %792 : vector<1x8xf32> to vector<12x8xf32>
    %794 = arith.addf %791, %793 : vector<12x8xf32>
    %c0_374 = arith.constant 0 : index
    %c0_375 = arith.constant 0 : index
    %795 = vector.load %arg44[%c0_374, %c0_375] : memref<12x8xf32, #tpu.memory_space<vmem>>, vector<12x8xf32>
    tpu.vector_store %arg44[%c0_374, %c0_375], %794 {strides = array<i32>} : memref<12x8xf32, #tpu.memory_space<vmem>>, vector<12x8xf32>,
    %c0_376 = arith.constant 0 : index
    %c0_377 = arith.constant 0 : index
    %796 = vector.load %arg41[%c0_376, %c0_377] : memref<32x24xf32, #tpu.memory_space<vmem>>, vector<32x24xf32>
    %cst_378 = arith.constant dense<0.000000e+00> : vector<12x24xf32>
    %797 = tpu.matmul %782, %796, %cst_378 {dimension_numbers = #tpu.dot_dimension_numbers<[1], [0], [0], [1], [0, 0, 1, 1], [], []>} : vector<12x32xf32>, vector<32x24xf32>, vector<12x24xf32> -> vector<12x24xf32>
    %c0_379 = arith.constant 0 : index
    %c0_380 = arith.constant 0 : index
    %798 = vector.load %arg42[%c0_379, %c0_380] : memref<1x24xf32, #tpu.memory_space<vmem>>, vector<1x24xf32>
    %799 = vector.broadcast %798 : vector<1x24xf32> to vector<12x24xf32>
    %800 = arith.addf %797, %799 : vector<12x24xf32>
    %c0_381 = arith.constant 0 : index
    %c0_382 = arith.constant 0 : index
    %801 = vector.load %arg45[%c0_381, %c0_382] : memref<12x24xf32, #tpu.memory_space<vmem>>, vector<12x24xf32>
    tpu.vector_store %arg45[%c0_381, %c0_382], %800 {strides = array<i32>} : memref<12x24xf32, #tpu.memory_space<vmem>>, vector<12x24xf32>,
    return
  }
}

</mosaic_0001>

<llo_original>
// kernel: transformer_forward.1
$region0: #{transformer_forward.1}
  #allocation0 [shape = 'u32[]', space=smem, size = 0x4, offset = 0x4, fixed_abs, tag = 'smem constant byte address 0x4 - core index']
  #allocation1 [shape = 'u32[144,128]{1,0:T(1,128)}', space=vmem, size = 0x12000, scoped, tag = 'internal scratch']
  %s0 = inlined_call_operand.smem [shape: u32[47], index: -1, kind: input, shape index: {}]
  %s1 = sld [smem:[%s0]]
  %s2 = scalar_lea.smem %s0, 1
  %s3 = sld [smem:[%s2]]
  %s4 = scalar_lea.smem %s0, 2
  %s5 = sld [smem:[%s4]]
  %s6 = scalar_lea.smem %s0, 3
  %s7 = sld [smem:[%s6]]
  %s8 = scalar_lea.smem %s0, 4
  %s9 = sld [smem:[%s8]]
  %s10 = scalar_lea.smem %s0, 5
  %s11 = sld [smem:[%s10]]
  %s12 = scalar_lea.smem %s0, 6
  %s13 = sld [smem:[%s12]]
  %s14 = scalar_lea.smem %s0, 7
  %s15 = sld [smem:[%s14]]
  %s16 = scalar_lea.smem %s0, 8
  %s17 = sld [smem:[%s16]]
  %s18 = scalar_lea.smem %s0, 9
  %s19 = sld [smem:[%s18]]
  %s20 = scalar_lea.smem %s0, 10
  %s21 = sld [smem:[%s20]]
  %s22 = scalar_lea.smem %s0, 11
  %s23 = sld [smem:[%s22]]
  %s24 = scalar_lea.smem %s0, 12
  %s25 = sld [smem:[%s24]]
  %s26 = scalar_lea.smem %s0, 13
  %s27 = sld [smem:[%s26]]
  %s28 = scalar_lea.smem %s0, 14
  %s29 = sld [smem:[%s28]]
  %s30 = scalar_lea.smem %s0, 15
  %s31 = sld [smem:[%s30]]
  %s32 = scalar_lea.smem %s0, 16
  %s33 = sld [smem:[%s32]]
  %s34 = scalar_lea.smem %s0, 17
  %s35 = sld [smem:[%s34]]
  %s36 = scalar_lea.smem %s0, 18
  %s37 = sld [smem:[%s36]]
  %s38 = scalar_lea.smem %s0, 19
  %s39 = sld [smem:[%s38]]
  %s40 = scalar_lea.smem %s0, 20
  %s41 = sld [smem:[%s40]]
  %s42 = scalar_lea.smem %s0, 21
  %s43 = sld [smem:[%s42]]
  %s44 = scalar_lea.smem %s0, 22
  %s45 = sld [smem:[%s44]]
  %s46 = scalar_lea.smem %s0, 23
  %s47 = sld [smem:[%s46]]
  %s48 = scalar_lea.smem %s0, 24
  %s49 = sld [smem:[%s48]]
  %s50 = scalar_lea.smem %s0, 25
  %s51 = sld [smem:[%s50]]
  %s52 = scalar_lea.smem %s0, 26
  %s53 = sld [smem:[%s52]]
  %s54 = scalar_lea.smem %s0, 27
  %s55 = sld [smem:[%s54]]
  %s56 = scalar_lea.smem %s0, 28
  %s57 = sld [smem:[%s56]]
  %s58 = scalar_lea.smem %s0, 29
  %s59 = sld [smem:[%s58]]
  %s60 = scalar_lea.smem %s0, 30
  %s61 = sld [smem:[%s60]]
  %s62 = scalar_lea.smem %s0, 31
  %s63 = sld [smem:[%s62]]
  %s64 = scalar_lea.smem %s0, 32
  %s65 = sld [smem:[%s64]]
  %s66 = scalar_lea.smem %s0, 33
  %s67 = sld [smem:[%s66]]
  %s68 = scalar_lea.smem %s0, 34
  %s69 = sld [smem:[%s68]]
  %s70 = scalar_lea.smem %s0, 35
  %s71 = sld [smem:[%s70]]
  %s72 = scalar_lea.smem %s0, 36
  %s73 = sld [smem:[%s72]]
  %s74 = scalar_lea.smem %s0, 37
  %s75 = sld [smem:[%s74]]
  %s76 = scalar_lea.smem %s0, 38
  %s77 = sld [smem:[%s76]]
  %s78 = scalar_lea.smem %s0, 39
  %s79 = sld [smem:[%s78]]
  %s80 = scalar_lea.smem %s0, 40
  %s81 = sld [smem:[%s80]]
  %s82 = scalar_lea.smem %s0, 41
  %s83 = sld [smem:[%s82]]
  %s84 = scalar_lea.smem %s0, 42
  %s85 = sld [smem:[%s84]]
  %s86 = scalar_lea.smem %s0, 43
  %s87 = sld [smem:[%s86]]
  %s88 = scalar_lea.smem %s0, 44
  %s89 = sld [smem:[%s88]]
  %s90 = scalar_lea.smem %s0, 45
  %s91 = sld [smem:[%s90]]
  %s92 = scalar_lea.smem %s0, 46
  %s93 = sld [smem:[%s92]]
  %94 = xla_tuple %s87, %s89, %s91, %s93
  %s95 = sld [smem:[#allocation0]]
  $region206: #{transformer_forward.1} parent=0
    _
  %s97 = ssub.s32 1, %s95
  %s98 = scalar_select 0, %s97, %s95
  // Predicated region
  $region2: #{transformer_forward.1} parent=0 // pred_check
    _
  $region3: #{transformer_forward.1} parent=0 // pred_check_branch
    %100 = sbr.rel (0) target = $region5
  $region4: #{transformer_forward.1} parent=0 // pred_region
    _
  $region5: #{transformer_forward.1} parent=0 // pred_fallthru
    _
  // Predicated region
  $region6: #{transformer_forward.1} parent=0 // pred_check
    _
  $region7: #{transformer_forward.1} parent=0 // pred_check_branch
    %102 = sbr.rel (0) target = $region9
  $region8: #{transformer_forward.1} parent=0 // pred_region
    _
  $region9: #{transformer_forward.1} parent=0 // pred_fallthru
    _
  // Predicated region
  $region10: #{transformer_forward.1} parent=0 // pred_check
    _
  $region11: #{transformer_forward.1} parent=0 // pred_check_branch
    %104 = sbr.rel (0) target = $region13
  $region12: #{transformer_forward.1} parent=0 // pred_region
    _
  $region13: #{transformer_forward.1} parent=0 // pred_fallthru
    _
  // Predicated region
  $region14: #{transformer_forward.1} parent=0 // pred_check
    _
  $region15: #{transformer_forward.1} parent=0 // pred_check_branch
    %106 = sbr.rel (0) target = $region17
  $region16: #{transformer_forward.1} parent=0 // pred_region
    _
  $region17: #{transformer_forward.1} parent=0 // pred_fallthru
    _
  // Predicated region
  $region18: #{transformer_forward.1} parent=0 // pred_check
    _
  $region19: #{transformer_forward.1} parent=0 // pred_check_branch
    %108 = sbr.rel (0) target = $region21
  $region20: #{transformer_forward.1} parent=0 // pred_region
    _
  $region21: #{transformer_forward.1} parent=0 // pred_fallthru
    _
  // Predicated region
  $region22: #{transformer_forward.1} parent=0 // pred_check
    _
  $region23: #{transformer_forward.1} parent=0 // pred_check_branch
    %110 = sbr.rel (0) target = $region25
  $region24: #{transformer_forward.1} parent=0 // pred_region
    _
  $region25: #{transformer_forward.1} parent=0 // pred_fallthru
    _
  // Predicated region
  $region26: #{transformer_forward.1} parent=0 // pred_check
    _
  $region27: #{transformer_forward.1} parent=0 // pred_check_branch
    %112 = sbr.rel (0) target = $region29
  $region28: #{transformer_forward.1} parent=0 // pred_region
    _
  $region29: #{transformer_forward.1} parent=0 // pred_fallthru
    _
  // Predicated region
  $region30: #{transformer_forward.1} parent=0 // pred_check
    _
  $region31: #{transformer_forward.1} parent=0 // pred_check_branch
    %114 = sbr.rel (0) target = $region33
  $region32: #{transformer_forward.1} parent=0 // pred_region
    _
  $region33: #{transformer_forward.1} parent=0 // pred_fallthru
    _
  // Predicated region
  $region34: #{transformer_forward.1} parent=0 // pred_check
    _
  $region35: #{transformer_forward.1} parent=0 // pred_check_branch
    %116 = sbr.rel (0) target = $region37
  $region36: #{transformer_forward.1} parent=0 // pred_region
    _
  $region37: #{transformer_forward.1} parent=0 // pred_fallthru
    _
  // Predicated region
  $region38: #{transformer_forward.1} parent=0 // pred_check
    _
  $region39: #{transformer_forward.1} parent=0 // pred_check_branch
    %118 = sbr.rel (0) target = $region41
  $region40: #{transformer_forward.1} parent=0 // pred_region
    _
  $region41: #{transformer_forward.1} parent=0 // pred_fallthru
    _
  // Predicated region
  $region42: #{transformer_forward.1} parent=0 // pred_check
    _
  $region43: #{transformer_forward.1} parent=0 // pred_check_branch
    %120 = sbr.rel (0) target = $region45
  $region44: #{transformer_forward.1} parent=0 // pred_region
    _
  $region45: #{transformer_forward.1} parent=0 // pred_fallthru
    _
  // Predicated region
  $region46: #{transformer_forward.1} parent=0 // pred_check
    _
  $region47: #{transformer_forward.1} parent=0 // pred_check_branch
    %122 = sbr.rel (0) target = $region49
  $region48: #{transformer_forward.1} parent=0 // pred_region
    _
  $region49: #{transformer_forward.1} parent=0 // pred_fallthru
    _
  // Predicated region
  $region50: #{transformer_forward.1} parent=0 // pred_check
    _
  $region51: #{transformer_forward.1} parent=0 // pred_check_branch
    %124 = sbr.rel (0) target = $region53
  $region52: #{transformer_forward.1} parent=0 // pred_region
    _
  $region53: #{transformer_forward.1} parent=0 // pred_fallthru
    _
  // Predicated region
  $region54: #{transformer_forward.1} parent=0 // pred_check
    _
  $region55: #{transformer_forward.1} parent=0 // pred_check_branch
    %126 = sbr.rel (0) target = $region57
  $region56: #{transformer_forward.1} parent=0 // pred_region
    _
  $region57: #{transformer_forward.1} parent=0 // pred_fallthru
    _
  // Predicated region
  $region58: #{transformer_forward.1} parent=0 // pred_check
    _
  $region59: #{transformer_forward.1} parent=0 // pred_check_branch
    %128 = sbr.rel (0) target = $region61
  $region60: #{transformer_forward.1} parent=0 // pred_region
    _
  $region61: #{transformer_forward.1} parent=0 // pred_fallthru
    _
  // Predicated region
  $region62: #{transformer_forward.1} parent=0 // pred_check
    _
  $region63: #{transformer_forward.1} parent=0 // pred_check_branch
    %130 = sbr.rel (0) target = $region65
  $region64: #{transformer_forward.1} parent=0 // pred_region
    _
  $region65: #{transformer_forward.1} parent=0 // pred_fallthru
    _
  // Predicated region
  $region66: #{transformer_forward.1} parent=0 // pred_check
    _
  $region67: #{transformer_forward.1} parent=0 // pred_check_branch
    %132 = sbr.rel (0) target = $region69
  $region68: #{transformer_forward.1} parent=0 // pred_region
    _
  $region69: #{transformer_forward.1} parent=0 // pred_fallthru
    _
  // Predicated region
  $region70: #{transformer_forward.1} parent=0 // pred_check
    _
  $region71: #{transformer_forward.1} parent=0 // pred_check_branch
    %134 = sbr.rel (0) target = $region73
  $region72: #{transformer_forward.1} parent=0 // pred_region
    _
  $region73: #{transformer_forward.1} parent=0 // pred_fallthru
    _
  // Predicated region
  $region74: #{transformer_forward.1} parent=0 // pred_check
    _
  $region75: #{transformer_forward.1} parent=0 // pred_check_branch
    %136 = sbr.rel (0) target = $region77
  $region76: #{transformer_forward.1} parent=0 // pred_region
    _
  $region77: #{transformer_forward.1} parent=0 // pred_fallthru
    _
  // Predicated region
  $region78: #{transformer_forward.1} parent=0 // pred_check
    _
  $region79: #{transformer_forward.1} parent=0 // pred_check_branch
    %138 = sbr.rel (0) target = $region81
  $region80: #{transformer_forward.1} parent=0 // pred_region
    _
  $region81: #{transformer_forward.1} parent=0 // pred_fallthru
    _
  // Predicated region
  $region82: #{transformer_forward.1} parent=0 // pred_check
    _
  $region83: #{transformer_forward.1} parent=0 // pred_check_branch
    %140 = sbr.rel (0) target = $region85
  $region84: #{transformer_forward.1} parent=0 // pred_region
    _
  $region85: #{transformer_forward.1} parent=0 // pred_fallthru
    _
  // Predicated region
  $region86: #{transformer_forward.1} parent=0 // pred_check
    _
  $region87: #{transformer_forward.1} parent=0 // pred_check_branch
    %142 = sbr.rel (0) target = $region89
  $region88: #{transformer_forward.1} parent=0 // pred_region
    _
  $region89: #{transformer_forward.1} parent=0 // pred_fallthru
    _
  // Predicated region
  $region90: #{transformer_forward.1} parent=0 // pred_check
    _
  $region91: #{transformer_forward.1} parent=0 // pred_check_branch
    %144 = sbr.rel (0) target = $region93
  $region92: #{transformer_forward.1} parent=0 // pred_region
    _
  $region93: #{transformer_forward.1} parent=0 // pred_fallthru
    _
  // Predicated region
  $region94: #{transformer_forward.1} parent=0 // pred_check
    _
  $region95: #{transformer_forward.1} parent=0 // pred_check_branch
    %146 = sbr.rel (0) target = $region97
  $region96: #{transformer_forward.1} parent=0 // pred_region
    _
  $region97: #{transformer_forward.1} parent=0 // pred_fallthru
    _
  // Predicated region
  $region98: #{transformer_forward.1} parent=0 // pred_check
    _
  $region99: #{transformer_forward.1} parent=0 // pred_check_branch
    %148 = sbr.rel (0) target = $region101
  $region100: #{transformer_forward.1} parent=0 // pred_region
    _
  $region101: #{transformer_forward.1} parent=0 // pred_fallthru
    _
  // Predicated region
  $region102: #{transformer_forward.1} parent=0 // pred_check
    _
  $region103: #{transformer_forward.1} parent=0 // pred_check_branch
    %150 = sbr.rel (0) target = $region105
  $region104: #{transformer_forward.1} parent=0 // pred_region
    _
  $region105: #{transformer_forward.1} parent=0 // pred_fallthru
    _
  // Predicated region
  $region106: #{transformer_forward.1} parent=0 // pred_check
    _
  $region107: #{transformer_forward.1} parent=0 // pred_check_branch
    %152 = sbr.rel (0) target = $region109
  $region108: #{transformer_forward.1} parent=0 // pred_region
    _
  $region109: #{transformer_forward.1} parent=0 // pred_fallthru
    _
  // Predicated region
  $region110: #{transformer_forward.1} parent=0 // pred_check
    _
  $region111: #{transformer_forward.1} parent=0 // pred_check_branch
    %154 = sbr.rel (0) target = $region113
  $region112: #{transformer_forward.1} parent=0 // pred_region
    _
  $region113: #{transformer_forward.1} parent=0 // pred_fallthru
    _
  // Predicated region
  $region114: #{transformer_forward.1} parent=0 // pred_check
    _
  $region115: #{transformer_forward.1} parent=0 // pred_check_branch
    %156 = sbr.rel (0) target = $region117
  $region116: #{transformer_forward.1} parent=0 // pred_region
    _
  $region117: #{transformer_forward.1} parent=0 // pred_fallthru
    _
  // Predicated region
  $region118: #{transformer_forward.1} parent=0 // pred_check
    _
  $region119: #{transformer_forward.1} parent=0 // pred_check_branch
    %158 = sbr.rel (0) target = $region121
  $region120: #{transformer_forward.1} parent=0 // pred_region
    _
  $region121: #{transformer_forward.1} parent=0 // pred_fallthru
    _
  // Predicated region
  $region122: #{transformer_forward.1} parent=0 // pred_check
    _
  $region123: #{transformer_forward.1} parent=0 // pred_check_branch
    %160 = sbr.rel (0) target = $region125
  $region124: #{transformer_forward.1} parent=0 // pred_region
    _
  $region125: #{transformer_forward.1} parent=0 // pred_fallthru
    _
  // Predicated region
  $region126: #{transformer_forward.1} parent=0 // pred_check
    _
  $region127: #{transformer_forward.1} parent=0 // pred_check_branch
    %162 = sbr.rel (0) target = $region129
  $region128: #{transformer_forward.1} parent=0 // pred_region
    _
  $region129: #{transformer_forward.1} parent=0 // pred_fallthru
    _
  // Predicated region
  $region130: #{transformer_forward.1} parent=0 // pred_check
    _
  $region131: #{transformer_forward.1} parent=0 // pred_check_branch
    %164 = sbr.rel (0) target = $region133
  $region132: #{transformer_forward.1} parent=0 // pred_region
    _
  $region133: #{transformer_forward.1} parent=0 // pred_fallthru
    _
  // Predicated region
  $region134: #{transformer_forward.1} parent=0 // pred_check
    _
  $region135: #{transformer_forward.1} parent=0 // pred_check_branch
    %166 = sbr.rel (0) target = $region137
  $region136: #{transformer_forward.1} parent=0 // pred_region
    _
  $region137: #{transformer_forward.1} parent=0 // pred_fallthru
    _
  // Predicated region
  $region138: #{transformer_forward.1} parent=0 // pred_check
    _
  $region139: #{transformer_forward.1} parent=0 // pred_check_branch
    %168 = sbr.rel (0) target = $region141
  $region140: #{transformer_forward.1} parent=0 // pred_region
    _
  $region141: #{transformer_forward.1} parent=0 // pred_fallthru
    _
  // Predicated region
  $region142: #{transformer_forward.1} parent=0 // pred_check
    _
  $region143: #{transformer_forward.1} parent=0 // pred_check_branch
    %170 = sbr.rel (0) target = $region145
  $region144: #{transformer_forward.1} parent=0 // pred_region
    _
  $region145: #{transformer_forward.1} parent=0 // pred_fallthru
    _
  // Predicated region
  $region146: #{transformer_forward.1} parent=0 // pred_check
    _
  $region147: #{transformer_forward.1} parent=0 // pred_check_branch
    %172 = sbr.rel (0) target = $region149
  $region148: #{transformer_forward.1} parent=0 // pred_region
    _
  $region149: #{transformer_forward.1} parent=0 // pred_fallthru
    _
  // Predicated region
  $region150: #{transformer_forward.1} parent=0 // pred_check
    _
  $region151: #{transformer_forward.1} parent=0 // pred_check_branch
    %174 = sbr.rel (0) target = $region153
  $region152: #{transformer_forward.1} parent=0 // pred_region
    _
  $region153: #{transformer_forward.1} parent=0 // pred_fallthru
    _
  // Predicated region
  $region154: #{transformer_forward.1} parent=0 // pred_check
    _
  $region155: #{transformer_forward.1} parent=0 // pred_check_branch
    %176 = sbr.rel (0) target = $region157
  $region156: #{transformer_forward.1} parent=0 // pred_region
    _
  $region157: #{transformer_forward.1} parent=0 // pred_fallthru
    _
  // Predicated region
  $region158: #{transformer_forward.1} parent=0 // pred_check
    _
  $region159: #{transformer_forward.1} parent=0 // pred_check_branch
    %178 = sbr.rel (0) target = $region161
  $region160: #{transformer_forward.1} parent=0 // pred_region
    _
  $region161: #{transformer_forward.1} parent=0 // pred_fallthru
    _
  // Predicated region
  $region162: #{transformer_forward.1} parent=0 // pred_check
    _
  $region163: #{transformer_forward.1} parent=0 // pred_check_branch
    %180 = sbr.rel (0) target = $region165
  $region164: #{transformer_forward.1} parent=0 // pred_region
    _
  $region165: #{transformer_forward.1} parent=0 // pred_fallthru
    _
  // Predicated region
  $region166: #{transformer_forward.1} parent=0 // pred_check
    _
  $region167: #{transformer_forward.1} parent=0 // pred_check_branch
    %182 = sbr.rel (0) target = $region169
  $region168: #{transformer_forward.1} parent=0 // pred_region
    _
  $region169: #{transformer_forward.1} parent=0 // pred_fallthru
    _
  // Predicated region
  $region170: #{transformer_forward.1} parent=0 // pred_check
    _
  $region171: #{transformer_forward.1} parent=0 // pred_check_branch
    %184 = sbr.rel (0) target = $region173
  $region172: #{transformer_forward.1} parent=0 // pred_region
    _
  $region173: #{transformer_forward.1} parent=0 // pred_fallthru
    _
  %v185 = vld [vmem:[%s1] sm:$0xff]
  %v186 = vld [vmem:[%s1 + $0x8] sm:$0xff]
  %v187 = vld [vmem:[%s5] sm:$0xff]
  %v188 = vld [vmem:[%s5 + $0x8] sm:$0xff]
  %v189 = vld [vmem:[%s11] sm:$0xff]
  %v190 = vld [vmem:[%s11 + $0x8] sm:$0xff]
  %v191 = vld [vmem:[%s11 + $0x10] sm:$0xff]
  %v192 = vld [vmem:[%s11 + $0x18] sm:$0xff]
  %v193 = vld [vmem:[%s13] sm:$0x1]
  %v194 = vld [vmem:[%s15] sm:$0xff]
  %v195 = vld [vmem:[%s15 + $0x8] sm:$0xff]
  %v196 = vld [vmem:[%s15 + $0x10] sm:$0xff]
  %v197 = vld [vmem:[%s15 + $0x18] sm:$0xff]
  %v198 = vld [vmem:[%s17] sm:$0x1]
  %v199 = vld [vmem:[%s19] sm:$0x1]
  %v200 = vld [vmem:[%s21] sm:$0x1]
  %v201 = vld [vmem:[%s23] sm:$0xff]
  %v202 = vld [vmem:[%s23 + $0x8] sm:$0xff]
  %v203 = vld [vmem:[%s23 + $0x10] sm:$0xff]
  %v204 = vld [vmem:[%s23 + $0x18] sm:$0xff]
  %v205 = vld [vmem:[%s25] sm:$0x1]
  %v206 = vld [vmem:[%s27] sm:$0xff]
  %v207 = vld [vmem:[%s27 + $0x8] sm:$0xff]
  %v208 = vld [vmem:[%s27 + $0x10] sm:$0xff]
  %v209 = vld [vmem:[%s27 + $0x18] sm:$0xff]
  %v210 = vld [vmem:[%s27 + $0x20] sm:$0xff]
  %v211 = vld [vmem:[%s27 + $0x28] sm:$0xff]
  %v212 = vld [vmem:[%s27 + $0x30] sm:$0xff]
  %v213 = vld [vmem:[%s27 + $0x38] sm:$0xff]
  %v214 = vld [vmem:[%s29] sm:$0x1]
  %v215 = vld [vmem:[%s31] sm:$0x1]
  %v216 = vld [vmem:[%s33] sm:$0x1]
  %v218 = vlaneseq
  %v219 = vshrl.u32 %v218, 7
  %v220 = vsub.s32 0, %v219
  %v221 = vrot.slane %v193, %v220
  %vm223 = vcmask 261120
  %v225 = vsel %vm223, %v185, 0
  %v228 = vsel %vm223, %v186, 0
  %230 = vmatprep.subr.mxu0 0.0
  %231 = vmatpush1.msra.mxu0 0.0
  %232 = vmatprep.subr.mxu0 0.0
  %233 = vmatpush1.msra.mxu0 0.0
  %234 = vmatprep.subr.mxu0 0.0
  %235 = vmatpush1.msra.mxu0 0.0
  %236 = vmatprep.subr.mxu0 0.0
  %237 = vmatpush1.msra.mxu0 0.0
  %238 = vmatprep.subr.mxu0 0.0
  %239 = vmatpush1.msra.mxu0 0.0
  %240 = vmatprep.subr.mxu0 0.0
  %241 = vmatpush1.msra.mxu0 0.0
  %242 = vmatprep.subr.mxu0 0.0
  %243 = vmatpush1.msra.mxu0 0.0
  %244 = vmatprep.subr.mxu0 0.0
  %245 = vmatpush1.msra.mxu0 0.0
  %246 = vmatprep.subr.mxu0 0.0
  %247 = vmatpush1.msra.mxu0 0.0
  %248 = vmatprep.subr.mxu0 0.0
  %249 = vmatpush1.msra.mxu0 0.0
  %250 = vmatprep.subr.mxu0 0.0
  %251 = vmatpush1.msra.mxu0 0.0
  %252 = vmatprep.subr.mxu0 0.0
  %253 = vmatpush1.msra.mxu0 0.0
  %254 = vmatprep.subr.mxu0 0.0
  %255 = vmatpush1.msra.mxu0 %v192
  %256 = vmatprep.subr.mxu0 0.0
  %257 = vmatpush1.msra.mxu0 %v191
  %258 = vmatprep.subr.mxu0 0.0
  %259 = vmatpush1.msra.mxu0 %v190
  %260 = vmatprep.subr.mxu0 0.0
  %261 = vmatpush1.msra.mxu0 %v189
  %262 = vmatprep.subr.mxu0 0.0
  %263 = vmatpush2.msra.mxu0 0.0
  %264 = vmatprep.subr.mxu0 0.0
  %265 = vmatpush2.msra.mxu0 0.0
  %266 = vmatprep.subr.mxu0 0.0
  %267 = vmatpush2.msra.mxu0 0.0
  %268 = vmatprep.subr.mxu0 0.0
  %269 = vmatpush2.msra.mxu0 0.0
  %270 = vmatprep.subr.mxu0 0.0
  %271 = vmatpush2.msra.mxu0 0.0
  %272 = vmatprep.subr.mxu0 0.0
  %273 = vmatpush2.msra.mxu0 0.0
  %274 = vmatprep.subr.mxu0 0.0
  %275 = vmatpush2.msra.mxu0 0.0
  %276 = vmatprep.subr.mxu0 0.0
  %277 = vmatpush2.msra.mxu0 0.0
  %278 = vmatprep.subr.mxu0 0.0
  %279 = vmatpush2.msra.mxu0 0.0
  %280 = vmatprep.subr.mxu0 0.0
  %281 = vmatpush2.msra.mxu0 0.0
  %282 = vmatprep.subr.mxu0 0.0
  %283 = vmatpush2.msra.mxu0 0.0
  %284 = vmatprep.subr.mxu0 0.0
  %285 = vmatpush2.msra.mxu0 0.0
  %286 = vmatprep.subr.mxu0 0.0
  %287 = vmatpush2.msra.mxu0 0.0
  %288 = vmatprep.subr.mxu0 0.0
  %289 = vmatpush2.msra.mxu0 0.0
  %290 = vmatprep.subr.mxu0 0.0
  %291 = vmatpush2.msra.mxu0 0.0
  %292 = vmatprep.subr.mxu0 0.0
  %293 = vmatpush2.msra.mxu0 0.0
  %294 = vmatprep.mubr.f32.mxu0 0.0
  %295 = vmatmul.mubr.f32.gmra.mxu0 %v225
  %v296 = vpop.f32.mrf.mxu0
  %v297 = vadd.f32 %v221, %v296
  %v298 = vpop.f32.mrf.mxu0
  %299 = vmatprep.mubr.f32.mxu0 0.0
  %300 = vmatmul.mubr.f32.gmra.mxu0 %v228
  %v301 = vpop.f32.mrf.mxu0
  %v302 = vadd.f32 %v221, %v301
  %v303 = vpop.f32.mrf.mxu0
  %304 = vdwg.mxu0
  %v305 = vmul.f32 %v297, 0.35355338
  %v306 = vmul.f32 %v302, 0.35355338
  %309 = vrot.lane.b32.xlu0 %v297, 96
  %v310 = vpop.permute.xlu0 %309
  %311 = vrot.lane.b32.xlu0 %v302, 96
  %v312 = vpop.permute.xlu0 %311
  %vm313 = vcmask 64512
  %v315 = vsel %vm313, %v305, 0
  %v318 = vsel %vm313, %v306, 0
  %v320 = vsel %vm313, %v310, 0
  %v322 = vsel %vm313, %v312, 0
  %324 = vmatprep.subr.mxu0 0.0
  %325 = vmatpush1.xpose.msra.mxu0 0.0
  %326 = vmatprep.subr.mxu0 0.0
  %327 = vmatpush1.xpose.msra.mxu0 0.0
  %328 = vmatprep.subr.mxu0 0.0
  %329 = vmatpush1.xpose.msra.mxu0 0.0
  %330 = vmatprep.subr.mxu0 0.0
  %331 = vmatpush1.xpose.msra.mxu0 0.0
  %332 = vmatprep.subr.mxu0 0.0
  %333 = vmatpush1.xpose.msra.mxu0 0.0
  %334 = vmatprep.subr.mxu0 0.0
  %335 = vmatpush1.xpose.msra.mxu0 0.0
  %336 = vmatprep.subr.mxu0 0.0
  %337 = vmatpush1.xpose.msra.mxu0 0.0
  %338 = vmatprep.subr.mxu0 0.0
  %339 = vmatpush1.xpose.msra.mxu0 0.0
  %340 = vmatprep.subr.mxu0 0.0
  %341 = vmatpush1.xpose.msra.mxu0 0.0
  %342 = vmatprep.subr.mxu0 0.0
  %343 = vmatpush1.xpose.msra.mxu0 0.0
  %344 = vmatprep.subr.mxu0 0.0
  %345 = vmatpush1.xpose.msra.mxu0 0.0
  %346 = vmatprep.subr.mxu0 0.0
  %347 = vmatpush1.xpose.msra.mxu0 0.0
  %348 = vmatprep.subr.mxu0 0.0
  %349 = vmatpush1.xpose.msra.mxu0 0.0
  %350 = vmatprep.subr.mxu0 0.0
  %351 = vmatpush1.xpose.msra.mxu0 0.0
  %352 = vmatprep.subr.mxu0 0.0
  %353 = vmatpush1.xpose.msra.mxu0 %v322
  %354 = vmatprep.subr.mxu0 0.0
  %355 = vmatpush1.xpose.msra.mxu0 %v320
  %356 = vmatprep.subr.mxu0 0.0
  %357 = vmatpush2.xpose.msra.mxu0 0.0
  %358 = vmatprep.subr.mxu0 0.0
  %359 = vmatpush2.xpose.msra.mxu0 0.0
  %360 = vmatprep.subr.mxu0 0.0
  %361 = vmatpush2.xpose.msra.mxu0 0.0
  %362 = vmatprep.subr.mxu0 0.0
  %363 = vmatpush2.xpose.msra.mxu0 0.0
  %364 = vmatprep.subr.mxu0 0.0
  %365 = vmatpush2.xpose.msra.mxu0 0.0
  %366 = vmatprep.subr.mxu0 0.0
  %367 = vmatpush2.xpose.msra.mxu0 0.0
  %368 = vmatprep.subr.mxu0 0.0
  %369 = vmatpush2.xpose.msra.mxu0 0.0
  %370 = vmatprep.subr.mxu0 0.0
  %371 = vmatpush2.xpose.msra.mxu0 0.0
  %372 = vmatprep.subr.mxu0 0.0
  %373 = vmatpush2.xpose.msra.mxu0 0.0
  %374 = vmatprep.subr.mxu0 0.0
  %375 = vmatpush2.xpose.msra.mxu0 0.0
  %376 = vmatprep.subr.mxu0 0.0
  %377 = vmatpush2.xpose.msra.mxu0 0.0
  %378 = vmatprep.subr.mxu0 0.0
  %379 = vmatpush2.xpose.msra.mxu0 0.0
  %380 = vmatprep.subr.mxu0 0.0
  %381 = vmatpush2.xpose.msra.mxu0 0.0
  %382 = vmatprep.subr.mxu0 0.0
  %383 = vmatpush2.xpose.msra.mxu0 0.0
  %384 = vmatprep.subr.mxu0 0.0
  %385 = vmatpush2.xpose.msra.mxu0 0.0
  %386 = vmatprep.subr.mxu0 0.0
  %387 = vmatpush2.xpose.msra.mxu0 0.0
  %388 = vmatprep.mubr.f32.mxu0 0.0
  %389 = vmatmul.mubr.f32.gmra.mxu0 %v315
  %v390 = vpop.f32.mrf.mxu0
  %v391 = vadd.f32 0.0, %v390
  %v392 = vpop.f32.mrf.mxu0
  %393 = vmatprep.mubr.f32.mxu0 0.0
  %394 = vmatmul.mubr.f32.gmra.mxu0 %v318
  %v395 = vpop.f32.mrf.mxu0
  %v396 = vadd.f32 0.0, %v395
  %v397 = vpop.f32.mrf.mxu0
  %398 = vdwg.mxu0
  %399 = vrot.lane.b32.xlu0 %v305, 120
  %v400 = vpop.permute.xlu0 %399
  %401 = vrot.lane.b32.xlu0 %v306, 120
  %v402 = vpop.permute.xlu0 %401
  %403 = vrot.lane.b32.xlu0 %v297, 88
  %v404 = vpop.permute.xlu0 %403
  %405 = vrot.lane.b32.xlu0 %v302, 88
  %v406 = vpop.permute.xlu0 %405
  %v407 = vsel %vm313, %v400, 0
  %v409 = vsel %vm313, %v402, 0
  %v411 = vsel %vm313, %v404, 0
  %v413 = vsel %vm313, %v406, 0
  %415 = vmatprep.subr.mxu0 0.0
  %416 = vmatpush1.xpose.msra.mxu0 0.0
  %417 = vmatprep.subr.mxu0 0.0
  %418 = vmatpush1.xpose.msra.mxu0 0.0
  %419 = vmatprep.subr.mxu0 0.0
  %420 = vmatpush1.xpose.msra.mxu0 0.0
  %421 = vmatprep.subr.mxu0 0.0
  %422 = vmatpush1.xpose.msra.mxu0 0.0
  %423 = vmatprep.subr.mxu0 0.0
  %424 = vmatpush1.xpose.msra.mxu0 0.0
  %425 = vmatprep.subr.mxu0 0.0
  %426 = vmatpush1.xpose.msra.mxu0 0.0
  %427 = vmatprep.subr.mxu0 0.0
  %428 = vmatpush1.xpose.msra.mxu0 0.0
  %429 = vmatprep.subr.mxu0 0.0
  %430 = vmatpush1.xpose.msra.mxu0 0.0
  %431 = vmatprep.subr.mxu0 0.0
  %432 = vmatpush1.xpose.msra.mxu0 0.0
  %433 = vmatprep.subr.mxu0 0.0
  %434 = vmatpush1.xpose.msra.mxu0 0.0
  %435 = vmatprep.subr.mxu0 0.0
  %436 = vmatpush1.xpose.msra.mxu0 0.0
  %437 = vmatprep.subr.mxu0 0.0
  %438 = vmatpush1.xpose.msra.mxu0 0.0
  %439 = vmatprep.subr.mxu0 0.0
  %440 = vmatpush1.xpose.msra.mxu0 0.0
  %441 = vmatprep.subr.mxu0 0.0
  %442 = vmatpush1.xpose.msra.mxu0 0.0
  %443 = vmatprep.subr.mxu0 0.0
  %444 = vmatpush1.xpose.msra.mxu0 %v413
  %445 = vmatprep.subr.mxu0 0.0
  %446 = vmatpush1.xpose.msra.mxu0 %v411
  %447 = vmatprep.subr.mxu0 0.0
  %448 = vmatpush2.xpose.msra.mxu0 0.0
  %449 = vmatprep.subr.mxu0 0.0
  %450 = vmatpush2.xpose.msra.mxu0 0.0
  %451 = vmatprep.subr.mxu0 0.0
  %452 = vmatpush2.xpose.msra.mxu0 0.0
  %453 = vmatprep.subr.mxu0 0.0
  %454 = vmatpush2.xpose.msra.mxu0 0.0
  %455 = vmatprep.subr.mxu0 0.0
  %456 = vmatpush2.xpose.msra.mxu0 0.0
  %457 = vmatprep.subr.mxu0 0.0
  %458 = vmatpush2.xpose.msra.mxu0 0.0
  %459 = vmatprep.subr.mxu0 0.0
  %460 = vmatpush2.xpose.msra.mxu0 0.0
  %461 = vmatprep.subr.mxu0 0.0
  %462 = vmatpush2.xpose.msra.mxu0 0.0
  %463 = vmatprep.subr.mxu0 0.0
  %464 = vmatpush2.xpose.msra.mxu0 0.0
  %465 = vmatprep.subr.mxu0 0.0
  %466 = vmatpush2.xpose.msra.mxu0 0.0
  %467 = vmatprep.subr.mxu0 0.0
  %468 = vmatpush2.xpose.msra.mxu0 0.0
  %469 = vmatprep.subr.mxu0 0.0
  %470 = vmatpush2.xpose.msra.mxu0 0.0
  %471 = vmatprep.subr.mxu0 0.0
  %472 = vmatpush2.xpose.msra.mxu0 0.0
  %473 = vmatprep.subr.mxu0 0.0
  %474 = vmatpush2.xpose.msra.mxu0 0.0
  %475 = vmatprep.subr.mxu0 0.0
  %476 = vmatpush2.xpose.msra.mxu0 0.0
  %477 = vmatprep.subr.mxu0 0.0
  %478 = vmatpush2.xpose.msra.mxu0 0.0
  %479 = vmatprep.mubr.f32.mxu0 0.0
  %480 = vmatmul.mubr.f32.gmra.mxu0 %v407
  %v481 = vpop.f32.mrf.mxu0
  %v482 = vadd.f32 0.0, %v481
  %v483 = vpop.f32.mrf.mxu0
  %484 = vmatprep.mubr.f32.mxu0 0.0
  %485 = vmatmul.mubr.f32.gmra.mxu0 %v409
  %v486 = vpop.f32.mrf.mxu0
  %v487 = vadd.f32 0.0, %v486
  %v488 = vpop.f32.mrf.mxu0
  %489 = vdwg.mxu0
  %490 = vrot.lane.b32.xlu0 %v305, 112
  %v491 = vpop.permute.xlu0 %490
  %492 = vrot.lane.b32.xlu0 %v306, 112
  %v493 = vpop.permute.xlu0 %492
  %494 = vrot.lane.b32.xlu0 %v297, 80
  %v495 = vpop.permute.xlu0 %494
  %496 = vrot.lane.b32.xlu0 %v302, 80
  %v497 = vpop.permute.xlu0 %496
  %v498 = vsel %vm313, %v491, 0
  %v500 = vsel %vm313, %v493, 0
  %v502 = vsel %vm313, %v495, 0
  %v504 = vsel %vm313, %v497, 0
  %506 = vmatprep.subr.mxu0 0.0
  %507 = vmatpush1.xpose.msra.mxu0 0.0
  %508 = vmatprep.subr.mxu0 0.0
  %509 = vmatpush1.xpose.msra.mxu0 0.0
  %510 = vmatprep.subr.mxu0 0.0
  %511 = vmatpush1.xpose.msra.mxu0 0.0
  %512 = vmatprep.subr.mxu0 0.0
  %513 = vmatpush1.xpose.msra.mxu0 0.0
  %514 = vmatprep.subr.mxu0 0.0
  %515 = vmatpush1.xpose.msra.mxu0 0.0
  %516 = vmatprep.subr.mxu0 0.0
  %517 = vmatpush1.xpose.msra.mxu0 0.0
  %518 = vmatprep.subr.mxu0 0.0
  %519 = vmatpush1.xpose.msra.mxu0 0.0
  %520 = vmatprep.subr.mxu0 0.0
  %521 = vmatpush1.xpose.msra.mxu0 0.0
  %522 = vmatprep.subr.mxu0 0.0
  %523 = vmatpush1.xpose.msra.mxu0 0.0
  %524 = vmatprep.subr.mxu0 0.0
  %525 = vmatpush1.xpose.msra.mxu0 0.0
  %526 = vmatprep.subr.mxu0 0.0
  %527 = vmatpush1.xpose.msra.mxu0 0.0
  %528 = vmatprep.subr.mxu0 0.0
  %529 = vmatpush1.xpose.msra.mxu0 0.0
  %530 = vmatprep.subr.mxu0 0.0
  %531 = vmatpush1.xpose.msra.mxu0 0.0
  %532 = vmatprep.subr.mxu0 0.0
  %533 = vmatpush1.xpose.msra.mxu0 0.0
  %534 = vmatprep.subr.mxu0 0.0
  %535 = vmatpush1.xpose.msra.mxu0 %v504
  %536 = vmatprep.subr.mxu0 0.0
  %537 = vmatpush1.xpose.msra.mxu0 %v502
  %538 = vmatprep.subr.mxu0 0.0
  %539 = vmatpush2.xpose.msra.mxu0 0.0
  %540 = vmatprep.subr.mxu0 0.0
  %541 = vmatpush2.xpose.msra.mxu0 0.0
  %542 = vmatprep.subr.mxu0 0.0
  %543 = vmatpush2.xpose.msra.mxu0 0.0
  %544 = vmatprep.subr.mxu0 0.0
  %545 = vmatpush2.xpose.msra.mxu0 0.0
  %546 = vmatprep.subr.mxu0 0.0
  %547 = vmatpush2.xpose.msra.mxu0 0.0
  %548 = vmatprep.subr.mxu0 0.0
  %549 = vmatpush2.xpose.msra.mxu0 0.0
  %550 = vmatprep.subr.mxu0 0.0
  %551 = vmatpush2.xpose.msra.mxu0 0.0
  %552 = vmatprep.subr.mxu0 0.0
  %553 = vmatpush2.xpose.msra.mxu0 0.0
  %554 = vmatprep.subr.mxu0 0.0
  %555 = vmatpush2.xpose.msra.mxu0 0.0
  %556 = vmatprep.subr.mxu0 0.0
  %557 = vmatpush2.xpose.msra.mxu0 0.0
  %558 = vmatprep.subr.mxu0 0.0
  %559 = vmatpush2.xpose.msra.mxu0 0.0
  %560 = vmatprep.subr.mxu0 0.0
  %561 = vmatpush2.xpose.msra.mxu0 0.0
  %562 = vmatprep.subr.mxu0 0.0
  %563 = vmatpush2.xpose.msra.mxu0 0.0
  %564 = vmatprep.subr.mxu0 0.0
  %565 = vmatpush2.xpose.msra.mxu0 0.0
  %566 = vmatprep.subr.mxu0 0.0
  %567 = vmatpush2.xpose.msra.mxu0 0.0
  %568 = vmatprep.subr.mxu0 0.0
  %569 = vmatpush2.xpose.msra.mxu0 0.0
  %570 = vmatprep.mubr.f32.mxu0 0.0
  %571 = vmatmul.mubr.f32.gmra.mxu0 %v498
  %v572 = vpop.f32.mrf.mxu0
  %v573 = vadd.f32 0.0, %v572
  %v574 = vpop.f32.mrf.mxu0
  %575 = vmatprep.mubr.f32.mxu0 0.0
  %576 = vmatmul.mubr.f32.gmra.mxu0 %v500
  %v577 = vpop.f32.mrf.mxu0
  %v578 = vadd.f32 0.0, %v577
  %v579 = vpop.f32.mrf.mxu0
  %580 = vdwg.mxu0
  %581 = vrot.lane.b32.xlu0 %v305, 104
  %v582 = vpop.permute.xlu0 %581
  %583 = vrot.lane.b32.xlu0 %v306, 104
  %v584 = vpop.permute.xlu0 %583
  %585 = vrot.lane.b32.xlu0 %v297, 72
  %v586 = vpop.permute.xlu0 %585
  %587 = vrot.lane.b32.xlu0 %v302, 72
  %v588 = vpop.permute.xlu0 %587
  %v589 = vsel %vm313, %v582, 0
  %v591 = vsel %vm313, %v584, 0
  %v593 = vsel %vm313, %v586, 0
  %v595 = vsel %vm313, %v588, 0
  %597 = vmatprep.subr.mxu0 0.0
  %598 = vmatpush1.xpose.msra.mxu0 0.0
  %599 = vmatprep.subr.mxu0 0.0
  %600 = vmatpush1.xpose.msra.mxu0 0.0
  %601 = vmatprep.subr.mxu0 0.0
  %602 = vmatpush1.xpose.msra.mxu0 0.0
  %603 = vmatprep.subr.mxu0 0.0
  %604 = vmatpush1.xpose.msra.mxu0 0.0
  %605 = vmatprep.subr.mxu0 0.0
  %606 = vmatpush1.xpose.msra.mxu0 0.0
  %607 = vmatprep.subr.mxu0 0.0
  %608 = vmatpush1.xpose.msra.mxu0 0.0
  %609 = vmatprep.subr.mxu0 0.0
  %610 = vmatpush1.xpose.msra.mxu0 0.0
  %611 = vmatprep.subr.mxu0 0.0
  %612 = vmatpush1.xpose.msra.mxu0 0.0
  %613 = vmatprep.subr.mxu0 0.0
  %614 = vmatpush1.xpose.msra.mxu0 0.0
  %615 = vmatprep.subr.mxu0 0.0
  %616 = vmatpush1.xpose.msra.mxu0 0.0
  %617 = vmatprep.subr.mxu0 0.0
  %618 = vmatpush1.xpose.msra.mxu0 0.0
  %619 = vmatprep.subr.mxu0 0.0
  %620 = vmatpush1.xpose.msra.mxu0 0.0
  %621 = vmatprep.subr.mxu0 0.0
  %622 = vmatpush1.xpose.msra.mxu0 0.0
  %623 = vmatprep.subr.mxu0 0.0
  %624 = vmatpush1.xpose.msra.mxu0 0.0
  %625 = vmatprep.subr.mxu0 0.0
  %626 = vmatpush1.xpose.msra.mxu0 %v595
  %627 = vmatprep.subr.mxu0 0.0
  %628 = vmatpush1.xpose.msra.mxu0 %v593
  %629 = vmatprep.subr.mxu0 0.0
  %630 = vmatpush2.xpose.msra.mxu0 0.0
  %631 = vmatprep.subr.mxu0 0.0
  %632 = vmatpush2.xpose.msra.mxu0 0.0
  %633 = vmatprep.subr.mxu0 0.0
  %634 = vmatpush2.xpose.msra.mxu0 0.0
  %635 = vmatprep.subr.mxu0 0.0
  %636 = vmatpush2.xpose.msra.mxu0 0.0
  %637 = vmatprep.subr.mxu0 0.0
  %638 = vmatpush2.xpose.msra.mxu0 0.0
  %639 = vmatprep.subr.mxu0 0.0
  %640 = vmatpush2.xpose.msra.mxu0 0.0
  %641 = vmatprep.subr.mxu0 0.0
  %642 = vmatpush2.xpose.msra.mxu0 0.0
  %643 = vmatprep.subr.mxu0 0.0
  %644 = vmatpush2.xpose.msra.mxu0 0.0
  %645 = vmatprep.subr.mxu0 0.0
  %646 = vmatpush2.xpose.msra.mxu0 0.0
  %647 = vmatprep.subr.mxu0 0.0
  %648 = vmatpush2.xpose.msra.mxu0 0.0
  %649 = vmatprep.subr.mxu0 0.0
  %650 = vmatpush2.xpose.msra.mxu0 0.0
  %651 = vmatprep.subr.mxu0 0.0
  %652 = vmatpush2.xpose.msra.mxu0 0.0
  %653 = vmatprep.subr.mxu0 0.0
  %654 = vmatpush2.xpose.msra.mxu0 0.0
  %655 = vmatprep.subr.mxu0 0.0
  %656 = vmatpush2.xpose.msra.mxu0 0.0
  %657 = vmatprep.subr.mxu0 0.0
  %658 = vmatpush2.xpose.msra.mxu0 0.0
  %659 = vmatprep.subr.mxu0 0.0
  %660 = vmatpush2.xpose.msra.mxu0 0.0
  %661 = vmatprep.mubr.f32.mxu0 0.0
  %662 = vmatmul.mubr.f32.gmra.mxu0 %v589
  %v663 = vpop.f32.mrf.mxu0
  %v664 = vadd.f32 0.0, %v663
  %v665 = vpop.f32.mrf.mxu0
  %666 = vmatprep.mubr.f32.mxu0 0.0
  %667 = vmatmul.mubr.f32.gmra.mxu0 %v591
  %v668 = vpop.f32.mrf.mxu0
  %v669 = vadd.f32 0.0, %v668
  %v670 = vpop.f32.mrf.mxu0
  %671 = vdwg.mxu0
  %v672 = vadd.f32 %v391, %v187
  %v673 = vadd.f32 %v396, %v188
  %v674 = vadd.f32 %v482, %v187
  %v675 = vadd.f32 %v487, %v188
  %v676 = vadd.f32 %v573, %v187
  %v677 = vadd.f32 %v578, %v188
  %v678 = vadd.f32 %v664, %v187
  %v679 = vadd.f32 %v669, %v188
  %vm680 = vcmask 130048
  %v681 = vsel %vm680, %v672, -inf
  %682 = vmax.xlane.f32.xlu0 %v681
  %v683 = vpop.xlane.xlu0 %682
  %v684 = vsel %vm680, %v673, -inf
  %685 = vmax.xlane.f32.xlu0 %v684
  %v686 = vpop.xlane.xlu0 %685
  %v687 = vsel %vm680, %v674, -inf
  %688 = vmax.xlane.f32.xlu0 %v687
  %v689 = vpop.xlane.xlu0 %688
  %v690 = vsel %vm680, %v675, -inf
  %691 = vmax.xlane.f32.xlu0 %v690
  %v692 = vpop.xlane.xlu0 %691
  %v693 = vsel %vm680, %v676, -inf
  %694 = vmax.xlane.f32.xlu0 %v693
  %v695 = vpop.xlane.xlu0 %694
  %v696 = vsel %vm680, %v677, -inf
  %697 = vmax.xlane.f32.xlu0 %v696
  %v698 = vpop.xlane.xlu0 %697
  %v699 = vsel %vm680, %v678, -inf
  %700 = vmax.xlane.f32.xlu0 %v699
  %v701 = vpop.xlane.xlu0 %700
  %v702 = vsel %vm680, %v679, -inf
  %703 = vmax.xlane.f32.xlu0 %v702
  %v704 = vpop.xlane.xlu0 %703
  %v705 = vsub.f32 %v672, %v683
  %v706 = vsub.f32 %v673, %v686
  %v707 = vsub.f32 %v674, %v689
  %v708 = vsub.f32 %v675, %v692
  %v709 = vsub.f32 %v676, %v695
  %v710 = vsub.f32 %v677, %v698
  %v711 = vsub.f32 %v678, %v701
  %v712 = vsub.f32 %v679, %v704
  %v713 = vmul.f32 %v705, 1.442695
  %v714 = vpow.pop %v713
  %v715 = vmul.f32 %v706, 1.442695
  %v716 = vpow.pop %v715
  %v717 = vmul.f32 %v707, 1.442695
  %v718 = vpow.pop %v717
  %v719 = vmul.f32 %v708, 1.442695
  %v720 = vpow.pop %v719
  %v721 = vmul.f32 %v709, 1.442695
  %v722 = vpow.pop %v721
  %v723 = vmul.f32 %v710, 1.442695
  %v724 = vpow.pop %v723
  %v725 = vmul.f32 %v711, 1.442695
  %v726 = vpow.pop %v725
  %v727 = vmul.f32 %v712, 1.442695
  %v728 = vpow.pop %v727
  %v729 = vsel %vm680, %v714, 0.0
  %730 = vadd.xlane.f32.xlu0 %v729
  %v731 = vpop.xlane.xlu0 %730
  %v732 = vsel %vm680, %v716, 0.0
  %733 = vadd.xlane.f32.xlu0 %v732
  %v734 = vpop.xlane.xlu0 %733
  %v735 = vsel %vm680, %v718, 0.0
  %736 = vadd.xlane.f32.xlu0 %v735
  %v737 = vpop.xlane.xlu0 %736
  %v738 = vsel %vm680, %v720, 0.0
  %739 = vadd.xlane.f32.xlu0 %v738
  %v740 = vpop.xlane.xlu0 %739
  %v741 = vsel %vm680, %v722, 0.0
  %742 = vadd.xlane.f32.xlu0 %v741
  %v743 = vpop.xlane.xlu0 %742
  %v744 = vsel %vm680, %v724, 0.0
  %745 = vadd.xlane.f32.xlu0 %v744
  %v746 = vpop.xlane.xlu0 %745
  %v747 = vsel %vm680, %v726, 0.0
  %748 = vadd.xlane.f32.xlu0 %v747
  %v749 = vpop.xlane.xlu0 %748
  %v750 = vsel %vm680, %v728, 0.0
  %751 = vadd.xlane.f32.xlu0 %v750
  %v752 = vpop.xlane.xlu0 %751
  %v753 = vrcp.pop %v731
  %v754 = vrcp.pop %v734
  %v755 = vrcp.pop %v737
  %v756 = vrcp.pop %v740
  %v757 = vrcp.pop %v743
  %v758 = vrcp.pop %v746
  %v759 = vrcp.pop %v749
  %v760 = vrcp.pop %v752
  %v761 = vmul.f32 %v714, %v753
  %v762 = vmul.f32 %v716, %v754
  %v763 = vmul.f32 %v718, %v755
  %v764 = vmul.f32 %v720, %v756
  %v765 = vmul.f32 %v722, %v757
  %v766 = vmul.f32 %v724, %v758
  %v767 = vmul.f32 %v726, %v759
  %v768 = vmul.f32 %v728, %v760
  %769 = vrot.lane.b32.xlu0 %v297, 64
  %v770 = vpop.permute.xlu0 %769
  %771 = vrot.lane.b32.xlu0 %v302, 64
  %v772 = vpop.permute.xlu0 %771
  %v776 = vsel %vm680, %v761, 0
  %v779 = vsel %vm680, %v762, 0
  %781 = vmatprep.subr.mxu0 0.0
  %782 = vmatpush1.msra.mxu0 0.0
  %783 = vmatprep.subr.mxu0 0.0
  %784 = vmatpush1.msra.mxu0 0.0
  %785 = vmatprep.subr.mxu0 0.0
  %786 = vmatpush1.msra.mxu0 0.0
  %787 = vmatprep.subr.mxu0 0.0
  %788 = vmatpush1.msra.mxu0 0.0
  %789 = vmatprep.subr.mxu0 0.0
  %790 = vmatpush1.msra.mxu0 0.0
  %791 = vmatprep.subr.mxu0 0.0
  %792 = vmatpush1.msra.mxu0 0.0
  %793 = vmatprep.subr.mxu0 0.0
  %794 = vmatpush1.msra.mxu0 0.0
  %795 = vmatprep.subr.mxu0 0.0
  %796 = vmatpush1.msra.mxu0 0.0
  %797 = vmatprep.subr.mxu0 0.0
  %798 = vmatpush1.msra.mxu0 0.0
  %799 = vmatprep.subr.mxu0 0.0
  %800 = vmatpush1.msra.mxu0 0.0
  %801 = vmatprep.subr.mxu0 0.0
  %802 = vmatpush1.msra.mxu0 0.0
  %803 = vmatprep.subr.mxu0 0.0
  %804 = vmatpush1.msra.mxu0 0.0
  %805 = vmatprep.subr.mxu0 0.0
  %806 = vmatpush1.msra.mxu0 0.0
  %807 = vmatprep.subr.mxu0 0.0
  %808 = vmatpush1.msra.mxu0 0.0
  %809 = vmatprep.subr.mxu0 0.0
  %810 = vmatpush1.msra.mxu0 %v772
  %811 = vmatprep.subr.mxu0 0.0
  %812 = vmatpush1.msra.mxu0 %v770
  %813 = vmatprep.subr.mxu0 0.0
  %814 = vmatpush2.msra.mxu0 0.0
  %815 = vmatprep.subr.mxu0 0.0
  %816 = vmatpush2.msra.mxu0 0.0
  %817 = vmatprep.subr.mxu0 0.0
  %818 = vmatpush2.msra.mxu0 0.0
  %819 = vmatprep.subr.mxu0 0.0
  %820 = vmatpush2.msra.mxu0 0.0
  %821 = vmatprep.subr.mxu0 0.0
  %822 = vmatpush2.msra.mxu0 0.0
  %823 = vmatprep.subr.mxu0 0.0
  %824 = vmatpush2.msra.mxu0 0.0
  %825 = vmatprep.subr.mxu0 0.0
  %826 = vmatpush2.msra.mxu0 0.0
  %827 = vmatprep.subr.mxu0 0.0
  %828 = vmatpush2.msra.mxu0 0.0
  %829 = vmatprep.subr.mxu0 0.0
  %830 = vmatpush2.msra.mxu0 0.0
  %831 = vmatprep.subr.mxu0 0.0
  %832 = vmatpush2.msra.mxu0 0.0
  %833 = vmatprep.subr.mxu0 0.0
  %834 = vmatpush2.msra.mxu0 0.0
  %835 = vmatprep.subr.mxu0 0.0
  %836 = vmatpush2.msra.mxu0 0.0
  %837 = vmatprep.subr.mxu0 0.0
  %838 = vmatpush2.msra.mxu0 0.0
  %839 = vmatprep.subr.mxu0 0.0
  %840 = vmatpush2.msra.mxu0 0.0
  %841 = vmatprep.subr.mxu0 0.0
  %842 = vmatpush2.msra.mxu0 0.0
  %843 = vmatprep.subr.mxu0 0.0
  %844 = vmatpush2.msra.mxu0 0.0
  %845 = vmatprep.mubr.f32.mxu0 0.0
  %846 = vmatmul.mubr.f32.gmra.mxu0 %v776
  %v847 = vpop.f32.mrf.mxu0
  %v848 = vadd.f32 0.0, %v847
  %v849 = vpop.f32.mrf.mxu0
  %850 = vmatprep.mubr.f32.mxu0 0.0
  %851 = vmatmul.mubr.f32.gmra.mxu0 %v779
  %v852 = vpop.f32.mrf.mxu0
  %v853 = vadd.f32 0.0, %v852
  %v854 = vpop.f32.mrf.mxu0
  %855 = vdwg.mxu0
  %856 = vrot.lane.b32.xlu0 %v297, 56
  %v857 = vpop.permute.xlu0 %856
  %858 = vrot.lane.b32.xlu0 %v302, 56
  %v859 = vpop.permute.xlu0 %858
  %v863 = vsel %vm680, %v763, 0
  %v866 = vsel %vm680, %v764, 0
  %868 = vmatprep.subr.mxu0 0.0
  %869 = vmatpush1.msra.mxu0 0.0
  %870 = vmatprep.subr.mxu0 0.0
  %871 = vmatpush1.msra.mxu0 0.0
  %872 = vmatprep.subr.mxu0 0.0
  %873 = vmatpush1.msra.mxu0 0.0
  %874 = vmatprep.subr.mxu0 0.0
  %875 = vmatpush1.msra.mxu0 0.0
  %876 = vmatprep.subr.mxu0 0.0
  %877 = vmatpush1.msra.mxu0 0.0
  %878 = vmatprep.subr.mxu0 0.0
  %879 = vmatpush1.msra.mxu0 0.0
  %880 = vmatprep.subr.mxu0 0.0
  %881 = vmatpush1.msra.mxu0 0.0
  %882 = vmatprep.subr.mxu0 0.0
  %883 = vmatpush1.msra.mxu0 0.0
  %884 = vmatprep.subr.mxu0 0.0
  %885 = vmatpush1.msra.mxu0 0.0
  %886 = vmatprep.subr.mxu0 0.0
  %887 = vmatpush1.msra.mxu0 0.0
  %888 = vmatprep.subr.mxu0 0.0
  %889 = vmatpush1.msra.mxu0 0.0
  %890 = vmatprep.subr.mxu0 0.0
  %891 = vmatpush1.msra.mxu0 0.0
  %892 = vmatprep.subr.mxu0 0.0
  %893 = vmatpush1.msra.mxu0 0.0
  %894 = vmatprep.subr.mxu0 0.0
  %895 = vmatpush1.msra.mxu0 0.0
  %896 = vmatprep.subr.mxu0 0.0
  %897 = vmatpush1.msra.mxu0 %v859
  %898 = vmatprep.subr.mxu0 0.0
  %899 = vmatpush1.msra.mxu0 %v857
  %900 = vmatprep.subr.mxu0 0.0
  %901 = vmatpush2.msra.mxu0 0.0
  %902 = vmatprep.subr.mxu0 0.0
  %903 = vmatpush2.msra.mxu0 0.0
  %904 = vmatprep.subr.mxu0 0.0
  %905 = vmatpush2.msra.mxu0 0.0
  %906 = vmatprep.subr.mxu0 0.0
  %907 = vmatpush2.msra.mxu0 0.0
  %908 = vmatprep.subr.mxu0 0.0
  %909 = vmatpush2.msra.mxu0 0.0
  %910 = vmatprep.subr.mxu0 0.0
  %911 = vmatpush2.msra.mxu0 0.0
  %912 = vmatprep.subr.mxu0 0.0
  %913 = vmatpush2.msra.mxu0 0.0
  %914 = vmatprep.subr.mxu0 0.0
  %915 = vmatpush2.msra.mxu0 0.0
  %916 = vmatprep.subr.mxu0 0.0
  %917 = vmatpush2.msra.mxu0 0.0
  %918 = vmatprep.subr.mxu0 0.0
  %919 = vmatpush2.msra.mxu0 0.0
  %920 = vmatprep.subr.mxu0 0.0
  %921 = vmatpush2.msra.mxu0 0.0
  %922 = vmatprep.subr.mxu0 0.0
  %923 = vmatpush2.msra.mxu0 0.0
  %924 = vmatprep.subr.mxu0 0.0
  %925 = vmatpush2.msra.mxu0 0.0
  %926 = vmatprep.subr.mxu0 0.0
  %927 = vmatpush2.msra.mxu0 0.0
  %928 = vmatprep.subr.mxu0 0.0
  %929 = vmatpush2.msra.mxu0 0.0
  %930 = vmatprep.subr.mxu0 0.0
  %931 = vmatpush2.msra.mxu0 0.0
  %932 = vmatprep.mubr.f32.mxu0 0.0
  %933 = vmatmul.mubr.f32.gmra.mxu0 %v863
  %v934 = vpop.f32.mrf.mxu0
  %v935 = vadd.f32 0.0, %v934
  %v936 = vpop.f32.mrf.mxu0
  %937 = vmatprep.mubr.f32.mxu0 0.0
  %938 = vmatmul.mubr.f32.gmra.mxu0 %v866
  %v939 = vpop.f32.mrf.mxu0
  %v940 = vadd.f32 0.0, %v939
  %v941 = vpop.f32.mrf.mxu0
  %942 = vdwg.mxu0
  %943 = vrot.lane.b32.xlu0 %v297, 48
  %v944 = vpop.permute.xlu0 %943
  %945 = vrot.lane.b32.xlu0 %v302, 48
  %v946 = vpop.permute.xlu0 %945
  %v950 = vsel %vm680, %v765, 0
  %v953 = vsel %vm680, %v766, 0
  %955 = vmatprep.subr.mxu0 0.0
  %956 = vmatpush1.msra.mxu0 0.0
  %957 = vmatprep.subr.mxu0 0.0
  %958 = vmatpush1.msra.mxu0 0.0
  %959 = vmatprep.subr.mxu0 0.0
  %960 = vmatpush1.msra.mxu0 0.0
  %961 = vmatprep.subr.mxu0 0.0
  %962 = vmatpush1.msra.mxu0 0.0
  %963 = vmatprep.subr.mxu0 0.0
  %964 = vmatpush1.msra.mxu0 0.0
  %965 = vmatprep.subr.mxu0 0.0
  %966 = vmatpush1.msra.mxu0 0.0
  %967 = vmatprep.subr.mxu0 0.0
  %968 = vmatpush1.msra.mxu0 0.0
  %969 = vmatprep.subr.mxu0 0.0
  %970 = vmatpush1.msra.mxu0 0.0
  %971 = vmatprep.subr.mxu0 0.0
  %972 = vmatpush1.msra.mxu0 0.0
  %973 = vmatprep.subr.mxu0 0.0
  %974 = vmatpush1.msra.mxu0 0.0
  %975 = vmatprep.subr.mxu0 0.0
  %976 = vmatpush1.msra.mxu0 0.0
  %977 = vmatprep.subr.mxu0 0.0
  %978 = vmatpush1.msra.mxu0 0.0
  %979 = vmatprep.subr.mxu0 0.0
  %980 = vmatpush1.msra.mxu0 0.0
  %981 = vmatprep.subr.mxu0 0.0
  %982 = vmatpush1.msra.mxu0 0.0
  %983 = vmatprep.subr.mxu0 0.0
  %984 = vmatpush1.msra.mxu0 %v946
  %985 = vmatprep.subr.mxu0 0.0
  %986 = vmatpush1.msra.mxu0 %v944
  %987 = vmatprep.subr.mxu0 0.0
  %988 = vmatpush2.msra.mxu0 0.0
  %989 = vmatprep.subr.mxu0 0.0
  %990 = vmatpush2.msra.mxu0 0.0
  %991 = vmatprep.subr.mxu0 0.0
  %992 = vmatpush2.msra.mxu0 0.0
  %993 = vmatprep.subr.mxu0 0.0
  %994 = vmatpush2.msra.mxu0 0.0
  %995 = vmatprep.subr.mxu0 0.0
  %996 = vmatpush2.msra.mxu0 0.0
  %997 = vmatprep.subr.mxu0 0.0
  %998 = vmatpush2.msra.mxu0 0.0
  %999 = vmatprep.subr.mxu0 0.0
  %1000 = vmatpush2.msra.mxu0 0.0
  %1001 = vmatprep.subr.mxu0 0.0
  %1002 = vmatpush2.msra.mxu0 0.0
  %1003 = vmatprep.subr.mxu0 0.0
  %1004 = vmatpush2.msra.mxu0 0.0
  %1005 = vmatprep.subr.mxu0 0.0
  %1006 = vmatpush2.msra.mxu0 0.0
  %1007 = vmatprep.subr.mxu0 0.0
  %1008 = vmatpush2.msra.mxu0 0.0
  %1009 = vmatprep.subr.mxu0 0.0
  %1010 = vmatpush2.msra.mxu0 0.0
  %1011 = vmatprep.subr.mxu0 0.0
  %1012 = vmatpush2.msra.mxu0 0.0
  %1013 = vmatprep.subr.mxu0 0.0
  %1014 = vmatpush2.msra.mxu0 0.0
  %1015 = vmatprep.subr.mxu0 0.0
  %1016 = vmatpush2.msra.mxu0 0.0
  %1017 = vmatprep.subr.mxu0 0.0
  %1018 = vmatpush2.msra.mxu0 0.0
  %1019 = vmatprep.mubr.f32.mxu0 0.0
  %1020 = vmatmul.mubr.f32.gmra.mxu0 %v950
  %v1021 = vpop.f32.mrf.mxu0
  %v1022 = vadd.f32 0.0, %v1021
  %v1023 = vpop.f32.mrf.mxu0
  %1024 = vmatprep.mubr.f32.mxu0 0.0
  %1025 = vmatmul.mubr.f32.gmra.mxu0 %v953
  %v1026 = vpop.f32.mrf.mxu0
  %v1027 = vadd.f32 0.0, %v1026
  %v1028 = vpop.f32.mrf.mxu0
  %1029 = vdwg.mxu0
  %1030 = vrot.lane.b32.xlu0 %v297, 40
  %v1031 = vpop.permute.xlu0 %1030
  %1032 = vrot.lane.b32.xlu0 %v302, 40
  %v1033 = vpop.permute.xlu0 %1032
  %v1037 = vsel %vm680, %v767, 0
  %v1040 = vsel %vm680, %v768, 0
  %1042 = vmatprep.subr.mxu0 0.0
  %1043 = vmatpush1.msra.mxu0 0.0
  %1044 = vmatprep.subr.mxu0 0.0
  %1045 = vmatpush1.msra.mxu0 0.0
  %1046 = vmatprep.subr.mxu0 0.0
  %1047 = vmatpush1.msra.mxu0 0.0
  %1048 = vmatprep.subr.mxu0 0.0
  %1049 = vmatpush1.msra.mxu0 0.0
  %1050 = vmatprep.subr.mxu0 0.0
  %1051 = vmatpush1.msra.mxu0 0.0
  %1052 = vmatprep.subr.mxu0 0.0
  %1053 = vmatpush1.msra.mxu0 0.0
  %1054 = vmatprep.subr.mxu0 0.0
  %1055 = vmatpush1.msra.mxu0 0.0
  %1056 = vmatprep.subr.mxu0 0.0
  %1057 = vmatpush1.msra.mxu0 0.0
  %1058 = vmatprep.subr.mxu0 0.0
  %1059 = vmatpush1.msra.mxu0 0.0
  %1060 = vmatprep.subr.mxu0 0.0
  %1061 = vmatpush1.msra.mxu0 0.0
  %1062 = vmatprep.subr.mxu0 0.0
  %1063 = vmatpush1.msra.mxu0 0.0
  %1064 = vmatprep.subr.mxu0 0.0
  %1065 = vmatpush1.msra.mxu0 0.0
  %1066 = vmatprep.subr.mxu0 0.0
  %1067 = vmatpush1.msra.mxu0 0.0
  %1068 = vmatprep.subr.mxu0 0.0
  %1069 = vmatpush1.msra.mxu0 0.0
  %1070 = vmatprep.subr.mxu0 0.0
  %1071 = vmatpush1.msra.mxu0 %v1033
  %1072 = vmatprep.subr.mxu0 0.0
  %1073 = vmatpush1.msra.mxu0 %v1031
  %1074 = vmatprep.subr.mxu0 0.0
  %1075 = vmatpush2.msra.mxu0 0.0
  %1076 = vmatprep.subr.mxu0 0.0
  %1077 = vmatpush2.msra.mxu0 0.0
  %1078 = vmatprep.subr.mxu0 0.0
  %1079 = vmatpush2.msra.mxu0 0.0
  %1080 = vmatprep.subr.mxu0 0.0
  %1081 = vmatpush2.msra.mxu0 0.0
  %1082 = vmatprep.subr.mxu0 0.0
  %1083 = vmatpush2.msra.mxu0 0.0
  %1084 = vmatprep.subr.mxu0 0.0
  %1085 = vmatpush2.msra.mxu0 0.0
  %1086 = vmatprep.subr.mxu0 0.0
  %1087 = vmatpush2.msra.mxu0 0.0
  %1088 = vmatprep.subr.mxu0 0.0
  %1089 = vmatpush2.msra.mxu0 0.0
  %1090 = vmatprep.subr.mxu0 0.0
  %1091 = vmatpush2.msra.mxu0 0.0
  %1092 = vmatprep.subr.mxu0 0.0
  %1093 = vmatpush2.msra.mxu0 0.0
  %1094 = vmatprep.subr.mxu0 0.0
  %1095 = vmatpush2.msra.mxu0 0.0
  %1096 = vmatprep.subr.mxu0 0.0
  %1097 = vmatpush2.msra.mxu0 0.0
  %1098 = vmatprep.subr.mxu0 0.0
  %1099 = vmatpush2.msra.mxu0 0.0
  %1100 = vmatprep.subr.mxu0 0.0
  %1101 = vmatpush2.msra.mxu0 0.0
  %1102 = vmatprep.subr.mxu0 0.0
  %1103 = vmatpush2.msra.mxu0 0.0
  %1104 = vmatprep.subr.mxu0 0.0
  %1105 = vmatpush2.msra.mxu0 0.0
  %1106 = vmatprep.mubr.f32.mxu0 0.0
  %1107 = vmatmul.mubr.f32.gmra.mxu0 %v1037
  %v1108 = vpop.f32.mrf.mxu0
  %v1109 = vadd.f32 0.0, %v1108
  %v1110 = vpop.f32.mrf.mxu0
  %1111 = vmatprep.mubr.f32.mxu0 0.0
  %1112 = vmatmul.mubr.f32.gmra.mxu0 %v1040
  %v1113 = vpop.f32.mrf.mxu0
  %v1114 = vadd.f32 0.0, %v1113
  %v1115 = vpop.f32.mrf.mxu0
  %1116 = vdwg.mxu0
  %1119 = vrot.lane.b32.xlu0 %v935, 8
  %v1120 = vpop.permute.xlu0 %1119
  %1121 = vrot.lane.b32.xlu0 %v940, 8
  %v1122 = vpop.permute.xlu0 %1121
  %1127 = vrot.lane.b32.xlu0 %v1022, 16
  %v1128 = vpop.permute.xlu0 %1127
  %1129 = vrot.lane.b32.xlu0 %v1027, 16
  %v1130 = vpop.permute.xlu0 %1129
  %1135 = vrot.lane.b32.xlu0 %v1109, 24
  %v1136 = vpop.permute.xlu0 %1135
  %1137 = vrot.lane.b32.xlu0 %v1114, 24
  %v1138 = vpop.permute.xlu0 %1137
  %v1141 = vsel %vm313, %v848, %v1120
  %v1142 = vsel %vm313, %v853, %v1122
  %v1143 = vsel %vm680, %v1141, %v1128
  %v1144 = vsel %vm680, %v1142, %v1130
  %vm1145 = vcmask 195584
  %v1146 = vsel %vm1145, %v1143, %v1136
  %v1147 = vsel %vm1145, %v1144, %v1138
  %v1149 = vsel %vm223, %v1146, 0
  %v1152 = vsel %vm223, %v1147, 0
  %1154 = vmatprep.subr.mxu0 0.0
  %1155 = vmatpush1.msra.mxu0 0.0
  %1156 = vmatprep.subr.mxu0 0.0
  %1157 = vmatpush1.msra.mxu0 0.0
  %1158 = vmatprep.subr.mxu0 0.0
  %1159 = vmatpush1.msra.mxu0 0.0
  %1160 = vmatprep.subr.mxu0 0.0
  %1161 = vmatpush1.msra.mxu0 0.0
  %1162 = vmatprep.subr.mxu0 0.0
  %1163 = vmatpush1.msra.mxu0 0.0
  %1164 = vmatprep.subr.mxu0 0.0
  %1165 = vmatpush1.msra.mxu0 0.0
  %1166 = vmatprep.subr.mxu0 0.0
  %1167 = vmatpush1.msra.mxu0 0.0
  %1168 = vmatprep.subr.mxu0 0.0
  %1169 = vmatpush1.msra.mxu0 0.0
  %1170 = vmatprep.subr.mxu0 0.0
  %1171 = vmatpush1.msra.mxu0 0.0
  %1172 = vmatprep.subr.mxu0 0.0
  %1173 = vmatpush1.msra.mxu0 0.0
  %1174 = vmatprep.subr.mxu0 0.0
  %1175 = vmatpush1.msra.mxu0 0.0
  %1176 = vmatprep.subr.mxu0 0.0
  %1177 = vmatpush1.msra.mxu0 0.0
  %1178 = vmatprep.subr.mxu0 0.0
  %1179 = vmatpush1.msra.mxu0 %v197
  %1180 = vmatprep.subr.mxu0 0.0
  %1181 = vmatpush1.msra.mxu0 %v196
  %1182 = vmatprep.subr.mxu0 0.0
  %1183 = vmatpush1.msra.mxu0 %v195
  %1184 = vmatprep.subr.mxu0 0.0
  %1185 = vmatpush1.msra.mxu0 %v194
  %1186 = vmatprep.subr.mxu0 0.0
  %1187 = vmatpush2.msra.mxu0 0.0
  %1188 = vmatprep.subr.mxu0 0.0
  %1189 = vmatpush2.msra.mxu0 0.0
  %1190 = vmatprep.subr.mxu0 0.0
  %1191 = vmatpush2.msra.mxu0 0.0
  %1192 = vmatprep.subr.mxu0 0.0
  %1193 = vmatpush2.msra.mxu0 0.0
  %1194 = vmatprep.subr.mxu0 0.0
  %1195 = vmatpush2.msra.mxu0 0.0
  %1196 = vmatprep.subr.mxu0 0.0
  %1197 = vmatpush2.msra.mxu0 0.0
  %1198 = vmatprep.subr.mxu0 0.0
  %1199 = vmatpush2.msra.mxu0 0.0
  %1200 = vmatprep.subr.mxu0 0.0
  %1201 = vmatpush2.msra.mxu0 0.0
  %1202 = vmatprep.subr.mxu0 0.0
  %1203 = vmatpush2.msra.mxu0 0.0
  %1204 = vmatprep.subr.mxu0 0.0
  %1205 = vmatpush2.msra.mxu0 0.0
  %1206 = vmatprep.subr.mxu0 0.0
  %1207 = vmatpush2.msra.mxu0 0.0
  %1208 = vmatprep.subr.mxu0 0.0
  %1209 = vmatpush2.msra.mxu0 0.0
  %1210 = vmatprep.subr.mxu0 0.0
  %1211 = vmatpush2.msra.mxu0 0.0
  %1212 = vmatprep.subr.mxu0 0.0
  %1213 = vmatpush2.msra.mxu0 0.0
  %1214 = vmatprep.subr.mxu0 0.0
  %1215 = vmatpush2.msra.mxu0 0.0
  %1216 = vmatprep.subr.mxu0 0.0
  %1217 = vmatpush2.msra.mxu0 0.0
  %1218 = vmatprep.mubr.f32.mxu0 0.0
  %1219 = vmatmul.mubr.f32.gmra.mxu0 %v1149
  %v1220 = vpop.f32.mrf.mxu0
  %v1221 = vadd.f32 0.0, %v1220
  %v1222 = vpop.f32.mrf.mxu0
  %1223 = vmatprep.mubr.f32.mxu0 0.0
  %1224 = vmatmul.mubr.f32.gmra.mxu0 %v1152
  %v1225 = vpop.f32.mrf.mxu0
  %v1226 = vadd.f32 0.0, %v1225
  %v1227 = vpop.f32.mrf.mxu0
  %1228 = vdwg.mxu0
  %v1229 = vadd.f32 %v185, %v1221
  %v1230 = vadd.f32 %v186, %v1226
  %v1232 = vlaneseq
  %v1233 = vshrl.u32 %v1232, 7
  %v1234 = vsub.s32 0, %v1233
  %v1235 = vrot.slane %v198, %v1234
  %v1237 = vadd.f32 %v1229, %v1235
  %v1238 = vadd.f32 %v1230, %v1235
  %v1239 = vsel %vm223, %v1237, 0.0
  %1240 = vadd.xlane.f32.xlu0 %v1239
  %v1241 = vpop.xlane.xlu0 %1240
  %v1242 = vsel %vm223, %v1238, 0.0
  %1243 = vadd.xlane.f32.xlu0 %v1242
  %v1244 = vpop.xlane.xlu0 %1243
  %v1245 = vrcp.pop 32.0
  %v1246 = vmul.f32 %v1241, %v1245
  %v1247 = vmul.f32 %v1244, %v1245
  %v1248 = vsub.f32 %v1237, %v1246
  %v1249 = vsub.f32 %v1238, %v1247
  %v1250 = vmul.f32 %v1248, %v1248
  %v1251 = vmul.f32 %v1249, %v1249
  %v1252 = vsel %vm223, %v1250, 0.0
  %1253 = vadd.xlane.f32.xlu0 %v1252
  %v1254 = vpop.xlane.xlu0 %1253
  %v1255 = vsel %vm223, %v1251, 0.0
  %1256 = vadd.xlane.f32.xlu0 %v1255
  %v1257 = vpop.xlane.xlu0 %1256
  %v1258 = vmul.f32 %v1254, %v1245
  %v1259 = vmul.f32 %v1257, %v1245
  %v1260 = vadd.f32 %v1258, 1e-05
  %v1261 = vadd.f32 %v1259, 1e-05
  %v1262 = vrsqrt.pop %v1260
  %v1263 = vrsqrt.pop %v1261
  %v1264 = vmul.f32 %v1248, %v1262
  %v1265 = vmul.f32 %v1249, %v1263
  %v1267 = vlaneseq
  %v1268 = vshrl.u32 %v1267, 7
  %v1269 = vsub.s32 0, %v1268
  %v1270 = vrot.slane %v199, %v1269
  %v1272 = vmul.f32 %v1264, %v1270
  %v1273 = vmul.f32 %v1265, %v1270
  %v1275 = vlaneseq
  %v1276 = vshrl.u32 %v1275, 7
  %v1277 = vsub.s32 0, %v1276
  %v1278 = vrot.slane %v200, %v1277
  %v1280 = vadd.f32 %v1272, %v1278
  %v1281 = vadd.f32 %v1273, %v1278
  %v1283 = vlaneseq
  %v1284 = vshrl.u32 %v1283, 7
  %v1285 = vsub.s32 0, %v1284
  %v1286 = vrot.slane %v205, %v1285
  %v1289 = vsel %vm223, %v1280, 0
  %v1292 = vsel %vm223, %v1281, 0
  %1294 = vmatprep.subr.mxu0 0.0
  %1295 = vmatpush1.msra.mxu0 0.0
  %1296 = vmatprep.subr.mxu0 0.0
  %1297 = vmatpush1.msra.mxu0 0.0
  %1298 = vmatprep.subr.mxu0 0.0
  %1299 = vmatpush1.msra.mxu0 0.0
  %1300 = vmatprep.subr.mxu0 0.0
  %1301 = vmatpush1.msra.mxu0 0.0
  %1302 = vmatprep.subr.mxu0 0.0
  %1303 = vmatpush1.msra.mxu0 0.0
  %1304 = vmatprep.subr.mxu0 0.0
  %1305 = vmatpush1.msra.mxu0 0.0
  %1306 = vmatprep.subr.mxu0 0.0
  %1307 = vmatpush1.msra.mxu0 0.0
  %1308 = vmatprep.subr.mxu0 0.0
  %1309 = vmatpush1.msra.mxu0 0.0
  %1310 = vmatprep.subr.mxu0 0.0
  %1311 = vmatpush1.msra.mxu0 0.0
  %1312 = vmatprep.subr.mxu0 0.0
  %1313 = vmatpush1.msra.mxu0 0.0
  %1314 = vmatprep.subr.mxu0 0.0
  %1315 = vmatpush1.msra.mxu0 0.0
  %1316 = vmatprep.subr.mxu0 0.0
  %1317 = vmatpush1.msra.mxu0 0.0
  %1318 = vmatprep.subr.mxu0 0.0
  %1319 = vmatpush1.msra.mxu0 %v204
  %1320 = vmatprep.subr.mxu0 0.0
  %1321 = vmatpush1.msra.mxu0 %v203
  %1322 = vmatprep.subr.mxu0 0.0
  %1323 = vmatpush1.msra.mxu0 %v202
  %1324 = vmatprep.subr.mxu0 0.0
  %1325 = vmatpush1.msra.mxu0 %v201
  %1326 = vmatprep.subr.mxu0 0.0
  %1327 = vmatpush2.msra.mxu0 0.0
  %1328 = vmatprep.subr.mxu0 0.0
  %1329 = vmatpush2.msra.mxu0 0.0
  %1330 = vmatprep.subr.mxu0 0.0
  %1331 = vmatpush2.msra.mxu0 0.0
  %1332 = vmatprep.subr.mxu0 0.0
  %1333 = vmatpush2.msra.mxu0 0.0
  %1334 = vmatprep.subr.mxu0 0.0
  %1335 = vmatpush2.msra.mxu0 0.0
  %1336 = vmatprep.subr.mxu0 0.0
  %1337 = vmatpush2.msra.mxu0 0.0
  %1338 = vmatprep.subr.mxu0 0.0
  %1339 = vmatpush2.msra.mxu0 0.0
  %1340 = vmatprep.subr.mxu0 0.0
  %1341 = vmatpush2.msra.mxu0 0.0
  %1342 = vmatprep.subr.mxu0 0.0
  %1343 = vmatpush2.msra.mxu0 0.0
  %1344 = vmatprep.subr.mxu0 0.0
  %1345 = vmatpush2.msra.mxu0 0.0
  %1346 = vmatprep.subr.mxu0 0.0
  %1347 = vmatpush2.msra.mxu0 0.0
  %1348 = vmatprep.subr.mxu0 0.0
  %1349 = vmatpush2.msra.mxu0 0.0
  %1350 = vmatprep.subr.mxu0 0.0
  %1351 = vmatpush2.msra.mxu0 0.0
  %1352 = vmatprep.subr.mxu0 0.0
  %1353 = vmatpush2.msra.mxu0 0.0
  %1354 = vmatprep.subr.mxu0 0.0
  %1355 = vmatpush2.msra.mxu0 0.0
  %1356 = vmatprep.subr.mxu0 0.0
  %1357 = vmatpush2.msra.mxu0 0.0
  %1358 = vmatprep.mubr.f32.mxu0 0.0
  %1359 = vmatmul.mubr.f32.gmra.mxu0 %v1289
  %v1360 = vpop.f32.mrf.mxu0
  %v1361 = vadd.f32 %v1286, %v1360
  %v1362 = vpop.f32.mrf.mxu0
  %1363 = vmatprep.mubr.f32.mxu0 0.0
  %1364 = vmatmul.mubr.f32.gmra.mxu0 %v1292
  %v1365 = vpop.f32.mrf.mxu0
  %v1366 = vadd.f32 %v1286, %v1365
  %v1367 = vpop.f32.mrf.mxu0
  %1368 = vdwg.mxu0
  %v1369 = vmax.f32 %v1361, 0.0
  %v1370 = vmax.f32 %v1366, 0.0
  %vm1371 = vcmask 523264
  %v1373 = vsel %vm1371, %v1369, 0
  %v1376 = vsel %vm1371, %v1370, 0
  %1378 = vmatprep.subr.mxu0 0.0
  %1379 = vmatpush1.msra.mxu0 0.0
  %1380 = vmatprep.subr.mxu0 0.0
  %1381 = vmatpush1.msra.mxu0 0.0
  %1382 = vmatprep.subr.mxu0 0.0
  %1383 = vmatpush1.msra.mxu0 0.0
  %1384 = vmatprep.subr.mxu0 0.0
  %1385 = vmatpush1.msra.mxu0 0.0
  %1386 = vmatprep.subr.mxu0 0.0
  %1387 = vmatpush1.msra.mxu0 0.0
  %1388 = vmatprep.subr.mxu0 0.0
  %1389 = vmatpush1.msra.mxu0 0.0
  %1390 = vmatprep.subr.mxu0 0.0
  %1391 = vmatpush1.msra.mxu0 0.0
  %1392 = vmatprep.subr.mxu0 0.0
  %1393 = vmatpush1.msra.mxu0 0.0
  %1394 = vmatprep.subr.mxu0 0.0
  %1395 = vmatpush1.msra.mxu0 %v213
  %1396 = vmatprep.subr.mxu0 0.0
  %1397 = vmatpush1.msra.mxu0 %v212
  %1398 = vmatprep.subr.mxu0 0.0
  %1399 = vmatpush1.msra.mxu0 %v211
  %1400 = vmatprep.subr.mxu0 0.0
  %1401 = vmatpush1.msra.mxu0 %v210
  %1402 = vmatprep.subr.mxu0 0.0
  %1403 = vmatpush1.msra.mxu0 %v209
  %1404 = vmatprep.subr.mxu0 0.0
  %1405 = vmatpush1.msra.mxu0 %v208
  %1406 = vmatprep.subr.mxu0 0.0
  %1407 = vmatpush1.msra.mxu0 %v207
  %1408 = vmatprep.subr.mxu0 0.0
  %1409 = vmatpush1.msra.mxu0 %v206
  %1410 = vmatprep.subr.mxu0 0.0
  %1411 = vmatpush2.msra.mxu0 0.0
  %1412 = vmatprep.subr.mxu0 0.0
  %1413 = vmatpush2.msra.mxu0 0.0
  %1414 = vmatprep.subr.mxu0 0.0
  %1415 = vmatpush2.msra.mxu0 0.0
  %1416 = vmatprep.subr.mxu0 0.0
  %1417 = vmatpush2.msra.mxu0 0.0
  %1418 = vmatprep.subr.mxu0 0.0
  %1419 = vmatpush2.msra.mxu0 0.0
  %1420 = vmatprep.subr.mxu0 0.0
  %1421 = vmatpush2.msra.mxu0 0.0
  %1422 = vmatprep.subr.mxu0 0.0
  %1423 = vmatpush2.msra.mxu0 0.0
  %1424 = vmatprep.subr.mxu0 0.0
  %1425 = vmatpush2.msra.mxu0 0.0
  %1426 = vmatprep.subr.mxu0 0.0
  %1427 = vmatpush2.msra.mxu0 0.0
  %1428 = vmatprep.subr.mxu0 0.0
  %1429 = vmatpush2.msra.mxu0 0.0
  %1430 = vmatprep.subr.mxu0 0.0
  %1431 = vmatpush2.msra.mxu0 0.0
  %1432 = vmatprep.subr.mxu0 0.0
  %1433 = vmatpush2.msra.mxu0 0.0
  %1434 = vmatprep.subr.mxu0 0.0
  %1435 = vmatpush2.msra.mxu0 0.0
  %1436 = vmatprep.subr.mxu0 0.0
  %1437 = vmatpush2.msra.mxu0 0.0
  %1438 = vmatprep.subr.mxu0 0.0
  %1439 = vmatpush2.msra.mxu0 0.0
  %1440 = vmatprep.subr.mxu0 0.0
  %1441 = vmatpush2.msra.mxu0 0.0
  %1442 = vmatprep.mubr.f32.mxu0 0.0
  %1443 = vmatmul.mubr.f32.gmra.mxu0 %v1373
  %v1444 = vpop.f32.mrf.mxu0
  %v1445 = vadd.f32 0.0, %v1444
  %v1446 = vpop.f32.mrf.mxu0
  %1447 = vmatprep.mubr.f32.mxu0 0.0
  %1448 = vmatmul.mubr.f32.gmra.mxu0 %v1376
  %v1449 = vpop.f32.mrf.mxu0
  %v1450 = vadd.f32 0.0, %v1449
  %v1451 = vpop.f32.mrf.mxu0
  %1452 = vdwg.mxu0
  %v1453 = vadd.f32 %v1280, %v1445
  %v1454 = vadd.f32 %v1281, %v1450
  %v1456 = vlaneseq
  %v1457 = vshrl.u32 %v1456, 7
  %v1458 = vsub.s32 0, %v1457
  %v1459 = vrot.slane %v214, %v1458
  %v1461 = vadd.f32 %v1453, %v1459
  %v1462 = vadd.f32 %v1454, %v1459
  %v1463 = vsel %vm223, %v1461, 0.0
  %1464 = vadd.xlane.f32.xlu0 %v1463
  %v1465 = vpop.xlane.xlu0 %1464
  %v1466 = vsel %vm223, %v1462, 0.0
  %1467 = vadd.xlane.f32.xlu0 %v1466
  %v1468 = vpop.xlane.xlu0 %1467
  %v1469 = vmul.f32 %v1465, %v1245
  %v1470 = vmul.f32 %v1468, %v1245
  %v1471 = vsub.f32 %v1461, %v1469
  %v1472 = vsub.f32 %v1462, %v1470
  %v1473 = vmul.f32 %v1471, %v1471
  %v1474 = vmul.f32 %v1472, %v1472
  %v1475 = vsel %vm223, %v1473, 0.0
  %1476 = vadd.xlane.f32.xlu0 %v1475
  %v1477 = vpop.xlane.xlu0 %1476
  %v1478 = vsel %vm223, %v1474, 0.0
  %1479 = vadd.xlane.f32.xlu0 %v1478
  %v1480 = vpop.xlane.xlu0 %1479
  %v1481 = vmul.f32 %v1477, %v1245
  %v1482 = vmul.f32 %v1480, %v1245
  %v1483 = vadd.f32 %v1481, 1e-05
  %v1484 = vadd.f32 %v1482, 1e-05
  %v1485 = vrsqrt.pop %v1483
  %v1486 = vrsqrt.pop %v1484
  %v1487 = vmul.f32 %v1471, %v1485
  %v1488 = vmul.f32 %v1472, %v1486
  %v1490 = vlaneseq
  %v1491 = vshrl.u32 %v1490, 7
  %v1492 = vsub.s32 0, %v1491
  %v1493 = vrot.slane %v215, %v1492
  %v1495 = vmul.f32 %v1487, %v1493
  %v1496 = vmul.f32 %v1488, %v1493
  %v1498 = vlaneseq
  %v1499 = vshrl.u32 %v1498, 7
  %v1500 = vsub.s32 0, %v1499
  %v1501 = vrot.slane %v216, %v1500
  %v1503 = vadd.f32 %v1495, %v1501
  %v1504 = vadd.f32 %v1496, %v1501
  %s1505 = scalar_lea.vmem %s11, 32
  %v1506 = vld [vmem:[%s1505] sm:$0xff]
  %v1507 = vld [vmem:[%s1505 + $0x8] sm:$0xff]
  %v1508 = vld [vmem:[%s1505 + $0x10] sm:$0xff]
  %v1509 = vld [vmem:[%s1505 + $0x18] sm:$0xff]
  %s1510 = scalar_lea.vmem %s13, 1
  %v1511 = vld [vmem:[%s1510] sm:$0x1]
  %s1512 = scalar_lea.vmem %s15, 32
  %v1513 = vld [vmem:[%s1512] sm:$0xff]
  %v1514 = vld [vmem:[%s1512 + $0x8] sm:$0xff]
  %v1515 = vld [vmem:[%s1512 + $0x10] sm:$0xff]
  %v1516 = vld [vmem:[%s1512 + $0x18] sm:$0xff]
  %s1517 = scalar_lea.vmem %s17, 1
  %v1518 = vld [vmem:[%s1517] sm:$0x1]
  %s1519 = scalar_lea.vmem %s19, 1
  %v1520 = vld [vmem:[%s1519] sm:$0x1]
  %s1521 = scalar_lea.vmem %s21, 1
  %v1522 = vld [vmem:[%s1521] sm:$0x1]
  %s1523 = scalar_lea.vmem %s23, 32
  %v1524 = vld [vmem:[%s1523] sm:$0xff]
  %v1525 = vld [vmem:[%s1523 + $0x8] sm:$0xff]
  %v1526 = vld [vmem:[%s1523 + $0x10] sm:$0xff]
  %v1527 = vld [vmem:[%s1523 + $0x18] sm:$0xff]
  %s1528 = scalar_lea.vmem %s25, 1
  %v1529 = vld [vmem:[%s1528] sm:$0x1]
  %s1530 = scalar_lea.vmem %s27, 64
  %v1531 = vld [vmem:[%s1530] sm:$0xff]
  %v1532 = vld [vmem:[%s1530 + $0x8] sm:$0xff]
  %v1533 = vld [vmem:[%s1530 + $0x10] sm:$0xff]
  %v1534 = vld [vmem:[%s1530 + $0x18] sm:$0xff]
  %v1535 = vld [vmem:[%s1530 + $0x20] sm:$0xff]
  %v1536 = vld [vmem:[%s1530 + $0x28] sm:$0xff]
  %v1537 = vld [vmem:[%s1530 + $0x30] sm:$0xff]
  %v1538 = vld [vmem:[%s1530 + $0x38] sm:$0xff]
  %s1539 = scalar_lea.vmem %s29, 1
  %v1540 = vld [vmem:[%s1539] sm:$0x1]
  %s1541 = scalar_lea.vmem %s31, 1
  %v1542 = vld [vmem:[%s1541] sm:$0x1]
  %s1543 = scalar_lea.vmem %s33, 1
  %v1544 = vld [vmem:[%s1543] sm:$0x1]
  %v1546 = vlaneseq
  %v1547 = vshrl.u32 %v1546, 7
  %v1548 = vsub.s32 0, %v1547
  %v1549 = vrot.slane %v1511, %v1548
  %v1552 = vsel %vm223, %v1503, 0
  %v1555 = vsel %vm223, %v1504, 0
  %1557 = vmatprep.subr.mxu0 0.0
  %1558 = vmatpush1.msra.mxu0 0.0
  %1559 = vmatprep.subr.mxu0 0.0
  %1560 = vmatpush1.msra.mxu0 0.0
  %1561 = vmatprep.subr.mxu0 0.0
  %1562 = vmatpush1.msra.mxu0 0.0
  %1563 = vmatprep.subr.mxu0 0.0
  %1564 = vmatpush1.msra.mxu0 0.0
  %1565 = vmatprep.subr.mxu0 0.0
  %1566 = vmatpush1.msra.mxu0 0.0
  %1567 = vmatprep.subr.mxu0 0.0
  %1568 = vmatpush1.msra.mxu0 0.0
  %1569 = vmatprep.subr.mxu0 0.0
  %1570 = vmatpush1.msra.mxu0 0.0
  %1571 = vmatprep.subr.mxu0 0.0
  %1572 = vmatpush1.msra.mxu0 0.0
  %1573 = vmatprep.subr.mxu0 0.0
  %1574 = vmatpush1.msra.mxu0 0.0
  %1575 = vmatprep.subr.mxu0 0.0
  %1576 = vmatpush1.msra.mxu0 0.0
  %1577 = vmatprep.subr.mxu0 0.0
  %1578 = vmatpush1.msra.mxu0 0.0
  %1579 = vmatprep.subr.mxu0 0.0
  %1580 = vmatpush1.msra.mxu0 0.0
  %1581 = vmatprep.subr.mxu0 0.0
  %1582 = vmatpush1.msra.mxu0 %v1509
  %1583 = vmatprep.subr.mxu0 0.0
  %1584 = vmatpush1.msra.mxu0 %v1508
  %1585 = vmatprep.subr.mxu0 0.0
  %1586 = vmatpush1.msra.mxu0 %v1507
  %1587 = vmatprep.subr.mxu0 0.0
  %1588 = vmatpush1.msra.mxu0 %v1506
  %1589 = vmatprep.subr.mxu0 0.0
  %1590 = vmatpush2.msra.mxu0 0.0
  %1591 = vmatprep.subr.mxu0 0.0
  %1592 = vmatpush2.msra.mxu0 0.0
  %1593 = vmatprep.subr.mxu0 0.0
  %1594 = vmatpush2.msra.mxu0 0.0
  %1595 = vmatprep.subr.mxu0 0.0
  %1596 = vmatpush2.msra.mxu0 0.0
  %1597 = vmatprep.subr.mxu0 0.0
  %1598 = vmatpush2.msra.mxu0 0.0
  %1599 = vmatprep.subr.mxu0 0.0
  %1600 = vmatpush2.msra.mxu0 0.0
  %1601 = vmatprep.subr.mxu0 0.0
  %1602 = vmatpush2.msra.mxu0 0.0
  %1603 = vmatprep.subr.mxu0 0.0
  %1604 = vmatpush2.msra.mxu0 0.0
  %1605 = vmatprep.subr.mxu0 0.0
  %1606 = vmatpush2.msra.mxu0 0.0
  %1607 = vmatprep.subr.mxu0 0.0
  %1608 = vmatpush2.msra.mxu0 0.0
  %1609 = vmatprep.subr.mxu0 0.0
  %1610 = vmatpush2.msra.mxu0 0.0
  %1611 = vmatprep.subr.mxu0 0.0
  %1612 = vmatpush2.msra.mxu0 0.0
  %1613 = vmatprep.subr.mxu0 0.0
  %1614 = vmatpush2.msra.mxu0 0.0
  %1615 = vmatprep.subr.mxu0 0.0
  %1616 = vmatpush2.msra.mxu0 0.0
  %1617 = vmatprep.subr.mxu0 0.0
  %1618 = vmatpush2.msra.mxu0 0.0
  %1619 = vmatprep.subr.mxu0 0.0
  %1620 = vmatpush2.msra.mxu0 0.0
  %1621 = vmatprep.mubr.f32.mxu0 0.0
  %1622 = vmatmul.mubr.f32.gmra.mxu0 %v1552
  %v1623 = vpop.f32.mrf.mxu0
  %v1624 = vadd.f32 %v1549, %v1623
  %v1625 = vpop.f32.mrf.mxu0
  %1626 = vmatprep.mubr.f32.mxu0 0.0
  %1627 = vmatmul.mubr.f32.gmra.mxu0 %v1555
  %v1628 = vpop.f32.mrf.mxu0
  %v1629 = vadd.f32 %v1549, %v1628
  %v1630 = vpop.f32.mrf.mxu0
  %1631 = vdwg.mxu0
  %v1632 = vmul.f32 %v1624, 0.35355338
  %v1633 = vmul.f32 %v1629, 0.35355338
  %1636 = vrot.lane.b32.xlu0 %v1624, 96
  %v1637 = vpop.permute.xlu0 %1636
  %1638 = vrot.lane.b32.xlu0 %v1629, 96
  %v1639 = vpop.permute.xlu0 %1638
  %v1641 = vsel %vm313, %v1632, 0
  %v1644 = vsel %vm313, %v1633, 0
  %v1646 = vsel %vm313, %v1637, 0
  %v1648 = vsel %vm313, %v1639, 0
  %1650 = vmatprep.subr.mxu0 0.0
  %1651 = vmatpush1.xpose.msra.mxu0 0.0
  %1652 = vmatprep.subr.mxu0 0.0
  %1653 = vmatpush1.xpose.msra.mxu0 0.0
  %1654 = vmatprep.subr.mxu0 0.0
  %1655 = vmatpush1.xpose.msra.mxu0 0.0
  %1656 = vmatprep.subr.mxu0 0.0
  %1657 = vmatpush1.xpose.msra.mxu0 0.0
  %1658 = vmatprep.subr.mxu0 0.0
  %1659 = vmatpush1.xpose.msra.mxu0 0.0
  %1660 = vmatprep.subr.mxu0 0.0
  %1661 = vmatpush1.xpose.msra.mxu0 0.0
  %1662 = vmatprep.subr.mxu0 0.0
  %1663 = vmatpush1.xpose.msra.mxu0 0.0
  %1664 = vmatprep.subr.mxu0 0.0
  %1665 = vmatpush1.xpose.msra.mxu0 0.0
  %1666 = vmatprep.subr.mxu0 0.0
  %1667 = vmatpush1.xpose.msra.mxu0 0.0
  %1668 = vmatprep.subr.mxu0 0.0
  %1669 = vmatpush1.xpose.msra.mxu0 0.0
  %1670 = vmatprep.subr.mxu0 0.0
  %1671 = vmatpush1.xpose.msra.mxu0 0.0
  %1672 = vmatprep.subr.mxu0 0.0
  %1673 = vmatpush1.xpose.msra.mxu0 0.0
  %1674 = vmatprep.subr.mxu0 0.0
  %1675 = vmatpush1.xpose.msra.mxu0 0.0
  %1676 = vmatprep.subr.mxu0 0.0
  %1677 = vmatpush1.xpose.msra.mxu0 0.0
  %1678 = vmatprep.subr.mxu0 0.0
  %1679 = vmatpush1.xpose.msra.mxu0 %v1648
  %1680 = vmatprep.subr.mxu0 0.0
  %1681 = vmatpush1.xpose.msra.mxu0 %v1646
  %1682 = vmatprep.subr.mxu0 0.0
  %1683 = vmatpush2.xpose.msra.mxu0 0.0
  %1684 = vmatprep.subr.mxu0 0.0
  %1685 = vmatpush2.xpose.msra.mxu0 0.0
  %1686 = vmatprep.subr.mxu0 0.0
  %1687 = vmatpush2.xpose.msra.mxu0 0.0
  %1688 = vmatprep.subr.mxu0 0.0
  %1689 = vmatpush2.xpose.msra.mxu0 0.0
  %1690 = vmatprep.subr.mxu0 0.0
  %1691 = vmatpush2.xpose.msra.mxu0 0.0
  %1692 = vmatprep.subr.mxu0 0.0
  %1693 = vmatpush2.xpose.msra.mxu0 0.0
  %1694 = vmatprep.subr.mxu0 0.0
  %1695 = vmatpush2.xpose.msra.mxu0 0.0
  %1696 = vmatprep.subr.mxu0 0.0
  %1697 = vmatpush2.xpose.msra.mxu0 0.0
  %1698 = vmatprep.subr.mxu0 0.0
  %1699 = vmatpush2.xpose.msra.mxu0 0.0
  %1700 = vmatprep.subr.mxu0 0.0
  %1701 = vmatpush2.xpose.msra.mxu0 0.0
  %1702 = vmatprep.subr.mxu0 0.0
  %1703 = vmatpush2.xpose.msra.mxu0 0.0
  %1704 = vmatprep.subr.mxu0 0.0
  %1705 = vmatpush2.xpose.msra.mxu0 0.0
  %1706 = vmatprep.subr.mxu0 0.0
  %1707 = vmatpush2.xpose.msra.mxu0 0.0
  %1708 = vmatprep.subr.mxu0 0.0
  %1709 = vmatpush2.xpose.msra.mxu0 0.0
  %1710 = vmatprep.subr.mxu0 0.0
  %1711 = vmatpush2.xpose.msra.mxu0 0.0
  %1712 = vmatprep.subr.mxu0 0.0
  %1713 = vmatpush2.xpose.msra.mxu0 0.0
  %1714 = vmatprep.mubr.f32.mxu0 0.0
  %1715 = vmatmul.mubr.f32.gmra.mxu0 %v1641
  %v1716 = vpop.f32.mrf.mxu0
  %v1717 = vadd.f32 0.0, %v1716
  %v1718 = vpop.f32.mrf.mxu0
  %1719 = vmatprep.mubr.f32.mxu0 0.0
  %1720 = vmatmul.mubr.f32.gmra.mxu0 %v1644
  %v1721 = vpop.f32.mrf.mxu0
  %v1722 = vadd.f32 0.0, %v1721
  %v1723 = vpop.f32.mrf.mxu0
  %1724 = vdwg.mxu0
  %1725 = vrot.lane.b32.xlu0 %v1632, 120
  %v1726 = vpop.permute.xlu0 %1725
  %1727 = vrot.lane.b32.xlu0 %v1633, 120
  %v1728 = vpop.permute.xlu0 %1727
  %1729 = vrot.lane.b32.xlu0 %v1624, 88
  %v1730 = vpop.permute.xlu0 %1729
  %1731 = vrot.lane.b32.xlu0 %v1629, 88
  %v1732 = vpop.permute.xlu0 %1731
  %v1733 = vsel %vm313, %v1726, 0
  %v1735 = vsel %vm313, %v1728, 0
  %v1737 = vsel %vm313, %v1730, 0
  %v1739 = vsel %vm313, %v1732, 0
  %1741 = vmatprep.subr.mxu0 0.0
  %1742 = vmatpush1.xpose.msra.mxu0 0.0
  %1743 = vmatprep.subr.mxu0 0.0
  %1744 = vmatpush1.xpose.msra.mxu0 0.0
  %1745 = vmatprep.subr.mxu0 0.0
  %1746 = vmatpush1.xpose.msra.mxu0 0.0
  %1747 = vmatprep.subr.mxu0 0.0
  %1748 = vmatpush1.xpose.msra.mxu0 0.0
  %1749 = vmatprep.subr.mxu0 0.0
  %1750 = vmatpush1.xpose.msra.mxu0 0.0
  %1751 = vmatprep.subr.mxu0 0.0
  %1752 = vmatpush1.xpose.msra.mxu0 0.0
  %1753 = vmatprep.subr.mxu0 0.0
  %1754 = vmatpush1.xpose.msra.mxu0 0.0
  %1755 = vmatprep.subr.mxu0 0.0
  %1756 = vmatpush1.xpose.msra.mxu0 0.0
  %1757 = vmatprep.subr.mxu0 0.0
  %1758 = vmatpush1.xpose.msra.mxu0 0.0
  %1759 = vmatprep.subr.mxu0 0.0
  %1760 = vmatpush1.xpose.msra.mxu0 0.0
  %1761 = vmatprep.subr.mxu0 0.0
  %1762 = vmatpush1.xpose.msra.mxu0 0.0
  %1763 = vmatprep.subr.mxu0 0.0
  %1764 = vmatpush1.xpose.msra.mxu0 0.0
  %1765 = vmatprep.subr.mxu0 0.0
  %1766 = vmatpush1.xpose.msra.mxu0 0.0
  %1767 = vmatprep.subr.mxu0 0.0
  %1768 = vmatpush1.xpose.msra.mxu0 0.0
  %1769 = vmatprep.subr.mxu0 0.0
  %1770 = vmatpush1.xpose.msra.mxu0 %v1739
  %1771 = vmatprep.subr.mxu0 0.0
  %1772 = vmatpush1.xpose.msra.mxu0 %v1737
  %1773 = vmatprep.subr.mxu0 0.0
  %1774 = vmatpush2.xpose.msra.mxu0 0.0
  %1775 = vmatprep.subr.mxu0 0.0
  %1776 = vmatpush2.xpose.msra.mxu0 0.0
  %1777 = vmatprep.subr.mxu0 0.0
  %1778 = vmatpush2.xpose.msra.mxu0 0.0
  %1779 = vmatprep.subr.mxu0 0.0
  %1780 = vmatpush2.xpose.msra.mxu0 0.0
  %1781 = vmatprep.subr.mxu0 0.0
  %1782 = vmatpush2.xpose.msra.mxu0 0.0
  %1783 = vmatprep.subr.mxu0 0.0
  %1784 = vmatpush2.xpose.msra.mxu0 0.0
  %1785 = vmatprep.subr.mxu0 0.0
  %1786 = vmatpush2.xpose.msra.mxu0 0.0
  %1787 = vmatprep.subr.mxu0 0.0
  %1788 = vmatpush2.xpose.msra.mxu0 0.0
  %1789 = vmatprep.subr.mxu0 0.0
  %1790 = vmatpush2.xpose.msra.mxu0 0.0
  %1791 = vmatprep.subr.mxu0 0.0
  %1792 = vmatpush2.xpose.msra.mxu0 0.0
  %1793 = vmatprep.subr.mxu0 0.0
  %1794 = vmatpush2.xpose.msra.mxu0 0.0
  %1795 = vmatprep.subr.mxu0 0.0
  %1796 = vmatpush2.xpose.msra.mxu0 0.0
  %1797 = vmatprep.subr.mxu0 0.0
  %1798 = vmatpush2.xpose.msra.mxu0 0.0
  %1799 = vmatprep.subr.mxu0 0.0
  %1800 = vmatpush2.xpose.msra.mxu0 0.0
  %1801 = vmatprep.subr.mxu0 0.0
  %1802 = vmatpush2.xpose.msra.mxu0 0.0
  %1803 = vmatprep.subr.mxu0 0.0
  %1804 = vmatpush2.xpose.msra.mxu0 0.0
  %1805 = vmatprep.mubr.f32.mxu0 0.0
  %1806 = vmatmul.mubr.f32.gmra.mxu0 %v1733
  %v1807 = vpop.f32.mrf.mxu0
  %v1808 = vadd.f32 0.0, %v1807
  %v1809 = vpop.f32.mrf.mxu0
  %1810 = vmatprep.mubr.f32.mxu0 0.0
  %1811 = vmatmul.mubr.f32.gmra.mxu0 %v1735
  %v1812 = vpop.f32.mrf.mxu0
  %v1813 = vadd.f32 0.0, %v1812
  %v1814 = vpop.f32.mrf.mxu0
  %1815 = vdwg.mxu0
  %1816 = vrot.lane.b32.xlu0 %v1632, 112
  %v1817 = vpop.permute.xlu0 %1816
  %1818 = vrot.lane.b32.xlu0 %v1633, 112
  %v1819 = vpop.permute.xlu0 %1818
  %1820 = vrot.lane.b32.xlu0 %v1624, 80
  %v1821 = vpop.permute.xlu0 %1820
  %1822 = vrot.lane.b32.xlu0 %v1629, 80
  %v1823 = vpop.permute.xlu0 %1822
  %v1824 = vsel %vm313, %v1817, 0
  %v1826 = vsel %vm313, %v1819, 0
  %v1828 = vsel %vm313, %v1821, 0
  %v1830 = vsel %vm313, %v1823, 0
  %1832 = vmatprep.subr.mxu0 0.0
  %1833 = vmatpush1.xpose.msra.mxu0 0.0
  %1834 = vmatprep.subr.mxu0 0.0
  %1835 = vmatpush1.xpose.msra.mxu0 0.0
  %1836 = vmatprep.subr.mxu0 0.0
  %1837 = vmatpush1.xpose.msra.mxu0 0.0
  %1838 = vmatprep.subr.mxu0 0.0
  %1839 = vmatpush1.xpose.msra.mxu0 0.0
  %1840 = vmatprep.subr.mxu0 0.0
  %1841 = vmatpush1.xpose.msra.mxu0 0.0
  %1842 = vmatprep.subr.mxu0 0.0
  %1843 = vmatpush1.xpose.msra.mxu0 0.0
  %1844 = vmatprep.subr.mxu0 0.0
  %1845 = vmatpush1.xpose.msra.mxu0 0.0
  %1846 = vmatprep.subr.mxu0 0.0
  %1847 = vmatpush1.xpose.msra.mxu0 0.0
  %1848 = vmatprep.subr.mxu0 0.0
  %1849 = vmatpush1.xpose.msra.mxu0 0.0
  %1850 = vmatprep.subr.mxu0 0.0
  %1851 = vmatpush1.xpose.msra.mxu0 0.0
  %1852 = vmatprep.subr.mxu0 0.0
  %1853 = vmatpush1.xpose.msra.mxu0 0.0
  %1854 = vmatprep.subr.mxu0 0.0
  %1855 = vmatpush1.xpose.msra.mxu0 0.0
  %1856 = vmatprep.subr.mxu0 0.0
  %1857 = vmatpush1.xpose.msra.mxu0 0.0
  %1858 = vmatprep.subr.mxu0 0.0
  %1859 = vmatpush1.xpose.msra.mxu0 0.0
  %1860 = vmatprep.subr.mxu0 0.0
  %1861 = vmatpush1.xpose.msra.mxu0 %v1830
  %1862 = vmatprep.subr.mxu0 0.0
  %1863 = vmatpush1.xpose.msra.mxu0 %v1828
  %1864 = vmatprep.subr.mxu0 0.0
  %1865 = vmatpush2.xpose.msra.mxu0 0.0
  %1866 = vmatprep.subr.mxu0 0.0
  %1867 = vmatpush2.xpose.msra.mxu0 0.0
  %1868 = vmatprep.subr.mxu0 0.0
  %1869 = vmatpush2.xpose.msra.mxu0 0.0
  %1870 = vmatprep.subr.mxu0 0.0
  %1871 = vmatpush2.xpose.msra.mxu0 0.0
  %1872 = vmatprep.subr.mxu0 0.0
  %1873 = vmatpush2.xpose.msra.mxu0 0.0
  %1874 = vmatprep.subr.mxu0 0.0
  %1875 = vmatpush2.xpose.msra.mxu0 0.0
  %1876 = vmatprep.subr.mxu0 0.0
  %1877 = vmatpush2.xpose.msra.mxu0 0.0
  %1878 = vmatprep.subr.mxu0 0.0
  %1879 = vmatpush2.xpose.msra.mxu0 0.0
  %1880 = vmatprep.subr.mxu0 0.0
  %1881 = vmatpush2.xpose.msra.mxu0 0.0
  %1882 = vmatprep.subr.mxu0 0.0
  %1883 = vmatpush2.xpose.msra.mxu0 0.0
  %1884 = vmatprep.subr.mxu0 0.0
  %1885 = vmatpush2.xpose.msra.mxu0 0.0
  %1886 = vmatprep.subr.mxu0 0.0
  %1887 = vmatpush2.xpose.msra.mxu0 0.0
  %1888 = vmatprep.subr.mxu0 0.0
  %1889 = vmatpush2.xpose.msra.mxu0 0.0
  %1890 = vmatprep.subr.mxu0 0.0
  %1891 = vmatpush2.xpose.msra.mxu0 0.0
  %1892 = vmatprep.subr.mxu0 0.0
  %1893 = vmatpush2.xpose.msra.mxu0 0.0
  %1894 = vmatprep.subr.mxu0 0.0
  %1895 = vmatpush2.xpose.msra.mxu0 0.0
  %1896 = vmatprep.mubr.f32.mxu0 0.0
  %1897 = vmatmul.mubr.f32.gmra.mxu0 %v1824
  %v1898 = vpop.f32.mrf.mxu0
  %v1899 = vadd.f32 0.0, %v1898
  %v1900 = vpop.f32.mrf.mxu0
  %1901 = vmatprep.mubr.f32.mxu0 0.0
  %1902 = vmatmul.mubr.f32.gmra.mxu0 %v1826
  %v1903 = vpop.f32.mrf.mxu0
  %v1904 = vadd.f32 0.0, %v1903
  %v1905 = vpop.f32.mrf.mxu0
  %1906 = vdwg.mxu0
  %1907 = vrot.lane.b32.xlu0 %v1632, 104
  %v1908 = vpop.permute.xlu0 %1907
  %1909 = vrot.lane.b32.xlu0 %v1633, 104
  %v1910 = vpop.permute.xlu0 %1909
  %1911 = vrot.lane.b32.xlu0 %v1624, 72
  %v1912 = vpop.permute.xlu0 %1911
  %1913 = vrot.lane.b32.xlu0 %v1629, 72
  %v1914 = vpop.permute.xlu0 %1913
  %v1915 = vsel %vm313, %v1908, 0
  %v1917 = vsel %vm313, %v1910, 0
  %v1919 = vsel %vm313, %v1912, 0
  %v1921 = vsel %vm313, %v1914, 0
  %1923 = vmatprep.subr.mxu0 0.0
  %1924 = vmatpush1.xpose.msra.mxu0 0.0
  %1925 = vmatprep.subr.mxu0 0.0
  %1926 = vmatpush1.xpose.msra.mxu0 0.0
  %1927 = vmatprep.subr.mxu0 0.0
  %1928 = vmatpush1.xpose.msra.mxu0 0.0
  %1929 = vmatprep.subr.mxu0 0.0
  %1930 = vmatpush1.xpose.msra.mxu0 0.0
  %1931 = vmatprep.subr.mxu0 0.0
  %1932 = vmatpush1.xpose.msra.mxu0 0.0
  %1933 = vmatprep.subr.mxu0 0.0
  %1934 = vmatpush1.xpose.msra.mxu0 0.0
  %1935 = vmatprep.subr.mxu0 0.0
  %1936 = vmatpush1.xpose.msra.mxu0 0.0
  %1937 = vmatprep.subr.mxu0 0.0
  %1938 = vmatpush1.xpose.msra.mxu0 0.0
  %1939 = vmatprep.subr.mxu0 0.0
  %1940 = vmatpush1.xpose.msra.mxu0 0.0
  %1941 = vmatprep.subr.mxu0 0.0
  %1942 = vmatpush1.xpose.msra.mxu0 0.0
  %1943 = vmatprep.subr.mxu0 0.0
  %1944 = vmatpush1.xpose.msra.mxu0 0.0
  %1945 = vmatprep.subr.mxu0 0.0
  %1946 = vmatpush1.xpose.msra.mxu0 0.0
  %1947 = vmatprep.subr.mxu0 0.0
  %1948 = vmatpush1.xpose.msra.mxu0 0.0
  %1949 = vmatprep.subr.mxu0 0.0
  %1950 = vmatpush1.xpose.msra.mxu0 0.0
  %1951 = vmatprep.subr.mxu0 0.0
  %1952 = vmatpush1.xpose.msra.mxu0 %v1921
  %1953 = vmatprep.subr.mxu0 0.0
  %1954 = vmatpush1.xpose.msra.mxu0 %v1919
  %1955 = vmatprep.subr.mxu0 0.0
  %1956 = vmatpush2.xpose.msra.mxu0 0.0
  %1957 = vmatprep.subr.mxu0 0.0
  %1958 = vmatpush2.xpose.msra.mxu0 0.0
  %1959 = vmatprep.subr.mxu0 0.0
  %1960 = vmatpush2.xpose.msra.mxu0 0.0
  %1961 = vmatprep.subr.mxu0 0.0
  %1962 = vmatpush2.xpose.msra.mxu0 0.0
  %1963 = vmatprep.subr.mxu0 0.0
  %1964 = vmatpush2.xpose.msra.mxu0 0.0
  %1965 = vmatprep.subr.mxu0 0.0
  %1966 = vmatpush2.xpose.msra.mxu0 0.0
  %1967 = vmatprep.subr.mxu0 0.0
  %1968 = vmatpush2.xpose.msra.mxu0 0.0
  %1969 = vmatprep.subr.mxu0 0.0
  %1970 = vmatpush2.xpose.msra.mxu0 0.0
  %1971 = vmatprep.subr.mxu0 0.0
  %1972 = vmatpush2.xpose.msra.mxu0 0.0
  %1973 = vmatprep.subr.mxu0 0.0
  %1974 = vmatpush2.xpose.msra.mxu0 0.0
  %1975 = vmatprep.subr.mxu0 0.0
  %1976 = vmatpush2.xpose.msra.mxu0 0.0
  %1977 = vmatprep.subr.mxu0 0.0
  %1978 = vmatpush2.xpose.msra.mxu0 0.0
  %1979 = vmatprep.subr.mxu0 0.0
  %1980 = vmatpush2.xpose.msra.mxu0 0.0
  %1981 = vmatprep.subr.mxu0 0.0
  %1982 = vmatpush2.xpose.msra.mxu0 0.0
  %1983 = vmatprep.subr.mxu0 0.0
  %1984 = vmatpush2.xpose.msra.mxu0 0.0
  %1985 = vmatprep.subr.mxu0 0.0
  %1986 = vmatpush2.xpose.msra.mxu0 0.0
  %1987 = vmatprep.mubr.f32.mxu0 0.0
  %1988 = vmatmul.mubr.f32.gmra.mxu0 %v1915
  %v1989 = vpop.f32.mrf.mxu0
  %v1990 = vadd.f32 0.0, %v1989
  %v1991 = vpop.f32.mrf.mxu0
  %1992 = vmatprep.mubr.f32.mxu0 0.0
  %1993 = vmatmul.mubr.f32.gmra.mxu0 %v1917
  %v1994 = vpop.f32.mrf.mxu0
  %v1995 = vadd.f32 0.0, %v1994
  %v1996 = vpop.f32.mrf.mxu0
  %1997 = vdwg.mxu0
  %v1998 = vadd.f32 %v1717, %v187
  %v1999 = vadd.f32 %v1722, %v188
  %v2000 = vadd.f32 %v1808, %v187
  %v2001 = vadd.f32 %v1813, %v188
  %v2002 = vadd.f32 %v1899, %v187
  %v2003 = vadd.f32 %v1904, %v188
  %v2004 = vadd.f32 %v1990, %v187
  %v2005 = vadd.f32 %v1995, %v188
  %v2006 = vsel %vm680, %v1998, -inf
  %2007 = vmax.xlane.f32.xlu0 %v2006
  %v2008 = vpop.xlane.xlu0 %2007
  %v2009 = vsel %vm680, %v1999, -inf
  %2010 = vmax.xlane.f32.xlu0 %v2009
  %v2011 = vpop.xlane.xlu0 %2010
  %v2012 = vsel %vm680, %v2000, -inf
  %2013 = vmax.xlane.f32.xlu0 %v2012
  %v2014 = vpop.xlane.xlu0 %2013
  %v2015 = vsel %vm680, %v2001, -inf
  %2016 = vmax.xlane.f32.xlu0 %v2015
  %v2017 = vpop.xlane.xlu0 %2016
  %v2018 = vsel %vm680, %v2002, -inf
  %2019 = vmax.xlane.f32.xlu0 %v2018
  %v2020 = vpop.xlane.xlu0 %2019
  %v2021 = vsel %vm680, %v2003, -inf
  %2022 = vmax.xlane.f32.xlu0 %v2021
  %v2023 = vpop.xlane.xlu0 %2022
  %v2024 = vsel %vm680, %v2004, -inf
  %2025 = vmax.xlane.f32.xlu0 %v2024
  %v2026 = vpop.xlane.xlu0 %2025
  %v2027 = vsel %vm680, %v2005, -inf
  %2028 = vmax.xlane.f32.xlu0 %v2027
  %v2029 = vpop.xlane.xlu0 %2028
  %v2030 = vsub.f32 %v1998, %v2008
  %v2031 = vsub.f32 %v1999, %v2011
  %v2032 = vsub.f32 %v2000, %v2014
  %v2033 = vsub.f32 %v2001, %v2017
  %v2034 = vsub.f32 %v2002, %v2020
  %v2035 = vsub.f32 %v2003, %v2023
  %v2036 = vsub.f32 %v2004, %v2026
  %v2037 = vsub.f32 %v2005, %v2029
  %v2038 = vmul.f32 %v2030, 1.442695
  %v2039 = vpow.pop %v2038
  %v2040 = vmul.f32 %v2031, 1.442695
  %v2041 = vpow.pop %v2040
  %v2042 = vmul.f32 %v2032, 1.442695
  %v2043 = vpow.pop %v2042
  %v2044 = vmul.f32 %v2033, 1.442695
  %v2045 = vpow.pop %v2044
  %v2046 = vmul.f32 %v2034, 1.442695
  %v2047 = vpow.pop %v2046
  %v2048 = vmul.f32 %v2035, 1.442695
  %v2049 = vpow.pop %v2048
  %v2050 = vmul.f32 %v2036, 1.442695
  %v2051 = vpow.pop %v2050
  %v2052 = vmul.f32 %v2037, 1.442695
  %v2053 = vpow.pop %v2052
  %v2054 = vsel %vm680, %v2039, 0.0
  %2055 = vadd.xlane.f32.xlu0 %v2054
  %v2056 = vpop.xlane.xlu0 %2055
  %v2057 = vsel %vm680, %v2041, 0.0
  %2058 = vadd.xlane.f32.xlu0 %v2057
  %v2059 = vpop.xlane.xlu0 %2058
  %v2060 = vsel %vm680, %v2043, 0.0
  %2061 = vadd.xlane.f32.xlu0 %v2060
  %v2062 = vpop.xlane.xlu0 %2061
  %v2063 = vsel %vm680, %v2045, 0.0
  %2064 = vadd.xlane.f32.xlu0 %v2063
  %v2065 = vpop.xlane.xlu0 %2064
  %v2066 = vsel %vm680, %v2047, 0.0
  %2067 = vadd.xlane.f32.xlu0 %v2066
  %v2068 = vpop.xlane.xlu0 %2067
  %v2069 = vsel %vm680, %v2049, 0.0
  %2070 = vadd.xlane.f32.xlu0 %v2069
  %v2071 = vpop.xlane.xlu0 %2070
  %v2072 = vsel %vm680, %v2051, 0.0
  %2073 = vadd.xlane.f32.xlu0 %v2072
  %v2074 = vpop.xlane.xlu0 %2073
  %v2075 = vsel %vm680, %v2053, 0.0
  %2076 = vadd.xlane.f32.xlu0 %v2075
  %v2077 = vpop.xlane.xlu0 %2076
  %v2078 = vrcp.pop %v2056
  %v2079 = vrcp.pop %v2059
  %v2080 = vrcp.pop %v2062
  %v2081 = vrcp.pop %v2065
  %v2082 = vrcp.pop %v2068
  %v2083 = vrcp.pop %v2071
  %v2084 = vrcp.pop %v2074
  %v2085 = vrcp.pop %v2077
  %v2086 = vmul.f32 %v2039, %v2078
  %v2087 = vmul.f32 %v2041, %v2079
  %v2088 = vmul.f32 %v2043, %v2080
  %v2089 = vmul.f32 %v2045, %v2081
  %v2090 = vmul.f32 %v2047, %v2082
  %v2091 = vmul.f32 %v2049, %v2083
  %v2092 = vmul.f32 %v2051, %v2084
  %v2093 = vmul.f32 %v2053, %v2085
  %2094 = vrot.lane.b32.xlu0 %v1624, 64
  %v2095 = vpop.permute.xlu0 %2094
  %2096 = vrot.lane.b32.xlu0 %v1629, 64
  %v2097 = vpop.permute.xlu0 %2096
  %v2101 = vsel %vm680, %v2086, 0
  %v2104 = vsel %vm680, %v2087, 0
  %2106 = vmatprep.subr.mxu0 0.0
  %2107 = vmatpush1.msra.mxu0 0.0
  %2108 = vmatprep.subr.mxu0 0.0
  %2109 = vmatpush1.msra.mxu0 0.0
  %2110 = vmatprep.subr.mxu0 0.0
  %2111 = vmatpush1.msra.mxu0 0.0
  %2112 = vmatprep.subr.mxu0 0.0
  %2113 = vmatpush1.msra.mxu0 0.0
  %2114 = vmatprep.subr.mxu0 0.0
  %2115 = vmatpush1.msra.mxu0 0.0
  %2116 = vmatprep.subr.mxu0 0.0
  %2117 = vmatpush1.msra.mxu0 0.0
  %2118 = vmatprep.subr.mxu0 0.0
  %2119 = vmatpush1.msra.mxu0 0.0
  %2120 = vmatprep.subr.mxu0 0.0
  %2121 = vmatpush1.msra.mxu0 0.0
  %2122 = vmatprep.subr.mxu0 0.0
  %2123 = vmatpush1.msra.mxu0 0.0
  %2124 = vmatprep.subr.mxu0 0.0
  %2125 = vmatpush1.msra.mxu0 0.0
  %2126 = vmatprep.subr.mxu0 0.0
  %2127 = vmatpush1.msra.mxu0 0.0
  %2128 = vmatprep.subr.mxu0 0.0
  %2129 = vmatpush1.msra.mxu0 0.0
  %2130 = vmatprep.subr.mxu0 0.0
  %2131 = vmatpush1.msra.mxu0 0.0
  %2132 = vmatprep.subr.mxu0 0.0
  %2133 = vmatpush1.msra.mxu0 0.0
  %2134 = vmatprep.subr.mxu0 0.0
  %2135 = vmatpush1.msra.mxu0 %v2097
  %2136 = vmatprep.subr.mxu0 0.0
  %2137 = vmatpush1.msra.mxu0 %v2095
  %2138 = vmatprep.subr.mxu0 0.0
  %2139 = vmatpush2.msra.mxu0 0.0
  %2140 = vmatprep.subr.mxu0 0.0
  %2141 = vmatpush2.msra.mxu0 0.0
  %2142 = vmatprep.subr.mxu0 0.0
  %2143 = vmatpush2.msra.mxu0 0.0
  %2144 = vmatprep.subr.mxu0 0.0
  %2145 = vmatpush2.msra.mxu0 0.0
  %2146 = vmatprep.subr.mxu0 0.0
  %2147 = vmatpush2.msra.mxu0 0.0
  %2148 = vmatprep.subr.mxu0 0.0
  %2149 = vmatpush2.msra.mxu0 0.0
  %2150 = vmatprep.subr.mxu0 0.0
  %2151 = vmatpush2.msra.mxu0 0.0
  %2152 = vmatprep.subr.mxu0 0.0
  %2153 = vmatpush2.msra.mxu0 0.0
  %2154 = vmatprep.subr.mxu0 0.0
  %2155 = vmatpush2.msra.mxu0 0.0
  %2156 = vmatprep.subr.mxu0 0.0
  %2157 = vmatpush2.msra.mxu0 0.0
  %2158 = vmatprep.subr.mxu0 0.0
  %2159 = vmatpush2.msra.mxu0 0.0
  %2160 = vmatprep.subr.mxu0 0.0
  %2161 = vmatpush2.msra.mxu0 0.0
  %2162 = vmatprep.subr.mxu0 0.0
  %2163 = vmatpush2.msra.mxu0 0.0
  %2164 = vmatprep.subr.mxu0 0.0
  %2165 = vmatpush2.msra.mxu0 0.0
  %2166 = vmatprep.subr.mxu0 0.0
  %2167 = vmatpush2.msra.mxu0 0.0
  %2168 = vmatprep.subr.mxu0 0.0
  %2169 = vmatpush2.msra.mxu0 0.0
  %2170 = vmatprep.mubr.f32.mxu0 0.0
  %2171 = vmatmul.mubr.f32.gmra.mxu0 %v2101
  %v2172 = vpop.f32.mrf.mxu0
  %v2173 = vadd.f32 0.0, %v2172
  %v2174 = vpop.f32.mrf.mxu0
  %2175 = vmatprep.mubr.f32.mxu0 0.0
  %2176 = vmatmul.mubr.f32.gmra.mxu0 %v2104
  %v2177 = vpop.f32.mrf.mxu0
  %v2178 = vadd.f32 0.0, %v2177
  %v2179 = vpop.f32.mrf.mxu0
  %2180 = vdwg.mxu0
  %2181 = vrot.lane.b32.xlu0 %v1624, 56
  %v2182 = vpop.permute.xlu0 %2181
  %2183 = vrot.lane.b32.xlu0 %v1629, 56
  %v2184 = vpop.permute.xlu0 %2183
  %v2188 = vsel %vm680, %v2088, 0
  %v2191 = vsel %vm680, %v2089, 0
  %2193 = vmatprep.subr.mxu0 0.0
  %2194 = vmatpush1.msra.mxu0 0.0
  %2195 = vmatprep.subr.mxu0 0.0
  %2196 = vmatpush1.msra.mxu0 0.0
  %2197 = vmatprep.subr.mxu0 0.0
  %2198 = vmatpush1.msra.mxu0 0.0
  %2199 = vmatprep.subr.mxu0 0.0
  %2200 = vmatpush1.msra.mxu0 0.0
  %2201 = vmatprep.subr.mxu0 0.0
  %2202 = vmatpush1.msra.mxu0 0.0
  %2203 = vmatprep.subr.mxu0 0.0
  %2204 = vmatpush1.msra.mxu0 0.0
  %2205 = vmatprep.subr.mxu0 0.0
  %2206 = vmatpush1.msra.mxu0 0.0
  %2207 = vmatprep.subr.mxu0 0.0
  %2208 = vmatpush1.msra.mxu0 0.0
  %2209 = vmatprep.subr.mxu0 0.0
  %2210 = vmatpush1.msra.mxu0 0.0
  %2211 = vmatprep.subr.mxu0 0.0
  %2212 = vmatpush1.msra.mxu0 0.0
  %2213 = vmatprep.subr.mxu0 0.0
  %2214 = vmatpush1.msra.mxu0 0.0
  %2215 = vmatprep.subr.mxu0 0.0
  %2216 = vmatpush1.msra.mxu0 0.0
  %2217 = vmatprep.subr.mxu0 0.0
  %2218 = vmatpush1.msra.mxu0 0.0
  %2219 = vmatprep.subr.mxu0 0.0
  %2220 = vmatpush1.msra.mxu0 0.0
  %2221 = vmatprep.subr.mxu0 0.0
  %2222 = vmatpush1.msra.mxu0 %v2184
  %2223 = vmatprep.subr.mxu0 0.0
  %2224 = vmatpush1.msra.mxu0 %v2182
  %2225 = vmatprep.subr.mxu0 0.0
  %2226 = vmatpush2.msra.mxu0 0.0
  %2227 = vmatprep.subr.mxu0 0.0
  %2228 = vmatpush2.msra.mxu0 0.0
  %2229 = vmatprep.subr.mxu0 0.0
  %2230 = vmatpush2.msra.mxu0 0.0
  %2231 = vmatprep.subr.mxu0 0.0
  %2232 = vmatpush2.msra.mxu0 0.0
  %2233 = vmatprep.subr.mxu0 0.0
  %2234 = vmatpush2.msra.mxu0 0.0
  %2235 = vmatprep.subr.mxu0 0.0
  %2236 = vmatpush2.msra.mxu0 0.0
  %2237 = vmatprep.subr.mxu0 0.0
  %2238 = vmatpush2.msra.mxu0 0.0
  %2239 = vmatprep.subr.mxu0 0.0
  %2240 = vmatpush2.msra.mxu0 0.0
  %2241 = vmatprep.subr.mxu0 0.0
  %2242 = vmatpush2.msra.mxu0 0.0
  %2243 = vmatprep.subr.mxu0 0.0
  %2244 = vmatpush2.msra.mxu0 0.0
  %2245 = vmatprep.subr.mxu0 0.0
  %2246 = vmatpush2.msra.mxu0 0.0
  %2247 = vmatprep.subr.mxu0 0.0
  %2248 = vmatpush2.msra.mxu0 0.0
  %2249 = vmatprep.subr.mxu0 0.0
  %2250 = vmatpush2.msra.mxu0 0.0
  %2251 = vmatprep.subr.mxu0 0.0
  %2252 = vmatpush2.msra.mxu0 0.0
  %2253 = vmatprep.subr.mxu0 0.0
  %2254 = vmatpush2.msra.mxu0 0.0
  %2255 = vmatprep.subr.mxu0 0.0
  %2256 = vmatpush2.msra.mxu0 0.0
  %2257 = vmatprep.mubr.f32.mxu0 0.0
  %2258 = vmatmul.mubr.f32.gmra.mxu0 %v2188
  %v2259 = vpop.f32.mrf.mxu0
  %v2260 = vadd.f32 0.0, %v2259
  %v2261 = vpop.f32.mrf.mxu0
  %2262 = vmatprep.mubr.f32.mxu0 0.0
  %2263 = vmatmul.mubr.f32.gmra.mxu0 %v2191
  %v2264 = vpop.f32.mrf.mxu0
  %v2265 = vadd.f32 0.0, %v2264
  %v2266 = vpop.f32.mrf.mxu0
  %2267 = vdwg.mxu0
  %2268 = vrot.lane.b32.xlu0 %v1624, 48
  %v2269 = vpop.permute.xlu0 %2268
  %2270 = vrot.lane.b32.xlu0 %v1629, 48
  %v2271 = vpop.permute.xlu0 %2270
  %v2275 = vsel %vm680, %v2090, 0
  %v2278 = vsel %vm680, %v2091, 0
  %2280 = vmatprep.subr.mxu0 0.0
  %2281 = vmatpush1.msra.mxu0 0.0
  %2282 = vmatprep.subr.mxu0 0.0
  %2283 = vmatpush1.msra.mxu0 0.0
  %2284 = vmatprep.subr.mxu0 0.0
  %2285 = vmatpush1.msra.mxu0 0.0
  %2286 = vmatprep.subr.mxu0 0.0
  %2287 = vmatpush1.msra.mxu0 0.0
  %2288 = vmatprep.subr.mxu0 0.0
  %2289 = vmatpush1.msra.mxu0 0.0
  %2290 = vmatprep.subr.mxu0 0.0
  %2291 = vmatpush1.msra.mxu0 0.0
  %2292 = vmatprep.subr.mxu0 0.0
  %2293 = vmatpush1.msra.mxu0 0.0
  %2294 = vmatprep.subr.mxu0 0.0
  %2295 = vmatpush1.msra.mxu0 0.0
  %2296 = vmatprep.subr.mxu0 0.0
  %2297 = vmatpush1.msra.mxu0 0.0
  %2298 = vmatprep.subr.mxu0 0.0
  %2299 = vmatpush1.msra.mxu0 0.0
  %2300 = vmatprep.subr.mxu0 0.0
  %2301 = vmatpush1.msra.mxu0 0.0
  %2302 = vmatprep.subr.mxu0 0.0
  %2303 = vmatpush1.msra.mxu0 0.0
  %2304 = vmatprep.subr.mxu0 0.0
  %2305 = vmatpush1.msra.mxu0 0.0
  %2306 = vmatprep.subr.mxu0 0.0
  %2307 = vmatpush1.msra.mxu0 0.0
  %2308 = vmatprep.subr.mxu0 0.0
  %2309 = vmatpush1.msra.mxu0 %v2271
  %2310 = vmatprep.subr.mxu0 0.0
  %2311 = vmatpush1.msra.mxu0 %v2269
  %2312 = vmatprep.subr.mxu0 0.0
  %2313 = vmatpush2.msra.mxu0 0.0
  %2314 = vmatprep.subr.mxu0 0.0
  %2315 = vmatpush2.msra.mxu0 0.0
  %2316 = vmatprep.subr.mxu0 0.0
  %2317 = vmatpush2.msra.mxu0 0.0
  %2318 = vmatprep.subr.mxu0 0.0
  %2319 = vmatpush2.msra.mxu0 0.0
  %2320 = vmatprep.subr.mxu0 0.0
  %2321 = vmatpush2.msra.mxu0 0.0
  %2322 = vmatprep.subr.mxu0 0.0
  %2323 = vmatpush2.msra.mxu0 0.0
  %2324 = vmatprep.subr.mxu0 0.0
  %2325 = vmatpush2.msra.mxu0 0.0
  %2326 = vmatprep.subr.mxu0 0.0
  %2327 = vmatpush2.msra.mxu0 0.0
  %2328 = vmatprep.subr.mxu0 0.0
  %2329 = vmatpush2.msra.mxu0 0.0
  %2330 = vmatprep.subr.mxu0 0.0
  %2331 = vmatpush2.msra.mxu0 0.0
  %2332 = vmatprep.subr.mxu0 0.0
  %2333 = vmatpush2.msra.mxu0 0.0
  %2334 = vmatprep.subr.mxu0 0.0
  %2335 = vmatpush2.msra.mxu0 0.0
  %2336 = vmatprep.subr.mxu0 0.0
  %2337 = vmatpush2.msra.mxu0 0.0
  %2338 = vmatprep.subr.mxu0 0.0
  %2339 = vmatpush2.msra.mxu0 0.0
  %2340 = vmatprep.subr.mxu0 0.0
  %2341 = vmatpush2.msra.mxu0 0.0
  %2342 = vmatprep.subr.mxu0 0.0
  %2343 = vmatpush2.msra.mxu0 0.0
  %2344 = vmatprep.mubr.f32.mxu0 0.0
  %2345 = vmatmul.mubr.f32.gmra.mxu0 %v2275
  %v2346 = vpop.f32.mrf.mxu0
  %v2347 = vadd.f32 0.0, %v2346
  %v2348 = vpop.f32.mrf.mxu0
  %2349 = vmatprep.mubr.f32.mxu0 0.0
  %2350 = vmatmul.mubr.f32.gmra.mxu0 %v2278
  %v2351 = vpop.f32.mrf.mxu0
  %v2352 = vadd.f32 0.0, %v2351
  %v2353 = vpop.f32.mrf.mxu0
  %2354 = vdwg.mxu0
  %2355 = vrot.lane.b32.xlu0 %v1624, 40
  %v2356 = vpop.permute.xlu0 %2355
  %2357 = vrot.lane.b32.xlu0 %v1629, 40
  %v2358 = vpop.permute.xlu0 %2357
  %v2362 = vsel %vm680, %v2092, 0
  %v2365 = vsel %vm680, %v2093, 0
  %2367 = vmatprep.subr.mxu0 0.0
  %2368 = vmatpush1.msra.mxu0 0.0
  %2369 = vmatprep.subr.mxu0 0.0
  %2370 = vmatpush1.msra.mxu0 0.0
  %2371 = vmatprep.subr.mxu0 0.0
  %2372 = vmatpush1.msra.mxu0 0.0
  %2373 = vmatprep.subr.mxu0 0.0
  %2374 = vmatpush1.msra.mxu0 0.0
  %2375 = vmatprep.subr.mxu0 0.0
  %2376 = vmatpush1.msra.mxu0 0.0
  %2377 = vmatprep.subr.mxu0 0.0
  %2378 = vmatpush1.msra.mxu0 0.0
  %2379 = vmatprep.subr.mxu0 0.0
  %2380 = vmatpush1.msra.mxu0 0.0
  %2381 = vmatprep.subr.mxu0 0.0
  %2382 = vmatpush1.msra.mxu0 0.0
  %2383 = vmatprep.subr.mxu0 0.0
  %2384 = vmatpush1.msra.mxu0 0.0
  %2385 = vmatprep.subr.mxu0 0.0
  %2386 = vmatpush1.msra.mxu0 0.0
  %2387 = vmatprep.subr.mxu0 0.0
  %2388 = vmatpush1.msra.mxu0 0.0
  %2389 = vmatprep.subr.mxu0 0.0
  %2390 = vmatpush1.msra.mxu0 0.0
  %2391 = vmatprep.subr.mxu0 0.0
  %2392 = vmatpush1.msra.mxu0 0.0
  %2393 = vmatprep.subr.mxu0 0.0
  %2394 = vmatpush1.msra.mxu0 0.0
  %2395 = vmatprep.subr.mxu0 0.0
  %2396 = vmatpush1.msra.mxu0 %v2358
  %2397 = vmatprep.subr.mxu0 0.0
  %2398 = vmatpush1.msra.mxu0 %v2356
  %2399 = vmatprep.subr.mxu0 0.0
  %2400 = vmatpush2.msra.mxu0 0.0
  %2401 = vmatprep.subr.mxu0 0.0
  %2402 = vmatpush2.msra.mxu0 0.0
  %2403 = vmatprep.subr.mxu0 0.0
  %2404 = vmatpush2.msra.mxu0 0.0
  %2405 = vmatprep.subr.mxu0 0.0
  %2406 = vmatpush2.msra.mxu0 0.0
  %2407 = vmatprep.subr.mxu0 0.0
  %2408 = vmatpush2.msra.mxu0 0.0
  %2409 = vmatprep.subr.mxu0 0.0
  %2410 = vmatpush2.msra.mxu0 0.0
  %2411 = vmatprep.subr.mxu0 0.0
  %2412 = vmatpush2.msra.mxu0 0.0
  %2413 = vmatprep.subr.mxu0 0.0
  %2414 = vmatpush2.msra.mxu0 0.0
  %2415 = vmatprep.subr.mxu0 0.0
  %2416 = vmatpush2.msra.mxu0 0.0
  %2417 = vmatprep.subr.mxu0 0.0
  %2418 = vmatpush2.msra.mxu0 0.0
  %2419 = vmatprep.subr.mxu0 0.0
  %2420 = vmatpush2.msra.mxu0 0.0
  %2421 = vmatprep.subr.mxu0 0.0
  %2422 = vmatpush2.msra.mxu0 0.0
  %2423 = vmatprep.subr.mxu0 0.0
  %2424 = vmatpush2.msra.mxu0 0.0
  %2425 = vmatprep.subr.mxu0 0.0
  %2426 = vmatpush2.msra.mxu0 0.0
  %2427 = vmatprep.subr.mxu0 0.0
  %2428 = vmatpush2.msra.mxu0 0.0
  %2429 = vmatprep.subr.mxu0 0.0
  %2430 = vmatpush2.msra.mxu0 0.0
  %2431 = vmatprep.mubr.f32.mxu0 0.0
  %2432 = vmatmul.mubr.f32.gmra.mxu0 %v2362
  %v2433 = vpop.f32.mrf.mxu0
  %v2434 = vadd.f32 0.0, %v2433
  %v2435 = vpop.f32.mrf.mxu0
  %2436 = vmatprep.mubr.f32.mxu0 0.0
  %2437 = vmatmul.mubr.f32.gmra.mxu0 %v2365
  %v2438 = vpop.f32.mrf.mxu0
  %v2439 = vadd.f32 0.0, %v2438
  %v2440 = vpop.f32.mrf.mxu0
  %2441 = vdwg.mxu0
  %2444 = vrot.lane.b32.xlu0 %v2260, 8
  %v2445 = vpop.permute.xlu0 %2444
  %2446 = vrot.lane.b32.xlu0 %v2265, 8
  %v2447 = vpop.permute.xlu0 %2446
  %2452 = vrot.lane.b32.xlu0 %v2347, 16
  %v2453 = vpop.permute.xlu0 %2452
  %2454 = vrot.lane.b32.xlu0 %v2352, 16
  %v2455 = vpop.permute.xlu0 %2454
  %2460 = vrot.lane.b32.xlu0 %v2434, 24
  %v2461 = vpop.permute.xlu0 %2460
  %2462 = vrot.lane.b32.xlu0 %v2439, 24
  %v2463 = vpop.permute.xlu0 %2462
  %v2466 = vsel %vm313, %v2173, %v2445
  %v2467 = vsel %vm313, %v2178, %v2447
  %v2468 = vsel %vm680, %v2466, %v2453
  %v2469 = vsel %vm680, %v2467, %v2455
  %v2470 = vsel %vm1145, %v2468, %v2461
  %v2471 = vsel %vm1145, %v2469, %v2463
  %v2473 = vsel %vm223, %v2470, 0
  %v2476 = vsel %vm223, %v2471, 0
  %2478 = vmatprep.subr.mxu0 0.0
  %2479 = vmatpush1.msra.mxu0 0.0
  %2480 = vmatprep.subr.mxu0 0.0
  %2481 = vmatpush1.msra.mxu0 0.0
  %2482 = vmatprep.subr.mxu0 0.0
  %2483 = vmatpush1.msra.mxu0 0.0
  %2484 = vmatprep.subr.mxu0 0.0
  %2485 = vmatpush1.msra.mxu0 0.0
  %2486 = vmatprep.subr.mxu0 0.0
  %2487 = vmatpush1.msra.mxu0 0.0
  %2488 = vmatprep.subr.mxu0 0.0
  %2489 = vmatpush1.msra.mxu0 0.0
  %2490 = vmatprep.subr.mxu0 0.0
  %2491 = vmatpush1.msra.mxu0 0.0
  %2492 = vmatprep.subr.mxu0 0.0
  %2493 = vmatpush1.msra.mxu0 0.0
  %2494 = vmatprep.subr.mxu0 0.0
  %2495 = vmatpush1.msra.mxu0 0.0
  %2496 = vmatprep.subr.mxu0 0.0
  %2497 = vmatpush1.msra.mxu0 0.0
  %2498 = vmatprep.subr.mxu0 0.0
  %2499 = vmatpush1.msra.mxu0 0.0
  %2500 = vmatprep.subr.mxu0 0.0
  %2501 = vmatpush1.msra.mxu0 0.0
  %2502 = vmatprep.subr.mxu0 0.0
  %2503 = vmatpush1.msra.mxu0 %v1516
  %2504 = vmatprep.subr.mxu0 0.0
  %2505 = vmatpush1.msra.mxu0 %v1515
  %2506 = vmatprep.subr.mxu0 0.0
  %2507 = vmatpush1.msra.mxu0 %v1514
  %2508 = vmatprep.subr.mxu0 0.0
  %2509 = vmatpush1.msra.mxu0 %v1513
  %2510 = vmatprep.subr.mxu0 0.0
  %2511 = vmatpush2.msra.mxu0 0.0
  %2512 = vmatprep.subr.mxu0 0.0
  %2513 = vmatpush2.msra.mxu0 0.0
  %2514 = vmatprep.subr.mxu0 0.0
  %2515 = vmatpush2.msra.mxu0 0.0
  %2516 = vmatprep.subr.mxu0 0.0
  %2517 = vmatpush2.msra.mxu0 0.0
  %2518 = vmatprep.subr.mxu0 0.0
  %2519 = vmatpush2.msra.mxu0 0.0
  %2520 = vmatprep.subr.mxu0 0.0
  %2521 = vmatpush2.msra.mxu0 0.0
  %2522 = vmatprep.subr.mxu0 0.0
  %2523 = vmatpush2.msra.mxu0 0.0
  %2524 = vmatprep.subr.mxu0 0.0
  %2525 = vmatpush2.msra.mxu0 0.0
  %2526 = vmatprep.subr.mxu0 0.0
  %2527 = vmatpush2.msra.mxu0 0.0
  %2528 = vmatprep.subr.mxu0 0.0
  %2529 = vmatpush2.msra.mxu0 0.0
  %2530 = vmatprep.subr.mxu0 0.0
  %2531 = vmatpush2.msra.mxu0 0.0
  %2532 = vmatprep.subr.mxu0 0.0
  %2533 = vmatpush2.msra.mxu0 0.0
  %2534 = vmatprep.subr.mxu0 0.0
  %2535 = vmatpush2.msra.mxu0 0.0
  %2536 = vmatprep.subr.mxu0 0.0
  %2537 = vmatpush2.msra.mxu0 0.0
  %2538 = vmatprep.subr.mxu0 0.0
  %2539 = vmatpush2.msra.mxu0 0.0
  %2540 = vmatprep.subr.mxu0 0.0
  %2541 = vmatpush2.msra.mxu0 0.0
  %2542 = vmatprep.mubr.f32.mxu0 0.0
  %2543 = vmatmul.mubr.f32.gmra.mxu0 %v2473
  %v2544 = vpop.f32.mrf.mxu0
  %v2545 = vadd.f32 0.0, %v2544
  %v2546 = vpop.f32.mrf.mxu0
  %2547 = vmatprep.mubr.f32.mxu0 0.0
  %2548 = vmatmul.mubr.f32.gmra.mxu0 %v2476
  %v2549 = vpop.f32.mrf.mxu0
  %v2550 = vadd.f32 0.0, %v2549
  %v2551 = vpop.f32.mrf.mxu0
  %2552 = vdwg.mxu0
  %v2553 = vadd.f32 %v1503, %v2545
  %v2554 = vadd.f32 %v1504, %v2550
  %v2556 = vlaneseq
  %v2557 = vshrl.u32 %v2556, 7
  %v2558 = vsub.s32 0, %v2557
  %v2559 = vrot.slane %v1518, %v2558
  %v2561 = vadd.f32 %v2553, %v2559
  %v2562 = vadd.f32 %v2554, %v2559
  %v2563 = vsel %vm223, %v2561, 0.0
  %2564 = vadd.xlane.f32.xlu0 %v2563
  %v2565 = vpop.xlane.xlu0 %2564
  %v2566 = vsel %vm223, %v2562, 0.0
  %2567 = vadd.xlane.f32.xlu0 %v2566
  %v2568 = vpop.xlane.xlu0 %2567
  %v2569 = vmul.f32 %v2565, %v1245
  %v2570 = vmul.f32 %v2568, %v1245
  %v2571 = vsub.f32 %v2561, %v2569
  %v2572 = vsub.f32 %v2562, %v2570
  %v2573 = vmul.f32 %v2571, %v2571
  %v2574 = vmul.f32 %v2572, %v2572
  %v2575 = vsel %vm223, %v2573, 0.0
  %2576 = vadd.xlane.f32.xlu0 %v2575
  %v2577 = vpop.xlane.xlu0 %2576
  %v2578 = vsel %vm223, %v2574, 0.0
  %2579 = vadd.xlane.f32.xlu0 %v2578
  %v2580 = vpop.xlane.xlu0 %2579
  %v2581 = vmul.f32 %v2577, %v1245
  %v2582 = vmul.f32 %v2580, %v1245
  %v2583 = vadd.f32 %v2581, 1e-05
  %v2584 = vadd.f32 %v2582, 1e-05
  %v2585 = vrsqrt.pop %v2583
  %v2586 = vrsqrt.pop %v2584
  %v2587 = vmul.f32 %v2571, %v2585
  %v2588 = vmul.f32 %v2572, %v2586
  %v2590 = vlaneseq
  %v2591 = vshrl.u32 %v2590, 7
  %v2592 = vsub.s32 0, %v2591
  %v2593 = vrot.slane %v1520, %v2592
  %v2595 = vmul.f32 %v2587, %v2593
  %v2596 = vmul.f32 %v2588, %v2593
  %v2598 = vlaneseq
  %v2599 = vshrl.u32 %v2598, 7
  %v2600 = vsub.s32 0, %v2599
  %v2601 = vrot.slane %v1522, %v2600
  %v2603 = vadd.f32 %v2595, %v2601
  %v2604 = vadd.f32 %v2596, %v2601
  %v2606 = vlaneseq
  %v2607 = vshrl.u32 %v2606, 7
  %v2608 = vsub.s32 0, %v2607
  %v2609 = vrot.slane %v1529, %v2608
  %v2612 = vsel %vm223, %v2603, 0
  %v2615 = vsel %vm223, %v2604, 0
  %2617 = vmatprep.subr.mxu0 0.0
  %2618 = vmatpush1.msra.mxu0 0.0
  %2619 = vmatprep.subr.mxu0 0.0
  %2620 = vmatpush1.msra.mxu0 0.0
  %2621 = vmatprep.subr.mxu0 0.0
  %2622 = vmatpush1.msra.mxu0 0.0
  %2623 = vmatprep.subr.mxu0 0.0
  %2624 = vmatpush1.msra.mxu0 0.0
  %2625 = vmatprep.subr.mxu0 0.0
  %2626 = vmatpush1.msra.mxu0 0.0
  %2627 = vmatprep.subr.mxu0 0.0
  %2628 = vmatpush1.msra.mxu0 0.0
  %2629 = vmatprep.subr.mxu0 0.0
  %2630 = vmatpush1.msra.mxu0 0.0
  %2631 = vmatprep.subr.mxu0 0.0
  %2632 = vmatpush1.msra.mxu0 0.0
  %2633 = vmatprep.subr.mxu0 0.0
  %2634 = vmatpush1.msra.mxu0 0.0
  %2635 = vmatprep.subr.mxu0 0.0
  %2636 = vmatpush1.msra.mxu0 0.0
  %2637 = vmatprep.subr.mxu0 0.0
  %2638 = vmatpush1.msra.mxu0 0.0
  %2639 = vmatprep.subr.mxu0 0.0
  %2640 = vmatpush1.msra.mxu0 0.0
  %2641 = vmatprep.subr.mxu0 0.0
  %2642 = vmatpush1.msra.mxu0 %v1527
  %2643 = vmatprep.subr.mxu0 0.0
  %2644 = vmatpush1.msra.mxu0 %v1526
  %2645 = vmatprep.subr.mxu0 0.0
  %2646 = vmatpush1.msra.mxu0 %v1525
  %2647 = vmatprep.subr.mxu0 0.0
  %2648 = vmatpush1.msra.mxu0 %v1524
  %2649 = vmatprep.subr.mxu0 0.0
  %2650 = vmatpush2.msra.mxu0 0.0
  %2651 = vmatprep.subr.mxu0 0.0
  %2652 = vmatpush2.msra.mxu0 0.0
  %2653 = vmatprep.subr.mxu0 0.0
  %2654 = vmatpush2.msra.mxu0 0.0
  %2655 = vmatprep.subr.mxu0 0.0
  %2656 = vmatpush2.msra.mxu0 0.0
  %2657 = vmatprep.subr.mxu0 0.0
  %2658 = vmatpush2.msra.mxu0 0.0
  %2659 = vmatprep.subr.mxu0 0.0
  %2660 = vmatpush2.msra.mxu0 0.0
  %2661 = vmatprep.subr.mxu0 0.0
  %2662 = vmatpush2.msra.mxu0 0.0
  %2663 = vmatprep.subr.mxu0 0.0
  %2664 = vmatpush2.msra.mxu0 0.0
  %2665 = vmatprep.subr.mxu0 0.0
  %2666 = vmatpush2.msra.mxu0 0.0
  %2667 = vmatprep.subr.mxu0 0.0
  %2668 = vmatpush2.msra.mxu0 0.0
  %2669 = vmatprep.subr.mxu0 0.0
  %2670 = vmatpush2.msra.mxu0 0.0
  %2671 = vmatprep.subr.mxu0 0.0
  %2672 = vmatpush2.msra.mxu0 0.0
  %2673 = vmatprep.subr.mxu0 0.0
  %2674 = vmatpush2.msra.mxu0 0.0
  %2675 = vmatprep.subr.mxu0 0.0
  %2676 = vmatpush2.msra.mxu0 0.0
  %2677 = vmatprep.subr.mxu0 0.0
  %2678 = vmatpush2.msra.mxu0 0.0
  %2679 = vmatprep.subr.mxu0 0.0
  %2680 = vmatpush2.msra.mxu0 0.0
  %2681 = vmatprep.mubr.f32.mxu0 0.0
  %2682 = vmatmul.mubr.f32.gmra.mxu0 %v2612
  %v2683 = vpop.f32.mrf.mxu0
  %v2684 = vadd.f32 %v2609, %v2683
  %v2685 = vpop.f32.mrf.mxu0
  %2686 = vmatprep.mubr.f32.mxu0 0.0
  %2687 = vmatmul.mubr.f32.gmra.mxu0 %v2615
  %v2688 = vpop.f32.mrf.mxu0
  %v2689 = vadd.f32 %v2609, %v2688
  %v2690 = vpop.f32.mrf.mxu0
  %2691 = vdwg.mxu0
  %v2692 = vmax.f32 %v2684, 0.0
  %v2693 = vmax.f32 %v2689, 0.0
  %v2695 = vsel %vm1371, %v2692, 0
  %v2698 = vsel %vm1371, %v2693, 0
  %2700 = vmatprep.subr.mxu0 0.0
  %2701 = vmatpush1.msra.mxu0 0.0
  %2702 = vmatprep.subr.mxu0 0.0
  %2703 = vmatpush1.msra.mxu0 0.0
  %2704 = vmatprep.subr.mxu0 0.0
  %2705 = vmatpush1.msra.mxu0 0.0
  %2706 = vmatprep.subr.mxu0 0.0
  %2707 = vmatpush1.msra.mxu0 0.0
  %2708 = vmatprep.subr.mxu0 0.0
  %2709 = vmatpush1.msra.mxu0 0.0
  %2710 = vmatprep.subr.mxu0 0.0
  %2711 = vmatpush1.msra.mxu0 0.0
  %2712 = vmatprep.subr.mxu0 0.0
  %2713 = vmatpush1.msra.mxu0 0.0
  %2714 = vmatprep.subr.mxu0 0.0
  %2715 = vmatpush1.msra.mxu0 0.0
  %2716 = vmatprep.subr.mxu0 0.0
  %2717 = vmatpush1.msra.mxu0 %v1538
  %2718 = vmatprep.subr.mxu0 0.0
  %2719 = vmatpush1.msra.mxu0 %v1537
  %2720 = vmatprep.subr.mxu0 0.0
  %2721 = vmatpush1.msra.mxu0 %v1536
  %2722 = vmatprep.subr.mxu0 0.0
  %2723 = vmatpush1.msra.mxu0 %v1535
  %2724 = vmatprep.subr.mxu0 0.0
  %2725 = vmatpush1.msra.mxu0 %v1534
  %2726 = vmatprep.subr.mxu0 0.0
  %2727 = vmatpush1.msra.mxu0 %v1533
  %2728 = vmatprep.subr.mxu0 0.0
  %2729 = vmatpush1.msra.mxu0 %v1532
  %2730 = vmatprep.subr.mxu0 0.0
  %2731 = vmatpush1.msra.mxu0 %v1531
  %2732 = vmatprep.subr.mxu0 0.0
  %2733 = vmatpush2.msra.mxu0 0.0
  %2734 = vmatprep.subr.mxu0 0.0
  %2735 = vmatpush2.msra.mxu0 0.0
  %2736 = vmatprep.subr.mxu0 0.0
  %2737 = vmatpush2.msra.mxu0 0.0
  %2738 = vmatprep.subr.mxu0 0.0
  %2739 = vmatpush2.msra.mxu0 0.0
  %2740 = vmatprep.subr.mxu0 0.0
  %2741 = vmatpush2.msra.mxu0 0.0
  %2742 = vmatprep.subr.mxu0 0.0
  %2743 = vmatpush2.msra.mxu0 0.0
  %2744 = vmatprep.subr.mxu0 0.0
  %2745 = vmatpush2.msra.mxu0 0.0
  %2746 = vmatprep.subr.mxu0 0.0
  %2747 = vmatpush2.msra.mxu0 0.0
  %2748 = vmatprep.subr.mxu0 0.0
  %2749 = vmatpush2.msra.mxu0 0.0
  %2750 = vmatprep.subr.mxu0 0.0
  %2751 = vmatpush2.msra.mxu0 0.0
  %2752 = vmatprep.subr.mxu0 0.0
  %2753 = vmatpush2.msra.mxu0 0.0
  %2754 = vmatprep.subr.mxu0 0.0
  %2755 = vmatpush2.msra.mxu0 0.0
  %2756 = vmatprep.subr.mxu0 0.0
  %2757 = vmatpush2.msra.mxu0 0.0
  %2758 = vmatprep.subr.mxu0 0.0
  %2759 = vmatpush2.msra.mxu0 0.0
  %2760 = vmatprep.subr.mxu0 0.0
  %2761 = vmatpush2.msra.mxu0 0.0
  %2762 = vmatprep.subr.mxu0 0.0
  %2763 = vmatpush2.msra.mxu0 0.0
  %2764 = vmatprep.mubr.f32.mxu0 0.0
  %2765 = vmatmul.mubr.f32.gmra.mxu0 %v2695
  %v2766 = vpop.f32.mrf.mxu0
  %v2767 = vadd.f32 0.0, %v2766
  %v2768 = vpop.f32.mrf.mxu0
  %2769 = vmatprep.mubr.f32.mxu0 0.0
  %2770 = vmatmul.mubr.f32.gmra.mxu0 %v2698
  %v2771 = vpop.f32.mrf.mxu0
  %v2772 = vadd.f32 0.0, %v2771
  %v2773 = vpop.f32.mrf.mxu0
  %2774 = vdwg.mxu0
  %v2775 = vadd.f32 %v2603, %v2767
  %v2776 = vadd.f32 %v2604, %v2772
  %v2778 = vlaneseq
  %v2779 = vshrl.u32 %v2778, 7
  %v2780 = vsub.s32 0, %v2779
  %v2781 = vrot.slane %v1540, %v2780
  %v2783 = vadd.f32 %v2775, %v2781
  %v2784 = vadd.f32 %v2776, %v2781
  %v2785 = vsel %vm223, %v2783, 0.0
  %2786 = vadd.xlane.f32.xlu0 %v2785
  %v2787 = vpop.xlane.xlu0 %2786
  %v2788 = vsel %vm223, %v2784, 0.0
  %2789 = vadd.xlane.f32.xlu0 %v2788
  %v2790 = vpop.xlane.xlu0 %2789
  %v2791 = vmul.f32 %v2787, %v1245
  %v2792 = vmul.f32 %v2790, %v1245
  %v2793 = vsub.f32 %v2783, %v2791
  %v2794 = vsub.f32 %v2784, %v2792
  %v2795 = vmul.f32 %v2793, %v2793
  %v2796 = vmul.f32 %v2794, %v2794
  %v2797 = vsel %vm223, %v2795, 0.0
  %2798 = vadd.xlane.f32.xlu0 %v2797
  %v2799 = vpop.xlane.xlu0 %2798
  %v2800 = vsel %vm223, %v2796, 0.0
  %2801 = vadd.xlane.f32.xlu0 %v2800
  %v2802 = vpop.xlane.xlu0 %2801
  %v2803 = vmul.f32 %v2799, %v1245
  %v2804 = vmul.f32 %v2802, %v1245
  %v2805 = vadd.f32 %v2803, 1e-05
  %v2806 = vadd.f32 %v2804, 1e-05
  %v2807 = vrsqrt.pop %v2805
  %v2808 = vrsqrt.pop %v2806
  %v2809 = vmul.f32 %v2793, %v2807
  %v2810 = vmul.f32 %v2794, %v2808
  %v2812 = vlaneseq
  %v2813 = vshrl.u32 %v2812, 7
  %v2814 = vsub.s32 0, %v2813
  %v2815 = vrot.slane %v1542, %v2814
  %v2817 = vmul.f32 %v2809, %v2815
  %v2818 = vmul.f32 %v2810, %v2815
  %v2820 = vlaneseq
  %v2821 = vshrl.u32 %v2820, 7
  %v2822 = vsub.s32 0, %v2821
  %v2823 = vrot.slane %v1544, %v2822
  %v2825 = vadd.f32 %v2817, %v2823
  %v2826 = vadd.f32 %v2818, %v2823
  %v2827 = vld [vmem:[%s3] sm:$0xff]
  %v2828 = vld [vmem:[%s3 + $0x8] sm:$0xf]
  %v2829 = vld [vmem:[%s7] sm:$0xff]
  %v2830 = vld [vmem:[%s7 + $0x8] sm:$0xf]
  %v2831 = vld [vmem:[%s9] sm:$0xff]
  %v2832 = vld [vmem:[%s9 + $0x8] sm:$0xf]
  %v2833 = vld [vmem:[%s35] sm:$0xff]
  %v2834 = vld [vmem:[%s35 + $0x8] sm:$0xff]
  %v2835 = vld [vmem:[%s35 + $0x10] sm:$0xff]
  %v2836 = vld [vmem:[%s35 + $0x18] sm:$0xff]
  %v2837 = vld [vmem:[%s37] sm:$0x1]
  %v2838 = vld [vmem:[%s39] sm:$0xff]
  %v2839 = vld [vmem:[%s39 + $0x8] sm:$0xff]
  %v2840 = vld [vmem:[%s39 + $0x10] sm:$0xff]
  %v2841 = vld [vmem:[%s39 + $0x18] sm:$0xff]
  %v2842 = vld [vmem:[%s41] sm:$0x1]
  %v2843 = vld [vmem:[%s43] sm:$0x1]
  %v2844 = vld [vmem:[%s45] sm:$0x1]
  %v2845 = vld [vmem:[%s47] sm:$0xff]
  %v2846 = vld [vmem:[%s47 + $0x8] sm:$0xff]
  %v2847 = vld [vmem:[%s47 + $0x10] sm:$0xff]
  %v2848 = vld [vmem:[%s47 + $0x18] sm:$0xff]
  %v2849 = vld [vmem:[%s49] sm:$0x1]
  %v2850 = vld [vmem:[%s51] sm:$0xff]
  %v2851 = vld [vmem:[%s51 + $0x8] sm:$0xff]
  %v2852 = vld [vmem:[%s51 + $0x10] sm:$0xff]
  %v2853 = vld [vmem:[%s51 + $0x18] sm:$0xff]
  %v2854 = vld [vmem:[%s53] sm:$0x1]
  %v2855 = vld [vmem:[%s55] sm:$0xff]
  %v2856 = vld [vmem:[%s55 + $0x8] sm:$0xff]
  %v2857 = vld [vmem:[%s55 + $0x10] sm:$0xff]
  %v2858 = vld [vmem:[%s55 + $0x18] sm:$0xff]
  %v2859 = vld [vmem:[%s57] sm:$0x1]
  %v2860 = vld [vmem:[%s59] sm:$0x1]
  %v2861 = vld [vmem:[%s61] sm:$0x1]
  %v2862 = vld [vmem:[%s63] sm:$0xff]
  %v2863 = vld [vmem:[%s63 + $0x8] sm:$0xff]
  %v2864 = vld [vmem:[%s63 + $0x10] sm:$0xff]
  %v2865 = vld [vmem:[%s63 + $0x18] sm:$0xff]
  %v2866 = vld [vmem:[%s65] sm:$0x1]
  %v2867 = vld [vmem:[%s67] sm:$0xff]
  %v2868 = vld [vmem:[%s67 + $0x8] sm:$0xff]
  %v2869 = vld [vmem:[%s67 + $0x10] sm:$0xff]
  %v2870 = vld [vmem:[%s67 + $0x18] sm:$0xff]
  %v2871 = vld [vmem:[%s67 + $0x20] sm:$0xff]
  %v2872 = vld [vmem:[%s67 + $0x28] sm:$0xff]
  %v2873 = vld [vmem:[%s67 + $0x30] sm:$0xff]
  %v2874 = vld [vmem:[%s67 + $0x38] sm:$0xff]
  %v2875 = vld [vmem:[%s69] sm:$0x1]
  %v2876 = vld [vmem:[%s71] sm:$0x1]
  %v2877 = vld [vmem:[%s73] sm:$0x1]
  %v2879 = vlaneseq
  %v2880 = vshrl.u32 %v2879, 7
  %v2881 = vsub.s32 0, %v2880
  %v2882 = vrot.slane %v2837, %v2881
  %v2885 = vsel %vm223, %v2827, 0
  %v2888 = vsel %vm223, %v2828, 0
  %2890 = vmatprep.subr.mxu0 0.0
  %2891 = vmatpush1.msra.mxu0 0.0
  %2892 = vmatprep.subr.mxu0 0.0
  %2893 = vmatpush1.msra.mxu0 0.0
  %2894 = vmatprep.subr.mxu0 0.0
  %2895 = vmatpush1.msra.mxu0 0.0
  %2896 = vmatprep.subr.mxu0 0.0
  %2897 = vmatpush1.msra.mxu0 0.0
  %2898 = vmatprep.subr.mxu0 0.0
  %2899 = vmatpush1.msra.mxu0 0.0
  %2900 = vmatprep.subr.mxu0 0.0
  %2901 = vmatpush1.msra.mxu0 0.0
  %2902 = vmatprep.subr.mxu0 0.0
  %2903 = vmatpush1.msra.mxu0 0.0
  %2904 = vmatprep.subr.mxu0 0.0
  %2905 = vmatpush1.msra.mxu0 0.0
  %2906 = vmatprep.subr.mxu0 0.0
  %2907 = vmatpush1.msra.mxu0 0.0
  %2908 = vmatprep.subr.mxu0 0.0
  %2909 = vmatpush1.msra.mxu0 0.0
  %2910 = vmatprep.subr.mxu0 0.0
  %2911 = vmatpush1.msra.mxu0 0.0
  %2912 = vmatprep.subr.mxu0 0.0
  %2913 = vmatpush1.msra.mxu0 0.0
  %2914 = vmatprep.subr.mxu0 0.0
  %2915 = vmatpush1.msra.mxu0 %v2836
  %2916 = vmatprep.subr.mxu0 0.0
  %2917 = vmatpush1.msra.mxu0 %v2835
  %2918 = vmatprep.subr.mxu0 0.0
  %2919 = vmatpush1.msra.mxu0 %v2834
  %2920 = vmatprep.subr.mxu0 0.0
  %2921 = vmatpush1.msra.mxu0 %v2833
  %2922 = vmatprep.subr.mxu0 0.0
  %2923 = vmatpush2.msra.mxu0 0.0
  %2924 = vmatprep.subr.mxu0 0.0
  %2925 = vmatpush2.msra.mxu0 0.0
  %2926 = vmatprep.subr.mxu0 0.0
  %2927 = vmatpush2.msra.mxu0 0.0
  %2928 = vmatprep.subr.mxu0 0.0
  %2929 = vmatpush2.msra.mxu0 0.0
  %2930 = vmatprep.subr.mxu0 0.0
  %2931 = vmatpush2.msra.mxu0 0.0
  %2932 = vmatprep.subr.mxu0 0.0
  %2933 = vmatpush2.msra.mxu0 0.0
  %2934 = vmatprep.subr.mxu0 0.0
  %2935 = vmatpush2.msra.mxu0 0.0
  %2936 = vmatprep.subr.mxu0 0.0
  %2937 = vmatpush2.msra.mxu0 0.0
  %2938 = vmatprep.subr.mxu0 0.0
  %2939 = vmatpush2.msra.mxu0 0.0
  %2940 = vmatprep.subr.mxu0 0.0
  %2941 = vmatpush2.msra.mxu0 0.0
  %2942 = vmatprep.subr.mxu0 0.0
  %2943 = vmatpush2.msra.mxu0 0.0
  %2944 = vmatprep.subr.mxu0 0.0
  %2945 = vmatpush2.msra.mxu0 0.0
  %2946 = vmatprep.subr.mxu0 0.0
  %2947 = vmatpush2.msra.mxu0 0.0
  %2948 = vmatprep.subr.mxu0 0.0
  %2949 = vmatpush2.msra.mxu0 0.0
  %2950 = vmatprep.subr.mxu0 0.0
  %2951 = vmatpush2.msra.mxu0 0.0
  %2952 = vmatprep.subr.mxu0 0.0
  %2953 = vmatpush2.msra.mxu0 0.0
  %2954 = vmatprep.mubr.f32.mxu0 0.0
  %2955 = vmatmul.mubr.f32.gmra.mxu0 %v2885
  %v2956 = vpop.f32.mrf.mxu0
  %v2957 = vadd.f32 %v2882, %v2956
  %v2958 = vpop.f32.mrf.mxu0
  %2959 = vmatprep.mubr.f32.mxu0 0.0
  %2960 = vmatmul.mubr.f32.gmra.mxu0 %v2888
  %v2961 = vpop.f32.mrf.mxu0
  %v2962 = vadd.f32 %v2882, %v2961
  %v2963 = vpop.f32.mrf.mxu0
  %2964 = vdwg.mxu0
  %v2965 = vmul.f32 %v2957, 0.35355338
  %v2966 = vmul.f32 %v2962, 0.35355338
  %2969 = vrot.lane.b32.xlu0 %v2957, 96
  %v2970 = vpop.permute.xlu0 %2969
  %2971 = vrot.lane.b32.xlu0 %v2962, 96
  %v2972 = vpop.permute.xlu0 %2971
  %v2974 = vsel %vm313, %v2965, 0
  %v2977 = vsel %vm313, %v2966, 0
  %v2979 = vsel %vm313, %v2970, 0
  %v2981 = vsel %vm313, %v2972, 0
  %2983 = vmatprep.subr.mxu0 0.0
  %2984 = vmatpush1.xpose.msra.mxu0 0.0
  %2985 = vmatprep.subr.mxu0 0.0
  %2986 = vmatpush1.xpose.msra.mxu0 0.0
  %2987 = vmatprep.subr.mxu0 0.0
  %2988 = vmatpush1.xpose.msra.mxu0 0.0
  %2989 = vmatprep.subr.mxu0 0.0
  %2990 = vmatpush1.xpose.msra.mxu0 0.0
  %2991 = vmatprep.subr.mxu0 0.0
  %2992 = vmatpush1.xpose.msra.mxu0 0.0
  %2993 = vmatprep.subr.mxu0 0.0
  %2994 = vmatpush1.xpose.msra.mxu0 0.0
  %2995 = vmatprep.subr.mxu0 0.0
  %2996 = vmatpush1.xpose.msra.mxu0 0.0
  %2997 = vmatprep.subr.mxu0 0.0
  %2998 = vmatpush1.xpose.msra.mxu0 0.0
  %2999 = vmatprep.subr.mxu0 0.0
  %3000 = vmatpush1.xpose.msra.mxu0 0.0
  %3001 = vmatprep.subr.mxu0 0.0
  %3002 = vmatpush1.xpose.msra.mxu0 0.0
  %3003 = vmatprep.subr.mxu0 0.0
  %3004 = vmatpush1.xpose.msra.mxu0 0.0
  %3005 = vmatprep.subr.mxu0 0.0
  %3006 = vmatpush1.xpose.msra.mxu0 0.0
  %3007 = vmatprep.subr.mxu0 0.0
  %3008 = vmatpush1.xpose.msra.mxu0 0.0
  %3009 = vmatprep.subr.mxu0 0.0
  %3010 = vmatpush1.xpose.msra.mxu0 0.0
  %3011 = vmatprep.subr.mxu0 0.0
  %3012 = vmatpush1.xpose.msra.mxu0 %v2981
  %3013 = vmatprep.subr.mxu0 0.0
  %3014 = vmatpush1.xpose.msra.mxu0 %v2979
  %3015 = vmatprep.subr.mxu0 0.0
  %3016 = vmatpush2.xpose.msra.mxu0 0.0
  %3017 = vmatprep.subr.mxu0 0.0
  %3018 = vmatpush2.xpose.msra.mxu0 0.0
  %3019 = vmatprep.subr.mxu0 0.0
  %3020 = vmatpush2.xpose.msra.mxu0 0.0
  %3021 = vmatprep.subr.mxu0 0.0
  %3022 = vmatpush2.xpose.msra.mxu0 0.0
  %3023 = vmatprep.subr.mxu0 0.0
  %3024 = vmatpush2.xpose.msra.mxu0 0.0
  %3025 = vmatprep.subr.mxu0 0.0
  %3026 = vmatpush2.xpose.msra.mxu0 0.0
  %3027 = vmatprep.subr.mxu0 0.0
  %3028 = vmatpush2.xpose.msra.mxu0 0.0
  %3029 = vmatprep.subr.mxu0 0.0
  %3030 = vmatpush2.xpose.msra.mxu0 0.0
  %3031 = vmatprep.subr.mxu0 0.0
  %3032 = vmatpush2.xpose.msra.mxu0 0.0
  %3033 = vmatprep.subr.mxu0 0.0
  %3034 = vmatpush2.xpose.msra.mxu0 0.0
  %3035 = vmatprep.subr.mxu0 0.0
  %3036 = vmatpush2.xpose.msra.mxu0 0.0
  %3037 = vmatprep.subr.mxu0 0.0
  %3038 = vmatpush2.xpose.msra.mxu0 0.0
  %3039 = vmatprep.subr.mxu0 0.0
  %3040 = vmatpush2.xpose.msra.mxu0 0.0
  %3041 = vmatprep.subr.mxu0 0.0
  %3042 = vmatpush2.xpose.msra.mxu0 0.0
  %3043 = vmatprep.subr.mxu0 0.0
  %3044 = vmatpush2.xpose.msra.mxu0 0.0
  %3045 = vmatprep.subr.mxu0 0.0
  %3046 = vmatpush2.xpose.msra.mxu0 0.0
  %3047 = vmatprep.mubr.f32.mxu0 0.0
  %3048 = vmatmul.mubr.f32.gmra.mxu0 %v2974
  %v3049 = vpop.f32.mrf.mxu0
  %v3050 = vadd.f32 0.0, %v3049
  %v3051 = vpop.f32.mrf.mxu0
  %3052 = vmatprep.mubr.f32.mxu0 0.0
  %3053 = vmatmul.mubr.f32.gmra.mxu0 %v2977
  %v3054 = vpop.f32.mrf.mxu0
  %v3055 = vadd.f32 0.0, %v3054
  %v3056 = vpop.f32.mrf.mxu0
  %3057 = vdwg.mxu0
  %3058 = vrot.lane.b32.xlu0 %v2965, 120
  %v3059 = vpop.permute.xlu0 %3058
  %3060 = vrot.lane.b32.xlu0 %v2966, 120
  %v3061 = vpop.permute.xlu0 %3060
  %3062 = vrot.lane.b32.xlu0 %v2957, 88
  %v3063 = vpop.permute.xlu0 %3062
  %3064 = vrot.lane.b32.xlu0 %v2962, 88
  %v3065 = vpop.permute.xlu0 %3064
  %v3066 = vsel %vm313, %v3059, 0
  %v3068 = vsel %vm313, %v3061, 0
  %v3070 = vsel %vm313, %v3063, 0
  %v3072 = vsel %vm313, %v3065, 0
  %3074 = vmatprep.subr.mxu0 0.0
  %3075 = vmatpush1.xpose.msra.mxu0 0.0
  %3076 = vmatprep.subr.mxu0 0.0
  %3077 = vmatpush1.xpose.msra.mxu0 0.0
  %3078 = vmatprep.subr.mxu0 0.0
  %3079 = vmatpush1.xpose.msra.mxu0 0.0
  %3080 = vmatprep.subr.mxu0 0.0
  %3081 = vmatpush1.xpose.msra.mxu0 0.0
  %3082 = vmatprep.subr.mxu0 0.0
  %3083 = vmatpush1.xpose.msra.mxu0 0.0
  %3084 = vmatprep.subr.mxu0 0.0
  %3085 = vmatpush1.xpose.msra.mxu0 0.0
  %3086 = vmatprep.subr.mxu0 0.0
  %3087 = vmatpush1.xpose.msra.mxu0 0.0
  %3088 = vmatprep.subr.mxu0 0.0
  %3089 = vmatpush1.xpose.msra.mxu0 0.0
  %3090 = vmatprep.subr.mxu0 0.0
  %3091 = vmatpush1.xpose.msra.mxu0 0.0
  %3092 = vmatprep.subr.mxu0 0.0
  %3093 = vmatpush1.xpose.msra.mxu0 0.0
  %3094 = vmatprep.subr.mxu0 0.0
  %3095 = vmatpush1.xpose.msra.mxu0 0.0
  %3096 = vmatprep.subr.mxu0 0.0
  %3097 = vmatpush1.xpose.msra.mxu0 0.0
  %3098 = vmatprep.subr.mxu0 0.0
  %3099 = vmatpush1.xpose.msra.mxu0 0.0
  %3100 = vmatprep.subr.mxu0 0.0
  %3101 = vmatpush1.xpose.msra.mxu0 0.0
  %3102 = vmatprep.subr.mxu0 0.0
  %3103 = vmatpush1.xpose.msra.mxu0 %v3072
  %3104 = vmatprep.subr.mxu0 0.0
  %3105 = vmatpush1.xpose.msra.mxu0 %v3070
  %3106 = vmatprep.subr.mxu0 0.0
  %3107 = vmatpush2.xpose.msra.mxu0 0.0
  %3108 = vmatprep.subr.mxu0 0.0
  %3109 = vmatpush2.xpose.msra.mxu0 0.0
  %3110 = vmatprep.subr.mxu0 0.0
  %3111 = vmatpush2.xpose.msra.mxu0 0.0
  %3112 = vmatprep.subr.mxu0 0.0
  %3113 = vmatpush2.xpose.msra.mxu0 0.0
  %3114 = vmatprep.subr.mxu0 0.0
  %3115 = vmatpush2.xpose.msra.mxu0 0.0
  %3116 = vmatprep.subr.mxu0 0.0
  %3117 = vmatpush2.xpose.msra.mxu0 0.0
  %3118 = vmatprep.subr.mxu0 0.0
  %3119 = vmatpush2.xpose.msra.mxu0 0.0
  %3120 = vmatprep.subr.mxu0 0.0
  %3121 = vmatpush2.xpose.msra.mxu0 0.0
  %3122 = vmatprep.subr.mxu0 0.0
  %3123 = vmatpush2.xpose.msra.mxu0 0.0
  %3124 = vmatprep.subr.mxu0 0.0
  %3125 = vmatpush2.xpose.msra.mxu0 0.0
  %3126 = vmatprep.subr.mxu0 0.0
  %3127 = vmatpush2.xpose.msra.mxu0 0.0
  %3128 = vmatprep.subr.mxu0 0.0
  %3129 = vmatpush2.xpose.msra.mxu0 0.0
  %3130 = vmatprep.subr.mxu0 0.0
  %3131 = vmatpush2.xpose.msra.mxu0 0.0
  %3132 = vmatprep.subr.mxu0 0.0
  %3133 = vmatpush2.xpose.msra.mxu0 0.0
  %3134 = vmatprep.subr.mxu0 0.0
  %3135 = vmatpush2.xpose.msra.mxu0 0.0
  %3136 = vmatprep.subr.mxu0 0.0
  %3137 = vmatpush2.xpose.msra.mxu0 0.0
  %3138 = vmatprep.mubr.f32.mxu0 0.0
  %3139 = vmatmul.mubr.f32.gmra.mxu0 %v3066
  %v3140 = vpop.f32.mrf.mxu0
  %v3141 = vadd.f32 0.0, %v3140
  %v3142 = vpop.f32.mrf.mxu0
  %3143 = vmatprep.mubr.f32.mxu0 0.0
  %3144 = vmatmul.mubr.f32.gmra.mxu0 %v3068
  %v3145 = vpop.f32.mrf.mxu0
  %v3146 = vadd.f32 0.0, %v3145
  %v3147 = vpop.f32.mrf.mxu0
  %3148 = vdwg.mxu0
  %3149 = vrot.lane.b32.xlu0 %v2965, 112
  %v3150 = vpop.permute.xlu0 %3149
  %3151 = vrot.lane.b32.xlu0 %v2966, 112
  %v3152 = vpop.permute.xlu0 %3151
  %3153 = vrot.lane.b32.xlu0 %v2957, 80
  %v3154 = vpop.permute.xlu0 %3153
  %3155 = vrot.lane.b32.xlu0 %v2962, 80
  %v3156 = vpop.permute.xlu0 %3155
  %v3157 = vsel %vm313, %v3150, 0
  %v3159 = vsel %vm313, %v3152, 0
  %v3161 = vsel %vm313, %v3154, 0
  %v3163 = vsel %vm313, %v3156, 0
  %3165 = vmatprep.subr.mxu0 0.0
  %3166 = vmatpush1.xpose.msra.mxu0 0.0
  %3167 = vmatprep.subr.mxu0 0.0
  %3168 = vmatpush1.xpose.msra.mxu0 0.0
  %3169 = vmatprep.subr.mxu0 0.0
  %3170 = vmatpush1.xpose.msra.mxu0 0.0
  %3171 = vmatprep.subr.mxu0 0.0
  %3172 = vmatpush1.xpose.msra.mxu0 0.0
  %3173 = vmatprep.subr.mxu0 0.0
  %3174 = vmatpush1.xpose.msra.mxu0 0.0
  %3175 = vmatprep.subr.mxu0 0.0
  %3176 = vmatpush1.xpose.msra.mxu0 0.0
  %3177 = vmatprep.subr.mxu0 0.0
  %3178 = vmatpush1.xpose.msra.mxu0 0.0
  %3179 = vmatprep.subr.mxu0 0.0
  %3180 = vmatpush1.xpose.msra.mxu0 0.0
  %3181 = vmatprep.subr.mxu0 0.0
  %3182 = vmatpush1.xpose.msra.mxu0 0.0
  %3183 = vmatprep.subr.mxu0 0.0
  %3184 = vmatpush1.xpose.msra.mxu0 0.0
  %3185 = vmatprep.subr.mxu0 0.0
  %3186 = vmatpush1.xpose.msra.mxu0 0.0
  %3187 = vmatprep.subr.mxu0 0.0
  %3188 = vmatpush1.xpose.msra.mxu0 0.0
  %3189 = vmatprep.subr.mxu0 0.0
  %3190 = vmatpush1.xpose.msra.mxu0 0.0
  %3191 = vmatprep.subr.mxu0 0.0
  %3192 = vmatpush1.xpose.msra.mxu0 0.0
  %3193 = vmatprep.subr.mxu0 0.0
  %3194 = vmatpush1.xpose.msra.mxu0 %v3163
  %3195 = vmatprep.subr.mxu0 0.0
  %3196 = vmatpush1.xpose.msra.mxu0 %v3161
  %3197 = vmatprep.subr.mxu0 0.0
  %3198 = vmatpush2.xpose.msra.mxu0 0.0
  %3199 = vmatprep.subr.mxu0 0.0
  %3200 = vmatpush2.xpose.msra.mxu0 0.0
  %3201 = vmatprep.subr.mxu0 0.0
  %3202 = vmatpush2.xpose.msra.mxu0 0.0
  %3203 = vmatprep.subr.mxu0 0.0
  %3204 = vmatpush2.xpose.msra.mxu0 0.0
  %3205 = vmatprep.subr.mxu0 0.0
  %3206 = vmatpush2.xpose.msra.mxu0 0.0
  %3207 = vmatprep.subr.mxu0 0.0
  %3208 = vmatpush2.xpose.msra.mxu0 0.0
  %3209 = vmatprep.subr.mxu0 0.0
  %3210 = vmatpush2.xpose.msra.mxu0 0.0
  %3211 = vmatprep.subr.mxu0 0.0
  %3212 = vmatpush2.xpose.msra.mxu0 0.0
  %3213 = vmatprep.subr.mxu0 0.0
  %3214 = vmatpush2.xpose.msra.mxu0 0.0
  %3215 = vmatprep.subr.mxu0 0.0
  %3216 = vmatpush2.xpose.msra.mxu0 0.0
  %3217 = vmatprep.subr.mxu0 0.0
  %3218 = vmatpush2.xpose.msra.mxu0 0.0
  %3219 = vmatprep.subr.mxu0 0.0
  %3220 = vmatpush2.xpose.msra.mxu0 0.0
  %3221 = vmatprep.subr.mxu0 0.0
  %3222 = vmatpush2.xpose.msra.mxu0 0.0
  %3223 = vmatprep.subr.mxu0 0.0
  %3224 = vmatpush2.xpose.msra.mxu0 0.0
  %3225 = vmatprep.subr.mxu0 0.0
  %3226 = vmatpush2.xpose.msra.mxu0 0.0
  %3227 = vmatprep.subr.mxu0 0.0
  %3228 = vmatpush2.xpose.msra.mxu0 0.0
  %3229 = vmatprep.mubr.f32.mxu0 0.0
  %3230 = vmatmul.mubr.f32.gmra.mxu0 %v3157
  %v3231 = vpop.f32.mrf.mxu0
  %v3232 = vadd.f32 0.0, %v3231
  %v3233 = vpop.f32.mrf.mxu0
  %3234 = vmatprep.mubr.f32.mxu0 0.0
  %3235 = vmatmul.mubr.f32.gmra.mxu0 %v3159
  %v3236 = vpop.f32.mrf.mxu0
  %v3237 = vadd.f32 0.0, %v3236
  %v3238 = vpop.f32.mrf.mxu0
  %3239 = vdwg.mxu0
  %3240 = vrot.lane.b32.xlu0 %v2965, 104
  %v3241 = vpop.permute.xlu0 %3240
  %3242 = vrot.lane.b32.xlu0 %v2966, 104
  %v3243 = vpop.permute.xlu0 %3242
  %3244 = vrot.lane.b32.xlu0 %v2957, 72
  %v3245 = vpop.permute.xlu0 %3244
  %3246 = vrot.lane.b32.xlu0 %v2962, 72
  %v3247 = vpop.permute.xlu0 %3246
  %v3248 = vsel %vm313, %v3241, 0
  %v3250 = vsel %vm313, %v3243, 0
  %v3252 = vsel %vm313, %v3245, 0
  %v3254 = vsel %vm313, %v3247, 0
  %3256 = vmatprep.subr.mxu0 0.0
  %3257 = vmatpush1.xpose.msra.mxu0 0.0
  %3258 = vmatprep.subr.mxu0 0.0
  %3259 = vmatpush1.xpose.msra.mxu0 0.0
  %3260 = vmatprep.subr.mxu0 0.0
  %3261 = vmatpush1.xpose.msra.mxu0 0.0
  %3262 = vmatprep.subr.mxu0 0.0
  %3263 = vmatpush1.xpose.msra.mxu0 0.0
  %3264 = vmatprep.subr.mxu0 0.0
  %3265 = vmatpush1.xpose.msra.mxu0 0.0
  %3266 = vmatprep.subr.mxu0 0.0
  %3267 = vmatpush1.xpose.msra.mxu0 0.0
  %3268 = vmatprep.subr.mxu0 0.0
  %3269 = vmatpush1.xpose.msra.mxu0 0.0
  %3270 = vmatprep.subr.mxu0 0.0
  %3271 = vmatpush1.xpose.msra.mxu0 0.0
  %3272 = vmatprep.subr.mxu0 0.0
  %3273 = vmatpush1.xpose.msra.mxu0 0.0
  %3274 = vmatprep.subr.mxu0 0.0
  %3275 = vmatpush1.xpose.msra.mxu0 0.0
  %3276 = vmatprep.subr.mxu0 0.0
  %3277 = vmatpush1.xpose.msra.mxu0 0.0
  %3278 = vmatprep.subr.mxu0 0.0
  %3279 = vmatpush1.xpose.msra.mxu0 0.0
  %3280 = vmatprep.subr.mxu0 0.0
  %3281 = vmatpush1.xpose.msra.mxu0 0.0
  %3282 = vmatprep.subr.mxu0 0.0
  %3283 = vmatpush1.xpose.msra.mxu0 0.0
  %3284 = vmatprep.subr.mxu0 0.0
  %3285 = vmatpush1.xpose.msra.mxu0 %v3254
  %3286 = vmatprep.subr.mxu0 0.0
  %3287 = vmatpush1.xpose.msra.mxu0 %v3252
  %3288 = vmatprep.subr.mxu0 0.0
  %3289 = vmatpush2.xpose.msra.mxu0 0.0
  %3290 = vmatprep.subr.mxu0 0.0
  %3291 = vmatpush2.xpose.msra.mxu0 0.0
  %3292 = vmatprep.subr.mxu0 0.0
  %3293 = vmatpush2.xpose.msra.mxu0 0.0
  %3294 = vmatprep.subr.mxu0 0.0
  %3295 = vmatpush2.xpose.msra.mxu0 0.0
  %3296 = vmatprep.subr.mxu0 0.0
  %3297 = vmatpush2.xpose.msra.mxu0 0.0
  %3298 = vmatprep.subr.mxu0 0.0
  %3299 = vmatpush2.xpose.msra.mxu0 0.0
  %3300 = vmatprep.subr.mxu0 0.0
  %3301 = vmatpush2.xpose.msra.mxu0 0.0
  %3302 = vmatprep.subr.mxu0 0.0
  %3303 = vmatpush2.xpose.msra.mxu0 0.0
  %3304 = vmatprep.subr.mxu0 0.0
  %3305 = vmatpush2.xpose.msra.mxu0 0.0
  %3306 = vmatprep.subr.mxu0 0.0
  %3307 = vmatpush2.xpose.msra.mxu0 0.0
  %3308 = vmatprep.subr.mxu0 0.0
  %3309 = vmatpush2.xpose.msra.mxu0 0.0
  %3310 = vmatprep.subr.mxu0 0.0
  %3311 = vmatpush2.xpose.msra.mxu0 0.0
  %3312 = vmatprep.subr.mxu0 0.0
  %3313 = vmatpush2.xpose.msra.mxu0 0.0
  %3314 = vmatprep.subr.mxu0 0.0
  %3315 = vmatpush2.xpose.msra.mxu0 0.0
  %3316 = vmatprep.subr.mxu0 0.0
  %3317 = vmatpush2.xpose.msra.mxu0 0.0
  %3318 = vmatprep.subr.mxu0 0.0
  %3319 = vmatpush2.xpose.msra.mxu0 0.0
  %3320 = vmatprep.mubr.f32.mxu0 0.0
  %3321 = vmatmul.mubr.f32.gmra.mxu0 %v3248
  %v3322 = vpop.f32.mrf.mxu0
  %v3323 = vadd.f32 0.0, %v3322
  %v3324 = vpop.f32.mrf.mxu0
  %3325 = vmatprep.mubr.f32.mxu0 0.0
  %3326 = vmatmul.mubr.f32.gmra.mxu0 %v3250
  %v3327 = vpop.f32.mrf.mxu0
  %v3328 = vadd.f32 0.0, %v3327
  %v3329 = vpop.f32.mrf.mxu0
  %3330 = vdwg.mxu0
  %v3331 = vadd.f32 %v3050, %v2829
  %v3332 = vadd.f32 %v3055, %v2830
  %v3333 = vadd.f32 %v3141, %v2829
  %v3334 = vadd.f32 %v3146, %v2830
  %v3335 = vadd.f32 %v3232, %v2829
  %v3336 = vadd.f32 %v3237, %v2830
  %v3337 = vadd.f32 %v3323, %v2829
  %v3338 = vadd.f32 %v3328, %v2830
  %vm3339 = vcmask 97280
  %v3340 = vsel %vm3339, %v3331, -inf
  %3341 = vmax.xlane.f32.xlu0 %v3340
  %v3342 = vpop.xlane.xlu0 %3341
  %vm3343 = vcmask 93184
  %v3344 = vsel %vm3343, %v3332, -inf
  %3345 = vmax.xlane.f32.xlu0 %v3344
  %v3346 = vpop.xlane.xlu0 %3345
  %v3347 = vsel %vm3339, %v3333, -inf
  %3348 = vmax.xlane.f32.xlu0 %v3347
  %v3349 = vpop.xlane.xlu0 %3348
  %v3350 = vsel %vm3343, %v3334, -inf
  %3351 = vmax.xlane.f32.xlu0 %v3350
  %v3352 = vpop.xlane.xlu0 %3351
  %v3353 = vsel %vm3339, %v3335, -inf
  %3354 = vmax.xlane.f32.xlu0 %v3353
  %v3355 = vpop.xlane.xlu0 %3354
  %v3356 = vsel %vm3343, %v3336, -inf
  %3357 = vmax.xlane.f32.xlu0 %v3356
  %v3358 = vpop.xlane.xlu0 %3357
  %v3359 = vsel %vm3339, %v3337, -inf
  %3360 = vmax.xlane.f32.xlu0 %v3359
  %v3361 = vpop.xlane.xlu0 %3360
  %v3362 = vsel %vm3343, %v3338, -inf
  %3363 = vmax.xlane.f32.xlu0 %v3362
  %v3364 = vpop.xlane.xlu0 %3363
  %v3365 = vsub.f32 %v3331, %v3342
  %v3366 = vsub.f32 %v3332, %v3346
  %v3367 = vsub.f32 %v3333, %v3349
  %v3368 = vsub.f32 %v3334, %v3352
  %v3369 = vsub.f32 %v3335, %v3355
  %v3370 = vsub.f32 %v3336, %v3358
  %v3371 = vsub.f32 %v3337, %v3361
  %v3372 = vsub.f32 %v3338, %v3364
  %v3373 = vmul.f32 %v3365, 1.442695
  %v3374 = vpow.pop %v3373
  %v3375 = vmul.f32 %v3366, 1.442695
  %v3376 = vpow.pop %v3375
  %v3377 = vmul.f32 %v3367, 1.442695
  %v3378 = vpow.pop %v3377
  %v3379 = vmul.f32 %v3368, 1.442695
  %v3380 = vpow.pop %v3379
  %v3381 = vmul.f32 %v3369, 1.442695
  %v3382 = vpow.pop %v3381
  %v3383 = vmul.f32 %v3370, 1.442695
  %v3384 = vpow.pop %v3383
  %v3385 = vmul.f32 %v3371, 1.442695
  %v3386 = vpow.pop %v3385
  %v3387 = vmul.f32 %v3372, 1.442695
  %v3388 = vpow.pop %v3387
  %v3389 = vsel %vm3339, %v3374, 0.0
  %3390 = vadd.xlane.f32.xlu0 %v3389
  %v3391 = vpop.xlane.xlu0 %3390
  %v3392 = vsel %vm3343, %v3376, 0.0
  %3393 = vadd.xlane.f32.xlu0 %v3392
  %v3394 = vpop.xlane.xlu0 %3393
  %v3395 = vsel %vm3339, %v3378, 0.0
  %3396 = vadd.xlane.f32.xlu0 %v3395
  %v3397 = vpop.xlane.xlu0 %3396
  %v3398 = vsel %vm3343, %v3380, 0.0
  %3399 = vadd.xlane.f32.xlu0 %v3398
  %v3400 = vpop.xlane.xlu0 %3399
  %v3401 = vsel %vm3339, %v3382, 0.0
  %3402 = vadd.xlane.f32.xlu0 %v3401
  %v3403 = vpop.xlane.xlu0 %3402
  %v3404 = vsel %vm3343, %v3384, 0.0
  %3405 = vadd.xlane.f32.xlu0 %v3404
  %v3406 = vpop.xlane.xlu0 %3405
  %v3407 = vsel %vm3339, %v3386, 0.0
  %3408 = vadd.xlane.f32.xlu0 %v3407
  %v3409 = vpop.xlane.xlu0 %3408
  %v3410 = vsel %vm3343, %v3388, 0.0
  %3411 = vadd.xlane.f32.xlu0 %v3410
  %v3412 = vpop.xlane.xlu0 %3411
  %v3413 = vrcp.pop %v3391
  %v3414 = vrcp.pop %v3394
  %v3415 = vrcp.pop %v3397
  %v3416 = vrcp.pop %v3400
  %v3417 = vrcp.pop %v3403
  %v3418 = vrcp.pop %v3406
  %v3419 = vrcp.pop %v3409
  %v3420 = vrcp.pop %v3412
  %v3421 = vmul.f32 %v3374, %v3413
  %v3422 = vmul.f32 %v3376, %v3414
  %v3423 = vmul.f32 %v3378, %v3415
  %v3424 = vmul.f32 %v3380, %v3416
  %v3425 = vmul.f32 %v3382, %v3417
  %v3426 = vmul.f32 %v3384, %v3418
  %v3427 = vmul.f32 %v3386, %v3419
  %v3428 = vmul.f32 %v3388, %v3420
  %3429 = vrot.lane.b32.xlu0 %v2957, 64
  %v3430 = vpop.permute.xlu0 %3429
  %3431 = vrot.lane.b32.xlu0 %v2962, 64
  %v3432 = vpop.permute.xlu0 %3431
  %v3435 = vsel %vm3339, %v3421, 0
  %v3438 = vsel %vm3339, %v3422, 0
  %vm3440 = vcmask 1043456
  %v3441 = vsel %vm3440, %v3432, 0
  %3443 = vmatprep.subr.mxu0 0.0
  %3444 = vmatpush1.msra.mxu0 0.0
  %3445 = vmatprep.subr.mxu0 0.0
  %3446 = vmatpush1.msra.mxu0 0.0
  %3447 = vmatprep.subr.mxu0 0.0
  %3448 = vmatpush1.msra.mxu0 0.0
  %3449 = vmatprep.subr.mxu0 0.0
  %3450 = vmatpush1.msra.mxu0 0.0
  %3451 = vmatprep.subr.mxu0 0.0
  %3452 = vmatpush1.msra.mxu0 0.0
  %3453 = vmatprep.subr.mxu0 0.0
  %3454 = vmatpush1.msra.mxu0 0.0
  %3455 = vmatprep.subr.mxu0 0.0
  %3456 = vmatpush1.msra.mxu0 0.0
  %3457 = vmatprep.subr.mxu0 0.0
  %3458 = vmatpush1.msra.mxu0 0.0
  %3459 = vmatprep.subr.mxu0 0.0
  %3460 = vmatpush1.msra.mxu0 0.0
  %3461 = vmatprep.subr.mxu0 0.0
  %3462 = vmatpush1.msra.mxu0 0.0
  %3463 = vmatprep.subr.mxu0 0.0
  %3464 = vmatpush1.msra.mxu0 0.0
  %3465 = vmatprep.subr.mxu0 0.0
  %3466 = vmatpush1.msra.mxu0 0.0
  %3467 = vmatprep.subr.mxu0 0.0
  %3468 = vmatpush1.msra.mxu0 0.0
  %3469 = vmatprep.subr.mxu0 0.0
  %3470 = vmatpush1.msra.mxu0 0.0
  %3471 = vmatprep.subr.mxu0 0.0
  %3472 = vmatpush1.msra.mxu0 %v3441
  %3473 = vmatprep.subr.mxu0 0.0
  %3474 = vmatpush1.msra.mxu0 %v3430
  %3475 = vmatprep.subr.mxu0 0.0
  %3476 = vmatpush2.msra.mxu0 0.0
  %3477 = vmatprep.subr.mxu0 0.0
  %3478 = vmatpush2.msra.mxu0 0.0
  %3479 = vmatprep.subr.mxu0 0.0
  %3480 = vmatpush2.msra.mxu0 0.0
  %3481 = vmatprep.subr.mxu0 0.0
  %3482 = vmatpush2.msra.mxu0 0.0
  %3483 = vmatprep.subr.mxu0 0.0
  %3484 = vmatpush2.msra.mxu0 0.0
  %3485 = vmatprep.subr.mxu0 0.0
  %3486 = vmatpush2.msra.mxu0 0.0
  %3487 = vmatprep.subr.mxu0 0.0
  %3488 = vmatpush2.msra.mxu0 0.0
  %3489 = vmatprep.subr.mxu0 0.0
  %3490 = vmatpush2.msra.mxu0 0.0
  %3491 = vmatprep.subr.mxu0 0.0
  %3492 = vmatpush2.msra.mxu0 0.0
  %3493 = vmatprep.subr.mxu0 0.0
  %3494 = vmatpush2.msra.mxu0 0.0
  %3495 = vmatprep.subr.mxu0 0.0
  %3496 = vmatpush2.msra.mxu0 0.0
  %3497 = vmatprep.subr.mxu0 0.0
  %3498 = vmatpush2.msra.mxu0 0.0
  %3499 = vmatprep.subr.mxu0 0.0
  %3500 = vmatpush2.msra.mxu0 0.0
  %3501 = vmatprep.subr.mxu0 0.0
  %3502 = vmatpush2.msra.mxu0 0.0
  %3503 = vmatprep.subr.mxu0 0.0
  %3504 = vmatpush2.msra.mxu0 0.0
  %3505 = vmatprep.subr.mxu0 0.0
  %3506 = vmatpush2.msra.mxu0 0.0
  %3507 = vmatprep.mubr.f32.mxu0 0.0
  %3508 = vmatmul.mubr.f32.gmra.mxu0 %v3435
  %v3509 = vpop.f32.mrf.mxu0
  %v3510 = vadd.f32 0.0, %v3509
  %v3511 = vpop.f32.mrf.mxu0
  %3512 = vmatprep.mubr.f32.mxu0 0.0
  %3513 = vmatmul.mubr.f32.gmra.mxu0 %v3438
  %v3514 = vpop.f32.mrf.mxu0
  %v3515 = vadd.f32 0.0, %v3514
  %v3516 = vpop.f32.mrf.mxu0
  %3517 = vdwg.mxu0
  %3518 = vrot.lane.b32.xlu0 %v2957, 56
  %v3519 = vpop.permute.xlu0 %3518
  %3520 = vrot.lane.b32.xlu0 %v2962, 56
  %v3521 = vpop.permute.xlu0 %3520
  %v3524 = vsel %vm3339, %v3423, 0
  %v3527 = vsel %vm3339, %v3424, 0
  %v3529 = vsel %vm3440, %v3521, 0
  %3531 = vmatprep.subr.mxu0 0.0
  %3532 = vmatpush1.msra.mxu0 0.0
  %3533 = vmatprep.subr.mxu0 0.0
  %3534 = vmatpush1.msra.mxu0 0.0
  %3535 = vmatprep.subr.mxu0 0.0
  %3536 = vmatpush1.msra.mxu0 0.0
  %3537 = vmatprep.subr.mxu0 0.0
  %3538 = vmatpush1.msra.mxu0 0.0
  %3539 = vmatprep.subr.mxu0 0.0
  %3540 = vmatpush1.msra.mxu0 0.0
  %3541 = vmatprep.subr.mxu0 0.0
  %3542 = vmatpush1.msra.mxu0 0.0
  %3543 = vmatprep.subr.mxu0 0.0
  %3544 = vmatpush1.msra.mxu0 0.0
  %3545 = vmatprep.subr.mxu0 0.0
  %3546 = vmatpush1.msra.mxu0 0.0
  %3547 = vmatprep.subr.mxu0 0.0
  %3548 = vmatpush1.msra.mxu0 0.0
  %3549 = vmatprep.subr.mxu0 0.0
  %3550 = vmatpush1.msra.mxu0 0.0
  %3551 = vmatprep.subr.mxu0 0.0
  %3552 = vmatpush1.msra.mxu0 0.0
  %3553 = vmatprep.subr.mxu0 0.0
  %3554 = vmatpush1.msra.mxu0 0.0
  %3555 = vmatprep.subr.mxu0 0.0
  %3556 = vmatpush1.msra.mxu0 0.0
  %3557 = vmatprep.subr.mxu0 0.0
  %3558 = vmatpush1.msra.mxu0 0.0
  %3559 = vmatprep.subr.mxu0 0.0
  %3560 = vmatpush1.msra.mxu0 %v3529
  %3561 = vmatprep.subr.mxu0 0.0
  %3562 = vmatpush1.msra.mxu0 %v3519
  %3563 = vmatprep.subr.mxu0 0.0
  %3564 = vmatpush2.msra.mxu0 0.0
  %3565 = vmatprep.subr.mxu0 0.0
  %3566 = vmatpush2.msra.mxu0 0.0
  %3567 = vmatprep.subr.mxu0 0.0
  %3568 = vmatpush2.msra.mxu0 0.0
  %3569 = vmatprep.subr.mxu0 0.0
  %3570 = vmatpush2.msra.mxu0 0.0
  %3571 = vmatprep.subr.mxu0 0.0
  %3572 = vmatpush2.msra.mxu0 0.0
  %3573 = vmatprep.subr.mxu0 0.0
  %3574 = vmatpush2.msra.mxu0 0.0
  %3575 = vmatprep.subr.mxu0 0.0
  %3576 = vmatpush2.msra.mxu0 0.0
  %3577 = vmatprep.subr.mxu0 0.0
  %3578 = vmatpush2.msra.mxu0 0.0
  %3579 = vmatprep.subr.mxu0 0.0
  %3580 = vmatpush2.msra.mxu0 0.0
  %3581 = vmatprep.subr.mxu0 0.0
  %3582 = vmatpush2.msra.mxu0 0.0
  %3583 = vmatprep.subr.mxu0 0.0
  %3584 = vmatpush2.msra.mxu0 0.0
  %3585 = vmatprep.subr.mxu0 0.0
  %3586 = vmatpush2.msra.mxu0 0.0
  %3587 = vmatprep.subr.mxu0 0.0
  %3588 = vmatpush2.msra.mxu0 0.0
  %3589 = vmatprep.subr.mxu0 0.0
  %3590 = vmatpush2.msra.mxu0 0.0
  %3591 = vmatprep.subr.mxu0 0.0
  %3592 = vmatpush2.msra.mxu0 0.0
  %3593 = vmatprep.subr.mxu0 0.0
  %3594 = vmatpush2.msra.mxu0 0.0
  %3595 = vmatprep.mubr.f32.mxu0 0.0
  %3596 = vmatmul.mubr.f32.gmra.mxu0 %v3524
  %v3597 = vpop.f32.mrf.mxu0
  %v3598 = vadd.f32 0.0, %v3597
  %v3599 = vpop.f32.mrf.mxu0
  %3600 = vmatprep.mubr.f32.mxu0 0.0
  %3601 = vmatmul.mubr.f32.gmra.mxu0 %v3527
  %v3602 = vpop.f32.mrf.mxu0
  %v3603 = vadd.f32 0.0, %v3602
  %v3604 = vpop.f32.mrf.mxu0
  %3605 = vdwg.mxu0
  %3606 = vrot.lane.b32.xlu0 %v2957, 48
  %v3607 = vpop.permute.xlu0 %3606
  %3608 = vrot.lane.b32.xlu0 %v2962, 48
  %v3609 = vpop.permute.xlu0 %3608
  %v3612 = vsel %vm3339, %v3425, 0
  %v3615 = vsel %vm3339, %v3426, 0
  %v3617 = vsel %vm3440, %v3609, 0
  %3619 = vmatprep.subr.mxu0 0.0
  %3620 = vmatpush1.msra.mxu0 0.0
  %3621 = vmatprep.subr.mxu0 0.0
  %3622 = vmatpush1.msra.mxu0 0.0
  %3623 = vmatprep.subr.mxu0 0.0
  %3624 = vmatpush1.msra.mxu0 0.0
  %3625 = vmatprep.subr.mxu0 0.0
  %3626 = vmatpush1.msra.mxu0 0.0
  %3627 = vmatprep.subr.mxu0 0.0
  %3628 = vmatpush1.msra.mxu0 0.0
  %3629 = vmatprep.subr.mxu0 0.0
  %3630 = vmatpush1.msra.mxu0 0.0
  %3631 = vmatprep.subr.mxu0 0.0
  %3632 = vmatpush1.msra.mxu0 0.0
  %3633 = vmatprep.subr.mxu0 0.0
  %3634 = vmatpush1.msra.mxu0 0.0
  %3635 = vmatprep.subr.mxu0 0.0
  %3636 = vmatpush1.msra.mxu0 0.0
  %3637 = vmatprep.subr.mxu0 0.0
  %3638 = vmatpush1.msra.mxu0 0.0
  %3639 = vmatprep.subr.mxu0 0.0
  %3640 = vmatpush1.msra.mxu0 0.0
  %3641 = vmatprep.subr.mxu0 0.0
  %3642 = vmatpush1.msra.mxu0 0.0
  %3643 = vmatprep.subr.mxu0 0.0
  %3644 = vmatpush1.msra.mxu0 0.0
  %3645 = vmatprep.subr.mxu0 0.0
  %3646 = vmatpush1.msra.mxu0 0.0
  %3647 = vmatprep.subr.mxu0 0.0
  %3648 = vmatpush1.msra.mxu0 %v3617
  %3649 = vmatprep.subr.mxu0 0.0
  %3650 = vmatpush1.msra.mxu0 %v3607
  %3651 = vmatprep.subr.mxu0 0.0
  %3652 = vmatpush2.msra.mxu0 0.0
  %3653 = vmatprep.subr.mxu0 0.0
  %3654 = vmatpush2.msra.mxu0 0.0
  %3655 = vmatprep.subr.mxu0 0.0
  %3656 = vmatpush2.msra.mxu0 0.0
  %3657 = vmatprep.subr.mxu0 0.0
  %3658 = vmatpush2.msra.mxu0 0.0
  %3659 = vmatprep.subr.mxu0 0.0
  %3660 = vmatpush2.msra.mxu0 0.0
  %3661 = vmatprep.subr.mxu0 0.0
  %3662 = vmatpush2.msra.mxu0 0.0
  %3663 = vmatprep.subr.mxu0 0.0
  %3664 = vmatpush2.msra.mxu0 0.0
  %3665 = vmatprep.subr.mxu0 0.0
  %3666 = vmatpush2.msra.mxu0 0.0
  %3667 = vmatprep.subr.mxu0 0.0
  %3668 = vmatpush2.msra.mxu0 0.0
  %3669 = vmatprep.subr.mxu0 0.0
  %3670 = vmatpush2.msra.mxu0 0.0
  %3671 = vmatprep.subr.mxu0 0.0
  %3672 = vmatpush2.msra.mxu0 0.0
  %3673 = vmatprep.subr.mxu0 0.0
  %3674 = vmatpush2.msra.mxu0 0.0
  %3675 = vmatprep.subr.mxu0 0.0
  %3676 = vmatpush2.msra.mxu0 0.0
  %3677 = vmatprep.subr.mxu0 0.0
  %3678 = vmatpush2.msra.mxu0 0.0
  %3679 = vmatprep.subr.mxu0 0.0
  %3680 = vmatpush2.msra.mxu0 0.0
  %3681 = vmatprep.subr.mxu0 0.0
  %3682 = vmatpush2.msra.mxu0 0.0
  %3683 = vmatprep.mubr.f32.mxu0 0.0
  %3684 = vmatmul.mubr.f32.gmra.mxu0 %v3612
  %v3685 = vpop.f32.mrf.mxu0
  %v3686 = vadd.f32 0.0, %v3685
  %v3687 = vpop.f32.mrf.mxu0
  %3688 = vmatprep.mubr.f32.mxu0 0.0
  %3689 = vmatmul.mubr.f32.gmra.mxu0 %v3615
  %v3690 = vpop.f32.mrf.mxu0
  %v3691 = vadd.f32 0.0, %v3690
  %v3692 = vpop.f32.mrf.mxu0
  %3693 = vdwg.mxu0
  %3694 = vrot.lane.b32.xlu0 %v2957, 40
  %v3695 = vpop.permute.xlu0 %3694
  %3696 = vrot.lane.b32.xlu0 %v2962, 40
  %v3697 = vpop.permute.xlu0 %3696
  %v3700 = vsel %vm3339, %v3427, 0
  %v3703 = vsel %vm3339, %v3428, 0
  %v3705 = vsel %vm3440, %v3697, 0
  %3707 = vmatprep.subr.mxu0 0.0
  %3708 = vmatpush1.msra.mxu0 0.0
  %3709 = vmatprep.subr.mxu0 0.0
  %3710 = vmatpush1.msra.mxu0 0.0
  %3711 = vmatprep.subr.mxu0 0.0
  %3712 = vmatpush1.msra.mxu0 0.0
  %3713 = vmatprep.subr.mxu0 0.0
  %3714 = vmatpush1.msra.mxu0 0.0
  %3715 = vmatprep.subr.mxu0 0.0
  %3716 = vmatpush1.msra.mxu0 0.0
  %3717 = vmatprep.subr.mxu0 0.0
  %3718 = vmatpush1.msra.mxu0 0.0
  %3719 = vmatprep.subr.mxu0 0.0
  %3720 = vmatpush1.msra.mxu0 0.0
  %3721 = vmatprep.subr.mxu0 0.0
  %3722 = vmatpush1.msra.mxu0 0.0
  %3723 = vmatprep.subr.mxu0 0.0
  %3724 = vmatpush1.msra.mxu0 0.0
  %3725 = vmatprep.subr.mxu0 0.0
  %3726 = vmatpush1.msra.mxu0 0.0
  %3727 = vmatprep.subr.mxu0 0.0
  %3728 = vmatpush1.msra.mxu0 0.0
  %3729 = vmatprep.subr.mxu0 0.0
  %3730 = vmatpush1.msra.mxu0 0.0
  %3731 = vmatprep.subr.mxu0 0.0
  %3732 = vmatpush1.msra.mxu0 0.0
  %3733 = vmatprep.subr.mxu0 0.0
  %3734 = vmatpush1.msra.mxu0 0.0
  %3735 = vmatprep.subr.mxu0 0.0
  %3736 = vmatpush1.msra.mxu0 %v3705
  %3737 = vmatprep.subr.mxu0 0.0
  %3738 = vmatpush1.msra.mxu0 %v3695
  %3739 = vmatprep.subr.mxu0 0.0
  %3740 = vmatpush2.msra.mxu0 0.0
  %3741 = vmatprep.subr.mxu0 0.0
  %3742 = vmatpush2.msra.mxu0 0.0
  %3743 = vmatprep.subr.mxu0 0.0
  %3744 = vmatpush2.msra.mxu0 0.0
  %3745 = vmatprep.subr.mxu0 0.0
  %3746 = vmatpush2.msra.mxu0 0.0
  %3747 = vmatprep.subr.mxu0 0.0
  %3748 = vmatpush2.msra.mxu0 0.0
  %3749 = vmatprep.subr.mxu0 0.0
  %3750 = vmatpush2.msra.mxu0 0.0
  %3751 = vmatprep.subr.mxu0 0.0
  %3752 = vmatpush2.msra.mxu0 0.0
  %3753 = vmatprep.subr.mxu0 0.0
  %3754 = vmatpush2.msra.mxu0 0.0
  %3755 = vmatprep.subr.mxu0 0.0
  %3756 = vmatpush2.msra.mxu0 0.0
  %3757 = vmatprep.subr.mxu0 0.0
  %3758 = vmatpush2.msra.mxu0 0.0
  %3759 = vmatprep.subr.mxu0 0.0
  %3760 = vmatpush2.msra.mxu0 0.0
  %3761 = vmatprep.subr.mxu0 0.0
  %3762 = vmatpush2.msra.mxu0 0.0
  %3763 = vmatprep.subr.mxu0 0.0
  %3764 = vmatpush2.msra.mxu0 0.0
  %3765 = vmatprep.subr.mxu0 0.0
  %3766 = vmatpush2.msra.mxu0 0.0
  %3767 = vmatprep.subr.mxu0 0.0
  %3768 = vmatpush2.msra.mxu0 0.0
  %3769 = vmatprep.subr.mxu0 0.0
  %3770 = vmatpush2.msra.mxu0 0.0
  %3771 = vmatprep.mubr.f32.mxu0 0.0
  %3772 = vmatmul.mubr.f32.gmra.mxu0 %v3700
  %v3773 = vpop.f32.mrf.mxu0
  %v3774 = vadd.f32 0.0, %v3773
  %v3775 = vpop.f32.mrf.mxu0
  %3776 = vmatprep.mubr.f32.mxu0 0.0
  %3777 = vmatmul.mubr.f32.gmra.mxu0 %v3703
  %v3778 = vpop.f32.mrf.mxu0
  %v3779 = vadd.f32 0.0, %v3778
  %v3780 = vpop.f32.mrf.mxu0
  %3781 = vdwg.mxu0
  %3784 = vrot.lane.b32.xlu0 %v3598, 8
  %v3785 = vpop.permute.xlu0 %3784
  %3786 = vrot.lane.b32.xlu0 %v3603, 8
  %v3787 = vpop.permute.xlu0 %3786
  %3792 = vrot.lane.b32.xlu0 %v3686, 16
  %v3793 = vpop.permute.xlu0 %3792
  %3794 = vrot.lane.b32.xlu0 %v3691, 16
  %v3795 = vpop.permute.xlu0 %3794
  %3800 = vrot.lane.b32.xlu0 %v3774, 24
  %v3801 = vpop.permute.xlu0 %3800
  %3802 = vrot.lane.b32.xlu0 %v3779, 24
  %v3803 = vpop.permute.xlu0 %3802
  %v3806 = vsel %vm313, %v3510, %v3785
  %v3807 = vsel %vm313, %v3515, %v3787
  %v3808 = vsel %vm680, %v3806, %v3793
  %v3809 = vsel %vm680, %v3807, %v3795
  %v3810 = vsel %vm1145, %v3808, %v3801
  %v3811 = vsel %vm1145, %v3809, %v3803
  %v3813 = vsel %vm223, %v3810, 0
  %v3816 = vsel %vm223, %v3811, 0
  %3818 = vmatprep.subr.mxu0 0.0
  %3819 = vmatpush1.msra.mxu0 0.0
  %3820 = vmatprep.subr.mxu0 0.0
  %3821 = vmatpush1.msra.mxu0 0.0
  %3822 = vmatprep.subr.mxu0 0.0
  %3823 = vmatpush1.msra.mxu0 0.0
  %3824 = vmatprep.subr.mxu0 0.0
  %3825 = vmatpush1.msra.mxu0 0.0
  %3826 = vmatprep.subr.mxu0 0.0
  %3827 = vmatpush1.msra.mxu0 0.0
  %3828 = vmatprep.subr.mxu0 0.0
  %3829 = vmatpush1.msra.mxu0 0.0
  %3830 = vmatprep.subr.mxu0 0.0
  %3831 = vmatpush1.msra.mxu0 0.0
  %3832 = vmatprep.subr.mxu0 0.0
  %3833 = vmatpush1.msra.mxu0 0.0
  %3834 = vmatprep.subr.mxu0 0.0
  %3835 = vmatpush1.msra.mxu0 0.0
  %3836 = vmatprep.subr.mxu0 0.0
  %3837 = vmatpush1.msra.mxu0 0.0
  %3838 = vmatprep.subr.mxu0 0.0
  %3839 = vmatpush1.msra.mxu0 0.0
  %3840 = vmatprep.subr.mxu0 0.0
  %3841 = vmatpush1.msra.mxu0 0.0
  %3842 = vmatprep.subr.mxu0 0.0
  %3843 = vmatpush1.msra.mxu0 %v2841
  %3844 = vmatprep.subr.mxu0 0.0
  %3845 = vmatpush1.msra.mxu0 %v2840
  %3846 = vmatprep.subr.mxu0 0.0
  %3847 = vmatpush1.msra.mxu0 %v2839
  %3848 = vmatprep.subr.mxu0 0.0
  %3849 = vmatpush1.msra.mxu0 %v2838
  %3850 = vmatprep.subr.mxu0 0.0
  %3851 = vmatpush2.msra.mxu0 0.0
  %3852 = vmatprep.subr.mxu0 0.0
  %3853 = vmatpush2.msra.mxu0 0.0
  %3854 = vmatprep.subr.mxu0 0.0
  %3855 = vmatpush2.msra.mxu0 0.0
  %3856 = vmatprep.subr.mxu0 0.0
  %3857 = vmatpush2.msra.mxu0 0.0
  %3858 = vmatprep.subr.mxu0 0.0
  %3859 = vmatpush2.msra.mxu0 0.0
  %3860 = vmatprep.subr.mxu0 0.0
  %3861 = vmatpush2.msra.mxu0 0.0
  %3862 = vmatprep.subr.mxu0 0.0
  %3863 = vmatpush2.msra.mxu0 0.0
  %3864 = vmatprep.subr.mxu0 0.0
  %3865 = vmatpush2.msra.mxu0 0.0
  %3866 = vmatprep.subr.mxu0 0.0
  %3867 = vmatpush2.msra.mxu0 0.0
  %3868 = vmatprep.subr.mxu0 0.0
  %3869 = vmatpush2.msra.mxu0 0.0
  %3870 = vmatprep.subr.mxu0 0.0
  %3871 = vmatpush2.msra.mxu0 0.0
  %3872 = vmatprep.subr.mxu0 0.0
  %3873 = vmatpush2.msra.mxu0 0.0
  %3874 = vmatprep.subr.mxu0 0.0
  %3875 = vmatpush2.msra.mxu0 0.0
  %3876 = vmatprep.subr.mxu0 0.0
  %3877 = vmatpush2.msra.mxu0 0.0
  %3878 = vmatprep.subr.mxu0 0.0
  %3879 = vmatpush2.msra.mxu0 0.0
  %3880 = vmatprep.subr.mxu0 0.0
  %3881 = vmatpush2.msra.mxu0 0.0
  %3882 = vmatprep.mubr.f32.mxu0 0.0
  %3883 = vmatmul.mubr.f32.gmra.mxu0 %v3813
  %v3884 = vpop.f32.mrf.mxu0
  %v3885 = vadd.f32 0.0, %v3884
  %v3886 = vpop.f32.mrf.mxu0
  %3887 = vmatprep.mubr.f32.mxu0 0.0
  %3888 = vmatmul.mubr.f32.gmra.mxu0 %v3816
  %v3889 = vpop.f32.mrf.mxu0
  %v3890 = vadd.f32 0.0, %v3889
  %v3891 = vpop.f32.mrf.mxu0
  %3892 = vdwg.mxu0
  %v3893 = vadd.f32 %v2827, %v3885
  %v3894 = vadd.f32 %v2828, %v3890
  %v3896 = vlaneseq
  %v3897 = vshrl.u32 %v3896, 7
  %v3898 = vsub.s32 0, %v3897
  %v3899 = vrot.slane %v2842, %v3898
  %v3901 = vadd.f32 %v3893, %v3899
  %v3902 = vadd.f32 %v3894, %v3899
  %v3903 = vsel %vm223, %v3901, 0.0
  %3904 = vadd.xlane.f32.xlu0 %v3903
  %v3905 = vpop.xlane.xlu0 %3904
  %vm3906 = vcmask 257024
  %v3907 = vsel %vm3906, %v3902, 0.0
  %3908 = vadd.xlane.f32.xlu0 %v3907
  %v3909 = vpop.xlane.xlu0 %3908
  %v3910 = vmul.f32 %v3905, %v1245
  %v3911 = vmul.f32 %v3909, %v1245
  %v3912 = vsub.f32 %v3901, %v3910
  %v3913 = vsub.f32 %v3902, %v3911
  %v3914 = vmul.f32 %v3912, %v3912
  %v3915 = vmul.f32 %v3913, %v3913
  %v3916 = vsel %vm223, %v3914, 0.0
  %3917 = vadd.xlane.f32.xlu0 %v3916
  %v3918 = vpop.xlane.xlu0 %3917
  %v3919 = vsel %vm3906, %v3915, 0.0
  %3920 = vadd.xlane.f32.xlu0 %v3919
  %v3921 = vpop.xlane.xlu0 %3920
  %v3922 = vmul.f32 %v3918, %v1245
  %v3923 = vmul.f32 %v3921, %v1245
  %v3924 = vadd.f32 %v3922, 1e-05
  %v3925 = vadd.f32 %v3923, 1e-05
  %v3926 = vrsqrt.pop %v3924
  %v3927 = vrsqrt.pop %v3925
  %v3928 = vmul.f32 %v3912, %v3926
  %v3929 = vmul.f32 %v3913, %v3927
  %v3931 = vlaneseq
  %v3932 = vshrl.u32 %v3931, 7
  %v3933 = vsub.s32 0, %v3932
  %v3934 = vrot.slane %v2843, %v3933
  %v3936 = vmul.f32 %v3928, %v3934
  %v3937 = vmul.f32 %v3929, %v3934
  %v3939 = vlaneseq
  %v3940 = vshrl.u32 %v3939, 7
  %v3941 = vsub.s32 0, %v3940
  %v3942 = vrot.slane %v2844, %v3941
  %v3944 = vadd.f32 %v3936, %v3942
  %v3945 = vadd.f32 %v3937, %v3942
  %v3947 = vlaneseq
  %v3948 = vshrl.u32 %v3947, 7
  %v3949 = vsub.s32 0, %v3948
  %v3950 = vrot.slane %v2849, %v3949
  %v3953 = vsel %vm223, %v3944, 0
  %v3956 = vsel %vm223, %v3945, 0
  %3958 = vmatprep.subr.mxu0 0.0
  %3959 = vmatpush1.msra.mxu0 0.0
  %3960 = vmatprep.subr.mxu0 0.0
  %3961 = vmatpush1.msra.mxu0 0.0
  %3962 = vmatprep.subr.mxu0 0.0
  %3963 = vmatpush1.msra.mxu0 0.0
  %3964 = vmatprep.subr.mxu0 0.0
  %3965 = vmatpush1.msra.mxu0 0.0
  %3966 = vmatprep.subr.mxu0 0.0
  %3967 = vmatpush1.msra.mxu0 0.0
  %3968 = vmatprep.subr.mxu0 0.0
  %3969 = vmatpush1.msra.mxu0 0.0
  %3970 = vmatprep.subr.mxu0 0.0
  %3971 = vmatpush1.msra.mxu0 0.0
  %3972 = vmatprep.subr.mxu0 0.0
  %3973 = vmatpush1.msra.mxu0 0.0
  %3974 = vmatprep.subr.mxu0 0.0
  %3975 = vmatpush1.msra.mxu0 0.0
  %3976 = vmatprep.subr.mxu0 0.0
  %3977 = vmatpush1.msra.mxu0 0.0
  %3978 = vmatprep.subr.mxu0 0.0
  %3979 = vmatpush1.msra.mxu0 0.0
  %3980 = vmatprep.subr.mxu0 0.0
  %3981 = vmatpush1.msra.mxu0 0.0
  %3982 = vmatprep.subr.mxu0 0.0
  %3983 = vmatpush1.msra.mxu0 %v2848
  %3984 = vmatprep.subr.mxu0 0.0
  %3985 = vmatpush1.msra.mxu0 %v2847
  %3986 = vmatprep.subr.mxu0 0.0
  %3987 = vmatpush1.msra.mxu0 %v2846
  %3988 = vmatprep.subr.mxu0 0.0
  %3989 = vmatpush1.msra.mxu0 %v2845
  %3990 = vmatprep.subr.mxu0 0.0
  %3991 = vmatpush2.msra.mxu0 0.0
  %3992 = vmatprep.subr.mxu0 0.0
  %3993 = vmatpush2.msra.mxu0 0.0
  %3994 = vmatprep.subr.mxu0 0.0
  %3995 = vmatpush2.msra.mxu0 0.0
  %3996 = vmatprep.subr.mxu0 0.0
  %3997 = vmatpush2.msra.mxu0 0.0
  %3998 = vmatprep.subr.mxu0 0.0
  %3999 = vmatpush2.msra.mxu0 0.0
  %4000 = vmatprep.subr.mxu0 0.0
  %4001 = vmatpush2.msra.mxu0 0.0
  %4002 = vmatprep.subr.mxu0 0.0
  %4003 = vmatpush2.msra.mxu0 0.0
  %4004 = vmatprep.subr.mxu0 0.0
  %4005 = vmatpush2.msra.mxu0 0.0
  %4006 = vmatprep.subr.mxu0 0.0
  %4007 = vmatpush2.msra.mxu0 0.0
  %4008 = vmatprep.subr.mxu0 0.0
  %4009 = vmatpush2.msra.mxu0 0.0
  %4010 = vmatprep.subr.mxu0 0.0
  %4011 = vmatpush2.msra.mxu0 0.0
  %4012 = vmatprep.subr.mxu0 0.0
  %4013 = vmatpush2.msra.mxu0 0.0
  %4014 = vmatprep.subr.mxu0 0.0
  %4015 = vmatpush2.msra.mxu0 0.0
  %4016 = vmatprep.subr.mxu0 0.0
  %4017 = vmatpush2.msra.mxu0 0.0
  %4018 = vmatprep.subr.mxu0 0.0
  %4019 = vmatpush2.msra.mxu0 0.0
  %4020 = vmatprep.subr.mxu0 0.0
  %4021 = vmatpush2.msra.mxu0 0.0
  %4022 = vmatprep.mubr.f32.mxu0 0.0
  %4023 = vmatmul.mubr.f32.gmra.mxu0 %v3953
  %v4024 = vpop.f32.mrf.mxu0
  %v4025 = vadd.f32 %v3950, %v4024
  %v4026 = vpop.f32.mrf.mxu0
  %4027 = vmatprep.mubr.f32.mxu0 0.0
  %4028 = vmatmul.mubr.f32.gmra.mxu0 %v3956
  %v4029 = vpop.f32.mrf.mxu0
  %v4030 = vadd.f32 %v3950, %v4029
  %v4031 = vpop.f32.mrf.mxu0
  %4032 = vdwg.mxu0
  %v4034 = vlaneseq
  %v4035 = vshrl.u32 %v4034, 7
  %v4036 = vsub.s32 0, %v4035
  %v4037 = vrot.slane %v2854, %v4036
  %v4040 = vsel %vm223, %v2825, 0
  %v4043 = vsel %vm223, %v2826, 0
  %4045 = vmatprep.subr.mxu0 0.0
  %4046 = vmatpush1.msra.mxu0 0.0
  %4047 = vmatprep.subr.mxu0 0.0
  %4048 = vmatpush1.msra.mxu0 0.0
  %4049 = vmatprep.subr.mxu0 0.0
  %4050 = vmatpush1.msra.mxu0 0.0
  %4051 = vmatprep.subr.mxu0 0.0
  %4052 = vmatpush1.msra.mxu0 0.0
  %4053 = vmatprep.subr.mxu0 0.0
  %4054 = vmatpush1.msra.mxu0 0.0
  %4055 = vmatprep.subr.mxu0 0.0
  %4056 = vmatpush1.msra.mxu0 0.0
  %4057 = vmatprep.subr.mxu0 0.0
  %4058 = vmatpush1.msra.mxu0 0.0
  %4059 = vmatprep.subr.mxu0 0.0
  %4060 = vmatpush1.msra.mxu0 0.0
  %4061 = vmatprep.subr.mxu0 0.0
  %4062 = vmatpush1.msra.mxu0 0.0
  %4063 = vmatprep.subr.mxu0 0.0
  %4064 = vmatpush1.msra.mxu0 0.0
  %4065 = vmatprep.subr.mxu0 0.0
  %4066 = vmatpush1.msra.mxu0 0.0
  %4067 = vmatprep.subr.mxu0 0.0
  %4068 = vmatpush1.msra.mxu0 0.0
  %4069 = vmatprep.subr.mxu0 0.0
  %4070 = vmatpush1.msra.mxu0 %v2853
  %4071 = vmatprep.subr.mxu0 0.0
  %4072 = vmatpush1.msra.mxu0 %v2852
  %4073 = vmatprep.subr.mxu0 0.0
  %4074 = vmatpush1.msra.mxu0 %v2851
  %4075 = vmatprep.subr.mxu0 0.0
  %4076 = vmatpush1.msra.mxu0 %v2850
  %4077 = vmatprep.subr.mxu0 0.0
  %4078 = vmatpush2.msra.mxu0 0.0
  %4079 = vmatprep.subr.mxu0 0.0
  %4080 = vmatpush2.msra.mxu0 0.0
  %4081 = vmatprep.subr.mxu0 0.0
  %4082 = vmatpush2.msra.mxu0 0.0
  %4083 = vmatprep.subr.mxu0 0.0
  %4084 = vmatpush2.msra.mxu0 0.0
  %4085 = vmatprep.subr.mxu0 0.0
  %4086 = vmatpush2.msra.mxu0 0.0
  %4087 = vmatprep.subr.mxu0 0.0
  %4088 = vmatpush2.msra.mxu0 0.0
  %4089 = vmatprep.subr.mxu0 0.0
  %4090 = vmatpush2.msra.mxu0 0.0
  %4091 = vmatprep.subr.mxu0 0.0
  %4092 = vmatpush2.msra.mxu0 0.0
  %4093 = vmatprep.subr.mxu0 0.0
  %4094 = vmatpush2.msra.mxu0 0.0
  %4095 = vmatprep.subr.mxu0 0.0
  %4096 = vmatpush2.msra.mxu0 0.0
  %4097 = vmatprep.subr.mxu0 0.0
  %4098 = vmatpush2.msra.mxu0 0.0
  %4099 = vmatprep.subr.mxu0 0.0
  %4100 = vmatpush2.msra.mxu0 0.0
  %4101 = vmatprep.subr.mxu0 0.0
  %4102 = vmatpush2.msra.mxu0 0.0
  %4103 = vmatprep.subr.mxu0 0.0
  %4104 = vmatpush2.msra.mxu0 0.0
  %4105 = vmatprep.subr.mxu0 0.0
  %4106 = vmatpush2.msra.mxu0 0.0
  %4107 = vmatprep.subr.mxu0 0.0
  %4108 = vmatpush2.msra.mxu0 0.0
  %4109 = vmatprep.mubr.f32.mxu0 0.0
  %4110 = vmatmul.mubr.f32.gmra.mxu0 %v4040
  %v4111 = vpop.f32.mrf.mxu0
  %v4112 = vadd.f32 %v4037, %v4111
  %v4113 = vpop.f32.mrf.mxu0
  %4114 = vmatprep.mubr.f32.mxu0 0.0
  %4115 = vmatmul.mubr.f32.gmra.mxu0 %v4043
  %v4116 = vpop.f32.mrf.mxu0
  %v4117 = vadd.f32 %v4037, %v4116
  %v4118 = vpop.f32.mrf.mxu0
  %4119 = vdwg.mxu0
  %v4120 = vmul.f32 %v4025, 0.35355338
  %v4121 = vmul.f32 %v4030, 0.35355338
  %v4123 = vsel %vm313, %v4120, 0
  %v4126 = vsel %vm313, %v4121, 0
  %v4129 = vsel %vm313, %v4112, 0
  %v4132 = vsel %vm313, %v4117, 0
  %4134 = vmatprep.subr.mxu0 0.0
  %4135 = vmatpush1.xpose.msra.mxu0 0.0
  %4136 = vmatprep.subr.mxu0 0.0
  %4137 = vmatpush1.xpose.msra.mxu0 0.0
  %4138 = vmatprep.subr.mxu0 0.0
  %4139 = vmatpush1.xpose.msra.mxu0 0.0
  %4140 = vmatprep.subr.mxu0 0.0
  %4141 = vmatpush1.xpose.msra.mxu0 0.0
  %4142 = vmatprep.subr.mxu0 0.0
  %4143 = vmatpush1.xpose.msra.mxu0 0.0
  %4144 = vmatprep.subr.mxu0 0.0
  %4145 = vmatpush1.xpose.msra.mxu0 0.0
  %4146 = vmatprep.subr.mxu0 0.0
  %4147 = vmatpush1.xpose.msra.mxu0 0.0
  %4148 = vmatprep.subr.mxu0 0.0
  %4149 = vmatpush1.xpose.msra.mxu0 0.0
  %4150 = vmatprep.subr.mxu0 0.0
  %4151 = vmatpush1.xpose.msra.mxu0 0.0
  %4152 = vmatprep.subr.mxu0 0.0
  %4153 = vmatpush1.xpose.msra.mxu0 0.0
  %4154 = vmatprep.subr.mxu0 0.0
  %4155 = vmatpush1.xpose.msra.mxu0 0.0
  %4156 = vmatprep.subr.mxu0 0.0
  %4157 = vmatpush1.xpose.msra.mxu0 0.0
  %4158 = vmatprep.subr.mxu0 0.0
  %4159 = vmatpush1.xpose.msra.mxu0 0.0
  %4160 = vmatprep.subr.mxu0 0.0
  %4161 = vmatpush1.xpose.msra.mxu0 0.0
  %4162 = vmatprep.subr.mxu0 0.0
  %4163 = vmatpush1.xpose.msra.mxu0 %v4132
  %4164 = vmatprep.subr.mxu0 0.0
  %4165 = vmatpush1.xpose.msra.mxu0 %v4129
  %4166 = vmatprep.subr.mxu0 0.0
  %4167 = vmatpush2.xpose.msra.mxu0 0.0
  %4168 = vmatprep.subr.mxu0 0.0
  %4169 = vmatpush2.xpose.msra.mxu0 0.0
  %4170 = vmatprep.subr.mxu0 0.0
  %4171 = vmatpush2.xpose.msra.mxu0 0.0
  %4172 = vmatprep.subr.mxu0 0.0
  %4173 = vmatpush2.xpose.msra.mxu0 0.0
  %4174 = vmatprep.subr.mxu0 0.0
  %4175 = vmatpush2.xpose.msra.mxu0 0.0
  %4176 = vmatprep.subr.mxu0 0.0
  %4177 = vmatpush2.xpose.msra.mxu0 0.0
  %4178 = vmatprep.subr.mxu0 0.0
  %4179 = vmatpush2.xpose.msra.mxu0 0.0
  %4180 = vmatprep.subr.mxu0 0.0
  %4181 = vmatpush2.xpose.msra.mxu0 0.0
  %4182 = vmatprep.subr.mxu0 0.0
  %4183 = vmatpush2.xpose.msra.mxu0 0.0
  %4184 = vmatprep.subr.mxu0 0.0
  %4185 = vmatpush2.xpose.msra.mxu0 0.0
  %4186 = vmatprep.subr.mxu0 0.0
  %4187 = vmatpush2.xpose.msra.mxu0 0.0
  %4188 = vmatprep.subr.mxu0 0.0
  %4189 = vmatpush2.xpose.msra.mxu0 0.0
  %4190 = vmatprep.subr.mxu0 0.0
  %4191 = vmatpush2.xpose.msra.mxu0 0.0
  %4192 = vmatprep.subr.mxu0 0.0
  %4193 = vmatpush2.xpose.msra.mxu0 0.0
  %4194 = vmatprep.subr.mxu0 0.0
  %4195 = vmatpush2.xpose.msra.mxu0 0.0
  %4196 = vmatprep.subr.mxu0 0.0
  %4197 = vmatpush2.xpose.msra.mxu0 0.0
  %4198 = vmatprep.mubr.f32.mxu0 0.0
  %4199 = vmatmul.mubr.f32.gmra.mxu0 %v4123
  %v4200 = vpop.f32.mrf.mxu0
  %v4201 = vadd.f32 0.0, %v4200
  %v4202 = vpop.f32.mrf.mxu0
  %4203 = vmatprep.mubr.f32.mxu0 0.0
  %4204 = vmatmul.mubr.f32.gmra.mxu0 %v4126
  %v4205 = vpop.f32.mrf.mxu0
  %v4206 = vadd.f32 0.0, %v4205
  %v4207 = vpop.f32.mrf.mxu0
  %4208 = vdwg.mxu0
  %4209 = vrot.lane.b32.xlu0 %v4120, 120
  %v4210 = vpop.permute.xlu0 %4209
  %4211 = vrot.lane.b32.xlu0 %v4121, 120
  %v4212 = vpop.permute.xlu0 %4211
  %4213 = vrot.lane.b32.xlu0 %v4112, 120
  %v4214 = vpop.permute.xlu0 %4213
  %4215 = vrot.lane.b32.xlu0 %v4117, 120
  %v4216 = vpop.permute.xlu0 %4215
  %v4217 = vsel %vm313, %v4210, 0
  %v4219 = vsel %vm313, %v4212, 0
  %v4221 = vsel %vm313, %v4214, 0
  %v4223 = vsel %vm313, %v4216, 0
  %4225 = vmatprep.subr.mxu0 0.0
  %4226 = vmatpush1.xpose.msra.mxu0 0.0
  %4227 = vmatprep.subr.mxu0 0.0
  %4228 = vmatpush1.xpose.msra.mxu0 0.0
  %4229 = vmatprep.subr.mxu0 0.0
  %4230 = vmatpush1.xpose.msra.mxu0 0.0
  %4231 = vmatprep.subr.mxu0 0.0
  %4232 = vmatpush1.xpose.msra.mxu0 0.0
  %4233 = vmatprep.subr.mxu0 0.0
  %4234 = vmatpush1.xpose.msra.mxu0 0.0
  %4235 = vmatprep.subr.mxu0 0.0
  %4236 = vmatpush1.xpose.msra.mxu0 0.0
  %4237 = vmatprep.subr.mxu0 0.0
  %4238 = vmatpush1.xpose.msra.mxu0 0.0
  %4239 = vmatprep.subr.mxu0 0.0
  %4240 = vmatpush1.xpose.msra.mxu0 0.0
  %4241 = vmatprep.subr.mxu0 0.0
  %4242 = vmatpush1.xpose.msra.mxu0 0.0
  %4243 = vmatprep.subr.mxu0 0.0
  %4244 = vmatpush1.xpose.msra.mxu0 0.0
  %4245 = vmatprep.subr.mxu0 0.0
  %4246 = vmatpush1.xpose.msra.mxu0 0.0
  %4247 = vmatprep.subr.mxu0 0.0
  %4248 = vmatpush1.xpose.msra.mxu0 0.0
  %4249 = vmatprep.subr.mxu0 0.0
  %4250 = vmatpush1.xpose.msra.mxu0 0.0
  %4251 = vmatprep.subr.mxu0 0.0
  %4252 = vmatpush1.xpose.msra.mxu0 0.0
  %4253 = vmatprep.subr.mxu0 0.0
  %4254 = vmatpush1.xpose.msra.mxu0 %v4223
  %4255 = vmatprep.subr.mxu0 0.0
  %4256 = vmatpush1.xpose.msra.mxu0 %v4221
  %4257 = vmatprep.subr.mxu0 0.0
  %4258 = vmatpush2.xpose.msra.mxu0 0.0
  %4259 = vmatprep.subr.mxu0 0.0
  %4260 = vmatpush2.xpose.msra.mxu0 0.0
  %4261 = vmatprep.subr.mxu0 0.0
  %4262 = vmatpush2.xpose.msra.mxu0 0.0
  %4263 = vmatprep.subr.mxu0 0.0
  %4264 = vmatpush2.xpose.msra.mxu0 0.0
  %4265 = vmatprep.subr.mxu0 0.0
  %4266 = vmatpush2.xpose.msra.mxu0 0.0
  %4267 = vmatprep.subr.mxu0 0.0
  %4268 = vmatpush2.xpose.msra.mxu0 0.0
  %4269 = vmatprep.subr.mxu0 0.0
  %4270 = vmatpush2.xpose.msra.mxu0 0.0
  %4271 = vmatprep.subr.mxu0 0.0
  %4272 = vmatpush2.xpose.msra.mxu0 0.0
  %4273 = vmatprep.subr.mxu0 0.0
  %4274 = vmatpush2.xpose.msra.mxu0 0.0
  %4275 = vmatprep.subr.mxu0 0.0
  %4276 = vmatpush2.xpose.msra.mxu0 0.0
  %4277 = vmatprep.subr.mxu0 0.0
  %4278 = vmatpush2.xpose.msra.mxu0 0.0
  %4279 = vmatprep.subr.mxu0 0.0
  %4280 = vmatpush2.xpose.msra.mxu0 0.0
  %4281 = vmatprep.subr.mxu0 0.0
  %4282 = vmatpush2.xpose.msra.mxu0 0.0
  %4283 = vmatprep.subr.mxu0 0.0
  %4284 = vmatpush2.xpose.msra.mxu0 0.0
  %4285 = vmatprep.subr.mxu0 0.0
  %4286 = vmatpush2.xpose.msra.mxu0 0.0
  %4287 = vmatprep.subr.mxu0 0.0
  %4288 = vmatpush2.xpose.msra.mxu0 0.0
  %4289 = vmatprep.mubr.f32.mxu0 0.0
  %4290 = vmatmul.mubr.f32.gmra.mxu0 %v4217
  %v4291 = vpop.f32.mrf.mxu0
  %v4292 = vadd.f32 0.0, %v4291
  %v4293 = vpop.f32.mrf.mxu0
  %4294 = vmatprep.mubr.f32.mxu0 0.0
  %4295 = vmatmul.mubr.f32.gmra.mxu0 %v4219
  %v4296 = vpop.f32.mrf.mxu0
  %v4297 = vadd.f32 0.0, %v4296
  %v4298 = vpop.f32.mrf.mxu0
  %4299 = vdwg.mxu0
  %4300 = vrot.lane.b32.xlu0 %v4120, 112
  %v4301 = vpop.permute.xlu0 %4300
  %4302 = vrot.lane.b32.xlu0 %v4121, 112
  %v4303 = vpop.permute.xlu0 %4302
  %4304 = vrot.lane.b32.xlu0 %v4112, 112
  %v4305 = vpop.permute.xlu0 %4304
  %4306 = vrot.lane.b32.xlu0 %v4117, 112
  %v4307 = vpop.permute.xlu0 %4306
  %v4308 = vsel %vm313, %v4301, 0
  %v4310 = vsel %vm313, %v4303, 0
  %v4312 = vsel %vm313, %v4305, 0
  %v4314 = vsel %vm313, %v4307, 0
  %4316 = vmatprep.subr.mxu0 0.0
  %4317 = vmatpush1.xpose.msra.mxu0 0.0
  %4318 = vmatprep.subr.mxu0 0.0
  %4319 = vmatpush1.xpose.msra.mxu0 0.0
  %4320 = vmatprep.subr.mxu0 0.0
  %4321 = vmatpush1.xpose.msra.mxu0 0.0
  %4322 = vmatprep.subr.mxu0 0.0
  %4323 = vmatpush1.xpose.msra.mxu0 0.0
  %4324 = vmatprep.subr.mxu0 0.0
  %4325 = vmatpush1.xpose.msra.mxu0 0.0
  %4326 = vmatprep.subr.mxu0 0.0
  %4327 = vmatpush1.xpose.msra.mxu0 0.0
  %4328 = vmatprep.subr.mxu0 0.0
  %4329 = vmatpush1.xpose.msra.mxu0 0.0
  %4330 = vmatprep.subr.mxu0 0.0
  %4331 = vmatpush1.xpose.msra.mxu0 0.0
  %4332 = vmatprep.subr.mxu0 0.0
  %4333 = vmatpush1.xpose.msra.mxu0 0.0
  %4334 = vmatprep.subr.mxu0 0.0
  %4335 = vmatpush1.xpose.msra.mxu0 0.0
  %4336 = vmatprep.subr.mxu0 0.0
  %4337 = vmatpush1.xpose.msra.mxu0 0.0
  %4338 = vmatprep.subr.mxu0 0.0
  %4339 = vmatpush1.xpose.msra.mxu0 0.0
  %4340 = vmatprep.subr.mxu0 0.0
  %4341 = vmatpush1.xpose.msra.mxu0 0.0
  %4342 = vmatprep.subr.mxu0 0.0
  %4343 = vmatpush1.xpose.msra.mxu0 0.0
  %4344 = vmatprep.subr.mxu0 0.0
  %4345 = vmatpush1.xpose.msra.mxu0 %v4314
  %4346 = vmatprep.subr.mxu0 0.0
  %4347 = vmatpush1.xpose.msra.mxu0 %v4312
  %4348 = vmatprep.subr.mxu0 0.0
  %4349 = vmatpush2.xpose.msra.mxu0 0.0
  %4350 = vmatprep.subr.mxu0 0.0
  %4351 = vmatpush2.xpose.msra.mxu0 0.0
  %4352 = vmatprep.subr.mxu0 0.0
  %4353 = vmatpush2.xpose.msra.mxu0 0.0
  %4354 = vmatprep.subr.mxu0 0.0
  %4355 = vmatpush2.xpose.msra.mxu0 0.0
  %4356 = vmatprep.subr.mxu0 0.0
  %4357 = vmatpush2.xpose.msra.mxu0 0.0
  %4358 = vmatprep.subr.mxu0 0.0
  %4359 = vmatpush2.xpose.msra.mxu0 0.0
  %4360 = vmatprep.subr.mxu0 0.0
  %4361 = vmatpush2.xpose.msra.mxu0 0.0
  %4362 = vmatprep.subr.mxu0 0.0
  %4363 = vmatpush2.xpose.msra.mxu0 0.0
  %4364 = vmatprep.subr.mxu0 0.0
  %4365 = vmatpush2.xpose.msra.mxu0 0.0
  %4366 = vmatprep.subr.mxu0 0.0
  %4367 = vmatpush2.xpose.msra.mxu0 0.0
  %4368 = vmatprep.subr.mxu0 0.0
  %4369 = vmatpush2.xpose.msra.mxu0 0.0
  %4370 = vmatprep.subr.mxu0 0.0
  %4371 = vmatpush2.xpose.msra.mxu0 0.0
  %4372 = vmatprep.subr.mxu0 0.0
  %4373 = vmatpush2.xpose.msra.mxu0 0.0
  %4374 = vmatprep.subr.mxu0 0.0
  %4375 = vmatpush2.xpose.msra.mxu0 0.0
  %4376 = vmatprep.subr.mxu0 0.0
  %4377 = vmatpush2.xpose.msra.mxu0 0.0
  %4378 = vmatprep.subr.mxu0 0.0
  %4379 = vmatpush2.xpose.msra.mxu0 0.0
  %4380 = vmatprep.mubr.f32.mxu0 0.0
  %4381 = vmatmul.mubr.f32.gmra.mxu0 %v4308
  %v4382 = vpop.f32.mrf.mxu0
  %v4383 = vadd.f32 0.0, %v4382
  %v4384 = vpop.f32.mrf.mxu0
  %4385 = vmatprep.mubr.f32.mxu0 0.0
  %4386 = vmatmul.mubr.f32.gmra.mxu0 %v4310
  %v4387 = vpop.f32.mrf.mxu0
  %v4388 = vadd.f32 0.0, %v4387
  %v4389 = vpop.f32.mrf.mxu0
  %4390 = vdwg.mxu0
  %4391 = vrot.lane.b32.xlu0 %v4120, 104
  %v4392 = vpop.permute.xlu0 %4391
  %4393 = vrot.lane.b32.xlu0 %v4121, 104
  %v4394 = vpop.permute.xlu0 %4393
  %4395 = vrot.lane.b32.xlu0 %v4112, 104
  %v4396 = vpop.permute.xlu0 %4395
  %4397 = vrot.lane.b32.xlu0 %v4117, 104
  %v4398 = vpop.permute.xlu0 %4397
  %v4399 = vsel %vm313, %v4392, 0
  %v4401 = vsel %vm313, %v4394, 0
  %v4403 = vsel %vm313, %v4396, 0
  %v4405 = vsel %vm313, %v4398, 0
  %4407 = vmatprep.subr.mxu0 0.0
  %4408 = vmatpush1.xpose.msra.mxu0 0.0
  %4409 = vmatprep.subr.mxu0 0.0
  %4410 = vmatpush1.xpose.msra.mxu0 0.0
  %4411 = vmatprep.subr.mxu0 0.0
  %4412 = vmatpush1.xpose.msra.mxu0 0.0
  %4413 = vmatprep.subr.mxu0 0.0
  %4414 = vmatpush1.xpose.msra.mxu0 0.0
  %4415 = vmatprep.subr.mxu0 0.0
  %4416 = vmatpush1.xpose.msra.mxu0 0.0
  %4417 = vmatprep.subr.mxu0 0.0
  %4418 = vmatpush1.xpose.msra.mxu0 0.0
  %4419 = vmatprep.subr.mxu0 0.0
  %4420 = vmatpush1.xpose.msra.mxu0 0.0
  %4421 = vmatprep.subr.mxu0 0.0
  %4422 = vmatpush1.xpose.msra.mxu0 0.0
  %4423 = vmatprep.subr.mxu0 0.0
  %4424 = vmatpush1.xpose.msra.mxu0 0.0
  %4425 = vmatprep.subr.mxu0 0.0
  %4426 = vmatpush1.xpose.msra.mxu0 0.0
  %4427 = vmatprep.subr.mxu0 0.0
  %4428 = vmatpush1.xpose.msra.mxu0 0.0
  %4429 = vmatprep.subr.mxu0 0.0
  %4430 = vmatpush1.xpose.msra.mxu0 0.0
  %4431 = vmatprep.subr.mxu0 0.0
  %4432 = vmatpush1.xpose.msra.mxu0 0.0
  %4433 = vmatprep.subr.mxu0 0.0
  %4434 = vmatpush1.xpose.msra.mxu0 0.0
  %4435 = vmatprep.subr.mxu0 0.0
  %4436 = vmatpush1.xpose.msra.mxu0 %v4405
  %4437 = vmatprep.subr.mxu0 0.0
  %4438 = vmatpush1.xpose.msra.mxu0 %v4403
  %4439 = vmatprep.subr.mxu0 0.0
  %4440 = vmatpush2.xpose.msra.mxu0 0.0
  %4441 = vmatprep.subr.mxu0 0.0
  %4442 = vmatpush2.xpose.msra.mxu0 0.0
  %4443 = vmatprep.subr.mxu0 0.0
  %4444 = vmatpush2.xpose.msra.mxu0 0.0
  %4445 = vmatprep.subr.mxu0 0.0
  %4446 = vmatpush2.xpose.msra.mxu0 0.0
  %4447 = vmatprep.subr.mxu0 0.0
  %4448 = vmatpush2.xpose.msra.mxu0 0.0
  %4449 = vmatprep.subr.mxu0 0.0
  %4450 = vmatpush2.xpose.msra.mxu0 0.0
  %4451 = vmatprep.subr.mxu0 0.0
  %4452 = vmatpush2.xpose.msra.mxu0 0.0
  %4453 = vmatprep.subr.mxu0 0.0
  %4454 = vmatpush2.xpose.msra.mxu0 0.0
  %4455 = vmatprep.subr.mxu0 0.0
  %4456 = vmatpush2.xpose.msra.mxu0 0.0
  %4457 = vmatprep.subr.mxu0 0.0
  %4458 = vmatpush2.xpose.msra.mxu0 0.0
  %4459 = vmatprep.subr.mxu0 0.0
  %4460 = vmatpush2.xpose.msra.mxu0 0.0
  %4461 = vmatprep.subr.mxu0 0.0
  %4462 = vmatpush2.xpose.msra.mxu0 0.0
  %4463 = vmatprep.subr.mxu0 0.0
  %4464 = vmatpush2.xpose.msra.mxu0 0.0
  %4465 = vmatprep.subr.mxu0 0.0
  %4466 = vmatpush2.xpose.msra.mxu0 0.0
  %4467 = vmatprep.subr.mxu0 0.0
  %4468 = vmatpush2.xpose.msra.mxu0 0.0
  %4469 = vmatprep.subr.mxu0 0.0
  %4470 = vmatpush2.xpose.msra.mxu0 0.0
  %4471 = vmatprep.mubr.f32.mxu0 0.0
  %4472 = vmatmul.mubr.f32.gmra.mxu0 %v4399
  %v4473 = vpop.f32.mrf.mxu0
  %v4474 = vadd.f32 0.0, %v4473
  %v4475 = vpop.f32.mrf.mxu0
  %4476 = vmatprep.mubr.f32.mxu0 0.0
  %4477 = vmatmul.mubr.f32.gmra.mxu0 %v4401
  %v4478 = vpop.f32.mrf.mxu0
  %v4479 = vadd.f32 0.0, %v4478
  %v4480 = vpop.f32.mrf.mxu0
  %4481 = vdwg.mxu0
  %v4482 = vadd.f32 %v4201, %v2831
  %v4483 = vadd.f32 %v4206, %v2832
  %v4484 = vadd.f32 %v4292, %v2831
  %v4485 = vadd.f32 %v4297, %v2832
  %v4486 = vadd.f32 %v4383, %v2831
  %v4487 = vadd.f32 %v4388, %v2832
  %v4488 = vadd.f32 %v4474, %v2831
  %v4489 = vadd.f32 %v4479, %v2832
  %v4490 = vsel %vm680, %v4482, -inf
  %4491 = vmax.xlane.f32.xlu0 %v4490
  %v4492 = vpop.xlane.xlu0 %4491
  %vm4493 = vcmask 125952
  %v4494 = vsel %vm4493, %v4483, -inf
  %4495 = vmax.xlane.f32.xlu0 %v4494
  %v4496 = vpop.xlane.xlu0 %4495
  %v4497 = vsel %vm680, %v4484, -inf
  %4498 = vmax.xlane.f32.xlu0 %v4497
  %v4499 = vpop.xlane.xlu0 %4498
  %v4500 = vsel %vm4493, %v4485, -inf
  %4501 = vmax.xlane.f32.xlu0 %v4500
  %v4502 = vpop.xlane.xlu0 %4501
  %v4503 = vsel %vm680, %v4486, -inf
  %4504 = vmax.xlane.f32.xlu0 %v4503
  %v4505 = vpop.xlane.xlu0 %4504
  %v4506 = vsel %vm4493, %v4487, -inf
  %4507 = vmax.xlane.f32.xlu0 %v4506
  %v4508 = vpop.xlane.xlu0 %4507
  %v4509 = vsel %vm680, %v4488, -inf
  %4510 = vmax.xlane.f32.xlu0 %v4509
  %v4511 = vpop.xlane.xlu0 %4510
  %v4512 = vsel %vm4493, %v4489, -inf
  %4513 = vmax.xlane.f32.xlu0 %v4512
  %v4514 = vpop.xlane.xlu0 %4513
  %v4515 = vsub.f32 %v4482, %v4492
  %v4516 = vsub.f32 %v4483, %v4496
  %v4517 = vsub.f32 %v4484, %v4499
  %v4518 = vsub.f32 %v4485, %v4502
  %v4519 = vsub.f32 %v4486, %v4505
  %v4520 = vsub.f32 %v4487, %v4508
  %v4521 = vsub.f32 %v4488, %v4511
  %v4522 = vsub.f32 %v4489, %v4514
  %v4523 = vmul.f32 %v4515, 1.442695
  %v4524 = vpow.pop %v4523
  %v4525 = vmul.f32 %v4516, 1.442695
  %v4526 = vpow.pop %v4525
  %v4527 = vmul.f32 %v4517, 1.442695
  %v4528 = vpow.pop %v4527
  %v4529 = vmul.f32 %v4518, 1.442695
  %v4530 = vpow.pop %v4529
  %v4531 = vmul.f32 %v4519, 1.442695
  %v4532 = vpow.pop %v4531
  %v4533 = vmul.f32 %v4520, 1.442695
  %v4534 = vpow.pop %v4533
  %v4535 = vmul.f32 %v4521, 1.442695
  %v4536 = vpow.pop %v4535
  %v4537 = vmul.f32 %v4522, 1.442695
  %v4538 = vpow.pop %v4537
  %v4539 = vsel %vm680, %v4524, 0.0
  %4540 = vadd.xlane.f32.xlu0 %v4539
  %v4541 = vpop.xlane.xlu0 %4540
  %v4542 = vsel %vm4493, %v4526, 0.0
  %4543 = vadd.xlane.f32.xlu0 %v4542
  %v4544 = vpop.xlane.xlu0 %4543
  %v4545 = vsel %vm680, %v4528, 0.0
  %4546 = vadd.xlane.f32.xlu0 %v4545
  %v4547 = vpop.xlane.xlu0 %4546
  %v4548 = vsel %vm4493, %v4530, 0.0
  %4549 = vadd.xlane.f32.xlu0 %v4548
  %v4550 = vpop.xlane.xlu0 %4549
  %v4551 = vsel %vm680, %v4532, 0.0
  %4552 = vadd.xlane.f32.xlu0 %v4551
  %v4553 = vpop.xlane.xlu0 %4552
  %v4554 = vsel %vm4493, %v4534, 0.0
  %4555 = vadd.xlane.f32.xlu0 %v4554
  %v4556 = vpop.xlane.xlu0 %4555
  %v4557 = vsel %vm680, %v4536, 0.0
  %4558 = vadd.xlane.f32.xlu0 %v4557
  %v4559 = vpop.xlane.xlu0 %4558
  %v4560 = vsel %vm4493, %v4538, 0.0
  %4561 = vadd.xlane.f32.xlu0 %v4560
  %v4562 = vpop.xlane.xlu0 %4561
  %v4563 = vrcp.pop %v4541
  %v4564 = vrcp.pop %v4544
  %v4565 = vrcp.pop %v4547
  %v4566 = vrcp.pop %v4550
  %v4567 = vrcp.pop %v4553
  %v4568 = vrcp.pop %v4556
  %v4569 = vrcp.pop %v4559
  %v4570 = vrcp.pop %v4562
  %v4571 = vmul.f32 %v4524, %v4563
  %v4572 = vmul.f32 %v4526, %v4564
  %v4573 = vmul.f32 %v4528, %v4565
  %v4574 = vmul.f32 %v4530, %v4566
  %v4575 = vmul.f32 %v4532, %v4567
  %v4576 = vmul.f32 %v4534, %v4568
  %v4577 = vmul.f32 %v4536, %v4569
  %v4578 = vmul.f32 %v4538, %v4570
  %4579 = vrot.lane.b32.xlu0 %v4112, 96
  %v4580 = vpop.permute.xlu0 %4579
  %4581 = vrot.lane.b32.xlu0 %v4117, 96
  %v4582 = vpop.permute.xlu0 %4581
  %v4586 = vsel %vm680, %v4571, 0
  %v4589 = vsel %vm680, %v4572, 0
  %4591 = vmatprep.subr.mxu0 0.0
  %4592 = vmatpush1.msra.mxu0 0.0
  %4593 = vmatprep.subr.mxu0 0.0
  %4594 = vmatpush1.msra.mxu0 0.0
  %4595 = vmatprep.subr.mxu0 0.0
  %4596 = vmatpush1.msra.mxu0 0.0
  %4597 = vmatprep.subr.mxu0 0.0
  %4598 = vmatpush1.msra.mxu0 0.0
  %4599 = vmatprep.subr.mxu0 0.0
  %4600 = vmatpush1.msra.mxu0 0.0
  %4601 = vmatprep.subr.mxu0 0.0
  %4602 = vmatpush1.msra.mxu0 0.0
  %4603 = vmatprep.subr.mxu0 0.0
  %4604 = vmatpush1.msra.mxu0 0.0
  %4605 = vmatprep.subr.mxu0 0.0
  %4606 = vmatpush1.msra.mxu0 0.0
  %4607 = vmatprep.subr.mxu0 0.0
  %4608 = vmatpush1.msra.mxu0 0.0
  %4609 = vmatprep.subr.mxu0 0.0
  %4610 = vmatpush1.msra.mxu0 0.0
  %4611 = vmatprep.subr.mxu0 0.0
  %4612 = vmatpush1.msra.mxu0 0.0
  %4613 = vmatprep.subr.mxu0 0.0
  %4614 = vmatpush1.msra.mxu0 0.0
  %4615 = vmatprep.subr.mxu0 0.0
  %4616 = vmatpush1.msra.mxu0 0.0
  %4617 = vmatprep.subr.mxu0 0.0
  %4618 = vmatpush1.msra.mxu0 0.0
  %4619 = vmatprep.subr.mxu0 0.0
  %4620 = vmatpush1.msra.mxu0 %v4582
  %4621 = vmatprep.subr.mxu0 0.0
  %4622 = vmatpush1.msra.mxu0 %v4580
  %4623 = vmatprep.subr.mxu0 0.0
  %4624 = vmatpush2.msra.mxu0 0.0
  %4625 = vmatprep.subr.mxu0 0.0
  %4626 = vmatpush2.msra.mxu0 0.0
  %4627 = vmatprep.subr.mxu0 0.0
  %4628 = vmatpush2.msra.mxu0 0.0
  %4629 = vmatprep.subr.mxu0 0.0
  %4630 = vmatpush2.msra.mxu0 0.0
  %4631 = vmatprep.subr.mxu0 0.0
  %4632 = vmatpush2.msra.mxu0 0.0
  %4633 = vmatprep.subr.mxu0 0.0
  %4634 = vmatpush2.msra.mxu0 0.0
  %4635 = vmatprep.subr.mxu0 0.0
  %4636 = vmatpush2.msra.mxu0 0.0
  %4637 = vmatprep.subr.mxu0 0.0
  %4638 = vmatpush2.msra.mxu0 0.0
  %4639 = vmatprep.subr.mxu0 0.0
  %4640 = vmatpush2.msra.mxu0 0.0
  %4641 = vmatprep.subr.mxu0 0.0
  %4642 = vmatpush2.msra.mxu0 0.0
  %4643 = vmatprep.subr.mxu0 0.0
  %4644 = vmatpush2.msra.mxu0 0.0
  %4645 = vmatprep.subr.mxu0 0.0
  %4646 = vmatpush2.msra.mxu0 0.0
  %4647 = vmatprep.subr.mxu0 0.0
  %4648 = vmatpush2.msra.mxu0 0.0
  %4649 = vmatprep.subr.mxu0 0.0
  %4650 = vmatpush2.msra.mxu0 0.0
  %4651 = vmatprep.subr.mxu0 0.0
  %4652 = vmatpush2.msra.mxu0 0.0
  %4653 = vmatprep.subr.mxu0 0.0
  %4654 = vmatpush2.msra.mxu0 0.0
  %4655 = vmatprep.mubr.f32.mxu0 0.0
  %4656 = vmatmul.mubr.f32.gmra.mxu0 %v4586
  %v4657 = vpop.f32.mrf.mxu0
  %v4658 = vadd.f32 0.0, %v4657
  %v4659 = vpop.f32.mrf.mxu0
  %4660 = vmatprep.mubr.f32.mxu0 0.0
  %4661 = vmatmul.mubr.f32.gmra.mxu0 %v4589
  %v4662 = vpop.f32.mrf.mxu0
  %v4663 = vadd.f32 0.0, %v4662
  %v4664 = vpop.f32.mrf.mxu0
  %4665 = vdwg.mxu0
  %4666 = vrot.lane.b32.xlu0 %v4112, 88
  %v4667 = vpop.permute.xlu0 %4666
  %4668 = vrot.lane.b32.xlu0 %v4117, 88
  %v4669 = vpop.permute.xlu0 %4668
  %v4673 = vsel %vm680, %v4573, 0
  %v4676 = vsel %vm680, %v4574, 0
  %4678 = vmatprep.subr.mxu0 0.0
  %4679 = vmatpush1.msra.mxu0 0.0
  %4680 = vmatprep.subr.mxu0 0.0
  %4681 = vmatpush1.msra.mxu0 0.0
  %4682 = vmatprep.subr.mxu0 0.0
  %4683 = vmatpush1.msra.mxu0 0.0
  %4684 = vmatprep.subr.mxu0 0.0
  %4685 = vmatpush1.msra.mxu0 0.0
  %4686 = vmatprep.subr.mxu0 0.0
  %4687 = vmatpush1.msra.mxu0 0.0
  %4688 = vmatprep.subr.mxu0 0.0
  %4689 = vmatpush1.msra.mxu0 0.0
  %4690 = vmatprep.subr.mxu0 0.0
  %4691 = vmatpush1.msra.mxu0 0.0
  %4692 = vmatprep.subr.mxu0 0.0
  %4693 = vmatpush1.msra.mxu0 0.0
  %4694 = vmatprep.subr.mxu0 0.0
  %4695 = vmatpush1.msra.mxu0 0.0
  %4696 = vmatprep.subr.mxu0 0.0
  %4697 = vmatpush1.msra.mxu0 0.0
  %4698 = vmatprep.subr.mxu0 0.0
  %4699 = vmatpush1.msra.mxu0 0.0
  %4700 = vmatprep.subr.mxu0 0.0
  %4701 = vmatpush1.msra.mxu0 0.0
  %4702 = vmatprep.subr.mxu0 0.0
  %4703 = vmatpush1.msra.mxu0 0.0
  %4704 = vmatprep.subr.mxu0 0.0
  %4705 = vmatpush1.msra.mxu0 0.0
  %4706 = vmatprep.subr.mxu0 0.0
  %4707 = vmatpush1.msra.mxu0 %v4669
  %4708 = vmatprep.subr.mxu0 0.0
  %4709 = vmatpush1.msra.mxu0 %v4667
  %4710 = vmatprep.subr.mxu0 0.0
  %4711 = vmatpush2.msra.mxu0 0.0
  %4712 = vmatprep.subr.mxu0 0.0
  %4713 = vmatpush2.msra.mxu0 0.0
  %4714 = vmatprep.subr.mxu0 0.0
  %4715 = vmatpush2.msra.mxu0 0.0
  %4716 = vmatprep.subr.mxu0 0.0
  %4717 = vmatpush2.msra.mxu0 0.0
  %4718 = vmatprep.subr.mxu0 0.0
  %4719 = vmatpush2.msra.mxu0 0.0
  %4720 = vmatprep.subr.mxu0 0.0
  %4721 = vmatpush2.msra.mxu0 0.0
  %4722 = vmatprep.subr.mxu0 0.0
  %4723 = vmatpush2.msra.mxu0 0.0
  %4724 = vmatprep.subr.mxu0 0.0
  %4725 = vmatpush2.msra.mxu0 0.0
  %4726 = vmatprep.subr.mxu0 0.0
  %4727 = vmatpush2.msra.mxu0 0.0
  %4728 = vmatprep.subr.mxu0 0.0
  %4729 = vmatpush2.msra.mxu0 0.0
  %4730 = vmatprep.subr.mxu0 0.0
  %4731 = vmatpush2.msra.mxu0 0.0
  %4732 = vmatprep.subr.mxu0 0.0
  %4733 = vmatpush2.msra.mxu0 0.0
  %4734 = vmatprep.subr.mxu0 0.0
  %4735 = vmatpush2.msra.mxu0 0.0
  %4736 = vmatprep.subr.mxu0 0.0
  %4737 = vmatpush2.msra.mxu0 0.0
  %4738 = vmatprep.subr.mxu0 0.0
  %4739 = vmatpush2.msra.mxu0 0.0
  %4740 = vmatprep.subr.mxu0 0.0
  %4741 = vmatpush2.msra.mxu0 0.0
  %4742 = vmatprep.mubr.f32.mxu0 0.0
  %4743 = vmatmul.mubr.f32.gmra.mxu0 %v4673
  %v4744 = vpop.f32.mrf.mxu0
  %v4745 = vadd.f32 0.0, %v4744
  %v4746 = vpop.f32.mrf.mxu0
  %4747 = vmatprep.mubr.f32.mxu0 0.0
  %4748 = vmatmul.mubr.f32.gmra.mxu0 %v4676
  %v4749 = vpop.f32.mrf.mxu0
  %v4750 = vadd.f32 0.0, %v4749
  %v4751 = vpop.f32.mrf.mxu0
  %4752 = vdwg.mxu0
  %4753 = vrot.lane.b32.xlu0 %v4112, 80
  %v4754 = vpop.permute.xlu0 %4753
  %4755 = vrot.lane.b32.xlu0 %v4117, 80
  %v4756 = vpop.permute.xlu0 %4755
  %v4760 = vsel %vm680, %v4575, 0
  %v4763 = vsel %vm680, %v4576, 0
  %4765 = vmatprep.subr.mxu0 0.0
  %4766 = vmatpush1.msra.mxu0 0.0
  %4767 = vmatprep.subr.mxu0 0.0
  %4768 = vmatpush1.msra.mxu0 0.0
  %4769 = vmatprep.subr.mxu0 0.0
  %4770 = vmatpush1.msra.mxu0 0.0
  %4771 = vmatprep.subr.mxu0 0.0
  %4772 = vmatpush1.msra.mxu0 0.0
  %4773 = vmatprep.subr.mxu0 0.0
  %4774 = vmatpush1.msra.mxu0 0.0
  %4775 = vmatprep.subr.mxu0 0.0
  %4776 = vmatpush1.msra.mxu0 0.0
  %4777 = vmatprep.subr.mxu0 0.0
  %4778 = vmatpush1.msra.mxu0 0.0
  %4779 = vmatprep.subr.mxu0 0.0
  %4780 = vmatpush1.msra.mxu0 0.0
  %4781 = vmatprep.subr.mxu0 0.0
  %4782 = vmatpush1.msra.mxu0 0.0
  %4783 = vmatprep.subr.mxu0 0.0
  %4784 = vmatpush1.msra.mxu0 0.0
  %4785 = vmatprep.subr.mxu0 0.0
  %4786 = vmatpush1.msra.mxu0 0.0
  %4787 = vmatprep.subr.mxu0 0.0
  %4788 = vmatpush1.msra.mxu0 0.0
  %4789 = vmatprep.subr.mxu0 0.0
  %4790 = vmatpush1.msra.mxu0 0.0
  %4791 = vmatprep.subr.mxu0 0.0
  %4792 = vmatpush1.msra.mxu0 0.0
  %4793 = vmatprep.subr.mxu0 0.0
  %4794 = vmatpush1.msra.mxu0 %v4756
  %4795 = vmatprep.subr.mxu0 0.0
  %4796 = vmatpush1.msra.mxu0 %v4754
  %4797 = vmatprep.subr.mxu0 0.0
  %4798 = vmatpush2.msra.mxu0 0.0
  %4799 = vmatprep.subr.mxu0 0.0
  %4800 = vmatpush2.msra.mxu0 0.0
  %4801 = vmatprep.subr.mxu0 0.0
  %4802 = vmatpush2.msra.mxu0 0.0
  %4803 = vmatprep.subr.mxu0 0.0
  %4804 = vmatpush2.msra.mxu0 0.0
  %4805 = vmatprep.subr.mxu0 0.0
  %4806 = vmatpush2.msra.mxu0 0.0
  %4807 = vmatprep.subr.mxu0 0.0
  %4808 = vmatpush2.msra.mxu0 0.0
  %4809 = vmatprep.subr.mxu0 0.0
  %4810 = vmatpush2.msra.mxu0 0.0
  %4811 = vmatprep.subr.mxu0 0.0
  %4812 = vmatpush2.msra.mxu0 0.0
  %4813 = vmatprep.subr.mxu0 0.0
  %4814 = vmatpush2.msra.mxu0 0.0
  %4815 = vmatprep.subr.mxu0 0.0
  %4816 = vmatpush2.msra.mxu0 0.0
  %4817 = vmatprep.subr.mxu0 0.0
  %4818 = vmatpush2.msra.mxu0 0.0
  %4819 = vmatprep.subr.mxu0 0.0
  %4820 = vmatpush2.msra.mxu0 0.0
  %4821 = vmatprep.subr.mxu0 0.0
  %4822 = vmatpush2.msra.mxu0 0.0
  %4823 = vmatprep.subr.mxu0 0.0
  %4824 = vmatpush2.msra.mxu0 0.0
  %4825 = vmatprep.subr.mxu0 0.0
  %4826 = vmatpush2.msra.mxu0 0.0
  %4827 = vmatprep.subr.mxu0 0.0
  %4828 = vmatpush2.msra.mxu0 0.0
  %4829 = vmatprep.mubr.f32.mxu0 0.0
  %4830 = vmatmul.mubr.f32.gmra.mxu0 %v4760
  %v4831 = vpop.f32.mrf.mxu0
  %v4832 = vadd.f32 0.0, %v4831
  %v4833 = vpop.f32.mrf.mxu0
  %4834 = vmatprep.mubr.f32.mxu0 0.0
  %4835 = vmatmul.mubr.f32.gmra.mxu0 %v4763
  %v4836 = vpop.f32.mrf.mxu0
  %v4837 = vadd.f32 0.0, %v4836
  %v4838 = vpop.f32.mrf.mxu0
  %4839 = vdwg.mxu0
  %4840 = vrot.lane.b32.xlu0 %v4112, 72
  %v4841 = vpop.permute.xlu0 %4840
  %4842 = vrot.lane.b32.xlu0 %v4117, 72
  %v4843 = vpop.permute.xlu0 %4842
  %v4847 = vsel %vm680, %v4577, 0
  %v4850 = vsel %vm680, %v4578, 0
  %4852 = vmatprep.subr.mxu0 0.0
  %4853 = vmatpush1.msra.mxu0 0.0
  %4854 = vmatprep.subr.mxu0 0.0
  %4855 = vmatpush1.msra.mxu0 0.0
  %4856 = vmatprep.subr.mxu0 0.0
  %4857 = vmatpush1.msra.mxu0 0.0
  %4858 = vmatprep.subr.mxu0 0.0
  %4859 = vmatpush1.msra.mxu0 0.0
  %4860 = vmatprep.subr.mxu0 0.0
  %4861 = vmatpush1.msra.mxu0 0.0
  %4862 = vmatprep.subr.mxu0 0.0
  %4863 = vmatpush1.msra.mxu0 0.0
  %4864 = vmatprep.subr.mxu0 0.0
  %4865 = vmatpush1.msra.mxu0 0.0
  %4866 = vmatprep.subr.mxu0 0.0
  %4867 = vmatpush1.msra.mxu0 0.0
  %4868 = vmatprep.subr.mxu0 0.0
  %4869 = vmatpush1.msra.mxu0 0.0
  %4870 = vmatprep.subr.mxu0 0.0
  %4871 = vmatpush1.msra.mxu0 0.0
  %4872 = vmatprep.subr.mxu0 0.0
  %4873 = vmatpush1.msra.mxu0 0.0
  %4874 = vmatprep.subr.mxu0 0.0
  %4875 = vmatpush1.msra.mxu0 0.0
  %4876 = vmatprep.subr.mxu0 0.0
  %4877 = vmatpush1.msra.mxu0 0.0
  %4878 = vmatprep.subr.mxu0 0.0
  %4879 = vmatpush1.msra.mxu0 0.0
  %4880 = vmatprep.subr.mxu0 0.0
  %4881 = vmatpush1.msra.mxu0 %v4843
  %4882 = vmatprep.subr.mxu0 0.0
  %4883 = vmatpush1.msra.mxu0 %v4841
  %4884 = vmatprep.subr.mxu0 0.0
  %4885 = vmatpush2.msra.mxu0 0.0
  %4886 = vmatprep.subr.mxu0 0.0
  %4887 = vmatpush2.msra.mxu0 0.0
  %4888 = vmatprep.subr.mxu0 0.0
  %4889 = vmatpush2.msra.mxu0 0.0
  %4890 = vmatprep.subr.mxu0 0.0
  %4891 = vmatpush2.msra.mxu0 0.0
  %4892 = vmatprep.subr.mxu0 0.0
  %4893 = vmatpush2.msra.mxu0 0.0
  %4894 = vmatprep.subr.mxu0 0.0
  %4895 = vmatpush2.msra.mxu0 0.0
  %4896 = vmatprep.subr.mxu0 0.0
  %4897 = vmatpush2.msra.mxu0 0.0
  %4898 = vmatprep.subr.mxu0 0.0
  %4899 = vmatpush2.msra.mxu0 0.0
  %4900 = vmatprep.subr.mxu0 0.0
  %4901 = vmatpush2.msra.mxu0 0.0
  %4902 = vmatprep.subr.mxu0 0.0
  %4903 = vmatpush2.msra.mxu0 0.0
  %4904 = vmatprep.subr.mxu0 0.0
  %4905 = vmatpush2.msra.mxu0 0.0
  %4906 = vmatprep.subr.mxu0 0.0
  %4907 = vmatpush2.msra.mxu0 0.0
  %4908 = vmatprep.subr.mxu0 0.0
  %4909 = vmatpush2.msra.mxu0 0.0
  %4910 = vmatprep.subr.mxu0 0.0
  %4911 = vmatpush2.msra.mxu0 0.0
  %4912 = vmatprep.subr.mxu0 0.0
  %4913 = vmatpush2.msra.mxu0 0.0
  %4914 = vmatprep.subr.mxu0 0.0
  %4915 = vmatpush2.msra.mxu0 0.0
  %4916 = vmatprep.mubr.f32.mxu0 0.0
  %4917 = vmatmul.mubr.f32.gmra.mxu0 %v4847
  %v4918 = vpop.f32.mrf.mxu0
  %v4919 = vadd.f32 0.0, %v4918
  %v4920 = vpop.f32.mrf.mxu0
  %4921 = vmatprep.mubr.f32.mxu0 0.0
  %4922 = vmatmul.mubr.f32.gmra.mxu0 %v4850
  %v4923 = vpop.f32.mrf.mxu0
  %v4924 = vadd.f32 0.0, %v4923
  %v4925 = vpop.f32.mrf.mxu0
  %4926 = vdwg.mxu0
  %4929 = vrot.lane.b32.xlu0 %v4745, 8
  %v4930 = vpop.permute.xlu0 %4929
  %4931 = vrot.lane.b32.xlu0 %v4750, 8
  %v4932 = vpop.permute.xlu0 %4931
  %4937 = vrot.lane.b32.xlu0 %v4832, 16
  %v4938 = vpop.permute.xlu0 %4937
  %4939 = vrot.lane.b32.xlu0 %v4837, 16
  %v4940 = vpop.permute.xlu0 %4939
  %4945 = vrot.lane.b32.xlu0 %v4919, 24
  %v4946 = vpop.permute.xlu0 %4945
  %4947 = vrot.lane.b32.xlu0 %v4924, 24
  %v4948 = vpop.permute.xlu0 %4947
  %v4951 = vsel %vm313, %v4658, %v4930
  %v4952 = vsel %vm313, %v4663, %v4932
  %v4953 = vsel %vm680, %v4951, %v4938
  %v4954 = vsel %vm680, %v4952, %v4940
  %v4955 = vsel %vm1145, %v4953, %v4946
  %v4956 = vsel %vm1145, %v4954, %v4948
  %v4958 = vsel %vm223, %v4955, 0
  %v4961 = vsel %vm223, %v4956, 0
  %4963 = vmatprep.subr.mxu0 0.0
  %4964 = vmatpush1.msra.mxu0 0.0
  %4965 = vmatprep.subr.mxu0 0.0
  %4966 = vmatpush1.msra.mxu0 0.0
  %4967 = vmatprep.subr.mxu0 0.0
  %4968 = vmatpush1.msra.mxu0 0.0
  %4969 = vmatprep.subr.mxu0 0.0
  %4970 = vmatpush1.msra.mxu0 0.0
  %4971 = vmatprep.subr.mxu0 0.0
  %4972 = vmatpush1.msra.mxu0 0.0
  %4973 = vmatprep.subr.mxu0 0.0
  %4974 = vmatpush1.msra.mxu0 0.0
  %4975 = vmatprep.subr.mxu0 0.0
  %4976 = vmatpush1.msra.mxu0 0.0
  %4977 = vmatprep.subr.mxu0 0.0
  %4978 = vmatpush1.msra.mxu0 0.0
  %4979 = vmatprep.subr.mxu0 0.0
  %4980 = vmatpush1.msra.mxu0 0.0
  %4981 = vmatprep.subr.mxu0 0.0
  %4982 = vmatpush1.msra.mxu0 0.0
  %4983 = vmatprep.subr.mxu0 0.0
  %4984 = vmatpush1.msra.mxu0 0.0
  %4985 = vmatprep.subr.mxu0 0.0
  %4986 = vmatpush1.msra.mxu0 0.0
  %4987 = vmatprep.subr.mxu0 0.0
  %4988 = vmatpush1.msra.mxu0 %v2858
  %4989 = vmatprep.subr.mxu0 0.0
  %4990 = vmatpush1.msra.mxu0 %v2857
  %4991 = vmatprep.subr.mxu0 0.0
  %4992 = vmatpush1.msra.mxu0 %v2856
  %4993 = vmatprep.subr.mxu0 0.0
  %4994 = vmatpush1.msra.mxu0 %v2855
  %4995 = vmatprep.subr.mxu0 0.0
  %4996 = vmatpush2.msra.mxu0 0.0
  %4997 = vmatprep.subr.mxu0 0.0
  %4998 = vmatpush2.msra.mxu0 0.0
  %4999 = vmatprep.subr.mxu0 0.0
  %5000 = vmatpush2.msra.mxu0 0.0
  %5001 = vmatprep.subr.mxu0 0.0
  %5002 = vmatpush2.msra.mxu0 0.0
  %5003 = vmatprep.subr.mxu0 0.0
  %5004 = vmatpush2.msra.mxu0 0.0
  %5005 = vmatprep.subr.mxu0 0.0
  %5006 = vmatpush2.msra.mxu0 0.0
  %5007 = vmatprep.subr.mxu0 0.0
  %5008 = vmatpush2.msra.mxu0 0.0
  %5009 = vmatprep.subr.mxu0 0.0
  %5010 = vmatpush2.msra.mxu0 0.0
  %5011 = vmatprep.subr.mxu0 0.0
  %5012 = vmatpush2.msra.mxu0 0.0
  %5013 = vmatprep.subr.mxu0 0.0
  %5014 = vmatpush2.msra.mxu0 0.0
  %5015 = vmatprep.subr.mxu0 0.0
  %5016 = vmatpush2.msra.mxu0 0.0
  %5017 = vmatprep.subr.mxu0 0.0
  %5018 = vmatpush2.msra.mxu0 0.0
  %5019 = vmatprep.subr.mxu0 0.0
  %5020 = vmatpush2.msra.mxu0 0.0
  %5021 = vmatprep.subr.mxu0 0.0
  %5022 = vmatpush2.msra.mxu0 0.0
  %5023 = vmatprep.subr.mxu0 0.0
  %5024 = vmatpush2.msra.mxu0 0.0
  %5025 = vmatprep.subr.mxu0 0.0
  %5026 = vmatpush2.msra.mxu0 0.0
  %5027 = vmatprep.mubr.f32.mxu0 0.0
  %5028 = vmatmul.mubr.f32.gmra.mxu0 %v4958
  %v5029 = vpop.f32.mrf.mxu0
  %v5030 = vadd.f32 0.0, %v5029
  %v5031 = vpop.f32.mrf.mxu0
  %5032 = vmatprep.mubr.f32.mxu0 0.0
  %5033 = vmatmul.mubr.f32.gmra.mxu0 %v4961
  %v5034 = vpop.f32.mrf.mxu0
  %v5035 = vadd.f32 0.0, %v5034
  %v5036 = vpop.f32.mrf.mxu0
  %5037 = vdwg.mxu0
  %v5038 = vadd.f32 %v3944, %v5030
  %v5039 = vadd.f32 %v3945, %v5035
  %v5041 = vlaneseq
  %v5042 = vshrl.u32 %v5041, 7
  %v5043 = vsub.s32 0, %v5042
  %v5044 = vrot.slane %v2859, %v5043
  %v5046 = vadd.f32 %v5038, %v5044
  %v5047 = vadd.f32 %v5039, %v5044
  %v5048 = vsel %vm223, %v5046, 0.0
  %5049 = vadd.xlane.f32.xlu0 %v5048
  %v5050 = vpop.xlane.xlu0 %5049
  %v5051 = vsel %vm3906, %v5047, 0.0
  %5052 = vadd.xlane.f32.xlu0 %v5051
  %v5053 = vpop.xlane.xlu0 %5052
  %v5054 = vmul.f32 %v5050, %v1245
  %v5055 = vmul.f32 %v5053, %v1245
  %v5056 = vsub.f32 %v5046, %v5054
  %v5057 = vsub.f32 %v5047, %v5055
  %v5058 = vmul.f32 %v5056, %v5056
  %v5059 = vmul.f32 %v5057, %v5057
  %v5060 = vsel %vm223, %v5058, 0.0
  %5061 = vadd.xlane.f32.xlu0 %v5060
  %v5062 = vpop.xlane.xlu0 %5061
  %v5063 = vsel %vm3906, %v5059, 0.0
  %5064 = vadd.xlane.f32.xlu0 %v5063
  %v5065 = vpop.xlane.xlu0 %5064
  %v5066 = vmul.f32 %v5062, %v1245
  %v5067 = vmul.f32 %v5065, %v1245
  %v5068 = vadd.f32 %v5066, 1e-05
  %v5069 = vadd.f32 %v5067, 1e-05
  %v5070 = vrsqrt.pop %v5068
  %v5071 = vrsqrt.pop %v5069
  %v5072 = vmul.f32 %v5056, %v5070
  %v5073 = vmul.f32 %v5057, %v5071
  %v5075 = vlaneseq
  %v5076 = vshrl.u32 %v5075, 7
  %v5077 = vsub.s32 0, %v5076
  %v5078 = vrot.slane %v2860, %v5077
  %v5080 = vmul.f32 %v5072, %v5078
  %v5081 = vmul.f32 %v5073, %v5078
  %v5083 = vlaneseq
  %v5084 = vshrl.u32 %v5083, 7
  %v5085 = vsub.s32 0, %v5084
  %v5086 = vrot.slane %v2861, %v5085
  %v5088 = vadd.f32 %v5080, %v5086
  %v5089 = vadd.f32 %v5081, %v5086
  %v5091 = vlaneseq
  %v5092 = vshrl.u32 %v5091, 7
  %v5093 = vsub.s32 0, %v5092
  %v5094 = vrot.slane %v2866, %v5093
  %v5097 = vsel %vm223, %v5088, 0
  %v5100 = vsel %vm223, %v5089, 0
  %5102 = vmatprep.subr.mxu0 0.0
  %5103 = vmatpush1.msra.mxu0 0.0
  %5104 = vmatprep.subr.mxu0 0.0
  %5105 = vmatpush1.msra.mxu0 0.0
  %5106 = vmatprep.subr.mxu0 0.0
  %5107 = vmatpush1.msra.mxu0 0.0
  %5108 = vmatprep.subr.mxu0 0.0
  %5109 = vmatpush1.msra.mxu0 0.0
  %5110 = vmatprep.subr.mxu0 0.0
  %5111 = vmatpush1.msra.mxu0 0.0
  %5112 = vmatprep.subr.mxu0 0.0
  %5113 = vmatpush1.msra.mxu0 0.0
  %5114 = vmatprep.subr.mxu0 0.0
  %5115 = vmatpush1.msra.mxu0 0.0
  %5116 = vmatprep.subr.mxu0 0.0
  %5117 = vmatpush1.msra.mxu0 0.0
  %5118 = vmatprep.subr.mxu0 0.0
  %5119 = vmatpush1.msra.mxu0 0.0
  %5120 = vmatprep.subr.mxu0 0.0
  %5121 = vmatpush1.msra.mxu0 0.0
  %5122 = vmatprep.subr.mxu0 0.0
  %5123 = vmatpush1.msra.mxu0 0.0
  %5124 = vmatprep.subr.mxu0 0.0
  %5125 = vmatpush1.msra.mxu0 0.0
  %5126 = vmatprep.subr.mxu0 0.0
  %5127 = vmatpush1.msra.mxu0 %v2865
  %5128 = vmatprep.subr.mxu0 0.0
  %5129 = vmatpush1.msra.mxu0 %v2864
  %5130 = vmatprep.subr.mxu0 0.0
  %5131 = vmatpush1.msra.mxu0 %v2863
  %5132 = vmatprep.subr.mxu0 0.0
  %5133 = vmatpush1.msra.mxu0 %v2862
  %5134 = vmatprep.subr.mxu0 0.0
  %5135 = vmatpush2.msra.mxu0 0.0
  %5136 = vmatprep.subr.mxu0 0.0
  %5137 = vmatpush2.msra.mxu0 0.0
  %5138 = vmatprep.subr.mxu0 0.0
  %5139 = vmatpush2.msra.mxu0 0.0
  %5140 = vmatprep.subr.mxu0 0.0
  %5141 = vmatpush2.msra.mxu0 0.0
  %5142 = vmatprep.subr.mxu0 0.0
  %5143 = vmatpush2.msra.mxu0 0.0
  %5144 = vmatprep.subr.mxu0 0.0
  %5145 = vmatpush2.msra.mxu0 0.0
  %5146 = vmatprep.subr.mxu0 0.0
  %5147 = vmatpush2.msra.mxu0 0.0
  %5148 = vmatprep.subr.mxu0 0.0
  %5149 = vmatpush2.msra.mxu0 0.0
  %5150 = vmatprep.subr.mxu0 0.0
  %5151 = vmatpush2.msra.mxu0 0.0
  %5152 = vmatprep.subr.mxu0 0.0
  %5153 = vmatpush2.msra.mxu0 0.0
  %5154 = vmatprep.subr.mxu0 0.0
  %5155 = vmatpush2.msra.mxu0 0.0
  %5156 = vmatprep.subr.mxu0 0.0
  %5157 = vmatpush2.msra.mxu0 0.0
  %5158 = vmatprep.subr.mxu0 0.0
  %5159 = vmatpush2.msra.mxu0 0.0
  %5160 = vmatprep.subr.mxu0 0.0
  %5161 = vmatpush2.msra.mxu0 0.0
  %5162 = vmatprep.subr.mxu0 0.0
  %5163 = vmatpush2.msra.mxu0 0.0
  %5164 = vmatprep.subr.mxu0 0.0
  %5165 = vmatpush2.msra.mxu0 0.0
  %5166 = vmatprep.mubr.f32.mxu0 0.0
  %5167 = vmatmul.mubr.f32.gmra.mxu0 %v5097
  %v5168 = vpop.f32.mrf.mxu0
  %v5169 = vadd.f32 %v5094, %v5168
  %v5170 = vpop.f32.mrf.mxu0
  %5171 = vmatprep.mubr.f32.mxu0 0.0
  %5172 = vmatmul.mubr.f32.gmra.mxu0 %v5100
  %v5173 = vpop.f32.mrf.mxu0
  %v5174 = vadd.f32 %v5094, %v5173
  %v5175 = vpop.f32.mrf.mxu0
  %5176 = vdwg.mxu0
  %v5177 = vmax.f32 %v5169, 0.0
  %v5178 = vmax.f32 %v5174, 0.0
  %v5180 = vsel %vm1371, %v5177, 0
  %v5183 = vsel %vm1371, %v5178, 0
  %5185 = vmatprep.subr.mxu0 0.0
  %5186 = vmatpush1.msra.mxu0 0.0
  %5187 = vmatprep.subr.mxu0 0.0
  %5188 = vmatpush1.msra.mxu0 0.0
  %5189 = vmatprep.subr.mxu0 0.0
  %5190 = vmatpush1.msra.mxu0 0.0
  %5191 = vmatprep.subr.mxu0 0.0
  %5192 = vmatpush1.msra.mxu0 0.0
  %5193 = vmatprep.subr.mxu0 0.0
  %5194 = vmatpush1.msra.mxu0 0.0
  %5195 = vmatprep.subr.mxu0 0.0
  %5196 = vmatpush1.msra.mxu0 0.0
  %5197 = vmatprep.subr.mxu0 0.0
  %5198 = vmatpush1.msra.mxu0 0.0
  %5199 = vmatprep.subr.mxu0 0.0
  %5200 = vmatpush1.msra.mxu0 0.0
  %5201 = vmatprep.subr.mxu0 0.0
  %5202 = vmatpush1.msra.mxu0 %v2874
  %5203 = vmatprep.subr.mxu0 0.0
  %5204 = vmatpush1.msra.mxu0 %v2873
  %5205 = vmatprep.subr.mxu0 0.0
  %5206 = vmatpush1.msra.mxu0 %v2872
  %5207 = vmatprep.subr.mxu0 0.0
  %5208 = vmatpush1.msra.mxu0 %v2871
  %5209 = vmatprep.subr.mxu0 0.0
  %5210 = vmatpush1.msra.mxu0 %v2870
  %5211 = vmatprep.subr.mxu0 0.0
  %5212 = vmatpush1.msra.mxu0 %v2869
  %5213 = vmatprep.subr.mxu0 0.0
  %5214 = vmatpush1.msra.mxu0 %v2868
  %5215 = vmatprep.subr.mxu0 0.0
  %5216 = vmatpush1.msra.mxu0 %v2867
  %5217 = vmatprep.subr.mxu0 0.0
  %5218 = vmatpush2.msra.mxu0 0.0
  %5219 = vmatprep.subr.mxu0 0.0
  %5220 = vmatpush2.msra.mxu0 0.0
  %5221 = vmatprep.subr.mxu0 0.0
  %5222 = vmatpush2.msra.mxu0 0.0
  %5223 = vmatprep.subr.mxu0 0.0
  %5224 = vmatpush2.msra.mxu0 0.0
  %5225 = vmatprep.subr.mxu0 0.0
  %5226 = vmatpush2.msra.mxu0 0.0
  %5227 = vmatprep.subr.mxu0 0.0
  %5228 = vmatpush2.msra.mxu0 0.0
  %5229 = vmatprep.subr.mxu0 0.0
  %5230 = vmatpush2.msra.mxu0 0.0
  %5231 = vmatprep.subr.mxu0 0.0
  %5232 = vmatpush2.msra.mxu0 0.0
  %5233 = vmatprep.subr.mxu0 0.0
  %5234 = vmatpush2.msra.mxu0 0.0
  %5235 = vmatprep.subr.mxu0 0.0
  %5236 = vmatpush2.msra.mxu0 0.0
  %5237 = vmatprep.subr.mxu0 0.0
  %5238 = vmatpush2.msra.mxu0 0.0
  %5239 = vmatprep.subr.mxu0 0.0
  %5240 = vmatpush2.msra.mxu0 0.0
  %5241 = vmatprep.subr.mxu0 0.0
  %5242 = vmatpush2.msra.mxu0 0.0
  %5243 = vmatprep.subr.mxu0 0.0
  %5244 = vmatpush2.msra.mxu0 0.0
  %5245 = vmatprep.subr.mxu0 0.0
  %5246 = vmatpush2.msra.mxu0 0.0
  %5247 = vmatprep.subr.mxu0 0.0
  %5248 = vmatpush2.msra.mxu0 0.0
  %5249 = vmatprep.mubr.f32.mxu0 0.0
  %5250 = vmatmul.mubr.f32.gmra.mxu0 %v5180
  %v5251 = vpop.f32.mrf.mxu0
  %v5252 = vadd.f32 0.0, %v5251
  %v5253 = vpop.f32.mrf.mxu0
  %5254 = vmatprep.mubr.f32.mxu0 0.0
  %5255 = vmatmul.mubr.f32.gmra.mxu0 %v5183
  %v5256 = vpop.f32.mrf.mxu0
  %v5257 = vadd.f32 0.0, %v5256
  %v5258 = vpop.f32.mrf.mxu0
  %5259 = vdwg.mxu0
  %v5260 = vadd.f32 %v5088, %v5252
  %v5261 = vadd.f32 %v5089, %v5257
  %v5263 = vlaneseq
  %v5264 = vshrl.u32 %v5263, 7
  %v5265 = vsub.s32 0, %v5264
  %v5266 = vrot.slane %v2875, %v5265
  %v5268 = vadd.f32 %v5260, %v5266
  %v5269 = vadd.f32 %v5261, %v5266
  %v5270 = vsel %vm223, %v5268, 0.0
  %5271 = vadd.xlane.f32.xlu0 %v5270
  %v5272 = vpop.xlane.xlu0 %5271
  %v5273 = vsel %vm3906, %v5269, 0.0
  %5274 = vadd.xlane.f32.xlu0 %v5273
  %v5275 = vpop.xlane.xlu0 %5274
  %v5276 = vmul.f32 %v5272, %v1245
  %v5277 = vmul.f32 %v5275, %v1245
  %v5278 = vsub.f32 %v5268, %v5276
  %v5279 = vsub.f32 %v5269, %v5277
  %v5280 = vmul.f32 %v5278, %v5278
  %v5281 = vmul.f32 %v5279, %v5279
  %v5282 = vsel %vm223, %v5280, 0.0
  %5283 = vadd.xlane.f32.xlu0 %v5282
  %v5284 = vpop.xlane.xlu0 %5283
  %v5285 = vsel %vm3906, %v5281, 0.0
  %5286 = vadd.xlane.f32.xlu0 %v5285
  %v5287 = vpop.xlane.xlu0 %5286
  %v5288 = vmul.f32 %v5284, %v1245
  %v5289 = vmul.f32 %v5287, %v1245
  %v5290 = vadd.f32 %v5288, 1e-05
  %v5291 = vadd.f32 %v5289, 1e-05
  %v5292 = vrsqrt.pop %v5290
  %v5293 = vrsqrt.pop %v5291
  %v5294 = vmul.f32 %v5278, %v5292
  %v5295 = vmul.f32 %v5279, %v5293
  %v5297 = vlaneseq
  %v5298 = vshrl.u32 %v5297, 7
  %v5299 = vsub.s32 0, %v5298
  %v5300 = vrot.slane %v2876, %v5299
  %v5302 = vmul.f32 %v5294, %v5300
  %v5303 = vmul.f32 %v5295, %v5300
  %v5305 = vlaneseq
  %v5306 = vshrl.u32 %v5305, 7
  %v5307 = vsub.s32 0, %v5306
  %v5308 = vrot.slane %v2877, %v5307
  %v5310 = vadd.f32 %v5302, %v5308
  %v5311 = vadd.f32 %v5303, %v5308
  %s5312 = scalar_lea.vmem %s35, 32
  %v5313 = vld [vmem:[%s5312] sm:$0xff]
  %v5314 = vld [vmem:[%s5312 + $0x8] sm:$0xff]
  %v5315 = vld [vmem:[%s5312 + $0x10] sm:$0xff]
  %v5316 = vld [vmem:[%s5312 + $0x18] sm:$0xff]
  %s5317 = scalar_lea.vmem %s37, 1
  %v5318 = vld [vmem:[%s5317] sm:$0x1]
  %s5319 = scalar_lea.vmem %s39, 32
  %v5320 = vld [vmem:[%s5319] sm:$0xff]
  %v5321 = vld [vmem:[%s5319 + $0x8] sm:$0xff]
  %v5322 = vld [vmem:[%s5319 + $0x10] sm:$0xff]
  %v5323 = vld [vmem:[%s5319 + $0x18] sm:$0xff]
  %s5324 = scalar_lea.vmem %s41, 1
  %v5325 = vld [vmem:[%s5324] sm:$0x1]
  %s5326 = scalar_lea.vmem %s43, 1
  %v5327 = vld [vmem:[%s5326] sm:$0x1]
  %s5328 = scalar_lea.vmem %s45, 1
  %v5329 = vld [vmem:[%s5328] sm:$0x1]
  %s5330 = scalar_lea.vmem %s47, 32
  %v5331 = vld [vmem:[%s5330] sm:$0xff]
  %v5332 = vld [vmem:[%s5330 + $0x8] sm:$0xff]
  %v5333 = vld [vmem:[%s5330 + $0x10] sm:$0xff]
  %v5334 = vld [vmem:[%s5330 + $0x18] sm:$0xff]
  %s5335 = scalar_lea.vmem %s49, 1
  %v5336 = vld [vmem:[%s5335] sm:$0x1]
  %s5337 = scalar_lea.vmem %s51, 32
  %v5338 = vld [vmem:[%s5337] sm:$0xff]
  %v5339 = vld [vmem:[%s5337 + $0x8] sm:$0xff]
  %v5340 = vld [vmem:[%s5337 + $0x10] sm:$0xff]
  %v5341 = vld [vmem:[%s5337 + $0x18] sm:$0xff]
  %s5342 = scalar_lea.vmem %s53, 1
  %v5343 = vld [vmem:[%s5342] sm:$0x1]
  %s5344 = scalar_lea.vmem %s55, 32
  %v5345 = vld [vmem:[%s5344] sm:$0xff]
  %v5346 = vld [vmem:[%s5344 + $0x8] sm:$0xff]
  %v5347 = vld [vmem:[%s5344 + $0x10] sm:$0xff]
  %v5348 = vld [vmem:[%s5344 + $0x18] sm:$0xff]
  %s5349 = scalar_lea.vmem %s57, 1
  %v5350 = vld [vmem:[%s5349] sm:$0x1]
  %s5351 = scalar_lea.vmem %s59, 1
  %v5352 = vld [vmem:[%s5351] sm:$0x1]
  %s5353 = scalar_lea.vmem %s61, 1
  %v5354 = vld [vmem:[%s5353] sm:$0x1]
  %s5355 = scalar_lea.vmem %s63, 32
  %v5356 = vld [vmem:[%s5355] sm:$0xff]
  %v5357 = vld [vmem:[%s5355 + $0x8] sm:$0xff]
  %v5358 = vld [vmem:[%s5355 + $0x10] sm:$0xff]
  %v5359 = vld [vmem:[%s5355 + $0x18] sm:$0xff]
  %s5360 = scalar_lea.vmem %s65, 1
  %v5361 = vld [vmem:[%s5360] sm:$0x1]
  %s5362 = scalar_lea.vmem %s67, 64
  %v5363 = vld [vmem:[%s5362] sm:$0xff]
  %v5364 = vld [vmem:[%s5362 + $0x8] sm:$0xff]
  %v5365 = vld [vmem:[%s5362 + $0x10] sm:$0xff]
  %v5366 = vld [vmem:[%s5362 + $0x18] sm:$0xff]
  %v5367 = vld [vmem:[%s5362 + $0x20] sm:$0xff]
  %v5368 = vld [vmem:[%s5362 + $0x28] sm:$0xff]
  %v5369 = vld [vmem:[%s5362 + $0x30] sm:$0xff]
  %v5370 = vld [vmem:[%s5362 + $0x38] sm:$0xff]
  %s5371 = scalar_lea.vmem %s69, 1
  %v5372 = vld [vmem:[%s5371] sm:$0x1]
  %s5373 = scalar_lea.vmem %s71, 1
  %v5374 = vld [vmem:[%s5373] sm:$0x1]
  %s5375 = scalar_lea.vmem %s73, 1
  %v5376 = vld [vmem:[%s5375] sm:$0x1]
  %v5378 = vlaneseq
  %v5379 = vshrl.u32 %v5378, 7
  %v5380 = vsub.s32 0, %v5379
  %v5381 = vrot.slane %v5318, %v5380
  %v5384 = vsel %vm223, %v5310, 0
  %v5387 = vsel %vm223, %v5311, 0
  %5389 = vmatprep.subr.mxu0 0.0
  %5390 = vmatpush1.msra.mxu0 0.0
  %5391 = vmatprep.subr.mxu0 0.0
  %5392 = vmatpush1.msra.mxu0 0.0
  %5393 = vmatprep.subr.mxu0 0.0
  %5394 = vmatpush1.msra.mxu0 0.0
  %5395 = vmatprep.subr.mxu0 0.0
  %5396 = vmatpush1.msra.mxu0 0.0
  %5397 = vmatprep.subr.mxu0 0.0
  %5398 = vmatpush1.msra.mxu0 0.0
  %5399 = vmatprep.subr.mxu0 0.0
  %5400 = vmatpush1.msra.mxu0 0.0
  %5401 = vmatprep.subr.mxu0 0.0
  %5402 = vmatpush1.msra.mxu0 0.0
  %5403 = vmatprep.subr.mxu0 0.0
  %5404 = vmatpush1.msra.mxu0 0.0
  %5405 = vmatprep.subr.mxu0 0.0
  %5406 = vmatpush1.msra.mxu0 0.0
  %5407 = vmatprep.subr.mxu0 0.0
  %5408 = vmatpush1.msra.mxu0 0.0
  %5409 = vmatprep.subr.mxu0 0.0
  %5410 = vmatpush1.msra.mxu0 0.0
  %5411 = vmatprep.subr.mxu0 0.0
  %5412 = vmatpush1.msra.mxu0 0.0
  %5413 = vmatprep.subr.mxu0 0.0
  %5414 = vmatpush1.msra.mxu0 %v5316
  %5415 = vmatprep.subr.mxu0 0.0
  %5416 = vmatpush1.msra.mxu0 %v5315
  %5417 = vmatprep.subr.mxu0 0.0
  %5418 = vmatpush1.msra.mxu0 %v5314
  %5419 = vmatprep.subr.mxu0 0.0
  %5420 = vmatpush1.msra.mxu0 %v5313
  %5421 = vmatprep.subr.mxu0 0.0
  %5422 = vmatpush2.msra.mxu0 0.0
  %5423 = vmatprep.subr.mxu0 0.0
  %5424 = vmatpush2.msra.mxu0 0.0
  %5425 = vmatprep.subr.mxu0 0.0
  %5426 = vmatpush2.msra.mxu0 0.0
  %5427 = vmatprep.subr.mxu0 0.0
  %5428 = vmatpush2.msra.mxu0 0.0
  %5429 = vmatprep.subr.mxu0 0.0
  %5430 = vmatpush2.msra.mxu0 0.0
  %5431 = vmatprep.subr.mxu0 0.0
  %5432 = vmatpush2.msra.mxu0 0.0
  %5433 = vmatprep.subr.mxu0 0.0
  %5434 = vmatpush2.msra.mxu0 0.0
  %5435 = vmatprep.subr.mxu0 0.0
  %5436 = vmatpush2.msra.mxu0 0.0
  %5437 = vmatprep.subr.mxu0 0.0
  %5438 = vmatpush2.msra.mxu0 0.0
  %5439 = vmatprep.subr.mxu0 0.0
  %5440 = vmatpush2.msra.mxu0 0.0
  %5441 = vmatprep.subr.mxu0 0.0
  %5442 = vmatpush2.msra.mxu0 0.0
  %5443 = vmatprep.subr.mxu0 0.0
  %5444 = vmatpush2.msra.mxu0 0.0
  %5445 = vmatprep.subr.mxu0 0.0
  %5446 = vmatpush2.msra.mxu0 0.0
  %5447 = vmatprep.subr.mxu0 0.0
  %5448 = vmatpush2.msra.mxu0 0.0
  %5449 = vmatprep.subr.mxu0 0.0
  %5450 = vmatpush2.msra.mxu0 0.0
  %5451 = vmatprep.subr.mxu0 0.0
  %5452 = vmatpush2.msra.mxu0 0.0
  %5453 = vmatprep.mubr.f32.mxu0 0.0
  %5454 = vmatmul.mubr.f32.gmra.mxu0 %v5384
  %v5455 = vpop.f32.mrf.mxu0
  %v5456 = vadd.f32 %v5381, %v5455
  %v5457 = vpop.f32.mrf.mxu0
  %5458 = vmatprep.mubr.f32.mxu0 0.0
  %5459 = vmatmul.mubr.f32.gmra.mxu0 %v5387
  %v5460 = vpop.f32.mrf.mxu0
  %v5461 = vadd.f32 %v5381, %v5460
  %v5462 = vpop.f32.mrf.mxu0
  %5463 = vdwg.mxu0
  %v5464 = vmul.f32 %v5456, 0.35355338
  %v5465 = vmul.f32 %v5461, 0.35355338
  %5468 = vrot.lane.b32.xlu0 %v5456, 96
  %v5469 = vpop.permute.xlu0 %5468
  %5470 = vrot.lane.b32.xlu0 %v5461, 96
  %v5471 = vpop.permute.xlu0 %5470
  %v5473 = vsel %vm313, %v5464, 0
  %v5476 = vsel %vm313, %v5465, 0
  %v5478 = vsel %vm313, %v5469, 0
  %v5480 = vsel %vm313, %v5471, 0
  %5482 = vmatprep.subr.mxu0 0.0
  %5483 = vmatpush1.xpose.msra.mxu0 0.0
  %5484 = vmatprep.subr.mxu0 0.0
  %5485 = vmatpush1.xpose.msra.mxu0 0.0
  %5486 = vmatprep.subr.mxu0 0.0
  %5487 = vmatpush1.xpose.msra.mxu0 0.0
  %5488 = vmatprep.subr.mxu0 0.0
  %5489 = vmatpush1.xpose.msra.mxu0 0.0
  %5490 = vmatprep.subr.mxu0 0.0
  %5491 = vmatpush1.xpose.msra.mxu0 0.0
  %5492 = vmatprep.subr.mxu0 0.0
  %5493 = vmatpush1.xpose.msra.mxu0 0.0
  %5494 = vmatprep.subr.mxu0 0.0
  %5495 = vmatpush1.xpose.msra.mxu0 0.0
  %5496 = vmatprep.subr.mxu0 0.0
  %5497 = vmatpush1.xpose.msra.mxu0 0.0
  %5498 = vmatprep.subr.mxu0 0.0
  %5499 = vmatpush1.xpose.msra.mxu0 0.0
  %5500 = vmatprep.subr.mxu0 0.0
  %5501 = vmatpush1.xpose.msra.mxu0 0.0
  %5502 = vmatprep.subr.mxu0 0.0
  %5503 = vmatpush1.xpose.msra.mxu0 0.0
  %5504 = vmatprep.subr.mxu0 0.0
  %5505 = vmatpush1.xpose.msra.mxu0 0.0
  %5506 = vmatprep.subr.mxu0 0.0
  %5507 = vmatpush1.xpose.msra.mxu0 0.0
  %5508 = vmatprep.subr.mxu0 0.0
  %5509 = vmatpush1.xpose.msra.mxu0 0.0
  %5510 = vmatprep.subr.mxu0 0.0
  %5511 = vmatpush1.xpose.msra.mxu0 %v5480
  %5512 = vmatprep.subr.mxu0 0.0
  %5513 = vmatpush1.xpose.msra.mxu0 %v5478
  %5514 = vmatprep.subr.mxu0 0.0
  %5515 = vmatpush2.xpose.msra.mxu0 0.0
  %5516 = vmatprep.subr.mxu0 0.0
  %5517 = vmatpush2.xpose.msra.mxu0 0.0
  %5518 = vmatprep.subr.mxu0 0.0
  %5519 = vmatpush2.xpose.msra.mxu0 0.0
  %5520 = vmatprep.subr.mxu0 0.0
  %5521 = vmatpush2.xpose.msra.mxu0 0.0
  %5522 = vmatprep.subr.mxu0 0.0
  %5523 = vmatpush2.xpose.msra.mxu0 0.0
  %5524 = vmatprep.subr.mxu0 0.0
  %5525 = vmatpush2.xpose.msra.mxu0 0.0
  %5526 = vmatprep.subr.mxu0 0.0
  %5527 = vmatpush2.xpose.msra.mxu0 0.0
  %5528 = vmatprep.subr.mxu0 0.0
  %5529 = vmatpush2.xpose.msra.mxu0 0.0
  %5530 = vmatprep.subr.mxu0 0.0
  %5531 = vmatpush2.xpose.msra.mxu0 0.0
  %5532 = vmatprep.subr.mxu0 0.0
  %5533 = vmatpush2.xpose.msra.mxu0 0.0
  %5534 = vmatprep.subr.mxu0 0.0
  %5535 = vmatpush2.xpose.msra.mxu0 0.0
  %5536 = vmatprep.subr.mxu0 0.0
  %5537 = vmatpush2.xpose.msra.mxu0 0.0
  %5538 = vmatprep.subr.mxu0 0.0
  %5539 = vmatpush2.xpose.msra.mxu0 0.0
  %5540 = vmatprep.subr.mxu0 0.0
  %5541 = vmatpush2.xpose.msra.mxu0 0.0
  %5542 = vmatprep.subr.mxu0 0.0
  %5543 = vmatpush2.xpose.msra.mxu0 0.0
  %5544 = vmatprep.subr.mxu0 0.0
  %5545 = vmatpush2.xpose.msra.mxu0 0.0
  %5546 = vmatprep.mubr.f32.mxu0 0.0
  %5547 = vmatmul.mubr.f32.gmra.mxu0 %v5473
  %v5548 = vpop.f32.mrf.mxu0
  %v5549 = vadd.f32 0.0, %v5548
  %v5550 = vpop.f32.mrf.mxu0
  %5551 = vmatprep.mubr.f32.mxu0 0.0
  %5552 = vmatmul.mubr.f32.gmra.mxu0 %v5476
  %v5553 = vpop.f32.mrf.mxu0
  %v5554 = vadd.f32 0.0, %v5553
  %v5555 = vpop.f32.mrf.mxu0
  %5556 = vdwg.mxu0
  %5557 = vrot.lane.b32.xlu0 %v5464, 120
  %v5558 = vpop.permute.xlu0 %5557
  %5559 = vrot.lane.b32.xlu0 %v5465, 120
  %v5560 = vpop.permute.xlu0 %5559
  %5561 = vrot.lane.b32.xlu0 %v5456, 88
  %v5562 = vpop.permute.xlu0 %5561
  %5563 = vrot.lane.b32.xlu0 %v5461, 88
  %v5564 = vpop.permute.xlu0 %5563
  %v5565 = vsel %vm313, %v5558, 0
  %v5567 = vsel %vm313, %v5560, 0
  %v5569 = vsel %vm313, %v5562, 0
  %v5571 = vsel %vm313, %v5564, 0
  %5573 = vmatprep.subr.mxu0 0.0
  %5574 = vmatpush1.xpose.msra.mxu0 0.0
  %5575 = vmatprep.subr.mxu0 0.0
  %5576 = vmatpush1.xpose.msra.mxu0 0.0
  %5577 = vmatprep.subr.mxu0 0.0
  %5578 = vmatpush1.xpose.msra.mxu0 0.0
  %5579 = vmatprep.subr.mxu0 0.0
  %5580 = vmatpush1.xpose.msra.mxu0 0.0
  %5581 = vmatprep.subr.mxu0 0.0
  %5582 = vmatpush1.xpose.msra.mxu0 0.0
  %5583 = vmatprep.subr.mxu0 0.0
  %5584 = vmatpush1.xpose.msra.mxu0 0.0
  %5585 = vmatprep.subr.mxu0 0.0
  %5586 = vmatpush1.xpose.msra.mxu0 0.0
  %5587 = vmatprep.subr.mxu0 0.0
  %5588 = vmatpush1.xpose.msra.mxu0 0.0
  %5589 = vmatprep.subr.mxu0 0.0
  %5590 = vmatpush1.xpose.msra.mxu0 0.0
  %5591 = vmatprep.subr.mxu0 0.0
  %5592 = vmatpush1.xpose.msra.mxu0 0.0
  %5593 = vmatprep.subr.mxu0 0.0
  %5594 = vmatpush1.xpose.msra.mxu0 0.0
  %5595 = vmatprep.subr.mxu0 0.0
  %5596 = vmatpush1.xpose.msra.mxu0 0.0
  %5597 = vmatprep.subr.mxu0 0.0
  %5598 = vmatpush1.xpose.msra.mxu0 0.0
  %5599 = vmatprep.subr.mxu0 0.0
  %5600 = vmatpush1.xpose.msra.mxu0 0.0
  %5601 = vmatprep.subr.mxu0 0.0
  %5602 = vmatpush1.xpose.msra.mxu0 %v5571
  %5603 = vmatprep.subr.mxu0 0.0
  %5604 = vmatpush1.xpose.msra.mxu0 %v5569
  %5605 = vmatprep.subr.mxu0 0.0
  %5606 = vmatpush2.xpose.msra.mxu0 0.0
  %5607 = vmatprep.subr.mxu0 0.0
  %5608 = vmatpush2.xpose.msra.mxu0 0.0
  %5609 = vmatprep.subr.mxu0 0.0
  %5610 = vmatpush2.xpose.msra.mxu0 0.0
  %5611 = vmatprep.subr.mxu0 0.0
  %5612 = vmatpush2.xpose.msra.mxu0 0.0
  %5613 = vmatprep.subr.mxu0 0.0
  %5614 = vmatpush2.xpose.msra.mxu0 0.0
  %5615 = vmatprep.subr.mxu0 0.0
  %5616 = vmatpush2.xpose.msra.mxu0 0.0
  %5617 = vmatprep.subr.mxu0 0.0
  %5618 = vmatpush2.xpose.msra.mxu0 0.0
  %5619 = vmatprep.subr.mxu0 0.0
  %5620 = vmatpush2.xpose.msra.mxu0 0.0
  %5621 = vmatprep.subr.mxu0 0.0
  %5622 = vmatpush2.xpose.msra.mxu0 0.0
  %5623 = vmatprep.subr.mxu0 0.0
  %5624 = vmatpush2.xpose.msra.mxu0 0.0
  %5625 = vmatprep.subr.mxu0 0.0
  %5626 = vmatpush2.xpose.msra.mxu0 0.0
  %5627 = vmatprep.subr.mxu0 0.0
  %5628 = vmatpush2.xpose.msra.mxu0 0.0
  %5629 = vmatprep.subr.mxu0 0.0
  %5630 = vmatpush2.xpose.msra.mxu0 0.0
  %5631 = vmatprep.subr.mxu0 0.0
  %5632 = vmatpush2.xpose.msra.mxu0 0.0
  %5633 = vmatprep.subr.mxu0 0.0
  %5634 = vmatpush2.xpose.msra.mxu0 0.0
  %5635 = vmatprep.subr.mxu0 0.0
  %5636 = vmatpush2.xpose.msra.mxu0 0.0
  %5637 = vmatprep.mubr.f32.mxu0 0.0
  %5638 = vmatmul.mubr.f32.gmra.mxu0 %v5565
  %v5639 = vpop.f32.mrf.mxu0
  %v5640 = vadd.f32 0.0, %v5639
  %v5641 = vpop.f32.mrf.mxu0
  %5642 = vmatprep.mubr.f32.mxu0 0.0
  %5643 = vmatmul.mubr.f32.gmra.mxu0 %v5567
  %v5644 = vpop.f32.mrf.mxu0
  %v5645 = vadd.f32 0.0, %v5644
  %v5646 = vpop.f32.mrf.mxu0
  %5647 = vdwg.mxu0
  %5648 = vrot.lane.b32.xlu0 %v5464, 112
  %v5649 = vpop.permute.xlu0 %5648
  %5650 = vrot.lane.b32.xlu0 %v5465, 112
  %v5651 = vpop.permute.xlu0 %5650
  %5652 = vrot.lane.b32.xlu0 %v5456, 80
  %v5653 = vpop.permute.xlu0 %5652
  %5654 = vrot.lane.b32.xlu0 %v5461, 80
  %v5655 = vpop.permute.xlu0 %5654
  %v5656 = vsel %vm313, %v5649, 0
  %v5658 = vsel %vm313, %v5651, 0
  %v5660 = vsel %vm313, %v5653, 0
  %v5662 = vsel %vm313, %v5655, 0
  %5664 = vmatprep.subr.mxu0 0.0
  %5665 = vmatpush1.xpose.msra.mxu0 0.0
  %5666 = vmatprep.subr.mxu0 0.0
  %5667 = vmatpush1.xpose.msra.mxu0 0.0
  %5668 = vmatprep.subr.mxu0 0.0
  %5669 = vmatpush1.xpose.msra.mxu0 0.0
  %5670 = vmatprep.subr.mxu0 0.0
  %5671 = vmatpush1.xpose.msra.mxu0 0.0
  %5672 = vmatprep.subr.mxu0 0.0
  %5673 = vmatpush1.xpose.msra.mxu0 0.0
  %5674 = vmatprep.subr.mxu0 0.0
  %5675 = vmatpush1.xpose.msra.mxu0 0.0
  %5676 = vmatprep.subr.mxu0 0.0
  %5677 = vmatpush1.xpose.msra.mxu0 0.0
  %5678 = vmatprep.subr.mxu0 0.0
  %5679 = vmatpush1.xpose.msra.mxu0 0.0
  %5680 = vmatprep.subr.mxu0 0.0
  %5681 = vmatpush1.xpose.msra.mxu0 0.0
  %5682 = vmatprep.subr.mxu0 0.0
  %5683 = vmatpush1.xpose.msra.mxu0 0.0
  %5684 = vmatprep.subr.mxu0 0.0
  %5685 = vmatpush1.xpose.msra.mxu0 0.0
  %5686 = vmatprep.subr.mxu0 0.0
  %5687 = vmatpush1.xpose.msra.mxu0 0.0
  %5688 = vmatprep.subr.mxu0 0.0
  %5689 = vmatpush1.xpose.msra.mxu0 0.0
  %5690 = vmatprep.subr.mxu0 0.0
  %5691 = vmatpush1.xpose.msra.mxu0 0.0
  %5692 = vmatprep.subr.mxu0 0.0
  %5693 = vmatpush1.xpose.msra.mxu0 %v5662
  %5694 = vmatprep.subr.mxu0 0.0
  %5695 = vmatpush1.xpose.msra.mxu0 %v5660
  %5696 = vmatprep.subr.mxu0 0.0
  %5697 = vmatpush2.xpose.msra.mxu0 0.0
  %5698 = vmatprep.subr.mxu0 0.0
  %5699 = vmatpush2.xpose.msra.mxu0 0.0
  %5700 = vmatprep.subr.mxu0 0.0
  %5701 = vmatpush2.xpose.msra.mxu0 0.0
  %5702 = vmatprep.subr.mxu0 0.0
  %5703 = vmatpush2.xpose.msra.mxu0 0.0
  %5704 = vmatprep.subr.mxu0 0.0
  %5705 = vmatpush2.xpose.msra.mxu0 0.0
  %5706 = vmatprep.subr.mxu0 0.0
  %5707 = vmatpush2.xpose.msra.mxu0 0.0
  %5708 = vmatprep.subr.mxu0 0.0
  %5709 = vmatpush2.xpose.msra.mxu0 0.0
  %5710 = vmatprep.subr.mxu0 0.0
  %5711 = vmatpush2.xpose.msra.mxu0 0.0
  %5712 = vmatprep.subr.mxu0 0.0
  %5713 = vmatpush2.xpose.msra.mxu0 0.0
  %5714 = vmatprep.subr.mxu0 0.0
  %5715 = vmatpush2.xpose.msra.mxu0 0.0
  %5716 = vmatprep.subr.mxu0 0.0
  %5717 = vmatpush2.xpose.msra.mxu0 0.0
  %5718 = vmatprep.subr.mxu0 0.0
  %5719 = vmatpush2.xpose.msra.mxu0 0.0
  %5720 = vmatprep.subr.mxu0 0.0
  %5721 = vmatpush2.xpose.msra.mxu0 0.0
  %5722 = vmatprep.subr.mxu0 0.0
  %5723 = vmatpush2.xpose.msra.mxu0 0.0
  %5724 = vmatprep.subr.mxu0 0.0
  %5725 = vmatpush2.xpose.msra.mxu0 0.0
  %5726 = vmatprep.subr.mxu0 0.0
  %5727 = vmatpush2.xpose.msra.mxu0 0.0
  %5728 = vmatprep.mubr.f32.mxu0 0.0
  %5729 = vmatmul.mubr.f32.gmra.mxu0 %v5656
  %v5730 = vpop.f32.mrf.mxu0
  %v5731 = vadd.f32 0.0, %v5730
  %v5732 = vpop.f32.mrf.mxu0
  %5733 = vmatprep.mubr.f32.mxu0 0.0
  %5734 = vmatmul.mubr.f32.gmra.mxu0 %v5658
  %v5735 = vpop.f32.mrf.mxu0
  %v5736 = vadd.f32 0.0, %v5735
  %v5737 = vpop.f32.mrf.mxu0
  %5738 = vdwg.mxu0
  %5739 = vrot.lane.b32.xlu0 %v5464, 104
  %v5740 = vpop.permute.xlu0 %5739
  %5741 = vrot.lane.b32.xlu0 %v5465, 104
  %v5742 = vpop.permute.xlu0 %5741
  %5743 = vrot.lane.b32.xlu0 %v5456, 72
  %v5744 = vpop.permute.xlu0 %5743
  %5745 = vrot.lane.b32.xlu0 %v5461, 72
  %v5746 = vpop.permute.xlu0 %5745
  %v5747 = vsel %vm313, %v5740, 0
  %v5749 = vsel %vm313, %v5742, 0
  %v5751 = vsel %vm313, %v5744, 0
  %v5753 = vsel %vm313, %v5746, 0
  %5755 = vmatprep.subr.mxu0 0.0
  %5756 = vmatpush1.xpose.msra.mxu0 0.0
  %5757 = vmatprep.subr.mxu0 0.0
  %5758 = vmatpush1.xpose.msra.mxu0 0.0
  %5759 = vmatprep.subr.mxu0 0.0
  %5760 = vmatpush1.xpose.msra.mxu0 0.0
  %5761 = vmatprep.subr.mxu0 0.0
  %5762 = vmatpush1.xpose.msra.mxu0 0.0
  %5763 = vmatprep.subr.mxu0 0.0
  %5764 = vmatpush1.xpose.msra.mxu0 0.0
  %5765 = vmatprep.subr.mxu0 0.0
  %5766 = vmatpush1.xpose.msra.mxu0 0.0
  %5767 = vmatprep.subr.mxu0 0.0
  %5768 = vmatpush1.xpose.msra.mxu0 0.0
  %5769 = vmatprep.subr.mxu0 0.0
  %5770 = vmatpush1.xpose.msra.mxu0 0.0
  %5771 = vmatprep.subr.mxu0 0.0
  %5772 = vmatpush1.xpose.msra.mxu0 0.0
  %5773 = vmatprep.subr.mxu0 0.0
  %5774 = vmatpush1.xpose.msra.mxu0 0.0
  %5775 = vmatprep.subr.mxu0 0.0
  %5776 = vmatpush1.xpose.msra.mxu0 0.0
  %5777 = vmatprep.subr.mxu0 0.0
  %5778 = vmatpush1.xpose.msra.mxu0 0.0
  %5779 = vmatprep.subr.mxu0 0.0
  %5780 = vmatpush1.xpose.msra.mxu0 0.0
  %5781 = vmatprep.subr.mxu0 0.0
  %5782 = vmatpush1.xpose.msra.mxu0 0.0
  %5783 = vmatprep.subr.mxu0 0.0
  %5784 = vmatpush1.xpose.msra.mxu0 %v5753
  %5785 = vmatprep.subr.mxu0 0.0
  %5786 = vmatpush1.xpose.msra.mxu0 %v5751
  %5787 = vmatprep.subr.mxu0 0.0
  %5788 = vmatpush2.xpose.msra.mxu0 0.0
  %5789 = vmatprep.subr.mxu0 0.0
  %5790 = vmatpush2.xpose.msra.mxu0 0.0
  %5791 = vmatprep.subr.mxu0 0.0
  %5792 = vmatpush2.xpose.msra.mxu0 0.0
  %5793 = vmatprep.subr.mxu0 0.0
  %5794 = vmatpush2.xpose.msra.mxu0 0.0
  %5795 = vmatprep.subr.mxu0 0.0
  %5796 = vmatpush2.xpose.msra.mxu0 0.0
  %5797 = vmatprep.subr.mxu0 0.0
  %5798 = vmatpush2.xpose.msra.mxu0 0.0
  %5799 = vmatprep.subr.mxu0 0.0
  %5800 = vmatpush2.xpose.msra.mxu0 0.0
  %5801 = vmatprep.subr.mxu0 0.0
  %5802 = vmatpush2.xpose.msra.mxu0 0.0
  %5803 = vmatprep.subr.mxu0 0.0
  %5804 = vmatpush2.xpose.msra.mxu0 0.0
  %5805 = vmatprep.subr.mxu0 0.0
  %5806 = vmatpush2.xpose.msra.mxu0 0.0
  %5807 = vmatprep.subr.mxu0 0.0
  %5808 = vmatpush2.xpose.msra.mxu0 0.0
  %5809 = vmatprep.subr.mxu0 0.0
  %5810 = vmatpush2.xpose.msra.mxu0 0.0
  %5811 = vmatprep.subr.mxu0 0.0
  %5812 = vmatpush2.xpose.msra.mxu0 0.0
  %5813 = vmatprep.subr.mxu0 0.0
  %5814 = vmatpush2.xpose.msra.mxu0 0.0
  %5815 = vmatprep.subr.mxu0 0.0
  %5816 = vmatpush2.xpose.msra.mxu0 0.0
  %5817 = vmatprep.subr.mxu0 0.0
  %5818 = vmatpush2.xpose.msra.mxu0 0.0
  %5819 = vmatprep.mubr.f32.mxu0 0.0
  %5820 = vmatmul.mubr.f32.gmra.mxu0 %v5747
  %v5821 = vpop.f32.mrf.mxu0
  %v5822 = vadd.f32 0.0, %v5821
  %v5823 = vpop.f32.mrf.mxu0
  %5824 = vmatprep.mubr.f32.mxu0 0.0
  %5825 = vmatmul.mubr.f32.gmra.mxu0 %v5749
  %v5826 = vpop.f32.mrf.mxu0
  %v5827 = vadd.f32 0.0, %v5826
  %v5828 = vpop.f32.mrf.mxu0
  %5829 = vdwg.mxu0
  %v5830 = vadd.f32 %v5549, %v2829
  %v5831 = vadd.f32 %v5554, %v2830
  %v5832 = vadd.f32 %v5640, %v2829
  %v5833 = vadd.f32 %v5645, %v2830
  %v5834 = vadd.f32 %v5731, %v2829
  %v5835 = vadd.f32 %v5736, %v2830
  %v5836 = vadd.f32 %v5822, %v2829
  %v5837 = vadd.f32 %v5827, %v2830
  %v5838 = vsel %vm3339, %v5830, -inf
  %5839 = vmax.xlane.f32.xlu0 %v5838
  %v5840 = vpop.xlane.xlu0 %5839
  %v5841 = vsel %vm3343, %v5831, -inf
  %5842 = vmax.xlane.f32.xlu0 %v5841
  %v5843 = vpop.xlane.xlu0 %5842
  %v5844 = vsel %vm3339, %v5832, -inf
  %5845 = vmax.xlane.f32.xlu0 %v5844
  %v5846 = vpop.xlane.xlu0 %5845
  %v5847 = vsel %vm3343, %v5833, -inf
  %5848 = vmax.xlane.f32.xlu0 %v5847
  %v5849 = vpop.xlane.xlu0 %5848
  %v5850 = vsel %vm3339, %v5834, -inf
  %5851 = vmax.xlane.f32.xlu0 %v5850
  %v5852 = vpop.xlane.xlu0 %5851
  %v5853 = vsel %vm3343, %v5835, -inf
  %5854 = vmax.xlane.f32.xlu0 %v5853
  %v5855 = vpop.xlane.xlu0 %5854
  %v5856 = vsel %vm3339, %v5836, -inf
  %5857 = vmax.xlane.f32.xlu0 %v5856
  %v5858 = vpop.xlane.xlu0 %5857
  %v5859 = vsel %vm3343, %v5837, -inf
  %5860 = vmax.xlane.f32.xlu0 %v5859
  %v5861 = vpop.xlane.xlu0 %5860
  %v5862 = vsub.f32 %v5830, %v5840
  %v5863 = vsub.f32 %v5831, %v5843
  %v5864 = vsub.f32 %v5832, %v5846
  %v5865 = vsub.f32 %v5833, %v5849
  %v5866 = vsub.f32 %v5834, %v5852
  %v5867 = vsub.f32 %v5835, %v5855
  %v5868 = vsub.f32 %v5836, %v5858
  %v5869 = vsub.f32 %v5837, %v5861
  %v5870 = vmul.f32 %v5862, 1.442695
  %v5871 = vpow.pop %v5870
  %v5872 = vmul.f32 %v5863, 1.442695
  %v5873 = vpow.pop %v5872
  %v5874 = vmul.f32 %v5864, 1.442695
  %v5875 = vpow.pop %v5874
  %v5876 = vmul.f32 %v5865, 1.442695
  %v5877 = vpow.pop %v5876
  %v5878 = vmul.f32 %v5866, 1.442695
  %v5879 = vpow.pop %v5878
  %v5880 = vmul.f32 %v5867, 1.442695
  %v5881 = vpow.pop %v5880
  %v5882 = vmul.f32 %v5868, 1.442695
  %v5883 = vpow.pop %v5882
  %v5884 = vmul.f32 %v5869, 1.442695
  %v5885 = vpow.pop %v5884
  %v5886 = vsel %vm3339, %v5871, 0.0
  %5887 = vadd.xlane.f32.xlu0 %v5886
  %v5888 = vpop.xlane.xlu0 %5887
  %v5889 = vsel %vm3343, %v5873, 0.0
  %5890 = vadd.xlane.f32.xlu0 %v5889
  %v5891 = vpop.xlane.xlu0 %5890
  %v5892 = vsel %vm3339, %v5875, 0.0
  %5893 = vadd.xlane.f32.xlu0 %v5892
  %v5894 = vpop.xlane.xlu0 %5893
  %v5895 = vsel %vm3343, %v5877, 0.0
  %5896 = vadd.xlane.f32.xlu0 %v5895
  %v5897 = vpop.xlane.xlu0 %5896
  %v5898 = vsel %vm3339, %v5879, 0.0
  %5899 = vadd.xlane.f32.xlu0 %v5898
  %v5900 = vpop.xlane.xlu0 %5899
  %v5901 = vsel %vm3343, %v5881, 0.0
  %5902 = vadd.xlane.f32.xlu0 %v5901
  %v5903 = vpop.xlane.xlu0 %5902
  %v5904 = vsel %vm3339, %v5883, 0.0
  %5905 = vadd.xlane.f32.xlu0 %v5904
  %v5906 = vpop.xlane.xlu0 %5905
  %v5907 = vsel %vm3343, %v5885, 0.0
  %5908 = vadd.xlane.f32.xlu0 %v5907
  %v5909 = vpop.xlane.xlu0 %5908
  %v5910 = vrcp.pop %v5888
  %v5911 = vrcp.pop %v5891
  %v5912 = vrcp.pop %v5894
  %v5913 = vrcp.pop %v5897
  %v5914 = vrcp.pop %v5900
  %v5915 = vrcp.pop %v5903
  %v5916 = vrcp.pop %v5906
  %v5917 = vrcp.pop %v5909
  %v5918 = vmul.f32 %v5871, %v5910
  %v5919 = vmul.f32 %v5873, %v5911
  %v5920 = vmul.f32 %v5875, %v5912
  %v5921 = vmul.f32 %v5877, %v5913
  %v5922 = vmul.f32 %v5879, %v5914
  %v5923 = vmul.f32 %v5881, %v5915
  %v5924 = vmul.f32 %v5883, %v5916
  %v5925 = vmul.f32 %v5885, %v5917
  %5926 = vrot.lane.b32.xlu0 %v5456, 64
  %v5927 = vpop.permute.xlu0 %5926
  %5928 = vrot.lane.b32.xlu0 %v5461, 64
  %v5929 = vpop.permute.xlu0 %5928
  %v5932 = vsel %vm3339, %v5918, 0
  %v5935 = vsel %vm3339, %v5919, 0
  %v5937 = vsel %vm3440, %v5929, 0
  %5939 = vmatprep.subr.mxu0 0.0
  %5940 = vmatpush1.msra.mxu0 0.0
  %5941 = vmatprep.subr.mxu0 0.0
  %5942 = vmatpush1.msra.mxu0 0.0
  %5943 = vmatprep.subr.mxu0 0.0
  %5944 = vmatpush1.msra.mxu0 0.0
  %5945 = vmatprep.subr.mxu0 0.0
  %5946 = vmatpush1.msra.mxu0 0.0
  %5947 = vmatprep.subr.mxu0 0.0
  %5948 = vmatpush1.msra.mxu0 0.0
  %5949 = vmatprep.subr.mxu0 0.0
  %5950 = vmatpush1.msra.mxu0 0.0
  %5951 = vmatprep.subr.mxu0 0.0
  %5952 = vmatpush1.msra.mxu0 0.0
  %5953 = vmatprep.subr.mxu0 0.0
  %5954 = vmatpush1.msra.mxu0 0.0
  %5955 = vmatprep.subr.mxu0 0.0
  %5956 = vmatpush1.msra.mxu0 0.0
  %5957 = vmatprep.subr.mxu0 0.0
  %5958 = vmatpush1.msra.mxu0 0.0
  %5959 = vmatprep.subr.mxu0 0.0
  %5960 = vmatpush1.msra.mxu0 0.0
  %5961 = vmatprep.subr.mxu0 0.0
  %5962 = vmatpush1.msra.mxu0 0.0
  %5963 = vmatprep.subr.mxu0 0.0
  %5964 = vmatpush1.msra.mxu0 0.0
  %5965 = vmatprep.subr.mxu0 0.0
  %5966 = vmatpush1.msra.mxu0 0.0
  %5967 = vmatprep.subr.mxu0 0.0
  %5968 = vmatpush1.msra.mxu0 %v5937
  %5969 = vmatprep.subr.mxu0 0.0
  %5970 = vmatpush1.msra.mxu0 %v5927
  %5971 = vmatprep.subr.mxu0 0.0
  %5972 = vmatpush2.msra.mxu0 0.0
  %5973 = vmatprep.subr.mxu0 0.0
  %5974 = vmatpush2.msra.mxu0 0.0
  %5975 = vmatprep.subr.mxu0 0.0
  %5976 = vmatpush2.msra.mxu0 0.0
  %5977 = vmatprep.subr.mxu0 0.0
  %5978 = vmatpush2.msra.mxu0 0.0
  %5979 = vmatprep.subr.mxu0 0.0
  %5980 = vmatpush2.msra.mxu0 0.0
  %5981 = vmatprep.subr.mxu0 0.0
  %5982 = vmatpush2.msra.mxu0 0.0
  %5983 = vmatprep.subr.mxu0 0.0
  %5984 = vmatpush2.msra.mxu0 0.0
  %5985 = vmatprep.subr.mxu0 0.0
  %5986 = vmatpush2.msra.mxu0 0.0
  %5987 = vmatprep.subr.mxu0 0.0
  %5988 = vmatpush2.msra.mxu0 0.0
  %5989 = vmatprep.subr.mxu0 0.0
  %5990 = vmatpush2.msra.mxu0 0.0
  %5991 = vmatprep.subr.mxu0 0.0
  %5992 = vmatpush2.msra.mxu0 0.0
  %5993 = vmatprep.subr.mxu0 0.0
  %5994 = vmatpush2.msra.mxu0 0.0
  %5995 = vmatprep.subr.mxu0 0.0
  %5996 = vmatpush2.msra.mxu0 0.0
  %5997 = vmatprep.subr.mxu0 0.0
  %5998 = vmatpush2.msra.mxu0 0.0
  %5999 = vmatprep.subr.mxu0 0.0
  %6000 = vmatpush2.msra.mxu0 0.0
  %6001 = vmatprep.subr.mxu0 0.0
  %6002 = vmatpush2.msra.mxu0 0.0
  %6003 = vmatprep.mubr.f32.mxu0 0.0
  %6004 = vmatmul.mubr.f32.gmra.mxu0 %v5932
  %v6005 = vpop.f32.mrf.mxu0
  %v6006 = vadd.f32 0.0, %v6005
  %v6007 = vpop.f32.mrf.mxu0
  %6008 = vmatprep.mubr.f32.mxu0 0.0
  %6009 = vmatmul.mubr.f32.gmra.mxu0 %v5935
  %v6010 = vpop.f32.mrf.mxu0
  %v6011 = vadd.f32 0.0, %v6010
  %v6012 = vpop.f32.mrf.mxu0
  %6013 = vdwg.mxu0
  %6014 = vrot.lane.b32.xlu0 %v5456, 56
  %v6015 = vpop.permute.xlu0 %6014
  %6016 = vrot.lane.b32.xlu0 %v5461, 56
  %v6017 = vpop.permute.xlu0 %6016
  %v6020 = vsel %vm3339, %v5920, 0
  %v6023 = vsel %vm3339, %v5921, 0
  %v6025 = vsel %vm3440, %v6017, 0
  %6027 = vmatprep.subr.mxu0 0.0
  %6028 = vmatpush1.msra.mxu0 0.0
  %6029 = vmatprep.subr.mxu0 0.0
  %6030 = vmatpush1.msra.mxu0 0.0
  %6031 = vmatprep.subr.mxu0 0.0
  %6032 = vmatpush1.msra.mxu0 0.0
  %6033 = vmatprep.subr.mxu0 0.0
  %6034 = vmatpush1.msra.mxu0 0.0
  %6035 = vmatprep.subr.mxu0 0.0
  %6036 = vmatpush1.msra.mxu0 0.0
  %6037 = vmatprep.subr.mxu0 0.0
  %6038 = vmatpush1.msra.mxu0 0.0
  %6039 = vmatprep.subr.mxu0 0.0
  %6040 = vmatpush1.msra.mxu0 0.0
  %6041 = vmatprep.subr.mxu0 0.0
  %6042 = vmatpush1.msra.mxu0 0.0
  %6043 = vmatprep.subr.mxu0 0.0
  %6044 = vmatpush1.msra.mxu0 0.0
  %6045 = vmatprep.subr.mxu0 0.0
  %6046 = vmatpush1.msra.mxu0 0.0
  %6047 = vmatprep.subr.mxu0 0.0
  %6048 = vmatpush1.msra.mxu0 0.0
  %6049 = vmatprep.subr.mxu0 0.0
  %6050 = vmatpush1.msra.mxu0 0.0
  %6051 = vmatprep.subr.mxu0 0.0
  %6052 = vmatpush1.msra.mxu0 0.0
  %6053 = vmatprep.subr.mxu0 0.0
  %6054 = vmatpush1.msra.mxu0 0.0
  %6055 = vmatprep.subr.mxu0 0.0
  %6056 = vmatpush1.msra.mxu0 %v6025
  %6057 = vmatprep.subr.mxu0 0.0
  %6058 = vmatpush1.msra.mxu0 %v6015
  %6059 = vmatprep.subr.mxu0 0.0
  %6060 = vmatpush2.msra.mxu0 0.0
  %6061 = vmatprep.subr.mxu0 0.0
  %6062 = vmatpush2.msra.mxu0 0.0
  %6063 = vmatprep.subr.mxu0 0.0
  %6064 = vmatpush2.msra.mxu0 0.0
  %6065 = vmatprep.subr.mxu0 0.0
  %6066 = vmatpush2.msra.mxu0 0.0
  %6067 = vmatprep.subr.mxu0 0.0
  %6068 = vmatpush2.msra.mxu0 0.0
  %6069 = vmatprep.subr.mxu0 0.0
  %6070 = vmatpush2.msra.mxu0 0.0
  %6071 = vmatprep.subr.mxu0 0.0
  %6072 = vmatpush2.msra.mxu0 0.0
  %6073 = vmatprep.subr.mxu0 0.0
  %6074 = vmatpush2.msra.mxu0 0.0
  %6075 = vmatprep.subr.mxu0 0.0
  %6076 = vmatpush2.msra.mxu0 0.0
  %6077 = vmatprep.subr.mxu0 0.0
  %6078 = vmatpush2.msra.mxu0 0.0
  %6079 = vmatprep.subr.mxu0 0.0
  %6080 = vmatpush2.msra.mxu0 0.0
  %6081 = vmatprep.subr.mxu0 0.0
  %6082 = vmatpush2.msra.mxu0 0.0
  %6083 = vmatprep.subr.mxu0 0.0
  %6084 = vmatpush2.msra.mxu0 0.0
  %6085 = vmatprep.subr.mxu0 0.0
  %6086 = vmatpush2.msra.mxu0 0.0
  %6087 = vmatprep.subr.mxu0 0.0
  %6088 = vmatpush2.msra.mxu0 0.0
  %6089 = vmatprep.subr.mxu0 0.0
  %6090 = vmatpush2.msra.mxu0 0.0
  %6091 = vmatprep.mubr.f32.mxu0 0.0
  %6092 = vmatmul.mubr.f32.gmra.mxu0 %v6020
  %v6093 = vpop.f32.mrf.mxu0
  %v6094 = vadd.f32 0.0, %v6093
  %v6095 = vpop.f32.mrf.mxu0
  %6096 = vmatprep.mubr.f32.mxu0 0.0
  %6097 = vmatmul.mubr.f32.gmra.mxu0 %v6023
  %v6098 = vpop.f32.mrf.mxu0
  %v6099 = vadd.f32 0.0, %v6098
  %v6100 = vpop.f32.mrf.mxu0
  %6101 = vdwg.mxu0
  %6102 = vrot.lane.b32.xlu0 %v5456, 48
  %v6103 = vpop.permute.xlu0 %6102
  %6104 = vrot.lane.b32.xlu0 %v5461, 48
  %v6105 = vpop.permute.xlu0 %6104
  %v6108 = vsel %vm3339, %v5922, 0
  %v6111 = vsel %vm3339, %v5923, 0
  %v6113 = vsel %vm3440, %v6105, 0
  %6115 = vmatprep.subr.mxu0 0.0
  %6116 = vmatpush1.msra.mxu0 0.0
  %6117 = vmatprep.subr.mxu0 0.0
  %6118 = vmatpush1.msra.mxu0 0.0
  %6119 = vmatprep.subr.mxu0 0.0
  %6120 = vmatpush1.msra.mxu0 0.0
  %6121 = vmatprep.subr.mxu0 0.0
  %6122 = vmatpush1.msra.mxu0 0.0
  %6123 = vmatprep.subr.mxu0 0.0
  %6124 = vmatpush1.msra.mxu0 0.0
  %6125 = vmatprep.subr.mxu0 0.0
  %6126 = vmatpush1.msra.mxu0 0.0
  %6127 = vmatprep.subr.mxu0 0.0
  %6128 = vmatpush1.msra.mxu0 0.0
  %6129 = vmatprep.subr.mxu0 0.0
  %6130 = vmatpush1.msra.mxu0 0.0
  %6131 = vmatprep.subr.mxu0 0.0
  %6132 = vmatpush1.msra.mxu0 0.0
  %6133 = vmatprep.subr.mxu0 0.0
  %6134 = vmatpush1.msra.mxu0 0.0
  %6135 = vmatprep.subr.mxu0 0.0
  %6136 = vmatpush1.msra.mxu0 0.0
  %6137 = vmatprep.subr.mxu0 0.0
  %6138 = vmatpush1.msra.mxu0 0.0
  %6139 = vmatprep.subr.mxu0 0.0
  %6140 = vmatpush1.msra.mxu0 0.0
  %6141 = vmatprep.subr.mxu0 0.0
  %6142 = vmatpush1.msra.mxu0 0.0
  %6143 = vmatprep.subr.mxu0 0.0
  %6144 = vmatpush1.msra.mxu0 %v6113
  %6145 = vmatprep.subr.mxu0 0.0
  %6146 = vmatpush1.msra.mxu0 %v6103
  %6147 = vmatprep.subr.mxu0 0.0
  %6148 = vmatpush2.msra.mxu0 0.0
  %6149 = vmatprep.subr.mxu0 0.0
  %6150 = vmatpush2.msra.mxu0 0.0
  %6151 = vmatprep.subr.mxu0 0.0
  %6152 = vmatpush2.msra.mxu0 0.0
  %6153 = vmatprep.subr.mxu0 0.0
  %6154 = vmatpush2.msra.mxu0 0.0
  %6155 = vmatprep.subr.mxu0 0.0
  %6156 = vmatpush2.msra.mxu0 0.0
  %6157 = vmatprep.subr.mxu0 0.0
  %6158 = vmatpush2.msra.mxu0 0.0
  %6159 = vmatprep.subr.mxu0 0.0
  %6160 = vmatpush2.msra.mxu0 0.0
  %6161 = vmatprep.subr.mxu0 0.0
  %6162 = vmatpush2.msra.mxu0 0.0
  %6163 = vmatprep.subr.mxu0 0.0
  %6164 = vmatpush2.msra.mxu0 0.0
  %6165 = vmatprep.subr.mxu0 0.0
  %6166 = vmatpush2.msra.mxu0 0.0
  %6167 = vmatprep.subr.mxu0 0.0
  %6168 = vmatpush2.msra.mxu0 0.0
  %6169 = vmatprep.subr.mxu0 0.0
  %6170 = vmatpush2.msra.mxu0 0.0
  %6171 = vmatprep.subr.mxu0 0.0
  %6172 = vmatpush2.msra.mxu0 0.0
  %6173 = vmatprep.subr.mxu0 0.0
  %6174 = vmatpush2.msra.mxu0 0.0
  %6175 = vmatprep.subr.mxu0 0.0
  %6176 = vmatpush2.msra.mxu0 0.0
  %6177 = vmatprep.subr.mxu0 0.0
  %6178 = vmatpush2.msra.mxu0 0.0
  %6179 = vmatprep.mubr.f32.mxu0 0.0
  %6180 = vmatmul.mubr.f32.gmra.mxu0 %v6108
  %v6181 = vpop.f32.mrf.mxu0
  %v6182 = vadd.f32 0.0, %v6181
  %v6183 = vpop.f32.mrf.mxu0
  %6184 = vmatprep.mubr.f32.mxu0 0.0
  %6185 = vmatmul.mubr.f32.gmra.mxu0 %v6111
  %v6186 = vpop.f32.mrf.mxu0
  %v6187 = vadd.f32 0.0, %v6186
  %v6188 = vpop.f32.mrf.mxu0
  %6189 = vdwg.mxu0
  %6190 = vrot.lane.b32.xlu0 %v5456, 40
  %v6191 = vpop.permute.xlu0 %6190
  %6192 = vrot.lane.b32.xlu0 %v5461, 40
  %v6193 = vpop.permute.xlu0 %6192
  %v6196 = vsel %vm3339, %v5924, 0
  %v6199 = vsel %vm3339, %v5925, 0
  %v6201 = vsel %vm3440, %v6193, 0
  %6203 = vmatprep.subr.mxu0 0.0
  %6204 = vmatpush1.msra.mxu0 0.0
  %6205 = vmatprep.subr.mxu0 0.0
  %6206 = vmatpush1.msra.mxu0 0.0
  %6207 = vmatprep.subr.mxu0 0.0
  %6208 = vmatpush1.msra.mxu0 0.0
  %6209 = vmatprep.subr.mxu0 0.0
  %6210 = vmatpush1.msra.mxu0 0.0
  %6211 = vmatprep.subr.mxu0 0.0
  %6212 = vmatpush1.msra.mxu0 0.0
  %6213 = vmatprep.subr.mxu0 0.0
  %6214 = vmatpush1.msra.mxu0 0.0
  %6215 = vmatprep.subr.mxu0 0.0
  %6216 = vmatpush1.msra.mxu0 0.0
  %6217 = vmatprep.subr.mxu0 0.0
  %6218 = vmatpush1.msra.mxu0 0.0
  %6219 = vmatprep.subr.mxu0 0.0
  %6220 = vmatpush1.msra.mxu0 0.0
  %6221 = vmatprep.subr.mxu0 0.0
  %6222 = vmatpush1.msra.mxu0 0.0
  %6223 = vmatprep.subr.mxu0 0.0
  %6224 = vmatpush1.msra.mxu0 0.0
  %6225 = vmatprep.subr.mxu0 0.0
  %6226 = vmatpush1.msra.mxu0 0.0
  %6227 = vmatprep.subr.mxu0 0.0
  %6228 = vmatpush1.msra.mxu0 0.0
  %6229 = vmatprep.subr.mxu0 0.0
  %6230 = vmatpush1.msra.mxu0 0.0
  %6231 = vmatprep.subr.mxu0 0.0
  %6232 = vmatpush1.msra.mxu0 %v6201
  %6233 = vmatprep.subr.mxu0 0.0
  %6234 = vmatpush1.msra.mxu0 %v6191
  %6235 = vmatprep.subr.mxu0 0.0
  %6236 = vmatpush2.msra.mxu0 0.0
  %6237 = vmatprep.subr.mxu0 0.0
  %6238 = vmatpush2.msra.mxu0 0.0
  %6239 = vmatprep.subr.mxu0 0.0
  %6240 = vmatpush2.msra.mxu0 0.0
  %6241 = vmatprep.subr.mxu0 0.0
  %6242 = vmatpush2.msra.mxu0 0.0
  %6243 = vmatprep.subr.mxu0 0.0
  %6244 = vmatpush2.msra.mxu0 0.0
  %6245 = vmatprep.subr.mxu0 0.0
  %6246 = vmatpush2.msra.mxu0 0.0
  %6247 = vmatprep.subr.mxu0 0.0
  %6248 = vmatpush2.msra.mxu0 0.0
  %6249 = vmatprep.subr.mxu0 0.0
  %6250 = vmatpush2.msra.mxu0 0.0
  %6251 = vmatprep.subr.mxu0 0.0
  %6252 = vmatpush2.msra.mxu0 0.0
  %6253 = vmatprep.subr.mxu0 0.0
  %6254 = vmatpush2.msra.mxu0 0.0
  %6255 = vmatprep.subr.mxu0 0.0
  %6256 = vmatpush2.msra.mxu0 0.0
  %6257 = vmatprep.subr.mxu0 0.0
  %6258 = vmatpush2.msra.mxu0 0.0
  %6259 = vmatprep.subr.mxu0 0.0
  %6260 = vmatpush2.msra.mxu0 0.0
  %6261 = vmatprep.subr.mxu0 0.0
  %6262 = vmatpush2.msra.mxu0 0.0
  %6263 = vmatprep.subr.mxu0 0.0
  %6264 = vmatpush2.msra.mxu0 0.0
  %6265 = vmatprep.subr.mxu0 0.0
  %6266 = vmatpush2.msra.mxu0 0.0
  %6267 = vmatprep.mubr.f32.mxu0 0.0
  %6268 = vmatmul.mubr.f32.gmra.mxu0 %v6196
  %v6269 = vpop.f32.mrf.mxu0
  %v6270 = vadd.f32 0.0, %v6269
  %v6271 = vpop.f32.mrf.mxu0
  %6272 = vmatprep.mubr.f32.mxu0 0.0
  %6273 = vmatmul.mubr.f32.gmra.mxu0 %v6199
  %v6274 = vpop.f32.mrf.mxu0
  %v6275 = vadd.f32 0.0, %v6274
  %v6276 = vpop.f32.mrf.mxu0
  %6277 = vdwg.mxu0
  %6280 = vrot.lane.b32.xlu0 %v6094, 8
  %v6281 = vpop.permute.xlu0 %6280
  %6282 = vrot.lane.b32.xlu0 %v6099, 8
  %v6283 = vpop.permute.xlu0 %6282
  %6288 = vrot.lane.b32.xlu0 %v6182, 16
  %v6289 = vpop.permute.xlu0 %6288
  %6290 = vrot.lane.b32.xlu0 %v6187, 16
  %v6291 = vpop.permute.xlu0 %6290
  %6296 = vrot.lane.b32.xlu0 %v6270, 24
  %v6297 = vpop.permute.xlu0 %6296
  %6298 = vrot.lane.b32.xlu0 %v6275, 24
  %v6299 = vpop.permute.xlu0 %6298
  %v6302 = vsel %vm313, %v6006, %v6281
  %v6303 = vsel %vm313, %v6011, %v6283
  %v6304 = vsel %vm680, %v6302, %v6289
  %v6305 = vsel %vm680, %v6303, %v6291
  %v6306 = vsel %vm1145, %v6304, %v6297
  %v6307 = vsel %vm1145, %v6305, %v6299
  %v6309 = vsel %vm223, %v6306, 0
  %v6312 = vsel %vm223, %v6307, 0
  %6314 = vmatprep.subr.mxu0 0.0
  %6315 = vmatpush1.msra.mxu0 0.0
  %6316 = vmatprep.subr.mxu0 0.0
  %6317 = vmatpush1.msra.mxu0 0.0
  %6318 = vmatprep.subr.mxu0 0.0
  %6319 = vmatpush1.msra.mxu0 0.0
  %6320 = vmatprep.subr.mxu0 0.0
  %6321 = vmatpush1.msra.mxu0 0.0
  %6322 = vmatprep.subr.mxu0 0.0
  %6323 = vmatpush1.msra.mxu0 0.0
  %6324 = vmatprep.subr.mxu0 0.0
  %6325 = vmatpush1.msra.mxu0 0.0
  %6326 = vmatprep.subr.mxu0 0.0
  %6327 = vmatpush1.msra.mxu0 0.0
  %6328 = vmatprep.subr.mxu0 0.0
  %6329 = vmatpush1.msra.mxu0 0.0
  %6330 = vmatprep.subr.mxu0 0.0
  %6331 = vmatpush1.msra.mxu0 0.0
  %6332 = vmatprep.subr.mxu0 0.0
  %6333 = vmatpush1.msra.mxu0 0.0
  %6334 = vmatprep.subr.mxu0 0.0
  %6335 = vmatpush1.msra.mxu0 0.0
  %6336 = vmatprep.subr.mxu0 0.0
  %6337 = vmatpush1.msra.mxu0 0.0
  %6338 = vmatprep.subr.mxu0 0.0
  %6339 = vmatpush1.msra.mxu0 %v5323
  %6340 = vmatprep.subr.mxu0 0.0
  %6341 = vmatpush1.msra.mxu0 %v5322
  %6342 = vmatprep.subr.mxu0 0.0
  %6343 = vmatpush1.msra.mxu0 %v5321
  %6344 = vmatprep.subr.mxu0 0.0
  %6345 = vmatpush1.msra.mxu0 %v5320
  %6346 = vmatprep.subr.mxu0 0.0
  %6347 = vmatpush2.msra.mxu0 0.0
  %6348 = vmatprep.subr.mxu0 0.0
  %6349 = vmatpush2.msra.mxu0 0.0
  %6350 = vmatprep.subr.mxu0 0.0
  %6351 = vmatpush2.msra.mxu0 0.0
  %6352 = vmatprep.subr.mxu0 0.0
  %6353 = vmatpush2.msra.mxu0 0.0
  %6354 = vmatprep.subr.mxu0 0.0
  %6355 = vmatpush2.msra.mxu0 0.0
  %6356 = vmatprep.subr.mxu0 0.0
  %6357 = vmatpush2.msra.mxu0 0.0
  %6358 = vmatprep.subr.mxu0 0.0
  %6359 = vmatpush2.msra.mxu0 0.0
  %6360 = vmatprep.subr.mxu0 0.0
  %6361 = vmatpush2.msra.mxu0 0.0
  %6362 = vmatprep.subr.mxu0 0.0
  %6363 = vmatpush2.msra.mxu0 0.0
  %6364 = vmatprep.subr.mxu0 0.0
  %6365 = vmatpush2.msra.mxu0 0.0
  %6366 = vmatprep.subr.mxu0 0.0
  %6367 = vmatpush2.msra.mxu0 0.0
  %6368 = vmatprep.subr.mxu0 0.0
  %6369 = vmatpush2.msra.mxu0 0.0
  %6370 = vmatprep.subr.mxu0 0.0
  %6371 = vmatpush2.msra.mxu0 0.0
  %6372 = vmatprep.subr.mxu0 0.0
  %6373 = vmatpush2.msra.mxu0 0.0
  %6374 = vmatprep.subr.mxu0 0.0
  %6375 = vmatpush2.msra.mxu0 0.0
  %6376 = vmatprep.subr.mxu0 0.0
  %6377 = vmatpush2.msra.mxu0 0.0
  %6378 = vmatprep.mubr.f32.mxu0 0.0
  %6379 = vmatmul.mubr.f32.gmra.mxu0 %v6309
  %v6380 = vpop.f32.mrf.mxu0
  %v6381 = vadd.f32 0.0, %v6380
  %v6382 = vpop.f32.mrf.mxu0
  %6383 = vmatprep.mubr.f32.mxu0 0.0
  %6384 = vmatmul.mubr.f32.gmra.mxu0 %v6312
  %v6385 = vpop.f32.mrf.mxu0
  %v6386 = vadd.f32 0.0, %v6385
  %v6387 = vpop.f32.mrf.mxu0
  %6388 = vdwg.mxu0
  %v6389 = vadd.f32 %v5310, %v6381
  %v6390 = vadd.f32 %v5311, %v6386
  %v6392 = vlaneseq
  %v6393 = vshrl.u32 %v6392, 7
  %v6394 = vsub.s32 0, %v6393
  %v6395 = vrot.slane %v5325, %v6394
  %v6397 = vadd.f32 %v6389, %v6395
  %v6398 = vadd.f32 %v6390, %v6395
  %v6399 = vsel %vm223, %v6397, 0.0
  %6400 = vadd.xlane.f32.xlu0 %v6399
  %v6401 = vpop.xlane.xlu0 %6400
  %v6402 = vsel %vm3906, %v6398, 0.0
  %6403 = vadd.xlane.f32.xlu0 %v6402
  %v6404 = vpop.xlane.xlu0 %6403
  %v6405 = vmul.f32 %v6401, %v1245
  %v6406 = vmul.f32 %v6404, %v1245
  %v6407 = vsub.f32 %v6397, %v6405
  %v6408 = vsub.f32 %v6398, %v6406
  %v6409 = vmul.f32 %v6407, %v6407
  %v6410 = vmul.f32 %v6408, %v6408
  %v6411 = vsel %vm223, %v6409, 0.0
  %6412 = vadd.xlane.f32.xlu0 %v6411
  %v6413 = vpop.xlane.xlu0 %6412
  %v6414 = vsel %vm3906, %v6410, 0.0
  %6415 = vadd.xlane.f32.xlu0 %v6414
  %v6416 = vpop.xlane.xlu0 %6415
  %v6417 = vmul.f32 %v6413, %v1245
  %v6418 = vmul.f32 %v6416, %v1245
  %v6419 = vadd.f32 %v6417, 1e-05
  %v6420 = vadd.f32 %v6418, 1e-05
  %v6421 = vrsqrt.pop %v6419
  %v6422 = vrsqrt.pop %v6420
  %v6423 = vmul.f32 %v6407, %v6421
  %v6424 = vmul.f32 %v6408, %v6422
  %v6426 = vlaneseq
  %v6427 = vshrl.u32 %v6426, 7
  %v6428 = vsub.s32 0, %v6427
  %v6429 = vrot.slane %v5327, %v6428
  %v6431 = vmul.f32 %v6423, %v6429
  %v6432 = vmul.f32 %v6424, %v6429
  %v6434 = vlaneseq
  %v6435 = vshrl.u32 %v6434, 7
  %v6436 = vsub.s32 0, %v6435
  %v6437 = vrot.slane %v5329, %v6436
  %v6439 = vadd.f32 %v6431, %v6437
  %v6440 = vadd.f32 %v6432, %v6437
  %v6442 = vlaneseq
  %v6443 = vshrl.u32 %v6442, 7
  %v6444 = vsub.s32 0, %v6443
  %v6445 = vrot.slane %v5336, %v6444
  %v6448 = vsel %vm223, %v6439, 0
  %v6451 = vsel %vm223, %v6440, 0
  %6453 = vmatprep.subr.mxu0 0.0
  %6454 = vmatpush1.msra.mxu0 0.0
  %6455 = vmatprep.subr.mxu0 0.0
  %6456 = vmatpush1.msra.mxu0 0.0
  %6457 = vmatprep.subr.mxu0 0.0
  %6458 = vmatpush1.msra.mxu0 0.0
  %6459 = vmatprep.subr.mxu0 0.0
  %6460 = vmatpush1.msra.mxu0 0.0
  %6461 = vmatprep.subr.mxu0 0.0
  %6462 = vmatpush1.msra.mxu0 0.0
  %6463 = vmatprep.subr.mxu0 0.0
  %6464 = vmatpush1.msra.mxu0 0.0
  %6465 = vmatprep.subr.mxu0 0.0
  %6466 = vmatpush1.msra.mxu0 0.0
  %6467 = vmatprep.subr.mxu0 0.0
  %6468 = vmatpush1.msra.mxu0 0.0
  %6469 = vmatprep.subr.mxu0 0.0
  %6470 = vmatpush1.msra.mxu0 0.0
  %6471 = vmatprep.subr.mxu0 0.0
  %6472 = vmatpush1.msra.mxu0 0.0
  %6473 = vmatprep.subr.mxu0 0.0
  %6474 = vmatpush1.msra.mxu0 0.0
  %6475 = vmatprep.subr.mxu0 0.0
  %6476 = vmatpush1.msra.mxu0 0.0
  %6477 = vmatprep.subr.mxu0 0.0
  %6478 = vmatpush1.msra.mxu0 %v5334
  %6479 = vmatprep.subr.mxu0 0.0
  %6480 = vmatpush1.msra.mxu0 %v5333
  %6481 = vmatprep.subr.mxu0 0.0
  %6482 = vmatpush1.msra.mxu0 %v5332
  %6483 = vmatprep.subr.mxu0 0.0
  %6484 = vmatpush1.msra.mxu0 %v5331
  %6485 = vmatprep.subr.mxu0 0.0
  %6486 = vmatpush2.msra.mxu0 0.0
  %6487 = vmatprep.subr.mxu0 0.0
  %6488 = vmatpush2.msra.mxu0 0.0
  %6489 = vmatprep.subr.mxu0 0.0
  %6490 = vmatpush2.msra.mxu0 0.0
  %6491 = vmatprep.subr.mxu0 0.0
  %6492 = vmatpush2.msra.mxu0 0.0
  %6493 = vmatprep.subr.mxu0 0.0
  %6494 = vmatpush2.msra.mxu0 0.0
  %6495 = vmatprep.subr.mxu0 0.0
  %6496 = vmatpush2.msra.mxu0 0.0
  %6497 = vmatprep.subr.mxu0 0.0
  %6498 = vmatpush2.msra.mxu0 0.0
  %6499 = vmatprep.subr.mxu0 0.0
  %6500 = vmatpush2.msra.mxu0 0.0
  %6501 = vmatprep.subr.mxu0 0.0
  %6502 = vmatpush2.msra.mxu0 0.0
  %6503 = vmatprep.subr.mxu0 0.0
  %6504 = vmatpush2.msra.mxu0 0.0
  %6505 = vmatprep.subr.mxu0 0.0
  %6506 = vmatpush2.msra.mxu0 0.0
  %6507 = vmatprep.subr.mxu0 0.0
  %6508 = vmatpush2.msra.mxu0 0.0
  %6509 = vmatprep.subr.mxu0 0.0
  %6510 = vmatpush2.msra.mxu0 0.0
  %6511 = vmatprep.subr.mxu0 0.0
  %6512 = vmatpush2.msra.mxu0 0.0
  %6513 = vmatprep.subr.mxu0 0.0
  %6514 = vmatpush2.msra.mxu0 0.0
  %6515 = vmatprep.subr.mxu0 0.0
  %6516 = vmatpush2.msra.mxu0 0.0
  %6517 = vmatprep.mubr.f32.mxu0 0.0
  %6518 = vmatmul.mubr.f32.gmra.mxu0 %v6448
  %v6519 = vpop.f32.mrf.mxu0
  %v6520 = vadd.f32 %v6445, %v6519
  %v6521 = vpop.f32.mrf.mxu0
  %6522 = vmatprep.mubr.f32.mxu0 0.0
  %6523 = vmatmul.mubr.f32.gmra.mxu0 %v6451
  %v6524 = vpop.f32.mrf.mxu0
  %v6525 = vadd.f32 %v6445, %v6524
  %v6526 = vpop.f32.mrf.mxu0
  %6527 = vdwg.mxu0
  %v6529 = vlaneseq
  %v6530 = vshrl.u32 %v6529, 7
  %v6531 = vsub.s32 0, %v6530
  %v6532 = vrot.slane %v5343, %v6531
  %6534 = vmatprep.subr.mxu0 0.0
  %6535 = vmatpush1.msra.mxu0 0.0
  %6536 = vmatprep.subr.mxu0 0.0
  %6537 = vmatpush1.msra.mxu0 0.0
  %6538 = vmatprep.subr.mxu0 0.0
  %6539 = vmatpush1.msra.mxu0 0.0
  %6540 = vmatprep.subr.mxu0 0.0
  %6541 = vmatpush1.msra.mxu0 0.0
  %6542 = vmatprep.subr.mxu0 0.0
  %6543 = vmatpush1.msra.mxu0 0.0
  %6544 = vmatprep.subr.mxu0 0.0
  %6545 = vmatpush1.msra.mxu0 0.0
  %6546 = vmatprep.subr.mxu0 0.0
  %6547 = vmatpush1.msra.mxu0 0.0
  %6548 = vmatprep.subr.mxu0 0.0
  %6549 = vmatpush1.msra.mxu0 0.0
  %6550 = vmatprep.subr.mxu0 0.0
  %6551 = vmatpush1.msra.mxu0 0.0
  %6552 = vmatprep.subr.mxu0 0.0
  %6553 = vmatpush1.msra.mxu0 0.0
  %6554 = vmatprep.subr.mxu0 0.0
  %6555 = vmatpush1.msra.mxu0 0.0
  %6556 = vmatprep.subr.mxu0 0.0
  %6557 = vmatpush1.msra.mxu0 0.0
  %6558 = vmatprep.subr.mxu0 0.0
  %6559 = vmatpush1.msra.mxu0 %v5341
  %6560 = vmatprep.subr.mxu0 0.0
  %6561 = vmatpush1.msra.mxu0 %v5340
  %6562 = vmatprep.subr.mxu0 0.0
  %6563 = vmatpush1.msra.mxu0 %v5339
  %6564 = vmatprep.subr.mxu0 0.0
  %6565 = vmatpush1.msra.mxu0 %v5338
  %6566 = vmatprep.subr.mxu0 0.0
  %6567 = vmatpush2.msra.mxu0 0.0
  %6568 = vmatprep.subr.mxu0 0.0
  %6569 = vmatpush2.msra.mxu0 0.0
  %6570 = vmatprep.subr.mxu0 0.0
  %6571 = vmatpush2.msra.mxu0 0.0
  %6572 = vmatprep.subr.mxu0 0.0
  %6573 = vmatpush2.msra.mxu0 0.0
  %6574 = vmatprep.subr.mxu0 0.0
  %6575 = vmatpush2.msra.mxu0 0.0
  %6576 = vmatprep.subr.mxu0 0.0
  %6577 = vmatpush2.msra.mxu0 0.0
  %6578 = vmatprep.subr.mxu0 0.0
  %6579 = vmatpush2.msra.mxu0 0.0
  %6580 = vmatprep.subr.mxu0 0.0
  %6581 = vmatpush2.msra.mxu0 0.0
  %6582 = vmatprep.subr.mxu0 0.0
  %6583 = vmatpush2.msra.mxu0 0.0
  %6584 = vmatprep.subr.mxu0 0.0
  %6585 = vmatpush2.msra.mxu0 0.0
  %6586 = vmatprep.subr.mxu0 0.0
  %6587 = vmatpush2.msra.mxu0 0.0
  %6588 = vmatprep.subr.mxu0 0.0
  %6589 = vmatpush2.msra.mxu0 0.0
  %6590 = vmatprep.subr.mxu0 0.0
  %6591 = vmatpush2.msra.mxu0 0.0
  %6592 = vmatprep.subr.mxu0 0.0
  %6593 = vmatpush2.msra.mxu0 0.0
  %6594 = vmatprep.subr.mxu0 0.0
  %6595 = vmatpush2.msra.mxu0 0.0
  %6596 = vmatprep.subr.mxu0 0.0
  %6597 = vmatpush2.msra.mxu0 0.0
  %6598 = vmatprep.mubr.f32.mxu0 0.0
  %6599 = vmatmul.mubr.f32.gmra.mxu0 %v4040
  %v6600 = vpop.f32.mrf.mxu0
  %v6601 = vadd.f32 %v6532, %v6600
  %v6602 = vpop.f32.mrf.mxu0
  %6603 = vmatprep.mubr.f32.mxu0 0.0
  %6604 = vmatmul.mubr.f32.gmra.mxu0 %v4043
  %v6605 = vpop.f32.mrf.mxu0
  %v6606 = vadd.f32 %v6532, %v6605
  %v6607 = vpop.f32.mrf.mxu0
  %6608 = vdwg.mxu0
  %v6609 = vmul.f32 %v6520, 0.35355338
  %v6610 = vmul.f32 %v6525, 0.35355338
  %v6612 = vsel %vm313, %v6609, 0
  %v6615 = vsel %vm313, %v6610, 0
  %v6618 = vsel %vm313, %v6601, 0
  %v6621 = vsel %vm313, %v6606, 0
  %6623 = vmatprep.subr.mxu0 0.0
  %6624 = vmatpush1.xpose.msra.mxu0 0.0
  %6625 = vmatprep.subr.mxu0 0.0
  %6626 = vmatpush1.xpose.msra.mxu0 0.0
  %6627 = vmatprep.subr.mxu0 0.0
  %6628 = vmatpush1.xpose.msra.mxu0 0.0
  %6629 = vmatprep.subr.mxu0 0.0
  %6630 = vmatpush1.xpose.msra.mxu0 0.0
  %6631 = vmatprep.subr.mxu0 0.0
  %6632 = vmatpush1.xpose.msra.mxu0 0.0
  %6633 = vmatprep.subr.mxu0 0.0
  %6634 = vmatpush1.xpose.msra.mxu0 0.0
  %6635 = vmatprep.subr.mxu0 0.0
  %6636 = vmatpush1.xpose.msra.mxu0 0.0
  %6637 = vmatprep.subr.mxu0 0.0
  %6638 = vmatpush1.xpose.msra.mxu0 0.0
  %6639 = vmatprep.subr.mxu0 0.0
  %6640 = vmatpush1.xpose.msra.mxu0 0.0
  %6641 = vmatprep.subr.mxu0 0.0
  %6642 = vmatpush1.xpose.msra.mxu0 0.0
  %6643 = vmatprep.subr.mxu0 0.0
  %6644 = vmatpush1.xpose.msra.mxu0 0.0
  %6645 = vmatprep.subr.mxu0 0.0
  %6646 = vmatpush1.xpose.msra.mxu0 0.0
  %6647 = vmatprep.subr.mxu0 0.0
  %6648 = vmatpush1.xpose.msra.mxu0 0.0
  %6649 = vmatprep.subr.mxu0 0.0
  %6650 = vmatpush1.xpose.msra.mxu0 0.0
  %6651 = vmatprep.subr.mxu0 0.0
  %6652 = vmatpush1.xpose.msra.mxu0 %v6621
  %6653 = vmatprep.subr.mxu0 0.0
  %6654 = vmatpush1.xpose.msra.mxu0 %v6618
  %6655 = vmatprep.subr.mxu0 0.0
  %6656 = vmatpush2.xpose.msra.mxu0 0.0
  %6657 = vmatprep.subr.mxu0 0.0
  %6658 = vmatpush2.xpose.msra.mxu0 0.0
  %6659 = vmatprep.subr.mxu0 0.0
  %6660 = vmatpush2.xpose.msra.mxu0 0.0
  %6661 = vmatprep.subr.mxu0 0.0
  %6662 = vmatpush2.xpose.msra.mxu0 0.0
  %6663 = vmatprep.subr.mxu0 0.0
  %6664 = vmatpush2.xpose.msra.mxu0 0.0
  %6665 = vmatprep.subr.mxu0 0.0
  %6666 = vmatpush2.xpose.msra.mxu0 0.0
  %6667 = vmatprep.subr.mxu0 0.0
  %6668 = vmatpush2.xpose.msra.mxu0 0.0
  %6669 = vmatprep.subr.mxu0 0.0
  %6670 = vmatpush2.xpose.msra.mxu0 0.0
  %6671 = vmatprep.subr.mxu0 0.0
  %6672 = vmatpush2.xpose.msra.mxu0 0.0
  %6673 = vmatprep.subr.mxu0 0.0
  %6674 = vmatpush2.xpose.msra.mxu0 0.0
  %6675 = vmatprep.subr.mxu0 0.0
  %6676 = vmatpush2.xpose.msra.mxu0 0.0
  %6677 = vmatprep.subr.mxu0 0.0
  %6678 = vmatpush2.xpose.msra.mxu0 0.0
  %6679 = vmatprep.subr.mxu0 0.0
  %6680 = vmatpush2.xpose.msra.mxu0 0.0
  %6681 = vmatprep.subr.mxu0 0.0
  %6682 = vmatpush2.xpose.msra.mxu0 0.0
  %6683 = vmatprep.subr.mxu0 0.0
  %6684 = vmatpush2.xpose.msra.mxu0 0.0
  %6685 = vmatprep.subr.mxu0 0.0
  %6686 = vmatpush2.xpose.msra.mxu0 0.0
  %6687 = vmatprep.mubr.f32.mxu0 0.0
  %6688 = vmatmul.mubr.f32.gmra.mxu0 %v6612
  %v6689 = vpop.f32.mrf.mxu0
  %v6690 = vadd.f32 0.0, %v6689
  %v6691 = vpop.f32.mrf.mxu0
  %6692 = vmatprep.mubr.f32.mxu0 0.0
  %6693 = vmatmul.mubr.f32.gmra.mxu0 %v6615
  %v6694 = vpop.f32.mrf.mxu0
  %v6695 = vadd.f32 0.0, %v6694
  %v6696 = vpop.f32.mrf.mxu0
  %6697 = vdwg.mxu0
  %6698 = vrot.lane.b32.xlu0 %v6609, 120
  %v6699 = vpop.permute.xlu0 %6698
  %6700 = vrot.lane.b32.xlu0 %v6610, 120
  %v6701 = vpop.permute.xlu0 %6700
  %6702 = vrot.lane.b32.xlu0 %v6601, 120
  %v6703 = vpop.permute.xlu0 %6702
  %6704 = vrot.lane.b32.xlu0 %v6606, 120
  %v6705 = vpop.permute.xlu0 %6704
  %v6706 = vsel %vm313, %v6699, 0
  %v6708 = vsel %vm313, %v6701, 0
  %v6710 = vsel %vm313, %v6703, 0
  %v6712 = vsel %vm313, %v6705, 0
  %6714 = vmatprep.subr.mxu0 0.0
  %6715 = vmatpush1.xpose.msra.mxu0 0.0
  %6716 = vmatprep.subr.mxu0 0.0
  %6717 = vmatpush1.xpose.msra.mxu0 0.0
  %6718 = vmatprep.subr.mxu0 0.0
  %6719 = vmatpush1.xpose.msra.mxu0 0.0
  %6720 = vmatprep.subr.mxu0 0.0
  %6721 = vmatpush1.xpose.msra.mxu0 0.0
  %6722 = vmatprep.subr.mxu0 0.0
  %6723 = vmatpush1.xpose.msra.mxu0 0.0
  %6724 = vmatprep.subr.mxu0 0.0
  %6725 = vmatpush1.xpose.msra.mxu0 0.0
  %6726 = vmatprep.subr.mxu0 0.0
  %6727 = vmatpush1.xpose.msra.mxu0 0.0
  %6728 = vmatprep.subr.mxu0 0.0
  %6729 = vmatpush1.xpose.msra.mxu0 0.0
  %6730 = vmatprep.subr.mxu0 0.0
  %6731 = vmatpush1.xpose.msra.mxu0 0.0
  %6732 = vmatprep.subr.mxu0 0.0
  %6733 = vmatpush1.xpose.msra.mxu0 0.0
  %6734 = vmatprep.subr.mxu0 0.0
  %6735 = vmatpush1.xpose.msra.mxu0 0.0
  %6736 = vmatprep.subr.mxu0 0.0
  %6737 = vmatpush1.xpose.msra.mxu0 0.0
  %6738 = vmatprep.subr.mxu0 0.0
  %6739 = vmatpush1.xpose.msra.mxu0 0.0
  %6740 = vmatprep.subr.mxu0 0.0
  %6741 = vmatpush1.xpose.msra.mxu0 0.0
  %6742 = vmatprep.subr.mxu0 0.0
  %6743 = vmatpush1.xpose.msra.mxu0 %v6712
  %6744 = vmatprep.subr.mxu0 0.0
  %6745 = vmatpush1.xpose.msra.mxu0 %v6710
  %6746 = vmatprep.subr.mxu0 0.0
  %6747 = vmatpush2.xpose.msra.mxu0 0.0
  %6748 = vmatprep.subr.mxu0 0.0
  %6749 = vmatpush2.xpose.msra.mxu0 0.0
  %6750 = vmatprep.subr.mxu0 0.0
  %6751 = vmatpush2.xpose.msra.mxu0 0.0
  %6752 = vmatprep.subr.mxu0 0.0
  %6753 = vmatpush2.xpose.msra.mxu0 0.0
  %6754 = vmatprep.subr.mxu0 0.0
  %6755 = vmatpush2.xpose.msra.mxu0 0.0
  %6756 = vmatprep.subr.mxu0 0.0
  %6757 = vmatpush2.xpose.msra.mxu0 0.0
  %6758 = vmatprep.subr.mxu0 0.0
  %6759 = vmatpush2.xpose.msra.mxu0 0.0
  %6760 = vmatprep.subr.mxu0 0.0
  %6761 = vmatpush2.xpose.msra.mxu0 0.0
  %6762 = vmatprep.subr.mxu0 0.0
  %6763 = vmatpush2.xpose.msra.mxu0 0.0
  %6764 = vmatprep.subr.mxu0 0.0
  %6765 = vmatpush2.xpose.msra.mxu0 0.0
  %6766 = vmatprep.subr.mxu0 0.0
  %6767 = vmatpush2.xpose.msra.mxu0 0.0
  %6768 = vmatprep.subr.mxu0 0.0
  %6769 = vmatpush2.xpose.msra.mxu0 0.0
  %6770 = vmatprep.subr.mxu0 0.0
  %6771 = vmatpush2.xpose.msra.mxu0 0.0
  %6772 = vmatprep.subr.mxu0 0.0
  %6773 = vmatpush2.xpose.msra.mxu0 0.0
  %6774 = vmatprep.subr.mxu0 0.0
  %6775 = vmatpush2.xpose.msra.mxu0 0.0
  %6776 = vmatprep.subr.mxu0 0.0
  %6777 = vmatpush2.xpose.msra.mxu0 0.0
  %6778 = vmatprep.mubr.f32.mxu0 0.0
  %6779 = vmatmul.mubr.f32.gmra.mxu0 %v6706
  %v6780 = vpop.f32.mrf.mxu0
  %v6781 = vadd.f32 0.0, %v6780
  %v6782 = vpop.f32.mrf.mxu0
  %6783 = vmatprep.mubr.f32.mxu0 0.0
  %6784 = vmatmul.mubr.f32.gmra.mxu0 %v6708
  %v6785 = vpop.f32.mrf.mxu0
  %v6786 = vadd.f32 0.0, %v6785
  %v6787 = vpop.f32.mrf.mxu0
  %6788 = vdwg.mxu0
  %6789 = vrot.lane.b32.xlu0 %v6609, 112
  %v6790 = vpop.permute.xlu0 %6789
  %6791 = vrot.lane.b32.xlu0 %v6610, 112
  %v6792 = vpop.permute.xlu0 %6791
  %6793 = vrot.lane.b32.xlu0 %v6601, 112
  %v6794 = vpop.permute.xlu0 %6793
  %6795 = vrot.lane.b32.xlu0 %v6606, 112
  %v6796 = vpop.permute.xlu0 %6795
  %v6797 = vsel %vm313, %v6790, 0
  %v6799 = vsel %vm313, %v6792, 0
  %v6801 = vsel %vm313, %v6794, 0
  %v6803 = vsel %vm313, %v6796, 0
  %6805 = vmatprep.subr.mxu0 0.0
  %6806 = vmatpush1.xpose.msra.mxu0 0.0
  %6807 = vmatprep.subr.mxu0 0.0
  %6808 = vmatpush1.xpose.msra.mxu0 0.0
  %6809 = vmatprep.subr.mxu0 0.0
  %6810 = vmatpush1.xpose.msra.mxu0 0.0
  %6811 = vmatprep.subr.mxu0 0.0
  %6812 = vmatpush1.xpose.msra.mxu0 0.0
  %6813 = vmatprep.subr.mxu0 0.0
  %6814 = vmatpush1.xpose.msra.mxu0 0.0
  %6815 = vmatprep.subr.mxu0 0.0
  %6816 = vmatpush1.xpose.msra.mxu0 0.0
  %6817 = vmatprep.subr.mxu0 0.0
  %6818 = vmatpush1.xpose.msra.mxu0 0.0
  %6819 = vmatprep.subr.mxu0 0.0
  %6820 = vmatpush1.xpose.msra.mxu0 0.0
  %6821 = vmatprep.subr.mxu0 0.0
  %6822 = vmatpush1.xpose.msra.mxu0 0.0
  %6823 = vmatprep.subr.mxu0 0.0
  %6824 = vmatpush1.xpose.msra.mxu0 0.0
  %6825 = vmatprep.subr.mxu0 0.0
  %6826 = vmatpush1.xpose.msra.mxu0 0.0
  %6827 = vmatprep.subr.mxu0 0.0
  %6828 = vmatpush1.xpose.msra.mxu0 0.0
  %6829 = vmatprep.subr.mxu0 0.0
  %6830 = vmatpush1.xpose.msra.mxu0 0.0
  %6831 = vmatprep.subr.mxu0 0.0
  %6832 = vmatpush1.xpose.msra.mxu0 0.0
  %6833 = vmatprep.subr.mxu0 0.0
  %6834 = vmatpush1.xpose.msra.mxu0 %v6803
  %6835 = vmatprep.subr.mxu0 0.0
  %6836 = vmatpush1.xpose.msra.mxu0 %v6801
  %6837 = vmatprep.subr.mxu0 0.0
  %6838 = vmatpush2.xpose.msra.mxu0 0.0
  %6839 = vmatprep.subr.mxu0 0.0
  %6840 = vmatpush2.xpose.msra.mxu0 0.0
  %6841 = vmatprep.subr.mxu0 0.0
  %6842 = vmatpush2.xpose.msra.mxu0 0.0
  %6843 = vmatprep.subr.mxu0 0.0
  %6844 = vmatpush2.xpose.msra.mxu0 0.0
  %6845 = vmatprep.subr.mxu0 0.0
  %6846 = vmatpush2.xpose.msra.mxu0 0.0
  %6847 = vmatprep.subr.mxu0 0.0
  %6848 = vmatpush2.xpose.msra.mxu0 0.0
  %6849 = vmatprep.subr.mxu0 0.0
  %6850 = vmatpush2.xpose.msra.mxu0 0.0
  %6851 = vmatprep.subr.mxu0 0.0
  %6852 = vmatpush2.xpose.msra.mxu0 0.0
  %6853 = vmatprep.subr.mxu0 0.0
  %6854 = vmatpush2.xpose.msra.mxu0 0.0
  %6855 = vmatprep.subr.mxu0 0.0
  %6856 = vmatpush2.xpose.msra.mxu0 0.0
  %6857 = vmatprep.subr.mxu0 0.0
  %6858 = vmatpush2.xpose.msra.mxu0 0.0
  %6859 = vmatprep.subr.mxu0 0.0
  %6860 = vmatpush2.xpose.msra.mxu0 0.0
  %6861 = vmatprep.subr.mxu0 0.0
  %6862 = vmatpush2.xpose.msra.mxu0 0.0
  %6863 = vmatprep.subr.mxu0 0.0
  %6864 = vmatpush2.xpose.msra.mxu0 0.0
  %6865 = vmatprep.subr.mxu0 0.0
  %6866 = vmatpush2.xpose.msra.mxu0 0.0
  %6867 = vmatprep.subr.mxu0 0.0
  %6868 = vmatpush2.xpose.msra.mxu0 0.0
  %6869 = vmatprep.mubr.f32.mxu0 0.0
  %6870 = vmatmul.mubr.f32.gmra.mxu0 %v6797
  %v6871 = vpop.f32.mrf.mxu0
  %v6872 = vadd.f32 0.0, %v6871
  %v6873 = vpop.f32.mrf.mxu0
  %6874 = vmatprep.mubr.f32.mxu0 0.0
  %6875 = vmatmul.mubr.f32.gmra.mxu0 %v6799
  %v6876 = vpop.f32.mrf.mxu0
  %v6877 = vadd.f32 0.0, %v6876
  %v6878 = vpop.f32.mrf.mxu0
  %6879 = vdwg.mxu0
  %6880 = vrot.lane.b32.xlu0 %v6609, 104
  %v6881 = vpop.permute.xlu0 %6880
  %6882 = vrot.lane.b32.xlu0 %v6610, 104
  %v6883 = vpop.permute.xlu0 %6882
  %6884 = vrot.lane.b32.xlu0 %v6601, 104
  %v6885 = vpop.permute.xlu0 %6884
  %6886 = vrot.lane.b32.xlu0 %v6606, 104
  %v6887 = vpop.permute.xlu0 %6886
  %v6888 = vsel %vm313, %v6881, 0
  %v6890 = vsel %vm313, %v6883, 0
  %v6892 = vsel %vm313, %v6885, 0
  %v6894 = vsel %vm313, %v6887, 0
  %6896 = vmatprep.subr.mxu0 0.0
  %6897 = vmatpush1.xpose.msra.mxu0 0.0
  %6898 = vmatprep.subr.mxu0 0.0
  %6899 = vmatpush1.xpose.msra.mxu0 0.0
  %6900 = vmatprep.subr.mxu0 0.0
  %6901 = vmatpush1.xpose.msra.mxu0 0.0
  %6902 = vmatprep.subr.mxu0 0.0
  %6903 = vmatpush1.xpose.msra.mxu0 0.0
  %6904 = vmatprep.subr.mxu0 0.0
  %6905 = vmatpush1.xpose.msra.mxu0 0.0
  %6906 = vmatprep.subr.mxu0 0.0
  %6907 = vmatpush1.xpose.msra.mxu0 0.0
  %6908 = vmatprep.subr.mxu0 0.0
  %6909 = vmatpush1.xpose.msra.mxu0 0.0
  %6910 = vmatprep.subr.mxu0 0.0
  %6911 = vmatpush1.xpose.msra.mxu0 0.0
  %6912 = vmatprep.subr.mxu0 0.0
  %6913 = vmatpush1.xpose.msra.mxu0 0.0
  %6914 = vmatprep.subr.mxu0 0.0
  %6915 = vmatpush1.xpose.msra.mxu0 0.0
  %6916 = vmatprep.subr.mxu0 0.0
  %6917 = vmatpush1.xpose.msra.mxu0 0.0
  %6918 = vmatprep.subr.mxu0 0.0
  %6919 = vmatpush1.xpose.msra.mxu0 0.0
  %6920 = vmatprep.subr.mxu0 0.0
  %6921 = vmatpush1.xpose.msra.mxu0 0.0
  %6922 = vmatprep.subr.mxu0 0.0
  %6923 = vmatpush1.xpose.msra.mxu0 0.0
  %6924 = vmatprep.subr.mxu0 0.0
  %6925 = vmatpush1.xpose.msra.mxu0 %v6894
  %6926 = vmatprep.subr.mxu0 0.0
  %6927 = vmatpush1.xpose.msra.mxu0 %v6892
  %6928 = vmatprep.subr.mxu0 0.0
  %6929 = vmatpush2.xpose.msra.mxu0 0.0
  %6930 = vmatprep.subr.mxu0 0.0
  %6931 = vmatpush2.xpose.msra.mxu0 0.0
  %6932 = vmatprep.subr.mxu0 0.0
  %6933 = vmatpush2.xpose.msra.mxu0 0.0
  %6934 = vmatprep.subr.mxu0 0.0
  %6935 = vmatpush2.xpose.msra.mxu0 0.0
  %6936 = vmatprep.subr.mxu0 0.0
  %6937 = vmatpush2.xpose.msra.mxu0 0.0
  %6938 = vmatprep.subr.mxu0 0.0
  %6939 = vmatpush2.xpose.msra.mxu0 0.0
  %6940 = vmatprep.subr.mxu0 0.0
  %6941 = vmatpush2.xpose.msra.mxu0 0.0
  %6942 = vmatprep.subr.mxu0 0.0
  %6943 = vmatpush2.xpose.msra.mxu0 0.0
  %6944 = vmatprep.subr.mxu0 0.0
  %6945 = vmatpush2.xpose.msra.mxu0 0.0
  %6946 = vmatprep.subr.mxu0 0.0
  %6947 = vmatpush2.xpose.msra.mxu0 0.0
  %6948 = vmatprep.subr.mxu0 0.0
  %6949 = vmatpush2.xpose.msra.mxu0 0.0
  %6950 = vmatprep.subr.mxu0 0.0
  %6951 = vmatpush2.xpose.msra.mxu0 0.0
  %6952 = vmatprep.subr.mxu0 0.0
  %6953 = vmatpush2.xpose.msra.mxu0 0.0
  %6954 = vmatprep.subr.mxu0 0.0
  %6955 = vmatpush2.xpose.msra.mxu0 0.0
  %6956 = vmatprep.subr.mxu0 0.0
  %6957 = vmatpush2.xpose.msra.mxu0 0.0
  %6958 = vmatprep.subr.mxu0 0.0
  %6959 = vmatpush2.xpose.msra.mxu0 0.0
  %6960 = vmatprep.mubr.f32.mxu0 0.0
  %6961 = vmatmul.mubr.f32.gmra.mxu0 %v6888
  %v6962 = vpop.f32.mrf.mxu0
  %v6963 = vadd.f32 0.0, %v6962
  %v6964 = vpop.f32.mrf.mxu0
  %6965 = vmatprep.mubr.f32.mxu0 0.0
  %6966 = vmatmul.mubr.f32.gmra.mxu0 %v6890
  %v6967 = vpop.f32.mrf.mxu0
  %v6968 = vadd.f32 0.0, %v6967
  %v6969 = vpop.f32.mrf.mxu0
  %6970 = vdwg.mxu0
  %v6971 = vadd.f32 %v6690, %v2831
  %v6972 = vadd.f32 %v6695, %v2832
  %v6973 = vadd.f32 %v6781, %v2831
  %v6974 = vadd.f32 %v6786, %v2832
  %v6975 = vadd.f32 %v6872, %v2831
  %v6976 = vadd.f32 %v6877, %v2832
  %v6977 = vadd.f32 %v6963, %v2831
  %v6978 = vadd.f32 %v6968, %v2832
  %v6979 = vsel %vm680, %v6971, -inf
  %6980 = vmax.xlane.f32.xlu0 %v6979
  %v6981 = vpop.xlane.xlu0 %6980
  %v6982 = vsel %vm4493, %v6972, -inf
  %6983 = vmax.xlane.f32.xlu0 %v6982
  %v6984 = vpop.xlane.xlu0 %6983
  %v6985 = vsel %vm680, %v6973, -inf
  %6986 = vmax.xlane.f32.xlu0 %v6985
  %v6987 = vpop.xlane.xlu0 %6986
  %v6988 = vsel %vm4493, %v6974, -inf
  %6989 = vmax.xlane.f32.xlu0 %v6988
  %v6990 = vpop.xlane.xlu0 %6989
  %v6991 = vsel %vm680, %v6975, -inf
  %6992 = vmax.xlane.f32.xlu0 %v6991
  %v6993 = vpop.xlane.xlu0 %6992
  %v6994 = vsel %vm4493, %v6976, -inf
  %6995 = vmax.xlane.f32.xlu0 %v6994
  %v6996 = vpop.xlane.xlu0 %6995
  %v6997 = vsel %vm680, %v6977, -inf
  %6998 = vmax.xlane.f32.xlu0 %v6997
  %v6999 = vpop.xlane.xlu0 %6998
  %v7000 = vsel %vm4493, %v6978, -inf
  %7001 = vmax.xlane.f32.xlu0 %v7000
  %v7002 = vpop.xlane.xlu0 %7001
  %v7003 = vsub.f32 %v6971, %v6981
  %v7004 = vsub.f32 %v6972, %v6984
  %v7005 = vsub.f32 %v6973, %v6987
  %v7006 = vsub.f32 %v6974, %v6990
  %v7007 = vsub.f32 %v6975, %v6993
  %v7008 = vsub.f32 %v6976, %v6996
  %v7009 = vsub.f32 %v6977, %v6999
  %v7010 = vsub.f32 %v6978, %v7002
  %v7011 = vmul.f32 %v7003, 1.442695
  %v7012 = vpow.pop %v7011
  %v7013 = vmul.f32 %v7004, 1.442695
  %v7014 = vpow.pop %v7013
  %v7015 = vmul.f32 %v7005, 1.442695
  %v7016 = vpow.pop %v7015
  %v7017 = vmul.f32 %v7006, 1.442695
  %v7018 = vpow.pop %v7017
  %v7019 = vmul.f32 %v7007, 1.442695
  %v7020 = vpow.pop %v7019
  %v7021 = vmul.f32 %v7008, 1.442695
  %v7022 = vpow.pop %v7021
  %v7023 = vmul.f32 %v7009, 1.442695
  %v7024 = vpow.pop %v7023
  %v7025 = vmul.f32 %v7010, 1.442695
  %v7026 = vpow.pop %v7025
  %v7027 = vsel %vm680, %v7012, 0.0
  %7028 = vadd.xlane.f32.xlu0 %v7027
  %v7029 = vpop.xlane.xlu0 %7028
  %v7030 = vsel %vm4493, %v7014, 0.0
  %7031 = vadd.xlane.f32.xlu0 %v7030
  %v7032 = vpop.xlane.xlu0 %7031
  %v7033 = vsel %vm680, %v7016, 0.0
  %7034 = vadd.xlane.f32.xlu0 %v7033
  %v7035 = vpop.xlane.xlu0 %7034
  %v7036 = vsel %vm4493, %v7018, 0.0
  %7037 = vadd.xlane.f32.xlu0 %v7036
  %v7038 = vpop.xlane.xlu0 %7037
  %v7039 = vsel %vm680, %v7020, 0.0
  %7040 = vadd.xlane.f32.xlu0 %v7039
  %v7041 = vpop.xlane.xlu0 %7040
  %v7042 = vsel %vm4493, %v7022, 0.0
  %7043 = vadd.xlane.f32.xlu0 %v7042
  %v7044 = vpop.xlane.xlu0 %7043
  %v7045 = vsel %vm680, %v7024, 0.0
  %7046 = vadd.xlane.f32.xlu0 %v7045
  %v7047 = vpop.xlane.xlu0 %7046
  %v7048 = vsel %vm4493, %v7026, 0.0
  %7049 = vadd.xlane.f32.xlu0 %v7048
  %v7050 = vpop.xlane.xlu0 %7049
  %v7051 = vrcp.pop %v7029
  %v7052 = vrcp.pop %v7032
  %v7053 = vrcp.pop %v7035
  %v7054 = vrcp.pop %v7038
  %v7055 = vrcp.pop %v7041
  %v7056 = vrcp.pop %v7044
  %v7057 = vrcp.pop %v7047
  %v7058 = vrcp.pop %v7050
  %v7059 = vmul.f32 %v7012, %v7051
  %v7060 = vmul.f32 %v7014, %v7052
  %v7061 = vmul.f32 %v7016, %v7053
  %v7062 = vmul.f32 %v7018, %v7054
  %v7063 = vmul.f32 %v7020, %v7055
  %v7064 = vmul.f32 %v7022, %v7056
  %v7065 = vmul.f32 %v7024, %v7057
  %v7066 = vmul.f32 %v7026, %v7058
  %7067 = vrot.lane.b32.xlu0 %v6601, 96
  %v7068 = vpop.permute.xlu0 %7067
  %7069 = vrot.lane.b32.xlu0 %v6606, 96
  %v7070 = vpop.permute.xlu0 %7069
  %v7074 = vsel %vm680, %v7059, 0
  %v7077 = vsel %vm680, %v7060, 0
  %7079 = vmatprep.subr.mxu0 0.0
  %7080 = vmatpush1.msra.mxu0 0.0
  %7081 = vmatprep.subr.mxu0 0.0
  %7082 = vmatpush1.msra.mxu0 0.0
  %7083 = vmatprep.subr.mxu0 0.0
  %7084 = vmatpush1.msra.mxu0 0.0
  %7085 = vmatprep.subr.mxu0 0.0
  %7086 = vmatpush1.msra.mxu0 0.0
  %7087 = vmatprep.subr.mxu0 0.0
  %7088 = vmatpush1.msra.mxu0 0.0
  %7089 = vmatprep.subr.mxu0 0.0
  %7090 = vmatpush1.msra.mxu0 0.0
  %7091 = vmatprep.subr.mxu0 0.0
  %7092 = vmatpush1.msra.mxu0 0.0
  %7093 = vmatprep.subr.mxu0 0.0
  %7094 = vmatpush1.msra.mxu0 0.0
  %7095 = vmatprep.subr.mxu0 0.0
  %7096 = vmatpush1.msra.mxu0 0.0
  %7097 = vmatprep.subr.mxu0 0.0
  %7098 = vmatpush1.msra.mxu0 0.0
  %7099 = vmatprep.subr.mxu0 0.0
  %7100 = vmatpush1.msra.mxu0 0.0
  %7101 = vmatprep.subr.mxu0 0.0
  %7102 = vmatpush1.msra.mxu0 0.0
  %7103 = vmatprep.subr.mxu0 0.0
  %7104 = vmatpush1.msra.mxu0 0.0
  %7105 = vmatprep.subr.mxu0 0.0
  %7106 = vmatpush1.msra.mxu0 0.0
  %7107 = vmatprep.subr.mxu0 0.0
  %7108 = vmatpush1.msra.mxu0 %v7070
  %7109 = vmatprep.subr.mxu0 0.0
  %7110 = vmatpush1.msra.mxu0 %v7068
  %7111 = vmatprep.subr.mxu0 0.0
  %7112 = vmatpush2.msra.mxu0 0.0
  %7113 = vmatprep.subr.mxu0 0.0
  %7114 = vmatpush2.msra.mxu0 0.0
  %7115 = vmatprep.subr.mxu0 0.0
  %7116 = vmatpush2.msra.mxu0 0.0
  %7117 = vmatprep.subr.mxu0 0.0
  %7118 = vmatpush2.msra.mxu0 0.0
  %7119 = vmatprep.subr.mxu0 0.0
  %7120 = vmatpush2.msra.mxu0 0.0
  %7121 = vmatprep.subr.mxu0 0.0
  %7122 = vmatpush2.msra.mxu0 0.0
  %7123 = vmatprep.subr.mxu0 0.0
  %7124 = vmatpush2.msra.mxu0 0.0
  %7125 = vmatprep.subr.mxu0 0.0
  %7126 = vmatpush2.msra.mxu0 0.0
  %7127 = vmatprep.subr.mxu0 0.0
  %7128 = vmatpush2.msra.mxu0 0.0
  %7129 = vmatprep.subr.mxu0 0.0
  %7130 = vmatpush2.msra.mxu0 0.0
  %7131 = vmatprep.subr.mxu0 0.0
  %7132 = vmatpush2.msra.mxu0 0.0
  %7133 = vmatprep.subr.mxu0 0.0
  %7134 = vmatpush2.msra.mxu0 0.0
  %7135 = vmatprep.subr.mxu0 0.0
  %7136 = vmatpush2.msra.mxu0 0.0
  %7137 = vmatprep.subr.mxu0 0.0
  %7138 = vmatpush2.msra.mxu0 0.0
  %7139 = vmatprep.subr.mxu0 0.0
  %7140 = vmatpush2.msra.mxu0 0.0
  %7141 = vmatprep.subr.mxu0 0.0
  %7142 = vmatpush2.msra.mxu0 0.0
  %7143 = vmatprep.mubr.f32.mxu0 0.0
  %7144 = vmatmul.mubr.f32.gmra.mxu0 %v7074
  %v7145 = vpop.f32.mrf.mxu0
  %v7146 = vadd.f32 0.0, %v7145
  %v7147 = vpop.f32.mrf.mxu0
  %7148 = vmatprep.mubr.f32.mxu0 0.0
  %7149 = vmatmul.mubr.f32.gmra.mxu0 %v7077
  %v7150 = vpop.f32.mrf.mxu0
  %v7151 = vadd.f32 0.0, %v7150
  %v7152 = vpop.f32.mrf.mxu0
  %7153 = vdwg.mxu0
  %7154 = vrot.lane.b32.xlu0 %v6601, 88
  %v7155 = vpop.permute.xlu0 %7154
  %7156 = vrot.lane.b32.xlu0 %v6606, 88
  %v7157 = vpop.permute.xlu0 %7156
  %v7161 = vsel %vm680, %v7061, 0
  %v7164 = vsel %vm680, %v7062, 0
  %7166 = vmatprep.subr.mxu0 0.0
  %7167 = vmatpush1.msra.mxu0 0.0
  %7168 = vmatprep.subr.mxu0 0.0
  %7169 = vmatpush1.msra.mxu0 0.0
  %7170 = vmatprep.subr.mxu0 0.0
  %7171 = vmatpush1.msra.mxu0 0.0
  %7172 = vmatprep.subr.mxu0 0.0
  %7173 = vmatpush1.msra.mxu0 0.0
  %7174 = vmatprep.subr.mxu0 0.0
  %7175 = vmatpush1.msra.mxu0 0.0
  %7176 = vmatprep.subr.mxu0 0.0
  %7177 = vmatpush1.msra.mxu0 0.0
  %7178 = vmatprep.subr.mxu0 0.0
  %7179 = vmatpush1.msra.mxu0 0.0
  %7180 = vmatprep.subr.mxu0 0.0
  %7181 = vmatpush1.msra.mxu0 0.0
  %7182 = vmatprep.subr.mxu0 0.0
  %7183 = vmatpush1.msra.mxu0 0.0
  %7184 = vmatprep.subr.mxu0 0.0
  %7185 = vmatpush1.msra.mxu0 0.0
  %7186 = vmatprep.subr.mxu0 0.0
  %7187 = vmatpush1.msra.mxu0 0.0
  %7188 = vmatprep.subr.mxu0 0.0
  %7189 = vmatpush1.msra.mxu0 0.0
  %7190 = vmatprep.subr.mxu0 0.0
  %7191 = vmatpush1.msra.mxu0 0.0
  %7192 = vmatprep.subr.mxu0 0.0
  %7193 = vmatpush1.msra.mxu0 0.0
  %7194 = vmatprep.subr.mxu0 0.0
  %7195 = vmatpush1.msra.mxu0 %v7157
  %7196 = vmatprep.subr.mxu0 0.0
  %7197 = vmatpush1.msra.mxu0 %v7155
  %7198 = vmatprep.subr.mxu0 0.0
  %7199 = vmatpush2.msra.mxu0 0.0
  %7200 = vmatprep.subr.mxu0 0.0
  %7201 = vmatpush2.msra.mxu0 0.0
  %7202 = vmatprep.subr.mxu0 0.0
  %7203 = vmatpush2.msra.mxu0 0.0
  %7204 = vmatprep.subr.mxu0 0.0
  %7205 = vmatpush2.msra.mxu0 0.0
  %7206 = vmatprep.subr.mxu0 0.0
  %7207 = vmatpush2.msra.mxu0 0.0
  %7208 = vmatprep.subr.mxu0 0.0
  %7209 = vmatpush2.msra.mxu0 0.0
  %7210 = vmatprep.subr.mxu0 0.0
  %7211 = vmatpush2.msra.mxu0 0.0
  %7212 = vmatprep.subr.mxu0 0.0
  %7213 = vmatpush2.msra.mxu0 0.0
  %7214 = vmatprep.subr.mxu0 0.0
  %7215 = vmatpush2.msra.mxu0 0.0
  %7216 = vmatprep.subr.mxu0 0.0
  %7217 = vmatpush2.msra.mxu0 0.0
  %7218 = vmatprep.subr.mxu0 0.0
  %7219 = vmatpush2.msra.mxu0 0.0
  %7220 = vmatprep.subr.mxu0 0.0
  %7221 = vmatpush2.msra.mxu0 0.0
  %7222 = vmatprep.subr.mxu0 0.0
  %7223 = vmatpush2.msra.mxu0 0.0
  %7224 = vmatprep.subr.mxu0 0.0
  %7225 = vmatpush2.msra.mxu0 0.0
  %7226 = vmatprep.subr.mxu0 0.0
  %7227 = vmatpush2.msra.mxu0 0.0
  %7228 = vmatprep.subr.mxu0 0.0
  %7229 = vmatpush2.msra.mxu0 0.0
  %7230 = vmatprep.mubr.f32.mxu0 0.0
  %7231 = vmatmul.mubr.f32.gmra.mxu0 %v7161
  %v7232 = vpop.f32.mrf.mxu0
  %v7233 = vadd.f32 0.0, %v7232
  %v7234 = vpop.f32.mrf.mxu0
  %7235 = vmatprep.mubr.f32.mxu0 0.0
  %7236 = vmatmul.mubr.f32.gmra.mxu0 %v7164
  %v7237 = vpop.f32.mrf.mxu0
  %v7238 = vadd.f32 0.0, %v7237
  %v7239 = vpop.f32.mrf.mxu0
  %7240 = vdwg.mxu0
  %7241 = vrot.lane.b32.xlu0 %v6601, 80
  %v7242 = vpop.permute.xlu0 %7241
  %7243 = vrot.lane.b32.xlu0 %v6606, 80
  %v7244 = vpop.permute.xlu0 %7243
  %v7248 = vsel %vm680, %v7063, 0
  %v7251 = vsel %vm680, %v7064, 0
  %7253 = vmatprep.subr.mxu0 0.0
  %7254 = vmatpush1.msra.mxu0 0.0
  %7255 = vmatprep.subr.mxu0 0.0
  %7256 = vmatpush1.msra.mxu0 0.0
  %7257 = vmatprep.subr.mxu0 0.0
  %7258 = vmatpush1.msra.mxu0 0.0
  %7259 = vmatprep.subr.mxu0 0.0
  %7260 = vmatpush1.msra.mxu0 0.0
  %7261 = vmatprep.subr.mxu0 0.0
  %7262 = vmatpush1.msra.mxu0 0.0
  %7263 = vmatprep.subr.mxu0 0.0
  %7264 = vmatpush1.msra.mxu0 0.0
  %7265 = vmatprep.subr.mxu0 0.0
  %7266 = vmatpush1.msra.mxu0 0.0
  %7267 = vmatprep.subr.mxu0 0.0
  %7268 = vmatpush1.msra.mxu0 0.0
  %7269 = vmatprep.subr.mxu0 0.0
  %7270 = vmatpush1.msra.mxu0 0.0
  %7271 = vmatprep.subr.mxu0 0.0
  %7272 = vmatpush1.msra.mxu0 0.0
  %7273 = vmatprep.subr.mxu0 0.0
  %7274 = vmatpush1.msra.mxu0 0.0
  %7275 = vmatprep.subr.mxu0 0.0
  %7276 = vmatpush1.msra.mxu0 0.0
  %7277 = vmatprep.subr.mxu0 0.0
  %7278 = vmatpush1.msra.mxu0 0.0
  %7279 = vmatprep.subr.mxu0 0.0
  %7280 = vmatpush1.msra.mxu0 0.0
  %7281 = vmatprep.subr.mxu0 0.0
  %7282 = vmatpush1.msra.mxu0 %v7244
  %7283 = vmatprep.subr.mxu0 0.0
  %7284 = vmatpush1.msra.mxu0 %v7242
  %7285 = vmatprep.subr.mxu0 0.0
  %7286 = vmatpush2.msra.mxu0 0.0
  %7287 = vmatprep.subr.mxu0 0.0
  %7288 = vmatpush2.msra.mxu0 0.0
  %7289 = vmatprep.subr.mxu0 0.0
  %7290 = vmatpush2.msra.mxu0 0.0
  %7291 = vmatprep.subr.mxu0 0.0
  %7292 = vmatpush2.msra.mxu0 0.0
  %7293 = vmatprep.subr.mxu0 0.0
  %7294 = vmatpush2.msra.mxu0 0.0
  %7295 = vmatprep.subr.mxu0 0.0
  %7296 = vmatpush2.msra.mxu0 0.0
  %7297 = vmatprep.subr.mxu0 0.0
  %7298 = vmatpush2.msra.mxu0 0.0
  %7299 = vmatprep.subr.mxu0 0.0
  %7300 = vmatpush2.msra.mxu0 0.0
  %7301 = vmatprep.subr.mxu0 0.0
  %7302 = vmatpush2.msra.mxu0 0.0
  %7303 = vmatprep.subr.mxu0 0.0
  %7304 = vmatpush2.msra.mxu0 0.0
  %7305 = vmatprep.subr.mxu0 0.0
  %7306 = vmatpush2.msra.mxu0 0.0
  %7307 = vmatprep.subr.mxu0 0.0
  %7308 = vmatpush2.msra.mxu0 0.0
  %7309 = vmatprep.subr.mxu0 0.0
  %7310 = vmatpush2.msra.mxu0 0.0
  %7311 = vmatprep.subr.mxu0 0.0
  %7312 = vmatpush2.msra.mxu0 0.0
  %7313 = vmatprep.subr.mxu0 0.0
  %7314 = vmatpush2.msra.mxu0 0.0
  %7315 = vmatprep.subr.mxu0 0.0
  %7316 = vmatpush2.msra.mxu0 0.0
  %7317 = vmatprep.mubr.f32.mxu0 0.0
  %7318 = vmatmul.mubr.f32.gmra.mxu0 %v7248
  %v7319 = vpop.f32.mrf.mxu0
  %v7320 = vadd.f32 0.0, %v7319
  %v7321 = vpop.f32.mrf.mxu0
  %7322 = vmatprep.mubr.f32.mxu0 0.0
  %7323 = vmatmul.mubr.f32.gmra.mxu0 %v7251
  %v7324 = vpop.f32.mrf.mxu0
  %v7325 = vadd.f32 0.0, %v7324
  %v7326 = vpop.f32.mrf.mxu0
  %7327 = vdwg.mxu0
  %7328 = vrot.lane.b32.xlu0 %v6601, 72
  %v7329 = vpop.permute.xlu0 %7328
  %7330 = vrot.lane.b32.xlu0 %v6606, 72
  %v7331 = vpop.permute.xlu0 %7330
  %v7335 = vsel %vm680, %v7065, 0
  %v7338 = vsel %vm680, %v7066, 0
  %7340 = vmatprep.subr.mxu0 0.0
  %7341 = vmatpush1.msra.mxu0 0.0
  %7342 = vmatprep.subr.mxu0 0.0
  %7343 = vmatpush1.msra.mxu0 0.0
  %7344 = vmatprep.subr.mxu0 0.0
  %7345 = vmatpush1.msra.mxu0 0.0
  %7346 = vmatprep.subr.mxu0 0.0
  %7347 = vmatpush1.msra.mxu0 0.0
  %7348 = vmatprep.subr.mxu0 0.0
  %7349 = vmatpush1.msra.mxu0 0.0
  %7350 = vmatprep.subr.mxu0 0.0
  %7351 = vmatpush1.msra.mxu0 0.0
  %7352 = vmatprep.subr.mxu0 0.0
  %7353 = vmatpush1.msra.mxu0 0.0
  %7354 = vmatprep.subr.mxu0 0.0
  %7355 = vmatpush1.msra.mxu0 0.0
  %7356 = vmatprep.subr.mxu0 0.0
  %7357 = vmatpush1.msra.mxu0 0.0
  %7358 = vmatprep.subr.mxu0 0.0
  %7359 = vmatpush1.msra.mxu0 0.0
  %7360 = vmatprep.subr.mxu0 0.0
  %7361 = vmatpush1.msra.mxu0 0.0
  %7362 = vmatprep.subr.mxu0 0.0
  %7363 = vmatpush1.msra.mxu0 0.0
  %7364 = vmatprep.subr.mxu0 0.0
  %7365 = vmatpush1.msra.mxu0 0.0
  %7366 = vmatprep.subr.mxu0 0.0
  %7367 = vmatpush1.msra.mxu0 0.0
  %7368 = vmatprep.subr.mxu0 0.0
  %7369 = vmatpush1.msra.mxu0 %v7331
  %7370 = vmatprep.subr.mxu0 0.0
  %7371 = vmatpush1.msra.mxu0 %v7329
  %7372 = vmatprep.subr.mxu0 0.0
  %7373 = vmatpush2.msra.mxu0 0.0
  %7374 = vmatprep.subr.mxu0 0.0
  %7375 = vmatpush2.msra.mxu0 0.0
  %7376 = vmatprep.subr.mxu0 0.0
  %7377 = vmatpush2.msra.mxu0 0.0
  %7378 = vmatprep.subr.mxu0 0.0
  %7379 = vmatpush2.msra.mxu0 0.0
  %7380 = vmatprep.subr.mxu0 0.0
  %7381 = vmatpush2.msra.mxu0 0.0
  %7382 = vmatprep.subr.mxu0 0.0
  %7383 = vmatpush2.msra.mxu0 0.0
  %7384 = vmatprep.subr.mxu0 0.0
  %7385 = vmatpush2.msra.mxu0 0.0
  %7386 = vmatprep.subr.mxu0 0.0
  %7387 = vmatpush2.msra.mxu0 0.0
  %7388 = vmatprep.subr.mxu0 0.0
  %7389 = vmatpush2.msra.mxu0 0.0
  %7390 = vmatprep.subr.mxu0 0.0
  %7391 = vmatpush2.msra.mxu0 0.0
  %7392 = vmatprep.subr.mxu0 0.0
  %7393 = vmatpush2.msra.mxu0 0.0
  %7394 = vmatprep.subr.mxu0 0.0
  %7395 = vmatpush2.msra.mxu0 0.0
  %7396 = vmatprep.subr.mxu0 0.0
  %7397 = vmatpush2.msra.mxu0 0.0
  %7398 = vmatprep.subr.mxu0 0.0
  %7399 = vmatpush2.msra.mxu0 0.0
  %7400 = vmatprep.subr.mxu0 0.0
  %7401 = vmatpush2.msra.mxu0 0.0
  %7402 = vmatprep.subr.mxu0 0.0
  %7403 = vmatpush2.msra.mxu0 0.0
  %7404 = vmatprep.mubr.f32.mxu0 0.0
  %7405 = vmatmul.mubr.f32.gmra.mxu0 %v7335
  %v7406 = vpop.f32.mrf.mxu0
  %v7407 = vadd.f32 0.0, %v7406
  %v7408 = vpop.f32.mrf.mxu0
  %7409 = vmatprep.mubr.f32.mxu0 0.0
  %7410 = vmatmul.mubr.f32.gmra.mxu0 %v7338
  %v7411 = vpop.f32.mrf.mxu0
  %v7412 = vadd.f32 0.0, %v7411
  %v7413 = vpop.f32.mrf.mxu0
  %7414 = vdwg.mxu0
  %7417 = vrot.lane.b32.xlu0 %v7233, 8
  %v7418 = vpop.permute.xlu0 %7417
  %7419 = vrot.lane.b32.xlu0 %v7238, 8
  %v7420 = vpop.permute.xlu0 %7419
  %7425 = vrot.lane.b32.xlu0 %v7320, 16
  %v7426 = vpop.permute.xlu0 %7425
  %7427 = vrot.lane.b32.xlu0 %v7325, 16
  %v7428 = vpop.permute.xlu0 %7427
  %7433 = vrot.lane.b32.xlu0 %v7407, 24
  %v7434 = vpop.permute.xlu0 %7433
  %7435 = vrot.lane.b32.xlu0 %v7412, 24
  %v7436 = vpop.permute.xlu0 %7435
  %v7439 = vsel %vm313, %v7146, %v7418
  %v7440 = vsel %vm313, %v7151, %v7420
  %v7441 = vsel %vm680, %v7439, %v7426
  %v7442 = vsel %vm680, %v7440, %v7428
  %v7443 = vsel %vm1145, %v7441, %v7434
  %v7444 = vsel %vm1145, %v7442, %v7436
  %v7446 = vsel %vm223, %v7443, 0
  %v7449 = vsel %vm223, %v7444, 0
  %7451 = vmatprep.subr.mxu0 0.0
  %7452 = vmatpush1.msra.mxu0 0.0
  %7453 = vmatprep.subr.mxu0 0.0
  %7454 = vmatpush1.msra.mxu0 0.0
  %7455 = vmatprep.subr.mxu0 0.0
  %7456 = vmatpush1.msra.mxu0 0.0
  %7457 = vmatprep.subr.mxu0 0.0
  %7458 = vmatpush1.msra.mxu0 0.0
  %7459 = vmatprep.subr.mxu0 0.0
  %7460 = vmatpush1.msra.mxu0 0.0
  %7461 = vmatprep.subr.mxu0 0.0
  %7462 = vmatpush1.msra.mxu0 0.0
  %7463 = vmatprep.subr.mxu0 0.0
  %7464 = vmatpush1.msra.mxu0 0.0
  %7465 = vmatprep.subr.mxu0 0.0
  %7466 = vmatpush1.msra.mxu0 0.0
  %7467 = vmatprep.subr.mxu0 0.0
  %7468 = vmatpush1.msra.mxu0 0.0
  %7469 = vmatprep.subr.mxu0 0.0
  %7470 = vmatpush1.msra.mxu0 0.0
  %7471 = vmatprep.subr.mxu0 0.0
  %7472 = vmatpush1.msra.mxu0 0.0
  %7473 = vmatprep.subr.mxu0 0.0
  %7474 = vmatpush1.msra.mxu0 0.0
  %7475 = vmatprep.subr.mxu0 0.0
  %7476 = vmatpush1.msra.mxu0 %v5348
  %7477 = vmatprep.subr.mxu0 0.0
  %7478 = vmatpush1.msra.mxu0 %v5347
  %7479 = vmatprep.subr.mxu0 0.0
  %7480 = vmatpush1.msra.mxu0 %v5346
  %7481 = vmatprep.subr.mxu0 0.0
  %7482 = vmatpush1.msra.mxu0 %v5345
  %7483 = vmatprep.subr.mxu0 0.0
  %7484 = vmatpush2.msra.mxu0 0.0
  %7485 = vmatprep.subr.mxu0 0.0
  %7486 = vmatpush2.msra.mxu0 0.0
  %7487 = vmatprep.subr.mxu0 0.0
  %7488 = vmatpush2.msra.mxu0 0.0
  %7489 = vmatprep.subr.mxu0 0.0
  %7490 = vmatpush2.msra.mxu0 0.0
  %7491 = vmatprep.subr.mxu0 0.0
  %7492 = vmatpush2.msra.mxu0 0.0
  %7493 = vmatprep.subr.mxu0 0.0
  %7494 = vmatpush2.msra.mxu0 0.0
  %7495 = vmatprep.subr.mxu0 0.0
  %7496 = vmatpush2.msra.mxu0 0.0
  %7497 = vmatprep.subr.mxu0 0.0
  %7498 = vmatpush2.msra.mxu0 0.0
  %7499 = vmatprep.subr.mxu0 0.0
  %7500 = vmatpush2.msra.mxu0 0.0
  %7501 = vmatprep.subr.mxu0 0.0
  %7502 = vmatpush2.msra.mxu0 0.0
  %7503 = vmatprep.subr.mxu0 0.0
  %7504 = vmatpush2.msra.mxu0 0.0
  %7505 = vmatprep.subr.mxu0 0.0
  %7506 = vmatpush2.msra.mxu0 0.0
  %7507 = vmatprep.subr.mxu0 0.0
  %7508 = vmatpush2.msra.mxu0 0.0
  %7509 = vmatprep.subr.mxu0 0.0
  %7510 = vmatpush2.msra.mxu0 0.0
  %7511 = vmatprep.subr.mxu0 0.0
  %7512 = vmatpush2.msra.mxu0 0.0
  %7513 = vmatprep.subr.mxu0 0.0
  %7514 = vmatpush2.msra.mxu0 0.0
  %7515 = vmatprep.mubr.f32.mxu0 0.0
  %7516 = vmatmul.mubr.f32.gmra.mxu0 %v7446
  %v7517 = vpop.f32.mrf.mxu0
  %v7518 = vadd.f32 0.0, %v7517
  %v7519 = vpop.f32.mrf.mxu0
  %7520 = vmatprep.mubr.f32.mxu0 0.0
  %7521 = vmatmul.mubr.f32.gmra.mxu0 %v7449
  %v7522 = vpop.f32.mrf.mxu0
  %v7523 = vadd.f32 0.0, %v7522
  %v7524 = vpop.f32.mrf.mxu0
  %7525 = vdwg.mxu0
  %v7526 = vadd.f32 %v6439, %v7518
  %v7527 = vadd.f32 %v6440, %v7523
  %v7529 = vlaneseq
  %v7530 = vshrl.u32 %v7529, 7
  %v7531 = vsub.s32 0, %v7530
  %v7532 = vrot.slane %v5350, %v7531
  %v7534 = vadd.f32 %v7526, %v7532
  %v7535 = vadd.f32 %v7527, %v7532
  %v7536 = vsel %vm223, %v7534, 0.0
  %7537 = vadd.xlane.f32.xlu0 %v7536
  %v7538 = vpop.xlane.xlu0 %7537
  %v7539 = vsel %vm3906, %v7535, 0.0
  %7540 = vadd.xlane.f32.xlu0 %v7539
  %v7541 = vpop.xlane.xlu0 %7540
  %v7542 = vmul.f32 %v7538, %v1245
  %v7543 = vmul.f32 %v7541, %v1245
  %v7544 = vsub.f32 %v7534, %v7542
  %v7545 = vsub.f32 %v7535, %v7543
  %v7546 = vmul.f32 %v7544, %v7544
  %v7547 = vmul.f32 %v7545, %v7545
  %v7548 = vsel %vm223, %v7546, 0.0
  %7549 = vadd.xlane.f32.xlu0 %v7548
  %v7550 = vpop.xlane.xlu0 %7549
  %v7551 = vsel %vm3906, %v7547, 0.0
  %7552 = vadd.xlane.f32.xlu0 %v7551
  %v7553 = vpop.xlane.xlu0 %7552
  %v7554 = vmul.f32 %v7550, %v1245
  %v7555 = vmul.f32 %v7553, %v1245
  %v7556 = vadd.f32 %v7554, 1e-05
  %v7557 = vadd.f32 %v7555, 1e-05
  %v7558 = vrsqrt.pop %v7556
  %v7559 = vrsqrt.pop %v7557
  %v7560 = vmul.f32 %v7544, %v7558
  %v7561 = vmul.f32 %v7545, %v7559
  %v7563 = vlaneseq
  %v7564 = vshrl.u32 %v7563, 7
  %v7565 = vsub.s32 0, %v7564
  %v7566 = vrot.slane %v5352, %v7565
  %v7568 = vmul.f32 %v7560, %v7566
  %v7569 = vmul.f32 %v7561, %v7566
  %v7571 = vlaneseq
  %v7572 = vshrl.u32 %v7571, 7
  %v7573 = vsub.s32 0, %v7572
  %v7574 = vrot.slane %v5354, %v7573
  %v7576 = vadd.f32 %v7568, %v7574
  %v7577 = vadd.f32 %v7569, %v7574
  %v7579 = vlaneseq
  %v7580 = vshrl.u32 %v7579, 7
  %v7581 = vsub.s32 0, %v7580
  %v7582 = vrot.slane %v5361, %v7581
  %v7585 = vsel %vm223, %v7576, 0
  %v7588 = vsel %vm223, %v7577, 0
  %7590 = vmatprep.subr.mxu0 0.0
  %7591 = vmatpush1.msra.mxu0 0.0
  %7592 = vmatprep.subr.mxu0 0.0
  %7593 = vmatpush1.msra.mxu0 0.0
  %7594 = vmatprep.subr.mxu0 0.0
  %7595 = vmatpush1.msra.mxu0 0.0
  %7596 = vmatprep.subr.mxu0 0.0
  %7597 = vmatpush1.msra.mxu0 0.0
  %7598 = vmatprep.subr.mxu0 0.0
  %7599 = vmatpush1.msra.mxu0 0.0
  %7600 = vmatprep.subr.mxu0 0.0
  %7601 = vmatpush1.msra.mxu0 0.0
  %7602 = vmatprep.subr.mxu0 0.0
  %7603 = vmatpush1.msra.mxu0 0.0
  %7604 = vmatprep.subr.mxu0 0.0
  %7605 = vmatpush1.msra.mxu0 0.0
  %7606 = vmatprep.subr.mxu0 0.0
  %7607 = vmatpush1.msra.mxu0 0.0
  %7608 = vmatprep.subr.mxu0 0.0
  %7609 = vmatpush1.msra.mxu0 0.0
  %7610 = vmatprep.subr.mxu0 0.0
  %7611 = vmatpush1.msra.mxu0 0.0
  %7612 = vmatprep.subr.mxu0 0.0
  %7613 = vmatpush1.msra.mxu0 0.0
  %7614 = vmatprep.subr.mxu0 0.0
  %7615 = vmatpush1.msra.mxu0 %v5359
  %7616 = vmatprep.subr.mxu0 0.0
  %7617 = vmatpush1.msra.mxu0 %v5358
  %7618 = vmatprep.subr.mxu0 0.0
  %7619 = vmatpush1.msra.mxu0 %v5357
  %7620 = vmatprep.subr.mxu0 0.0
  %7621 = vmatpush1.msra.mxu0 %v5356
  %7622 = vmatprep.subr.mxu0 0.0
  %7623 = vmatpush2.msra.mxu0 0.0
  %7624 = vmatprep.subr.mxu0 0.0
  %7625 = vmatpush2.msra.mxu0 0.0
  %7626 = vmatprep.subr.mxu0 0.0
  %7627 = vmatpush2.msra.mxu0 0.0
  %7628 = vmatprep.subr.mxu0 0.0
  %7629 = vmatpush2.msra.mxu0 0.0
  %7630 = vmatprep.subr.mxu0 0.0
  %7631 = vmatpush2.msra.mxu0 0.0
  %7632 = vmatprep.subr.mxu0 0.0
  %7633 = vmatpush2.msra.mxu0 0.0
  %7634 = vmatprep.subr.mxu0 0.0
  %7635 = vmatpush2.msra.mxu0 0.0
  %7636 = vmatprep.subr.mxu0 0.0
  %7637 = vmatpush2.msra.mxu0 0.0
  %7638 = vmatprep.subr.mxu0 0.0
  %7639 = vmatpush2.msra.mxu0 0.0
  %7640 = vmatprep.subr.mxu0 0.0
  %7641 = vmatpush2.msra.mxu0 0.0
  %7642 = vmatprep.subr.mxu0 0.0
  %7643 = vmatpush2.msra.mxu0 0.0
  %7644 = vmatprep.subr.mxu0 0.0
  %7645 = vmatpush2.msra.mxu0 0.0
  %7646 = vmatprep.subr.mxu0 0.0
  %7647 = vmatpush2.msra.mxu0 0.0
  %7648 = vmatprep.subr.mxu0 0.0
  %7649 = vmatpush2.msra.mxu0 0.0
  %7650 = vmatprep.subr.mxu0 0.0
  %7651 = vmatpush2.msra.mxu0 0.0
  %7652 = vmatprep.subr.mxu0 0.0
  %7653 = vmatpush2.msra.mxu0 0.0
  %7654 = vmatprep.mubr.f32.mxu0 0.0
  %7655 = vmatmul.mubr.f32.gmra.mxu0 %v7585
  %v7656 = vpop.f32.mrf.mxu0
  %v7657 = vadd.f32 %v7582, %v7656
  %v7658 = vpop.f32.mrf.mxu0
  %7659 = vmatprep.mubr.f32.mxu0 0.0
  %7660 = vmatmul.mubr.f32.gmra.mxu0 %v7588
  %v7661 = vpop.f32.mrf.mxu0
  %v7662 = vadd.f32 %v7582, %v7661
  %v7663 = vpop.f32.mrf.mxu0
  %7664 = vdwg.mxu0
  %v7665 = vmax.f32 %v7657, 0.0
  %v7666 = vmax.f32 %v7662, 0.0
  %v7668 = vsel %vm1371, %v7665, 0
  %v7671 = vsel %vm1371, %v7666, 0
  %7673 = vmatprep.subr.mxu0 0.0
  %7674 = vmatpush1.msra.mxu0 0.0
  %7675 = vmatprep.subr.mxu0 0.0
  %7676 = vmatpush1.msra.mxu0 0.0
  %7677 = vmatprep.subr.mxu0 0.0
  %7678 = vmatpush1.msra.mxu0 0.0
  %7679 = vmatprep.subr.mxu0 0.0
  %7680 = vmatpush1.msra.mxu0 0.0
  %7681 = vmatprep.subr.mxu0 0.0
  %7682 = vmatpush1.msra.mxu0 0.0
  %7683 = vmatprep.subr.mxu0 0.0
  %7684 = vmatpush1.msra.mxu0 0.0
  %7685 = vmatprep.subr.mxu0 0.0
  %7686 = vmatpush1.msra.mxu0 0.0
  %7687 = vmatprep.subr.mxu0 0.0
  %7688 = vmatpush1.msra.mxu0 0.0
  %7689 = vmatprep.subr.mxu0 0.0
  %7690 = vmatpush1.msra.mxu0 %v5370
  %7691 = vmatprep.subr.mxu0 0.0
  %7692 = vmatpush1.msra.mxu0 %v5369
  %7693 = vmatprep.subr.mxu0 0.0
  %7694 = vmatpush1.msra.mxu0 %v5368
  %7695 = vmatprep.subr.mxu0 0.0
  %7696 = vmatpush1.msra.mxu0 %v5367
  %7697 = vmatprep.subr.mxu0 0.0
  %7698 = vmatpush1.msra.mxu0 %v5366
  %7699 = vmatprep.subr.mxu0 0.0
  %7700 = vmatpush1.msra.mxu0 %v5365
  %7701 = vmatprep.subr.mxu0 0.0
  %7702 = vmatpush1.msra.mxu0 %v5364
  %7703 = vmatprep.subr.mxu0 0.0
  %7704 = vmatpush1.msra.mxu0 %v5363
  %7705 = vmatprep.subr.mxu0 0.0
  %7706 = vmatpush2.msra.mxu0 0.0
  %7707 = vmatprep.subr.mxu0 0.0
  %7708 = vmatpush2.msra.mxu0 0.0
  %7709 = vmatprep.subr.mxu0 0.0
  %7710 = vmatpush2.msra.mxu0 0.0
  %7711 = vmatprep.subr.mxu0 0.0
  %7712 = vmatpush2.msra.mxu0 0.0
  %7713 = vmatprep.subr.mxu0 0.0
  %7714 = vmatpush2.msra.mxu0 0.0
  %7715 = vmatprep.subr.mxu0 0.0
  %7716 = vmatpush2.msra.mxu0 0.0
  %7717 = vmatprep.subr.mxu0 0.0
  %7718 = vmatpush2.msra.mxu0 0.0
  %7719 = vmatprep.subr.mxu0 0.0
  %7720 = vmatpush2.msra.mxu0 0.0
  %7721 = vmatprep.subr.mxu0 0.0
  %7722 = vmatpush2.msra.mxu0 0.0
  %7723 = vmatprep.subr.mxu0 0.0
  %7724 = vmatpush2.msra.mxu0 0.0
  %7725 = vmatprep.subr.mxu0 0.0
  %7726 = vmatpush2.msra.mxu0 0.0
  %7727 = vmatprep.subr.mxu0 0.0
  %7728 = vmatpush2.msra.mxu0 0.0
  %7729 = vmatprep.subr.mxu0 0.0
  %7730 = vmatpush2.msra.mxu0 0.0
  %7731 = vmatprep.subr.mxu0 0.0
  %7732 = vmatpush2.msra.mxu0 0.0
  %7733 = vmatprep.subr.mxu0 0.0
  %7734 = vmatpush2.msra.mxu0 0.0
  %7735 = vmatprep.subr.mxu0 0.0
  %7736 = vmatpush2.msra.mxu0 0.0
  %7737 = vmatprep.mubr.f32.mxu0 0.0
  %7738 = vmatmul.mubr.f32.gmra.mxu0 %v7668
  %v7739 = vpop.f32.mrf.mxu0
  %v7740 = vadd.f32 0.0, %v7739
  %v7741 = vpop.f32.mrf.mxu0
  %7742 = vmatprep.mubr.f32.mxu0 0.0
  %7743 = vmatmul.mubr.f32.gmra.mxu0 %v7671
  %v7744 = vpop.f32.mrf.mxu0
  %v7745 = vadd.f32 0.0, %v7744
  %v7746 = vpop.f32.mrf.mxu0
  %7747 = vdwg.mxu0
  %v7748 = vadd.f32 %v7576, %v7740
  %v7749 = vadd.f32 %v7577, %v7745
  %v7751 = vlaneseq
  %v7752 = vshrl.u32 %v7751, 7
  %v7753 = vsub.s32 0, %v7752
  %v7754 = vrot.slane %v5372, %v7753
  %v7756 = vadd.f32 %v7748, %v7754
  %v7757 = vadd.f32 %v7749, %v7754
  %v7758 = vsel %vm223, %v7756, 0.0
  %7759 = vadd.xlane.f32.xlu0 %v7758
  %v7760 = vpop.xlane.xlu0 %7759
  %v7761 = vsel %vm3906, %v7757, 0.0
  %7762 = vadd.xlane.f32.xlu0 %v7761
  %v7763 = vpop.xlane.xlu0 %7762
  %v7764 = vmul.f32 %v7760, %v1245
  %v7765 = vmul.f32 %v7763, %v1245
  %v7766 = vsub.f32 %v7756, %v7764
  %v7767 = vsub.f32 %v7757, %v7765
  %v7768 = vmul.f32 %v7766, %v7766
  %v7769 = vmul.f32 %v7767, %v7767
  %v7770 = vsel %vm223, %v7768, 0.0
  %7771 = vadd.xlane.f32.xlu0 %v7770
  %v7772 = vpop.xlane.xlu0 %7771
  %v7773 = vsel %vm3906, %v7769, 0.0
  %7774 = vadd.xlane.f32.xlu0 %v7773
  %v7775 = vpop.xlane.xlu0 %7774
  %v7776 = vmul.f32 %v7772, %v1245
  %v7777 = vmul.f32 %v7775, %v1245
  %v7778 = vadd.f32 %v7776, 1e-05
  %v7779 = vadd.f32 %v7777, 1e-05
  %v7780 = vrsqrt.pop %v7778
  %v7781 = vrsqrt.pop %v7779
  %v7782 = vmul.f32 %v7766, %v7780
  %v7783 = vmul.f32 %v7767, %v7781
  %v7785 = vlaneseq
  %v7786 = vshrl.u32 %v7785, 7
  %v7787 = vsub.s32 0, %v7786
  %v7788 = vrot.slane %v5374, %v7787
  %v7790 = vmul.f32 %v7782, %v7788
  %v7791 = vmul.f32 %v7783, %v7788
  %v7793 = vlaneseq
  %v7794 = vshrl.u32 %v7793, 7
  %v7795 = vsub.s32 0, %v7794
  %v7796 = vrot.slane %v5376, %v7795
  %v7798 = vadd.f32 %v7790, %v7796
  %v7799 = vadd.f32 %v7791, %v7796
  %7800 = vst.msk [vmem:[%s93] sm:$0xff] %vm680, %v7059
  %7801 = vst.msk [vmem:[%s93 + $0x8] sm:$0xf] %vm4493, %v7060
  %7802 = vst.msk [vmem:[%s93 + $0x10] sm:$0xff] %vm680, %v7061
  %7803 = vst.msk [vmem:[%s93 + $0x18] sm:$0xf] %vm4493, %v7062
  %7804 = vst.msk [vmem:[%s93 + $0x20] sm:$0xff] %vm680, %v7063
  %7805 = vst.msk [vmem:[%s93 + $0x28] sm:$0xf] %vm4493, %v7064
  %7806 = vst.msk [vmem:[%s93 + $0x30] sm:$0xff] %vm680, %v7065
  %7807 = vst.msk [vmem:[%s93 + $0x38] sm:$0xf] %vm4493, %v7066
  %v7808 = vld [vmem:[%s75] sm:$0xff]
  %v7809 = vld [vmem:[%s75 + $0x8] sm:$0xff]
  %v7810 = vld [vmem:[%s75 + $0x10] sm:$0xff]
  %v7811 = vld [vmem:[%s75 + $0x18] sm:$0xff]
  %v7812 = vld [vmem:[%s77] sm:$0x1]
  %v7814 = vlaneseq
  %v7815 = vshrl.u32 %v7814, 7
  %v7816 = vsub.s32 0, %v7815
  %v7817 = vrot.slane %v7812, %v7816
  %v7820 = vsel %vm223, %v7798, 0
  %v7823 = vsel %vm223, %v7799, 0
  %7825 = vmatprep.subr.mxu0 0.0
  %7826 = vmatpush1.msra.mxu0 0.0
  %7827 = vmatprep.subr.mxu0 0.0
  %7828 = vmatpush1.msra.mxu0 0.0
  %7829 = vmatprep.subr.mxu0 0.0
  %7830 = vmatpush1.msra.mxu0 0.0
  %7831 = vmatprep.subr.mxu0 0.0
  %7832 = vmatpush1.msra.mxu0 0.0
  %7833 = vmatprep.subr.mxu0 0.0
  %7834 = vmatpush1.msra.mxu0 0.0
  %7835 = vmatprep.subr.mxu0 0.0
  %7836 = vmatpush1.msra.mxu0 0.0
  %7837 = vmatprep.subr.mxu0 0.0
  %7838 = vmatpush1.msra.mxu0 0.0
  %7839 = vmatprep.subr.mxu0 0.0
  %7840 = vmatpush1.msra.mxu0 0.0
  %7841 = vmatprep.subr.mxu0 0.0
  %7842 = vmatpush1.msra.mxu0 0.0
  %7843 = vmatprep.subr.mxu0 0.0
  %7844 = vmatpush1.msra.mxu0 0.0
  %7845 = vmatprep.subr.mxu0 0.0
  %7846 = vmatpush1.msra.mxu0 0.0
  %7847 = vmatprep.subr.mxu0 0.0
  %7848 = vmatpush1.msra.mxu0 0.0
  %7849 = vmatprep.subr.mxu0 0.0
  %7850 = vmatpush1.msra.mxu0 %v7811
  %7851 = vmatprep.subr.mxu0 0.0
  %7852 = vmatpush1.msra.mxu0 %v7810
  %7853 = vmatprep.subr.mxu0 0.0
  %7854 = vmatpush1.msra.mxu0 %v7809
  %7855 = vmatprep.subr.mxu0 0.0
  %7856 = vmatpush1.msra.mxu0 %v7808
  %7857 = vmatprep.subr.mxu0 0.0
  %7858 = vmatpush2.msra.mxu0 0.0
  %7859 = vmatprep.subr.mxu0 0.0
  %7860 = vmatpush2.msra.mxu0 0.0
  %7861 = vmatprep.subr.mxu0 0.0
  %7862 = vmatpush2.msra.mxu0 0.0
  %7863 = vmatprep.subr.mxu0 0.0
  %7864 = vmatpush2.msra.mxu0 0.0
  %7865 = vmatprep.subr.mxu0 0.0
  %7866 = vmatpush2.msra.mxu0 0.0
  %7867 = vmatprep.subr.mxu0 0.0
  %7868 = vmatpush2.msra.mxu0 0.0
  %7869 = vmatprep.subr.mxu0 0.0
  %7870 = vmatpush2.msra.mxu0 0.0
  %7871 = vmatprep.subr.mxu0 0.0
  %7872 = vmatpush2.msra.mxu0 0.0
  %7873 = vmatprep.subr.mxu0 0.0
  %7874 = vmatpush2.msra.mxu0 0.0
  %7875 = vmatprep.subr.mxu0 0.0
  %7876 = vmatpush2.msra.mxu0 0.0
  %7877 = vmatprep.subr.mxu0 0.0
  %7878 = vmatpush2.msra.mxu0 0.0
  %7879 = vmatprep.subr.mxu0 0.0
  %7880 = vmatpush2.msra.mxu0 0.0
  %7881 = vmatprep.subr.mxu0 0.0
  %7882 = vmatpush2.msra.mxu0 0.0
  %7883 = vmatprep.subr.mxu0 0.0
  %7884 = vmatpush2.msra.mxu0 0.0
  %7885 = vmatprep.subr.mxu0 0.0
  %7886 = vmatpush2.msra.mxu0 0.0
  %7887 = vmatprep.subr.mxu0 0.0
  %7888 = vmatpush2.msra.mxu0 0.0
  %7889 = vmatprep.mubr.f32.mxu0 0.0
  %7890 = vmatmul.mubr.f32.gmra.mxu0 %v7820
  %v7891 = vpop.f32.mrf.mxu0
  %v7892 = vadd.f32 %v7817, %v7891
  %v7893 = vpop.f32.mrf.mxu0
  %7894 = vmatprep.mubr.f32.mxu0 0.0
  %7895 = vmatmul.mubr.f32.gmra.mxu0 %v7823
  %v7896 = vpop.f32.mrf.mxu0
  %v7897 = vadd.f32 %v7817, %v7896
  %v7898 = vpop.f32.mrf.mxu0
  %7899 = vdwg.mxu0
  %vm7900 = vcmask 80896
  %7901 = vst.msk [vmem:[%s87] sm:$0xff] %vm7900, %v7892
  %vm7902 = vcmask 76800
  %7903 = vst.msk [vmem:[%s87 + $0x8] sm:$0xf] %vm7902, %v7897
  %v7904 = vld [vmem:[%s79] sm:$0xff]
  %v7905 = vld [vmem:[%s79 + $0x8] sm:$0xff]
  %v7906 = vld [vmem:[%s79 + $0x10] sm:$0xff]
  %v7907 = vld [vmem:[%s79 + $0x18] sm:$0xff]
  %v7908 = vld [vmem:[%s81] sm:$0x1]
  %v7910 = vlaneseq
  %v7911 = vshrl.u32 %v7910, 7
  %v7912 = vsub.s32 0, %v7911
  %v7913 = vrot.slane %v7908, %v7912
  %7915 = vmatprep.subr.mxu0 0.0
  %7916 = vmatpush1.msra.mxu0 0.0
  %7917 = vmatprep.subr.mxu0 0.0
  %7918 = vmatpush1.msra.mxu0 0.0
  %7919 = vmatprep.subr.mxu0 0.0
  %7920 = vmatpush1.msra.mxu0 0.0
  %7921 = vmatprep.subr.mxu0 0.0
  %7922 = vmatpush1.msra.mxu0 0.0
  %7923 = vmatprep.subr.mxu0 0.0
  %7924 = vmatpush1.msra.mxu0 0.0
  %7925 = vmatprep.subr.mxu0 0.0
  %7926 = vmatpush1.msra.mxu0 0.0
  %7927 = vmatprep.subr.mxu0 0.0
  %7928 = vmatpush1.msra.mxu0 0.0
  %7929 = vmatprep.subr.mxu0 0.0
  %7930 = vmatpush1.msra.mxu0 0.0
  %7931 = vmatprep.subr.mxu0 0.0
  %7932 = vmatpush1.msra.mxu0 0.0
  %7933 = vmatprep.subr.mxu0 0.0
  %7934 = vmatpush1.msra.mxu0 0.0
  %7935 = vmatprep.subr.mxu0 0.0
  %7936 = vmatpush1.msra.mxu0 0.0
  %7937 = vmatprep.subr.mxu0 0.0
  %7938 = vmatpush1.msra.mxu0 0.0
  %7939 = vmatprep.subr.mxu0 0.0
  %7940 = vmatpush1.msra.mxu0 %v7907
  %7941 = vmatprep.subr.mxu0 0.0
  %7942 = vmatpush1.msra.mxu0 %v7906
  %7943 = vmatprep.subr.mxu0 0.0
  %7944 = vmatpush1.msra.mxu0 %v7905
  %7945 = vmatprep.subr.mxu0 0.0
  %7946 = vmatpush1.msra.mxu0 %v7904
  %7947 = vmatprep.subr.mxu0 0.0
  %7948 = vmatpush2.msra.mxu0 0.0
  %7949 = vmatprep.subr.mxu0 0.0
  %7950 = vmatpush2.msra.mxu0 0.0
  %7951 = vmatprep.subr.mxu0 0.0
  %7952 = vmatpush2.msra.mxu0 0.0
  %7953 = vmatprep.subr.mxu0 0.0
  %7954 = vmatpush2.msra.mxu0 0.0
  %7955 = vmatprep.subr.mxu0 0.0
  %7956 = vmatpush2.msra.mxu0 0.0
  %7957 = vmatprep.subr.mxu0 0.0
  %7958 = vmatpush2.msra.mxu0 0.0
  %7959 = vmatprep.subr.mxu0 0.0
  %7960 = vmatpush2.msra.mxu0 0.0
  %7961 = vmatprep.subr.mxu0 0.0
  %7962 = vmatpush2.msra.mxu0 0.0
  %7963 = vmatprep.subr.mxu0 0.0
  %7964 = vmatpush2.msra.mxu0 0.0
  %7965 = vmatprep.subr.mxu0 0.0
  %7966 = vmatpush2.msra.mxu0 0.0
  %7967 = vmatprep.subr.mxu0 0.0
  %7968 = vmatpush2.msra.mxu0 0.0
  %7969 = vmatprep.subr.mxu0 0.0
  %7970 = vmatpush2.msra.mxu0 0.0
  %7971 = vmatprep.subr.mxu0 0.0
  %7972 = vmatpush2.msra.mxu0 0.0
  %7973 = vmatprep.subr.mxu0 0.0
  %7974 = vmatpush2.msra.mxu0 0.0
  %7975 = vmatprep.subr.mxu0 0.0
  %7976 = vmatpush2.msra.mxu0 0.0
  %7977 = vmatprep.subr.mxu0 0.0
  %7978 = vmatpush2.msra.mxu0 0.0
  %7979 = vmatprep.mubr.f32.mxu0 0.0
  %7980 = vmatmul.mubr.f32.gmra.mxu0 %v7820
  %v7981 = vpop.f32.mrf.mxu0
  %v7982 = vadd.f32 %v7913, %v7981
  %v7983 = vpop.f32.mrf.mxu0
  %7984 = vmatprep.mubr.f32.mxu0 0.0
  %7985 = vmatmul.mubr.f32.gmra.mxu0 %v7823
  %v7986 = vpop.f32.mrf.mxu0
  %v7987 = vadd.f32 %v7913, %v7986
  %v7988 = vpop.f32.mrf.mxu0
  %7989 = vdwg.mxu0
  %7990 = vst.msk [vmem:[%s89] sm:$0xff] %vm313, %v7982
  %vm7991 = vcmask 60416
  %7992 = vst.msk [vmem:[%s89 + $0x8] sm:$0xf] %vm7991, %v7987
  %v7993 = vld [vmem:[%s83] sm:$0xff]
  %v7994 = vld [vmem:[%s83 + $0x8] sm:$0xff]
  %v7995 = vld [vmem:[%s83 + $0x10] sm:$0xff]
  %v7996 = vld [vmem:[%s83 + $0x18] sm:$0xff]
  %v7997 = vld [vmem:[%s85] sm:$0x1]
  %v7999 = vlaneseq
  %v8000 = vshrl.u32 %v7999, 7
  %v8001 = vsub.s32 0, %v8000
  %v8002 = vrot.slane %v7997, %v8001
  %8004 = vmatprep.subr.mxu0 0.0
  %8005 = vmatpush1.msra.mxu0 0.0
  %8006 = vmatprep.subr.mxu0 0.0
  %8007 = vmatpush1.msra.mxu0 0.0
  %8008 = vmatprep.subr.mxu0 0.0
  %8009 = vmatpush1.msra.mxu0 0.0
  %8010 = vmatprep.subr.mxu0 0.0
  %8011 = vmatpush1.msra.mxu0 0.0
  %8012 = vmatprep.subr.mxu0 0.0
  %8013 = vmatpush1.msra.mxu0 0.0
  %8014 = vmatprep.subr.mxu0 0.0
  %8015 = vmatpush1.msra.mxu0 0.0
  %8016 = vmatprep.subr.mxu0 0.0
  %8017 = vmatpush1.msra.mxu0 0.0
  %8018 = vmatprep.subr.mxu0 0.0
  %8019 = vmatpush1.msra.mxu0 0.0
  %8020 = vmatprep.subr.mxu0 0.0
  %8021 = vmatpush1.msra.mxu0 0.0
  %8022 = vmatprep.subr.mxu0 0.0
  %8023 = vmatpush1.msra.mxu0 0.0
  %8024 = vmatprep.subr.mxu0 0.0
  %8025 = vmatpush1.msra.mxu0 0.0
  %8026 = vmatprep.subr.mxu0 0.0
  %8027 = vmatpush1.msra.mxu0 0.0
  %8028 = vmatprep.subr.mxu0 0.0
  %8029 = vmatpush1.msra.mxu0 %v7996
  %8030 = vmatprep.subr.mxu0 0.0
  %8031 = vmatpush1.msra.mxu0 %v7995
  %8032 = vmatprep.subr.mxu0 0.0
  %8033 = vmatpush1.msra.mxu0 %v7994
  %8034 = vmatprep.subr.mxu0 0.0
  %8035 = vmatpush1.msra.mxu0 %v7993
  %8036 = vmatprep.subr.mxu0 0.0
  %8037 = vmatpush2.msra.mxu0 0.0
  %8038 = vmatprep.subr.mxu0 0.0
  %8039 = vmatpush2.msra.mxu0 0.0
  %8040 = vmatprep.subr.mxu0 0.0
  %8041 = vmatpush2.msra.mxu0 0.0
  %8042 = vmatprep.subr.mxu0 0.0
  %8043 = vmatpush2.msra.mxu0 0.0
  %8044 = vmatprep.subr.mxu0 0.0
  %8045 = vmatpush2.msra.mxu0 0.0
  %8046 = vmatprep.subr.mxu0 0.0
  %8047 = vmatpush2.msra.mxu0 0.0
  %8048 = vmatprep.subr.mxu0 0.0
  %8049 = vmatpush2.msra.mxu0 0.0
  %8050 = vmatprep.subr.mxu0 0.0
  %8051 = vmatpush2.msra.mxu0 0.0
  %8052 = vmatprep.subr.mxu0 0.0
  %8053 = vmatpush2.msra.mxu0 0.0
  %8054 = vmatprep.subr.mxu0 0.0
  %8055 = vmatpush2.msra.mxu0 0.0
  %8056 = vmatprep.subr.mxu0 0.0
  %8057 = vmatpush2.msra.mxu0 0.0
  %8058 = vmatprep.subr.mxu0 0.0
  %8059 = vmatpush2.msra.mxu0 0.0
  %8060 = vmatprep.subr.mxu0 0.0
  %8061 = vmatpush2.msra.mxu0 0.0
  %8062 = vmatprep.subr.mxu0 0.0
  %8063 = vmatpush2.msra.mxu0 0.0
  %8064 = vmatprep.subr.mxu0 0.0
  %8065 = vmatpush2.msra.mxu0 0.0
  %8066 = vmatprep.subr.mxu0 0.0
  %8067 = vmatpush2.msra.mxu0 0.0
  %8068 = vmatprep.mubr.f32.mxu0 0.0
  %8069 = vmatmul.mubr.f32.gmra.mxu0 %v7820
  %v8070 = vpop.f32.mrf.mxu0
  %v8071 = vadd.f32 %v8002, %v8070
  %v8072 = vpop.f32.mrf.mxu0
  %8073 = vmatprep.mubr.f32.mxu0 0.0
  %8074 = vmatmul.mubr.f32.gmra.mxu0 %v7823
  %v8075 = vpop.f32.mrf.mxu0
  %v8076 = vadd.f32 %v8002, %v8075
  %v8077 = vpop.f32.mrf.mxu0
  %8078 = vdwg.mxu0
  %8079 = vst.msk [vmem:[%s91] sm:$0xff] %vm1145, %v8071
  %vm8080 = vcmask 191488
  %8081 = vst.msk [vmem:[%s91 + $0x8] sm:$0xf] %vm8080, %v8076
  // Predicated region
  $region174: #{transformer_forward.1} parent=0 // pred_check
    _
  $region175: #{transformer_forward.1} parent=0 // pred_check_branch
    %8083 = sbr.rel (0) target = $region177
  $region176: #{transformer_forward.1} parent=0 // pred_region
    _
  $region177: #{transformer_forward.1} parent=0 // pred_fallthru
    _
  // Predicated region
  $region178: #{transformer_forward.1} parent=0 // pred_check
    _
  $region179: #{transformer_forward.1} parent=0 // pred_check_branch
    %8085 = sbr.rel (0) target = $region181
  $region180: #{transformer_forward.1} parent=0 // pred_region
    _
  $region181: #{transformer_forward.1} parent=0 // pred_fallthru
    _
  // Predicated region
  $region182: #{transformer_forward.1} parent=0 // pred_check
    _
  $region183: #{transformer_forward.1} parent=0 // pred_check_branch
    %8087 = sbr.rel (0) target = $region185
  $region184: #{transformer_forward.1} parent=0 // pred_region
    _
  $region185: #{transformer_forward.1} parent=0 // pred_fallthru
    _
  // Predicated region
  $region186: #{transformer_forward.1} parent=0 // pred_check
    _
  $region187: #{transformer_forward.1} parent=0 // pred_check_branch
    %8089 = sbr.rel (0) target = $region189
  $region188: #{transformer_forward.1} parent=0 // pred_region
    _
  $region189: #{transformer_forward.1} parent=0 // pred_fallthru
    _
  // Predicated region
  $region190: #{transformer_forward.1} parent=0 // pred_check
    _
  $region191: #{transformer_forward.1} parent=0 // pred_check_branch
    %8091 = sbr.rel (0) target = $region193
  $region192: #{transformer_forward.1} parent=0 // pred_region
    _
  $region193: #{transformer_forward.1} parent=0 // pred_fallthru
    _
  // Predicated region
  $region194: #{transformer_forward.1} parent=0 // pred_check
    _
  $region195: #{transformer_forward.1} parent=0 // pred_check_branch
    %8093 = sbr.rel (0) target = $region197
  $region196: #{transformer_forward.1} parent=0 // pred_region
    _
  $region197: #{transformer_forward.1} parent=0 // pred_fallthru
    _
  // Predicated region
  $region198: #{transformer_forward.1} parent=0 // pred_check
    _
  $region199: #{transformer_forward.1} parent=0 // pred_check_branch
    %8095 = sbr.rel (0) target = $region201
  $region200: #{transformer_forward.1} parent=0 // pred_region
    _
  $region201: #{transformer_forward.1} parent=0 // pred_fallthru
    _
  // Predicated region
  $region202: #{transformer_forward.1} parent=0 // pred_check
    _
  $region203: #{transformer_forward.1} parent=0 // pred_check_branch
    %8097 = sbr.rel (0) target = $region205
  $region204: #{transformer_forward.1} parent=0 // pred_region
    _
  $region205: #{transformer_forward.1} parent=0 // pred_fallthru
    _

</llo_original>
